<compile_context>
chip_gen: v5e
topology: v5e:2x2
jax: 0.10.0
libtpu: 0.0.40
codegen_flags: <defaults>
</compile_context>

<pallas_src>
import functools

import numpy as np

import jax
import jax.numpy as jnp
from jax import lax
from jax.experimental import pallas as pl
from jax.experimental.pallas import tpu as pltpu

EXPANSION = 2      # Bottleneck expansion
BN_EPS = 1e-5


# ----------------------------------------------------------------------------
# In-kernel helpers (pure value math on one (H, W, C) image)
# ----------------------------------------------------------------------------
def _maxpool2x2(x):
    """2x2 max pool, stride 2. Row/column pairing via reshape + max (VPU only)."""
    h, w, c = x.shape
    r = x.reshape(h // 2, 2, w, c)
    r = jnp.maximum(r[:, 0], r[:, 1])                 # (h/2, w, c)
    r = r.reshape(h // 2, w // 2, 2, c)
    return jnp.maximum(r[:, :, 0], r[:, :, 1])        # (h/2, w/2, c)


def _upsample2x_add(low, up):
    """up + nearest_upsample_x2(low); broadcast + reshape, no matmul."""
    h, w, c = up.shape
    h2, w2 = h // 2, w // 2
    t = jnp.broadcast_to(low[:, :, None, :], (h2, w2, 2, c)).reshape(h2, w, c)
    t = jnp.broadcast_to(t[:, None, :, :], (h2, 2, w, c)).reshape(h, w, c)
    return up + t


def _conv3x3(t, w_taps, bias):
    """3x3 conv, padding=1, on an (H, W, P) value.

    w_taps: (3, 3P, P) — one (3P, P) matrix per column tap kx, rows ordered
    (ky, cin) with ky major.  bias: (P,) (bn3 already folded in on the host).

    The three row shifts are concatenated on the channel axis (cheap major-axis
    slices) so each column tap is a single K=3P matmul; the +/-1 column shifts are
    applied to the matmul outputs via a flat major-axis shift + edge-column mask
    (no VMEM scratch, no read-modify-write stores).
    """
    h, w, p = t.shape
    m = h * w
    zrow = jnp.zeros((1, w, p), jnp.float32)
    rows_up = jnp.concatenate([zrow, t[:h - 1]], axis=0)      # rows y-1
    rows_dn = jnp.concatenate([t[1:], zrow], axis=0)          # rows y+1
    stack = jnp.concatenate([rows_up, t, rows_dn], axis=-1).reshape(m, 3 * p)

    cs0 = jnp.dot(stack, w_taps[0], preferred_element_type=jnp.float32)
    cs1 = jnp.dot(stack, w_taps[1], preferred_element_type=jnp.float32)
    cs2 = jnp.dot(stack, w_taps[2], preferred_element_type=jnp.float32)

    # out[y, x] = cs0[y, x-1] + cs1[y, x] + cs2[y, x+1]   (zero outside the image)
    zline = jnp.zeros((1, p), jnp.float32)
    sh_r = jnp.concatenate([zline, cs0[:m - 1]], axis=0)      # flat shift by +1
    sh_l = jnp.concatenate([cs2[1:], zline], axis=0)          # flat shift by -1
    col = lax.broadcasted_iota(jnp.int32, (h, w, 1), 1).reshape(m, 1)
    out = (cs1
           + jnp.where(col == 0, 0.0, sh_r)
           + jnp.where(col == w - 1, 0.0, sh_l)
           + bias.reshape(1, p))
    return out.reshape(h, w, p)


# ----------------------------------------------------------------------------
# Fused hourglass kernel (one batch element per grid step)
# ----------------------------------------------------------------------------
def _hourglass_kernel(x_ref, s1_ref, sh1_ref, w1_ref, b1_ref,
                      w2_ref, b2_ref, w3_ref, b3_ref, o_ref,
                      *, depth, num_blocks, block_index):
    planes = w1_ref.shape[-1]

    def bottleneck(x, b):
        h, w, c = x.shape
        m = h * w
        t = jnp.maximum(x * s1_ref[b].reshape(1, 1, c)
                        + sh1_ref[b].reshape(1, 1, c), 0.0)
        t = jnp.dot(t.reshape(m, c), w1_ref[b],
                    preferred_element_type=jnp.float32) + b1_ref[b].reshape(1, planes)
        t = jnp.maximum(t, 0.0).reshape(h, w, planes)          # bn2 folded into w1/b1
        t = _conv3x3(t, w2_ref[b], b2_ref[b])                  # bn3 folded into w2/b2
        t = jnp.maximum(t, 0.0)
        t = jnp.dot(t.reshape(m, planes), w3_ref[b],
                    preferred_element_type=jnp.float32) + b3_ref[b].reshape(1, c)
        return t.reshape(h, w, c) + x

    # TODO(synk): for large num_blocks switch the chain to lax.fori_loop with dynamic
    # param indexing to bound live ranges / compile time; num_blocks is small here.
    def chain(x, level, c):
        for j in range(num_blocks):
            x = bottleneck(x, block_index[(level, c, j)])
        return x

    def hour(nrec, x):
        up1 = chain(x, nrec - 1, 0)
        low1 = _maxpool2x2(x)
        low1 = chain(low1, nrec - 1, 1)
        if nrec > 1:
            low2 = hour(nrec - 1, low1)
        else:
            low2 = chain(low1, 0, 3)
        low3 = chain(low2, nrec - 1, 2)
        return _upsample2x_add(low3, up1)

    o_ref[0] = hour(depth, x_ref[0])


# ----------------------------------------------------------------------------
# Host-side parameter folding / stacking
# ----------------------------------------------------------------------------
def _fold_block(bp):
    """Fold bn2 into conv1, bn3 into conv2; reorder 3x3 weights per column tap."""
    p = bp['w1'].shape[-1]
    w1f = bp['w1'] * bp['s2'][None, :]
    b1f = bp['b1'] * bp['s2'] + bp['sh2']
    w2 = bp['w2'].reshape(3, 3, p, p)                          # (ky, kx, cin, cout)
    w2 = jnp.transpose(w2, (1, 0, 2, 3)).reshape(3, 3 * p, p)  # (kx, ky*cin, cout)
    w2f = w2 * bp['s3'].reshape(1, 1, p)
    b2f = bp['b2'] * bp['s3'] + bp['sh3']
    return dict(s1=bp['s1'], sh1=bp['sh1'], w1=w1f, b1=b1f,
                w2=w2f, b2=b2f, w3=bp['w3'], b3=bp['b3'])


def _stack_params(hg):
    flat, index = [], {}
    for i, chains in enumerate(hg):
        for c, chain in enumerate(chains):
            for j, bp in enumerate(chain):
                index[(i, c, j)] = len(flat)
                flat.append(_fold_block(bp))
    stacked = {k: jnp.stack([blk[k] for blk in flat], axis=0) for k in flat[0]}
    return stacked, index


def hourglass_pallas(x, hg, depth, num_blocks):
    n, h, w, c = x.shape
    assert h % (1 << depth) == 0 and w % (1 << depth) == 0
    stacked, index = _stack_params(hg)

    img_spec = pl.BlockSpec((1, h, w, c), lambda b: (b, 0, 0, 0))

    def whole(arr):                    # full-array block, constant index map
        nd = arr.ndim
        return pl.BlockSpec(arr.shape, lambda b, _nd=nd: (0,) * _nd)

    param_names = ('s1', 'sh1', 'w1', 'b1', 'w2', 'b2', 'w3', 'b3')
    params = [stacked[k] for k in param_names]

    kernel = functools.partial(_hourglass_kernel, depth=depth,
                               num_blocks=num_blocks, block_index=index)
    return pl.pallas_call(
        kernel,
        out_shape=jax.ShapeDtypeStruct((n, h, w, c), jnp.float32),
        grid=(n,),
        in_specs=[img_spec] + [whole(p) for p in params],
        out_specs=img_spec,
        compiler_params=pltpu.CompilerParams(
            dimension_semantics=("parallel",),
            vmem_limit_bytes=64 * 1024 * 1024),
    )(x, *params)


# ----------------------------------------------------------------------------
# Parameters (deterministic synthetic init)
# ----------------------------------------------------------------------------
def init_bottleneck_params(key, planes):
    cin = planes * EXPANSION
    k = jax.random.split(key, 9)

    def bn(kk, ch):
        kg, kb, km, kv = jax.random.split(kk, 4)
        gamma = 1.0 + 0.1 * jax.random.normal(kg, (ch,), jnp.float32)
        beta = 0.1 * jax.random.normal(kb, (ch,), jnp.float32)
        mean = 0.1 * jax.random.normal(km, (ch,), jnp.float32)
        var = 1.0 + 0.1 * jnp.abs(jax.random.normal(kv, (ch,), jnp.float32))
        scale = gamma / jnp.sqrt(var + BN_EPS)
        shift = beta - mean * scale
        return scale, shift

    s1, sh1 = bn(k[0], cin)
    s2, sh2 = bn(k[1], planes)
    s3, sh3 = bn(k[2], planes)
    return dict(
        s1=s1, sh1=sh1,
        w1=0.2 * jax.random.normal(k[3], (cin, planes), jnp.float32),
        b1=0.1 * jax.random.normal(k[4], (planes,), jnp.float32),
        s2=s2, sh2=sh2,
        w2=0.2 * jax.random.normal(k[5], (9, planes, planes), jnp.float32),
        b2=0.1 * jax.random.normal(k[6], (planes,), jnp.float32),
        s3=s3, sh3=sh3,
        w3=0.2 * jax.random.normal(k[7], (planes, cin), jnp.float32),
        b3=0.1 * jax.random.normal(k[8], (cin,), jnp.float32),
    )


def init_hourglass_params(key, num_blocks, planes, depth):
    hg = []
    for i in range(depth):
        n_chains = 4 if i == 0 else 3
        chains = []
        for _ in range(n_chains):
            chain = []
            for _ in range(num_blocks):
                key, sub = jax.random.split(key)
                chain.append(init_bottleneck_params(sub, planes))
            chains.append(chain)
        hg.append(chains)
    return hg


# ----------------------------------------------------------------------------
# Pure-JAX reference (unfolded params) for verification
# ----------------------------------------------------------------------------
def bottleneck_ref(x, p):
    planes = p['w1'].shape[-1]
    t = jnp.maximum(x * p['s1'] + p['sh1'], 0.0)
    t = jnp.einsum('nhwc,cd->nhwd', t, p['w1']) + p['b1']
    t = jnp.maximum(t * p['s2'] + p['sh2'], 0.0)
    t = lax.conv_general_dilated(
        t, p['w2'].reshape(3, 3, planes, planes), window_strides=(1, 1),
        padding=((1, 1), (1, 1)),
        dimension_numbers=('NHWC', 'HWIO', 'NHWC')) + p['b2']
    t = jnp.maximum(t * p['s3'] + p['sh3'], 0.0)
    t = jnp.einsum('nhwc,cd->nhwd', t, p['w3']) + p['b3']
    return t + x


def maxpool_ref(x):
    n, h, w, c = x.shape
    return x.reshape(n, h // 2, 2, w // 2, 2, c).max(axis=(2, 4))


def upsample_add_ref(low, up):
    return up + jnp.repeat(jnp.repeat(low, 2, axis=1), 2, axis=2)


def hourglass_ref(nrec, x, hg):
    def chain(v, blocks):
        for bp in blocks:
            v = bottleneck_ref(v, bp)
        return v
    up1 = chain(x, hg[nrec - 1][0])
    low1 = maxpool_ref(x)
    low1 = chain(low1, hg[nrec - 1][1])
    if nrec > 1:
        low2 = hourglass_ref(nrec - 1, low1, hg)
    else:
        low2 = chain(low1, hg[0][3])
    low3 = chain(low2, hg[nrec - 1][2])
    return upsample_add_ref(low3, up1)


# ----------------------------------------------------------------------------
if __name__ == "__main__":
    num_blocks, planes, depth = 1, 4, 2
    N, H, W = 2, 16, 16
    C = planes * EXPANSION                                   # 8 channels

    key = jax.random.PRNGKey(0)
    kx, kp = jax.random.split(key)

    x_nchw = jax.random.normal(kx, (N, C, H, W), jnp.float32)   # PyTorch layout
    x = jnp.transpose(x_nchw, (0, 2, 3, 1))                     # NHWC for the kernel

    hg = init_hourglass_params(kp, num_blocks, planes, depth)

    fwd = jax.jit(lambda xx, params: hourglass_pallas(xx, params, depth, num_blocks))
    out = jax.block_until_ready(fwd(x, hg))

    ref_fwd = jax.jit(lambda xx, params: hourglass_ref(depth, xx, params))
    ref = jax.block_until_ready(ref_fwd(x, hg))

    np.testing.assert_allclose(np.asarray(out), np.asarray(ref),
                               rtol=1e-3, atol=1e-3)

    out_nchw = jnp.transpose(out, (0, 3, 1, 2))              # back to PyTorch NCHW
    assert out_nchw.shape == (N, C, H, W)
    print("KERNEL_OK")
</pallas_src>

<mosaic_0001>
module attributes {stable_mosaic.version = 11 : i64} {
  func.func @_hourglass_kernel(%arg0: i32, %arg1: memref<1x16x16x8xf32, #tpu.memory_space<vmem>>, %arg2: memref<7x8xf32, #tpu.memory_space<vmem>>, %arg3: memref<7x8xf32, #tpu.memory_space<vmem>>, %arg4: memref<7x8x4xf32, #tpu.memory_space<vmem>>, %arg5: memref<7x4xf32, #tpu.memory_space<vmem>>, %arg6: memref<7x3x12x4xf32, #tpu.memory_space<vmem>>, %arg7: memref<7x4xf32, #tpu.memory_space<vmem>>, %arg8: memref<7x4x8xf32, #tpu.memory_space<vmem>>, %arg9: memref<7x8xf32, #tpu.memory_space<vmem>>, %arg10: memref<1x16x16x8xf32, #tpu.memory_space<vmem>>) attributes {dimension_semantics = [#tpu.dimension_semantics<parallel>], iteration_bounds = array<i64: 2>, scalar_prefetch = 0 : i64, scratch_operands = 0 : i64, tpu.core_type = #tpu.core_type<tc>, window_params = [{transform_indices = @transform_0, window_bounds = array<i64: 1, 16, 16, 8>}, {pipeline_mode = #tpu.pipeline_mode<synchronous>, transform_indices = @transform_1, window_bounds = array<i64: 7, 8>}, {pipeline_mode = #tpu.pipeline_mode<synchronous>, transform_indices = @transform_2, window_bounds = array<i64: 7, 8>}, {pipeline_mode = #tpu.pipeline_mode<synchronous>, transform_indices = @transform_3, window_bounds = array<i64: 7, 8, 4>}, {pipeline_mode = #tpu.pipeline_mode<synchronous>, transform_indices = @transform_4, window_bounds = array<i64: 7, 4>}, {pipeline_mode = #tpu.pipeline_mode<synchronous>, transform_indices = @transform_5, window_bounds = array<i64: 7, 3, 12, 4>}, {pipeline_mode = #tpu.pipeline_mode<synchronous>, transform_indices = @transform_6, window_bounds = array<i64: 7, 4>}, {pipeline_mode = #tpu.pipeline_mode<synchronous>, transform_indices = @transform_7, window_bounds = array<i64: 7, 4, 8>}, {pipeline_mode = #tpu.pipeline_mode<synchronous>, transform_indices = @transform_8, window_bounds = array<i64: 7, 8>}, {transform_indices = @transform_9, window_bounds = array<i64: 1, 16, 16, 8>}]} {
    %c0 = arith.constant 0 : index
    %c0_0 = arith.constant 0 : index
    %c0_1 = arith.constant 0 : index
    %c0_2 = arith.constant 0 : index
    %0 = vector.load %arg1[%c0, %c0_0, %c0_1, %c0_2] : memref<1x16x16x8xf32, #tpu.memory_space<vmem>>, vector<1x16x16x8xf32>
    %1 = vector.shape_cast %0 : vector<1x16x16x8xf32> to vector<16x16x8xf32>
    %c4 = arith.constant 4 : index
    %c0_3 = arith.constant 0 : index
    %2 = vector.load %arg2[%c4, %c0_3] : memref<7x8xf32, #tpu.memory_space<vmem>>, vector<1x8xf32>
    %3 = vector.shape_cast %2 : vector<1x8xf32> to vector<8xf32>
    %4 = vector.shape_cast %3 : vector<8xf32> to vector<1x1x8xf32>
    %5 = vector.broadcast %4 : vector<1x1x8xf32> to vector<16x16x8xf32>
    %6 = arith.mulf %1, %5 : vector<16x16x8xf32>
    %c4_4 = arith.constant 4 : index
    %c0_5 = arith.constant 0 : index
    %7 = vector.load %arg3[%c4_4, %c0_5] : memref<7x8xf32, #tpu.memory_space<vmem>>, vector<1x8xf32>
    %8 = vector.shape_cast %7 : vector<1x8xf32> to vector<8xf32>
    %9 = vector.shape_cast %8 : vector<8xf32> to vector<1x1x8xf32>
    %10 = vector.broadcast %9 : vector<1x1x8xf32> to vector<16x16x8xf32>
    %11 = arith.addf %6, %10 : vector<16x16x8xf32>
    %cst = arith.constant 0.000000e+00 : f32
    %12 = vector.broadcast %cst : f32 to vector<16x16x8xf32>
    %13 = arith.maximumf %11, %12 : vector<16x16x8xf32>
    %14 = vector.shape_cast %13 : vector<16x16x8xf32> to vector<256x8xf32>
    %c4_6 = arith.constant 4 : index
    %c0_7 = arith.constant 0 : index
    %c0_8 = arith.constant 0 : index
    %15 = vector.load %arg4[%c4_6, %c0_7, %c0_8] : memref<7x8x4xf32, #tpu.memory_space<vmem>>, vector<1x8x4xf32>
    %16 = vector.shape_cast %15 : vector<1x8x4xf32> to vector<8x4xf32>
    %cst_9 = arith.constant dense<0.000000e+00> : vector<256x4xf32>
    %17 = tpu.matmul %14, %16, %cst_9 {dimension_numbers = #tpu.dot_dimension_numbers<[1], [0], [0], [1], [0, 0, 1, 1], [], []>} : vector<256x8xf32>, vector<8x4xf32>, vector<256x4xf32> -> vector<256x4xf32>
    %c4_10 = arith.constant 4 : index
    %c0_11 = arith.constant 0 : index
    %18 = vector.load %arg5[%c4_10, %c0_11] : memref<7x4xf32, #tpu.memory_space<vmem>>, vector<1x4xf32>
    %19 = vector.shape_cast %18 : vector<1x4xf32> to vector<4xf32>
    %20 = vector.shape_cast %19 : vector<4xf32> to vector<1x4xf32>
    %21 = vector.broadcast %20 : vector<1x4xf32> to vector<256x4xf32>
    %22 = arith.addf %17, %21 : vector<256x4xf32>
    %cst_12 = arith.constant 0.000000e+00 : f32
    %23 = vector.broadcast %cst_12 : f32 to vector<256x4xf32>
    %24 = arith.maximumf %22, %23 : vector<256x4xf32>
    %25 = vector.shape_cast %24 : vector<256x4xf32> to vector<16x16x4xf32>
    %c4_13 = arith.constant 4 : index
    %c0_14 = arith.constant 0 : index
    %c0_15 = arith.constant 0 : index
    %c0_16 = arith.constant 0 : index
    %26 = vector.load %arg6[%c4_13, %c0_14, %c0_15, %c0_16] : memref<7x3x12x4xf32, #tpu.memory_space<vmem>>, vector<1x3x12x4xf32>
    %27 = vector.shape_cast %26 : vector<1x3x12x4xf32> to vector<3x12x4xf32>
    %c4_17 = arith.constant 4 : index
    %c0_18 = arith.constant 0 : index
    %28 = vector.load %arg7[%c4_17, %c0_18] : memref<7x4xf32, #tpu.memory_space<vmem>>, vector<1x4xf32>
    %29 = vector.shape_cast %28 : vector<1x4xf32> to vector<4xf32>
    %cst_19 = arith.constant 0.000000e+00 : f32
    %30 = vector.broadcast %cst_19 : f32 to vector<1x16x4xf32>
    %31 = vector.extract_strided_slice %25 {offsets = [0, 0, 0], sizes = [15, 16, 4], strides = [1, 1, 1]} : vector<16x16x4xf32> to vector<15x16x4xf32>
    %32 = tpu.concatenate %30, %31 in 0 : vector<1x16x4xf32>, vector<15x16x4xf32> -> vector<16x16x4xf32>
    %33 = vector.extract_strided_slice %25 {offsets = [1, 0, 0], sizes = [15, 16, 4], strides = [1, 1, 1]} : vector<16x16x4xf32> to vector<15x16x4xf32>
    %34 = tpu.concatenate %33, %30 in 0 : vector<15x16x4xf32>, vector<1x16x4xf32> -> vector<16x16x4xf32>
    %35 = tpu.concatenate %32, %25, %34 in 2 : vector<16x16x4xf32>, vector<16x16x4xf32>, vector<16x16x4xf32> -> vector<16x16x12xf32>
    %36 = vector.shape_cast %35 : vector<16x16x12xf32> to vector<256x12xf32>
    %37 = vector.extract_strided_slice %27 {offsets = [0, 0, 0], sizes = [1, 12, 4], strides = [1, 1, 1]} : vector<3x12x4xf32> to vector<1x12x4xf32>
    %38 = vector.shape_cast %37 : vector<1x12x4xf32> to vector<12x4xf32>
    %cst_20 = arith.constant dense<0.000000e+00> : vector<256x4xf32>
    %39 = tpu.matmul %36, %38, %cst_20 {dimension_numbers = #tpu.dot_dimension_numbers<[1], [0], [0], [1], [0, 0, 1, 1], [], []>} : vector<256x12xf32>, vector<12x4xf32>, vector<256x4xf32> -> vector<256x4xf32>
    %40 = vector.extract_strided_slice %27 {offsets = [1, 0, 0], sizes = [1, 12, 4], strides = [1, 1, 1]} : vector<3x12x4xf32> to vector<1x12x4xf32>
    %41 = vector.shape_cast %40 : vector<1x12x4xf32> to vector<12x4xf32>
    %cst_21 = arith.constant dense<0.000000e+00> : vector<256x4xf32>
    %42 = tpu.matmul %36, %41, %cst_21 {dimension_numbers = #tpu.dot_dimension_numbers<[1], [0], [0], [1], [0, 0, 1, 1], [], []>} : vector<256x12xf32>, vector<12x4xf32>, vector<256x4xf32> -> vector<256x4xf32>
    %43 = vector.extract_strided_slice %27 {offsets = [2, 0, 0], sizes = [1, 12, 4], strides = [1, 1, 1]} : vector<3x12x4xf32> to vector<1x12x4xf32>
    %44 = vector.shape_cast %43 : vector<1x12x4xf32> to vector<12x4xf32>
    %cst_22 = arith.constant dense<0.000000e+00> : vector<256x4xf32>
    %45 = tpu.matmul %36, %44, %cst_22 {dimension_numbers = #tpu.dot_dimension_numbers<[1], [0], [0], [1], [0, 0, 1, 1], [], []>} : vector<256x12xf32>, vector<12x4xf32>, vector<256x4xf32> -> vector<256x4xf32>
    %cst_23 = arith.constant 0.000000e+00 : f32
    %46 = vector.broadcast %cst_23 : f32 to vector<1x4xf32>
    %47 = vector.extract_strided_slice %39 {offsets = [0, 0], sizes = [255, 4], strides = [1, 1]} : vector<256x4xf32> to vector<255x4xf32>
    %48 = tpu.concatenate %46, %47 in 0 : vector<1x4xf32>, vector<255x4xf32> -> vector<256x4xf32>
    %49 = vector.extract_strided_slice %45 {offsets = [1, 0], sizes = [255, 4], strides = [1, 1]} : vector<256x4xf32> to vector<255x4xf32>
    %50 = tpu.concatenate %49, %46 in 0 : vector<255x4xf32>, vector<1x4xf32> -> vector<256x4xf32>
    %51 = tpu.iota {dimensions = array<i32: 1>} : vector<16x16x1xi32>
    %52 = vector.shape_cast %51 : vector<16x16x1xi32> to vector<256x1xi32>
    %c0_i32 = arith.constant 0 : i32
    %53 = vector.broadcast %c0_i32 : i32 to vector<256x1xi32>
    %54 = arith.cmpi eq, %52, %53 : vector<256x1xi32>
    %cst_24 = arith.constant 0.000000e+00 : f32
    %55 = vector.shape_cast %54 : vector<256x1xi1> to vector<256x1xi1>
    %56 = vector.broadcast %55 : vector<256x1xi1> to vector<256x4xi1>
    %57 = vector.broadcast %cst_24 : f32 to vector<256x4xf32>
    %58 = arith.select %56, %57, %48 : vector<256x4xi1>, vector<256x4xf32>
    %59 = arith.addf %42, %58 : vector<256x4xf32>
    %c15_i32 = arith.constant 15 : i32
    %60 = vector.broadcast %c15_i32 : i32 to vector<256x1xi32>
    %61 = arith.cmpi eq, %52, %60 : vector<256x1xi32>
    %cst_25 = arith.constant 0.000000e+00 : f32
    %62 = vector.shape_cast %61 : vector<256x1xi1> to vector<256x1xi1>
    %63 = vector.broadcast %62 : vector<256x1xi1> to vector<256x4xi1>
    %64 = vector.broadcast %cst_25 : f32 to vector<256x4xf32>
    %65 = arith.select %63, %64, %50 : vector<256x4xi1>, vector<256x4xf32>
    %66 = arith.addf %59, %65 : vector<256x4xf32>
    %67 = vector.shape_cast %29 : vector<4xf32> to vector<1x4xf32>
    %68 = vector.broadcast %67 : vector<1x4xf32> to vector<256x4xf32>
    %69 = arith.addf %66, %68 : vector<256x4xf32>
    %70 = vector.shape_cast %69 : vector<256x4xf32> to vector<16x16x4xf32>
    %cst_26 = arith.constant 0.000000e+00 : f32
    %71 = vector.broadcast %cst_26 : f32 to vector<16x16x4xf32>
    %72 = arith.maximumf %70, %71 : vector<16x16x4xf32>
    %73 = vector.shape_cast %72 : vector<16x16x4xf32> to vector<256x4xf32>
    %c4_27 = arith.constant 4 : index
    %c0_28 = arith.constant 0 : index
    %c0_29 = arith.constant 0 : index
    %74 = vector.load %arg8[%c4_27, %c0_28, %c0_29] : memref<7x4x8xf32, #tpu.memory_space<vmem>>, vector<1x4x8xf32>
    %75 = vector.shape_cast %74 : vector<1x4x8xf32> to vector<4x8xf32>
    %cst_30 = arith.constant dense<0.000000e+00> : vector<256x8xf32>
    %76 = tpu.matmul %73, %75, %cst_30 {dimension_numbers = #tpu.dot_dimension_numbers<[1], [0], [0], [1], [0, 0, 1, 1], [], []>} : vector<256x4xf32>, vector<4x8xf32>, vector<256x8xf32> -> vector<256x8xf32>
    %c4_31 = arith.constant 4 : index
    %c0_32 = arith.constant 0 : index
    %77 = vector.load %arg9[%c4_31, %c0_32] : memref<7x8xf32, #tpu.memory_space<vmem>>, vector<1x8xf32>
    %78 = vector.shape_cast %77 : vector<1x8xf32> to vector<8xf32>
    %79 = vector.shape_cast %78 : vector<8xf32> to vector<1x8xf32>
    %80 = vector.broadcast %79 : vector<1x8xf32> to vector<256x8xf32>
    %81 = arith.addf %76, %80 : vector<256x8xf32>
    %82 = vector.shape_cast %81 : vector<256x8xf32> to vector<16x16x8xf32>
    %83 = arith.addf %82, %1 : vector<16x16x8xf32>
    %84 = vector.shape_cast %1 : vector<16x16x8xf32> to vector<8x2x16x8xf32>
    %85 = vector.extract_strided_slice %84 {offsets = [0, 0, 0, 0], sizes = [8, 1, 16, 8], strides = [1, 1, 1, 1]} : vector<8x2x16x8xf32> to vector<8x1x16x8xf32>
    %86 = vector.shape_cast %85 : vector<8x1x16x8xf32> to vector<8x16x8xf32>
    %87 = vector.extract_strided_slice %84 {offsets = [0, 1, 0, 0], sizes = [8, 1, 16, 8], strides = [1, 1, 1, 1]} : vector<8x2x16x8xf32> to vector<8x1x16x8xf32>
    %88 = vector.shape_cast %87 : vector<8x1x16x8xf32> to vector<8x16x8xf32>
    %89 = arith.maximumf %86, %88 : vector<8x16x8xf32>
    %90 = vector.shape_cast %89 : vector<8x16x8xf32> to vector<8x8x2x8xf32>
    %91 = vector.extract_strided_slice %90 {offsets = [0, 0, 0, 0], sizes = [8, 8, 1, 8], strides = [1, 1, 1, 1]} : vector<8x8x2x8xf32> to vector<8x8x1x8xf32>
    %92 = vector.shape_cast %91 : vector<8x8x1x8xf32> to vector<8x8x8xf32>
    %93 = vector.extract_strided_slice %90 {offsets = [0, 0, 1, 0], sizes = [8, 8, 1, 8], strides = [1, 1, 1, 1]} : vector<8x8x2x8xf32> to vector<8x8x1x8xf32>
    %94 = vector.shape_cast %93 : vector<8x8x1x8xf32> to vector<8x8x8xf32>
    %95 = arith.maximumf %92, %94 : vector<8x8x8xf32>
    %c5 = arith.constant 5 : index
    %c0_33 = arith.constant 0 : index
    %96 = vector.load %arg2[%c5, %c0_33] : memref<7x8xf32, #tpu.memory_space<vmem>>, vector<1x8xf32>
    %97 = vector.shape_cast %96 : vector<1x8xf32> to vector<8xf32>
    %98 = vector.shape_cast %97 : vector<8xf32> to vector<1x1x8xf32>
    %99 = vector.broadcast %98 : vector<1x1x8xf32> to vector<8x8x8xf32>
    %100 = arith.mulf %95, %99 : vector<8x8x8xf32>
    %c5_34 = arith.constant 5 : index
    %c0_35 = arith.constant 0 : index
    %101 = vector.load %arg3[%c5_34, %c0_35] : memref<7x8xf32, #tpu.memory_space<vmem>>, vector<1x8xf32>
    %102 = vector.shape_cast %101 : vector<1x8xf32> to vector<8xf32>
    %103 = vector.shape_cast %102 : vector<8xf32> to vector<1x1x8xf32>
    %104 = vector.broadcast %103 : vector<1x1x8xf32> to vector<8x8x8xf32>
    %105 = arith.addf %100, %104 : vector<8x8x8xf32>
    %cst_36 = arith.constant 0.000000e+00 : f32
    %106 = vector.broadcast %cst_36 : f32 to vector<8x8x8xf32>
    %107 = arith.maximumf %105, %106 : vector<8x8x8xf32>
    %108 = vector.shape_cast %107 : vector<8x8x8xf32> to vector<64x8xf32>
    %c5_37 = arith.constant 5 : index
    %c0_38 = arith.constant 0 : index
    %c0_39 = arith.constant 0 : index
    %109 = vector.load %arg4[%c5_37, %c0_38, %c0_39] : memref<7x8x4xf32, #tpu.memory_space<vmem>>, vector<1x8x4xf32>
    %110 = vector.shape_cast %109 : vector<1x8x4xf32> to vector<8x4xf32>
    %cst_40 = arith.constant dense<0.000000e+00> : vector<64x4xf32>
    %111 = tpu.matmul %108, %110, %cst_40 {dimension_numbers = #tpu.dot_dimension_numbers<[1], [0], [0], [1], [0, 0, 1, 1], [], []>} : vector<64x8xf32>, vector<8x4xf32>, vector<64x4xf32> -> vector<64x4xf32>
    %c5_41 = arith.constant 5 : index
    %c0_42 = arith.constant 0 : index
    %112 = vector.load %arg5[%c5_41, %c0_42] : memref<7x4xf32, #tpu.memory_space<vmem>>, vector<1x4xf32>
    %113 = vector.shape_cast %112 : vector<1x4xf32> to vector<4xf32>
    %114 = vector.shape_cast %113 : vector<4xf32> to vector<1x4xf32>
    %115 = vector.broadcast %114 : vector<1x4xf32> to vector<64x4xf32>
    %116 = arith.addf %111, %115 : vector<64x4xf32>
    %cst_43 = arith.constant 0.000000e+00 : f32
    %117 = vector.broadcast %cst_43 : f32 to vector<64x4xf32>
    %118 = arith.maximumf %116, %117 : vector<64x4xf32>
    %119 = vector.shape_cast %118 : vector<64x4xf32> to vector<8x8x4xf32>
    %c5_44 = arith.constant 5 : index
    %c0_45 = arith.constant 0 : index
    %c0_46 = arith.constant 0 : index
    %c0_47 = arith.constant 0 : index
    %120 = vector.load %arg6[%c5_44, %c0_45, %c0_46, %c0_47] : memref<7x3x12x4xf32, #tpu.memory_space<vmem>>, vector<1x3x12x4xf32>
    %121 = vector.shape_cast %120 : vector<1x3x12x4xf32> to vector<3x12x4xf32>
    %c5_48 = arith.constant 5 : index
    %c0_49 = arith.constant 0 : index
    %122 = vector.load %arg7[%c5_48, %c0_49] : memref<7x4xf32, #tpu.memory_space<vmem>>, vector<1x4xf32>
    %123 = vector.shape_cast %122 : vector<1x4xf32> to vector<4xf32>
    %cst_50 = arith.constant 0.000000e+00 : f32
    %124 = vector.broadcast %cst_50 : f32 to vector<1x8x4xf32>
    %125 = vector.extract_strided_slice %119 {offsets = [0, 0, 0], sizes = [7, 8, 4], strides = [1, 1, 1]} : vector<8x8x4xf32> to vector<7x8x4xf32>
    %126 = tpu.concatenate %124, %125 in 0 : vector<1x8x4xf32>, vector<7x8x4xf32> -> vector<8x8x4xf32>
    %127 = vector.extract_strided_slice %119 {offsets = [1, 0, 0], sizes = [7, 8, 4], strides = [1, 1, 1]} : vector<8x8x4xf32> to vector<7x8x4xf32>
    %128 = tpu.concatenate %127, %124 in 0 : vector<7x8x4xf32>, vector<1x8x4xf32> -> vector<8x8x4xf32>
    %129 = tpu.concatenate %126, %119, %128 in 2 : vector<8x8x4xf32>, vector<8x8x4xf32>, vector<8x8x4xf32> -> vector<8x8x12xf32>
    %130 = vector.shape_cast %129 : vector<8x8x12xf32> to vector<64x12xf32>
    %131 = vector.extract_strided_slice %121 {offsets = [0, 0, 0], sizes = [1, 12, 4], strides = [1, 1, 1]} : vector<3x12x4xf32> to vector<1x12x4xf32>
    %132 = vector.shape_cast %131 : vector<1x12x4xf32> to vector<12x4xf32>
    %cst_51 = arith.constant dense<0.000000e+00> : vector<64x4xf32>
    %133 = tpu.matmul %130, %132, %cst_51 {dimension_numbers = #tpu.dot_dimension_numbers<[1], [0], [0], [1], [0, 0, 1, 1], [], []>} : vector<64x12xf32>, vector<12x4xf32>, vector<64x4xf32> -> vector<64x4xf32>
    %134 = vector.extract_strided_slice %121 {offsets = [1, 0, 0], sizes = [1, 12, 4], strides = [1, 1, 1]} : vector<3x12x4xf32> to vector<1x12x4xf32>
    %135 = vector.shape_cast %134 : vector<1x12x4xf32> to vector<12x4xf32>
    %cst_52 = arith.constant dense<0.000000e+00> : vector<64x4xf32>
    %136 = tpu.matmul %130, %135, %cst_52 {dimension_numbers = #tpu.dot_dimension_numbers<[1], [0], [0], [1], [0, 0, 1, 1], [], []>} : vector<64x12xf32>, vector<12x4xf32>, vector<64x4xf32> -> vector<64x4xf32>
    %137 = vector.extract_strided_slice %121 {offsets = [2, 0, 0], sizes = [1, 12, 4], strides = [1, 1, 1]} : vector<3x12x4xf32> to vector<1x12x4xf32>
    %138 = vector.shape_cast %137 : vector<1x12x4xf32> to vector<12x4xf32>
    %cst_53 = arith.constant dense<0.000000e+00> : vector<64x4xf32>
    %139 = tpu.matmul %130, %138, %cst_53 {dimension_numbers = #tpu.dot_dimension_numbers<[1], [0], [0], [1], [0, 0, 1, 1], [], []>} : vector<64x12xf32>, vector<12x4xf32>, vector<64x4xf32> -> vector<64x4xf32>
    %cst_54 = arith.constant 0.000000e+00 : f32
    %140 = vector.broadcast %cst_54 : f32 to vector<1x4xf32>
    %141 = vector.extract_strided_slice %133 {offsets = [0, 0], sizes = [63, 4], strides = [1, 1]} : vector<64x4xf32> to vector<63x4xf32>
    %142 = tpu.concatenate %140, %141 in 0 : vector<1x4xf32>, vector<63x4xf32> -> vector<64x4xf32>
    %143 = vector.extract_strided_slice %139 {offsets = [1, 0], sizes = [63, 4], strides = [1, 1]} : vector<64x4xf32> to vector<63x4xf32>
    %144 = tpu.concatenate %143, %140 in 0 : vector<63x4xf32>, vector<1x4xf32> -> vector<64x4xf32>
    %145 = tpu.iota {dimensions = array<i32: 1>} : vector<8x8x1xi32>
    %146 = vector.shape_cast %145 : vector<8x8x1xi32> to vector<64x1xi32>
    %c0_i32_55 = arith.constant 0 : i32
    %147 = vector.broadcast %c0_i32_55 : i32 to vector<64x1xi32>
    %148 = arith.cmpi eq, %146, %147 : vector<64x1xi32>
    %cst_56 = arith.constant 0.000000e+00 : f32
    %149 = vector.shape_cast %148 : vector<64x1xi1> to vector<64x1xi1>
    %150 = vector.broadcast %149 : vector<64x1xi1> to vector<64x4xi1>
    %151 = vector.broadcast %cst_56 : f32 to vector<64x4xf32>
    %152 = arith.select %150, %151, %142 : vector<64x4xi1>, vector<64x4xf32>
    %153 = arith.addf %136, %152 : vector<64x4xf32>
    %c7_i32 = arith.constant 7 : i32
    %154 = vector.broadcast %c7_i32 : i32 to vector<64x1xi32>
    %155 = arith.cmpi eq, %146, %154 : vector<64x1xi32>
    %cst_57 = arith.constant 0.000000e+00 : f32
    %156 = vector.shape_cast %155 : vector<64x1xi1> to vector<64x1xi1>
    %157 = vector.broadcast %156 : vector<64x1xi1> to vector<64x4xi1>
    %158 = vector.broadcast %cst_57 : f32 to vector<64x4xf32>
    %159 = arith.select %157, %158, %144 : vector<64x4xi1>, vector<64x4xf32>
    %160 = arith.addf %153, %159 : vector<64x4xf32>
    %161 = vector.shape_cast %123 : vector<4xf32> to vector<1x4xf32>
    %162 = vector.broadcast %161 : vector<1x4xf32> to vector<64x4xf32>
    %163 = arith.addf %160, %162 : vector<64x4xf32>
    %164 = vector.shape_cast %163 : vector<64x4xf32> to vector<8x8x4xf32>
    %cst_58 = arith.constant 0.000000e+00 : f32
    %165 = vector.broadcast %cst_58 : f32 to vector<8x8x4xf32>
    %166 = arith.maximumf %164, %165 : vector<8x8x4xf32>
    %167 = vector.shape_cast %166 : vector<8x8x4xf32> to vector<64x4xf32>
    %c5_59 = arith.constant 5 : index
    %c0_60 = arith.constant 0 : index
    %c0_61 = arith.constant 0 : index
    %168 = vector.load %arg8[%c5_59, %c0_60, %c0_61] : memref<7x4x8xf32, #tpu.memory_space<vmem>>, vector<1x4x8xf32>
    %169 = vector.shape_cast %168 : vector<1x4x8xf32> to vector<4x8xf32>
    %cst_62 = arith.constant dense<0.000000e+00> : vector<64x8xf32>
    %170 = tpu.matmul %167, %169, %cst_62 {dimension_numbers = #tpu.dot_dimension_numbers<[1], [0], [0], [1], [0, 0, 1, 1], [], []>} : vector<64x4xf32>, vector<4x8xf32>, vector<64x8xf32> -> vector<64x8xf32>
    %c5_63 = arith.constant 5 : index
    %c0_64 = arith.constant 0 : index
    %171 = vector.load %arg9[%c5_63, %c0_64] : memref<7x8xf32, #tpu.memory_space<vmem>>, vector<1x8xf32>
    %172 = vector.shape_cast %171 : vector<1x8xf32> to vector<8xf32>
    %173 = vector.shape_cast %172 : vector<8xf32> to vector<1x8xf32>
    %174 = vector.broadcast %173 : vector<1x8xf32> to vector<64x8xf32>
    %175 = arith.addf %170, %174 : vector<64x8xf32>
    %176 = vector.shape_cast %175 : vector<64x8xf32> to vector<8x8x8xf32>
    %177 = arith.addf %176, %95 : vector<8x8x8xf32>
    %c0_65 = arith.constant 0 : index
    %c0_66 = arith.constant 0 : index
    %178 = vector.load %arg2[%c0_65, %c0_66] : memref<7x8xf32, #tpu.memory_space<vmem>>, vector<1x8xf32>
    %179 = vector.shape_cast %178 : vector<1x8xf32> to vector<8xf32>
    %180 = vector.shape_cast %179 : vector<8xf32> to vector<1x1x8xf32>
    %181 = vector.broadcast %180 : vector<1x1x8xf32> to vector<8x8x8xf32>
    %182 = arith.mulf %177, %181 : vector<8x8x8xf32>
    %c0_67 = arith.constant 0 : index
    %c0_68 = arith.constant 0 : index
    %183 = vector.load %arg3[%c0_67, %c0_68] : memref<7x8xf32, #tpu.memory_space<vmem>>, vector<1x8xf32>
    %184 = vector.shape_cast %183 : vector<1x8xf32> to vector<8xf32>
    %185 = vector.shape_cast %184 : vector<8xf32> to vector<1x1x8xf32>
    %186 = vector.broadcast %185 : vector<1x1x8xf32> to vector<8x8x8xf32>
    %187 = arith.addf %182, %186 : vector<8x8x8xf32>
    %cst_69 = arith.constant 0.000000e+00 : f32
    %188 = vector.broadcast %cst_69 : f32 to vector<8x8x8xf32>
    %189 = arith.maximumf %187, %188 : vector<8x8x8xf32>
    %190 = vector.shape_cast %189 : vector<8x8x8xf32> to vector<64x8xf32>
    %c0_70 = arith.constant 0 : index
    %c0_71 = arith.constant 0 : index
    %c0_72 = arith.constant 0 : index
    %191 = vector.load %arg4[%c0_70, %c0_71, %c0_72] : memref<7x8x4xf32, #tpu.memory_space<vmem>>, vector<1x8x4xf32>
    %192 = vector.shape_cast %191 : vector<1x8x4xf32> to vector<8x4xf32>
    %cst_73 = arith.constant dense<0.000000e+00> : vector<64x4xf32>
    %193 = tpu.matmul %190, %192, %cst_73 {dimension_numbers = #tpu.dot_dimension_numbers<[1], [0], [0], [1], [0, 0, 1, 1], [], []>} : vector<64x8xf32>, vector<8x4xf32>, vector<64x4xf32> -> vector<64x4xf32>
    %c0_74 = arith.constant 0 : index
    %c0_75 = arith.constant 0 : index
    %194 = vector.load %arg5[%c0_74, %c0_75] : memref<7x4xf32, #tpu.memory_space<vmem>>, vector<1x4xf32>
    %195 = vector.shape_cast %194 : vector<1x4xf32> to vector<4xf32>
    %196 = vector.shape_cast %195 : vector<4xf32> to vector<1x4xf32>
    %197 = vector.broadcast %196 : vector<1x4xf32> to vector<64x4xf32>
    %198 = arith.addf %193, %197 : vector<64x4xf32>
    %cst_76 = arith.constant 0.000000e+00 : f32
    %199 = vector.broadcast %cst_76 : f32 to vector<64x4xf32>
    %200 = arith.maximumf %198, %199 : vector<64x4xf32>
    %201 = vector.shape_cast %200 : vector<64x4xf32> to vector<8x8x4xf32>
    %c0_77 = arith.constant 0 : index
    %c0_78 = arith.constant 0 : index
    %c0_79 = arith.constant 0 : index
    %c0_80 = arith.constant 0 : index
    %202 = vector.load %arg6[%c0_77, %c0_78, %c0_79, %c0_80] : memref<7x3x12x4xf32, #tpu.memory_space<vmem>>, vector<1x3x12x4xf32>
    %203 = vector.shape_cast %202 : vector<1x3x12x4xf32> to vector<3x12x4xf32>
    %c0_81 = arith.constant 0 : index
    %c0_82 = arith.constant 0 : index
    %204 = vector.load %arg7[%c0_81, %c0_82] : memref<7x4xf32, #tpu.memory_space<vmem>>, vector<1x4xf32>
    %205 = vector.shape_cast %204 : vector<1x4xf32> to vector<4xf32>
    %cst_83 = arith.constant 0.000000e+00 : f32
    %206 = vector.broadcast %cst_83 : f32 to vector<1x8x4xf32>
    %207 = vector.extract_strided_slice %201 {offsets = [0, 0, 0], sizes = [7, 8, 4], strides = [1, 1, 1]} : vector<8x8x4xf32> to vector<7x8x4xf32>
    %208 = tpu.concatenate %206, %207 in 0 : vector<1x8x4xf32>, vector<7x8x4xf32> -> vector<8x8x4xf32>
    %209 = vector.extract_strided_slice %201 {offsets = [1, 0, 0], sizes = [7, 8, 4], strides = [1, 1, 1]} : vector<8x8x4xf32> to vector<7x8x4xf32>
    %210 = tpu.concatenate %209, %206 in 0 : vector<7x8x4xf32>, vector<1x8x4xf32> -> vector<8x8x4xf32>
    %211 = tpu.concatenate %208, %201, %210 in 2 : vector<8x8x4xf32>, vector<8x8x4xf32>, vector<8x8x4xf32> -> vector<8x8x12xf32>
    %212 = vector.shape_cast %211 : vector<8x8x12xf32> to vector<64x12xf32>
    %213 = vector.extract_strided_slice %203 {offsets = [0, 0, 0], sizes = [1, 12, 4], strides = [1, 1, 1]} : vector<3x12x4xf32> to vector<1x12x4xf32>
    %214 = vector.shape_cast %213 : vector<1x12x4xf32> to vector<12x4xf32>
    %cst_84 = arith.constant dense<0.000000e+00> : vector<64x4xf32>
    %215 = tpu.matmul %212, %214, %cst_84 {dimension_numbers = #tpu.dot_dimension_numbers<[1], [0], [0], [1], [0, 0, 1, 1], [], []>} : vector<64x12xf32>, vector<12x4xf32>, vector<64x4xf32> -> vector<64x4xf32>
    %216 = vector.extract_strided_slice %203 {offsets = [1, 0, 0], sizes = [1, 12, 4], strides = [1, 1, 1]} : vector<3x12x4xf32> to vector<1x12x4xf32>
    %217 = vector.shape_cast %216 : vector<1x12x4xf32> to vector<12x4xf32>
    %cst_85 = arith.constant dense<0.000000e+00> : vector<64x4xf32>
    %218 = tpu.matmul %212, %217, %cst_85 {dimension_numbers = #tpu.dot_dimension_numbers<[1], [0], [0], [1], [0, 0, 1, 1], [], []>} : vector<64x12xf32>, vector<12x4xf32>, vector<64x4xf32> -> vector<64x4xf32>
    %219 = vector.extract_strided_slice %203 {offsets = [2, 0, 0], sizes = [1, 12, 4], strides = [1, 1, 1]} : vector<3x12x4xf32> to vector<1x12x4xf32>
    %220 = vector.shape_cast %219 : vector<1x12x4xf32> to vector<12x4xf32>
    %cst_86 = arith.constant dense<0.000000e+00> : vector<64x4xf32>
    %221 = tpu.matmul %212, %220, %cst_86 {dimension_numbers = #tpu.dot_dimension_numbers<[1], [0], [0], [1], [0, 0, 1, 1], [], []>} : vector<64x12xf32>, vector<12x4xf32>, vector<64x4xf32> -> vector<64x4xf32>
    %cst_87 = arith.constant 0.000000e+00 : f32
    %222 = vector.broadcast %cst_87 : f32 to vector<1x4xf32>
    %223 = vector.extract_strided_slice %215 {offsets = [0, 0], sizes = [63, 4], strides = [1, 1]} : vector<64x4xf32> to vector<63x4xf32>
    %224 = tpu.concatenate %222, %223 in 0 : vector<1x4xf32>, vector<63x4xf32> -> vector<64x4xf32>
    %225 = vector.extract_strided_slice %221 {offsets = [1, 0], sizes = [63, 4], strides = [1, 1]} : vector<64x4xf32> to vector<63x4xf32>
    %226 = tpu.concatenate %225, %222 in 0 : vector<63x4xf32>, vector<1x4xf32> -> vector<64x4xf32>
    %227 = tpu.iota {dimensions = array<i32: 1>} : vector<8x8x1xi32>
    %228 = vector.shape_cast %227 : vector<8x8x1xi32> to vector<64x1xi32>
    %c0_i32_88 = arith.constant 0 : i32
    %229 = vector.broadcast %c0_i32_88 : i32 to vector<64x1xi32>
    %230 = arith.cmpi eq, %228, %229 : vector<64x1xi32>
    %cst_89 = arith.constant 0.000000e+00 : f32
    %231 = vector.shape_cast %230 : vector<64x1xi1> to vector<64x1xi1>
    %232 = vector.broadcast %231 : vector<64x1xi1> to vector<64x4xi1>
    %233 = vector.broadcast %cst_89 : f32 to vector<64x4xf32>
    %234 = arith.select %232, %233, %224 : vector<64x4xi1>, vector<64x4xf32>
    %235 = arith.addf %218, %234 : vector<64x4xf32>
    %c7_i32_90 = arith.constant 7 : i32
    %236 = vector.broadcast %c7_i32_90 : i32 to vector<64x1xi32>
    %237 = arith.cmpi eq, %228, %236 : vector<64x1xi32>
    %cst_91 = arith.constant 0.000000e+00 : f32
    %238 = vector.shape_cast %237 : vector<64x1xi1> to vector<64x1xi1>
    %239 = vector.broadcast %238 : vector<64x1xi1> to vector<64x4xi1>
    %240 = vector.broadcast %cst_91 : f32 to vector<64x4xf32>
    %241 = arith.select %239, %240, %226 : vector<64x4xi1>, vector<64x4xf32>
    %242 = arith.addf %235, %241 : vector<64x4xf32>
    %243 = vector.shape_cast %205 : vector<4xf32> to vector<1x4xf32>
    %244 = vector.broadcast %243 : vector<1x4xf32> to vector<64x4xf32>
    %245 = arith.addf %242, %244 : vector<64x4xf32>
    %246 = vector.shape_cast %245 : vector<64x4xf32> to vector<8x8x4xf32>
    %cst_92 = arith.constant 0.000000e+00 : f32
    %247 = vector.broadcast %cst_92 : f32 to vector<8x8x4xf32>
    %248 = arith.maximumf %246, %247 : vector<8x8x4xf32>
    %249 = vector.shape_cast %248 : vector<8x8x4xf32> to vector<64x4xf32>
    %c0_93 = arith.constant 0 : index
    %c0_94 = arith.constant 0 : index
    %c0_95 = arith.constant 0 : index
    %250 = vector.load %arg8[%c0_93, %c0_94, %c0_95] : memref<7x4x8xf32, #tpu.memory_space<vmem>>, vector<1x4x8xf32>
    %251 = vector.shape_cast %250 : vector<1x4x8xf32> to vector<4x8xf32>
    %cst_96 = arith.constant dense<0.000000e+00> : vector<64x8xf32>
    %252 = tpu.matmul %249, %251, %cst_96 {dimension_numbers = #tpu.dot_dimension_numbers<[1], [0], [0], [1], [0, 0, 1, 1], [], []>} : vector<64x4xf32>, vector<4x8xf32>, vector<64x8xf32> -> vector<64x8xf32>
    %c0_97 = arith.constant 0 : index
    %c0_98 = arith.constant 0 : index
    %253 = vector.load %arg9[%c0_97, %c0_98] : memref<7x8xf32, #tpu.memory_space<vmem>>, vector<1x8xf32>
    %254 = vector.shape_cast %253 : vector<1x8xf32> to vector<8xf32>
    %255 = vector.shape_cast %254 : vector<8xf32> to vector<1x8xf32>
    %256 = vector.broadcast %255 : vector<1x8xf32> to vector<64x8xf32>
    %257 = arith.addf %252, %256 : vector<64x8xf32>
    %258 = vector.shape_cast %257 : vector<64x8xf32> to vector<8x8x8xf32>
    %259 = arith.addf %258, %177 : vector<8x8x8xf32>
    %260 = vector.shape_cast %177 : vector<8x8x8xf32> to vector<4x2x8x8xf32>
    %261 = vector.extract_strided_slice %260 {offsets = [0, 0, 0, 0], sizes = [4, 1, 8, 8], strides = [1, 1, 1, 1]} : vector<4x2x8x8xf32> to vector<4x1x8x8xf32>
    %262 = vector.shape_cast %261 : vector<4x1x8x8xf32> to vector<4x8x8xf32>
    %263 = vector.extract_strided_slice %260 {offsets = [0, 1, 0, 0], sizes = [4, 1, 8, 8], strides = [1, 1, 1, 1]} : vector<4x2x8x8xf32> to vector<4x1x8x8xf32>
    %264 = vector.shape_cast %263 : vector<4x1x8x8xf32> to vector<4x8x8xf32>
    %265 = arith.maximumf %262, %264 : vector<4x8x8xf32>
    %266 = vector.shape_cast %265 : vector<4x8x8xf32> to vector<4x4x2x8xf32>
    %267 = vector.extract_strided_slice %266 {offsets = [0, 0, 0, 0], sizes = [4, 4, 1, 8], strides = [1, 1, 1, 1]} : vector<4x4x2x8xf32> to vector<4x4x1x8xf32>
    %268 = vector.shape_cast %267 : vector<4x4x1x8xf32> to vector<4x4x8xf32>
    %269 = vector.extract_strided_slice %266 {offsets = [0, 0, 1, 0], sizes = [4, 4, 1, 8], strides = [1, 1, 1, 1]} : vector<4x4x2x8xf32> to vector<4x4x1x8xf32>
    %270 = vector.shape_cast %269 : vector<4x4x1x8xf32> to vector<4x4x8xf32>
    %271 = arith.maximumf %268, %270 : vector<4x4x8xf32>
    %c1 = arith.constant 1 : index
    %c0_99 = arith.constant 0 : index
    %272 = vector.load %arg2[%c1, %c0_99] : memref<7x8xf32, #tpu.memory_space<vmem>>, vector<1x8xf32>
    %273 = vector.shape_cast %272 : vector<1x8xf32> to vector<8xf32>
    %274 = vector.shape_cast %273 : vector<8xf32> to vector<1x1x8xf32>
    %275 = vector.broadcast %274 : vector<1x1x8xf32> to vector<4x4x8xf32>
    %276 = arith.mulf %271, %275 : vector<4x4x8xf32>
    %c1_100 = arith.constant 1 : index
    %c0_101 = arith.constant 0 : index
    %277 = vector.load %arg3[%c1_100, %c0_101] : memref<7x8xf32, #tpu.memory_space<vmem>>, vector<1x8xf32>
    %278 = vector.shape_cast %277 : vector<1x8xf32> to vector<8xf32>
    %279 = vector.shape_cast %278 : vector<8xf32> to vector<1x1x8xf32>
    %280 = vector.broadcast %279 : vector<1x1x8xf32> to vector<4x4x8xf32>
    %281 = arith.addf %276, %280 : vector<4x4x8xf32>
    %cst_102 = arith.constant 0.000000e+00 : f32
    %282 = vector.broadcast %cst_102 : f32 to vector<4x4x8xf32>
    %283 = arith.maximumf %281, %282 : vector<4x4x8xf32>
    %284 = vector.shape_cast %283 : vector<4x4x8xf32> to vector<16x8xf32>
    %c1_103 = arith.constant 1 : index
    %c0_104 = arith.constant 0 : index
    %c0_105 = arith.constant 0 : index
    %285 = vector.load %arg4[%c1_103, %c0_104, %c0_105] : memref<7x8x4xf32, #tpu.memory_space<vmem>>, vector<1x8x4xf32>
    %286 = vector.shape_cast %285 : vector<1x8x4xf32> to vector<8x4xf32>
    %cst_106 = arith.constant dense<0.000000e+00> : vector<16x4xf32>
    %287 = tpu.matmul %284, %286, %cst_106 {dimension_numbers = #tpu.dot_dimension_numbers<[1], [0], [0], [1], [0, 0, 1, 1], [], []>} : vector<16x8xf32>, vector<8x4xf32>, vector<16x4xf32> -> vector<16x4xf32>
    %c1_107 = arith.constant 1 : index
    %c0_108 = arith.constant 0 : index
    %288 = vector.load %arg5[%c1_107, %c0_108] : memref<7x4xf32, #tpu.memory_space<vmem>>, vector<1x4xf32>
    %289 = vector.shape_cast %288 : vector<1x4xf32> to vector<4xf32>
    %290 = vector.shape_cast %289 : vector<4xf32> to vector<1x4xf32>
    %291 = vector.broadcast %290 : vector<1x4xf32> to vector<16x4xf32>
    %292 = arith.addf %287, %291 : vector<16x4xf32>
    %cst_109 = arith.constant 0.000000e+00 : f32
    %293 = vector.broadcast %cst_109 : f32 to vector<16x4xf32>
    %294 = arith.maximumf %292, %293 : vector<16x4xf32>
    %295 = vector.shape_cast %294 : vector<16x4xf32> to vector<4x4x4xf32>
    %c1_110 = arith.constant 1 : index
    %c0_111 = arith.constant 0 : index
    %c0_112 = arith.constant 0 : index
    %c0_113 = arith.constant 0 : index
    %296 = vector.load %arg6[%c1_110, %c0_111, %c0_112, %c0_113] : memref<7x3x12x4xf32, #tpu.memory_space<vmem>>, vector<1x3x12x4xf32>
    %297 = vector.shape_cast %296 : vector<1x3x12x4xf32> to vector<3x12x4xf32>
    %c1_114 = arith.constant 1 : index
    %c0_115 = arith.constant 0 : index
    %298 = vector.load %arg7[%c1_114, %c0_115] : memref<7x4xf32, #tpu.memory_space<vmem>>, vector<1x4xf32>
    %299 = vector.shape_cast %298 : vector<1x4xf32> to vector<4xf32>
    %cst_116 = arith.constant 0.000000e+00 : f32
    %300 = vector.broadcast %cst_116 : f32 to vector<1x4x4xf32>
    %301 = vector.extract_strided_slice %295 {offsets = [0, 0, 0], sizes = [3, 4, 4], strides = [1, 1, 1]} : vector<4x4x4xf32> to vector<3x4x4xf32>
    %302 = tpu.concatenate %300, %301 in 0 : vector<1x4x4xf32>, vector<3x4x4xf32> -> vector<4x4x4xf32>
    %303 = vector.extract_strided_slice %295 {offsets = [1, 0, 0], sizes = [3, 4, 4], strides = [1, 1, 1]} : vector<4x4x4xf32> to vector<3x4x4xf32>
    %304 = tpu.concatenate %303, %300 in 0 : vector<3x4x4xf32>, vector<1x4x4xf32> -> vector<4x4x4xf32>
    %305 = tpu.concatenate %302, %295, %304 in 2 : vector<4x4x4xf32>, vector<4x4x4xf32>, vector<4x4x4xf32> -> vector<4x4x12xf32>
    %306 = vector.shape_cast %305 : vector<4x4x12xf32> to vector<16x12xf32>
    %307 = vector.extract_strided_slice %297 {offsets = [0, 0, 0], sizes = [1, 12, 4], strides = [1, 1, 1]} : vector<3x12x4xf32> to vector<1x12x4xf32>
    %308 = vector.shape_cast %307 : vector<1x12x4xf32> to vector<12x4xf32>
    %cst_117 = arith.constant dense<0.000000e+00> : vector<16x4xf32>
    %309 = tpu.matmul %306, %308, %cst_117 {dimension_numbers = #tpu.dot_dimension_numbers<[1], [0], [0], [1], [0, 0, 1, 1], [], []>} : vector<16x12xf32>, vector<12x4xf32>, vector<16x4xf32> -> vector<16x4xf32>
    %310 = vector.extract_strided_slice %297 {offsets = [1, 0, 0], sizes = [1, 12, 4], strides = [1, 1, 1]} : vector<3x12x4xf32> to vector<1x12x4xf32>
    %311 = vector.shape_cast %310 : vector<1x12x4xf32> to vector<12x4xf32>
    %cst_118 = arith.constant dense<0.000000e+00> : vector<16x4xf32>
    %312 = tpu.matmul %306, %311, %cst_118 {dimension_numbers = #tpu.dot_dimension_numbers<[1], [0], [0], [1], [0, 0, 1, 1], [], []>} : vector<16x12xf32>, vector<12x4xf32>, vector<16x4xf32> -> vector<16x4xf32>
    %313 = vector.extract_strided_slice %297 {offsets = [2, 0, 0], sizes = [1, 12, 4], strides = [1, 1, 1]} : vector<3x12x4xf32> to vector<1x12x4xf32>
    %314 = vector.shape_cast %313 : vector<1x12x4xf32> to vector<12x4xf32>
    %cst_119 = arith.constant dense<0.000000e+00> : vector<16x4xf32>
    %315 = tpu.matmul %306, %314, %cst_119 {dimension_numbers = #tpu.dot_dimension_numbers<[1], [0], [0], [1], [0, 0, 1, 1], [], []>} : vector<16x12xf32>, vector<12x4xf32>, vector<16x4xf32> -> vector<16x4xf32>
    %cst_120 = arith.constant 0.000000e+00 : f32
    %316 = vector.broadcast %cst_120 : f32 to vector<1x4xf32>
    %317 = vector.extract_strided_slice %309 {offsets = [0, 0], sizes = [15, 4], strides = [1, 1]} : vector<16x4xf32> to vector<15x4xf32>
    %318 = tpu.concatenate %316, %317 in 0 : vector<1x4xf32>, vector<15x4xf32> -> vector<16x4xf32>
    %319 = vector.extract_strided_slice %315 {offsets = [1, 0], sizes = [15, 4], strides = [1, 1]} : vector<16x4xf32> to vector<15x4xf32>
    %320 = tpu.concatenate %319, %316 in 0 : vector<15x4xf32>, vector<1x4xf32> -> vector<16x4xf32>
    %321 = tpu.iota {dimensions = array<i32: 1>} : vector<4x4x1xi32>
    %322 = vector.shape_cast %321 : vector<4x4x1xi32> to vector<16x1xi32>
    %c0_i32_121 = arith.constant 0 : i32
    %323 = vector.broadcast %c0_i32_121 : i32 to vector<16x1xi32>
    %324 = arith.cmpi eq, %322, %323 : vector<16x1xi32>
    %cst_122 = arith.constant 0.000000e+00 : f32
    %325 = vector.shape_cast %324 : vector<16x1xi1> to vector<16x1xi1>
    %326 = vector.broadcast %325 : vector<16x1xi1> to vector<16x4xi1>
    %327 = vector.broadcast %cst_122 : f32 to vector<16x4xf32>
    %328 = arith.select %326, %327, %318 : vector<16x4xi1>, vector<16x4xf32>
    %329 = arith.addf %312, %328 : vector<16x4xf32>
    %c3_i32 = arith.constant 3 : i32
    %330 = vector.broadcast %c3_i32 : i32 to vector<16x1xi32>
    %331 = arith.cmpi eq, %322, %330 : vector<16x1xi32>
    %cst_123 = arith.constant 0.000000e+00 : f32
    %332 = vector.shape_cast %331 : vector<16x1xi1> to vector<16x1xi1>
    %333 = vector.broadcast %332 : vector<16x1xi1> to vector<16x4xi1>
    %334 = vector.broadcast %cst_123 : f32 to vector<16x4xf32>
    %335 = arith.select %333, %334, %320 : vector<16x4xi1>, vector<16x4xf32>
    %336 = arith.addf %329, %335 : vector<16x4xf32>
    %337 = vector.shape_cast %299 : vector<4xf32> to vector<1x4xf32>
    %338 = vector.broadcast %337 : vector<1x4xf32> to vector<16x4xf32>
    %339 = arith.addf %336, %338 : vector<16x4xf32>
    %340 = vector.shape_cast %339 : vector<16x4xf32> to vector<4x4x4xf32>
    %cst_124 = arith.constant 0.000000e+00 : f32
    %341 = vector.broadcast %cst_124 : f32 to vector<4x4x4xf32>
    %342 = arith.maximumf %340, %341 : vector<4x4x4xf32>
    %343 = vector.shape_cast %342 : vector<4x4x4xf32> to vector<16x4xf32>
    %c1_125 = arith.constant 1 : index
    %c0_126 = arith.constant 0 : index
    %c0_127 = arith.constant 0 : index
    %344 = vector.load %arg8[%c1_125, %c0_126, %c0_127] : memref<7x4x8xf32, #tpu.memory_space<vmem>>, vector<1x4x8xf32>
    %345 = vector.shape_cast %344 : vector<1x4x8xf32> to vector<4x8xf32>
    %cst_128 = arith.constant dense<0.000000e+00> : vector<16x8xf32>
    %346 = tpu.matmul %343, %345, %cst_128 {dimension_numbers = #tpu.dot_dimension_numbers<[1], [0], [0], [1], [0, 0, 1, 1], [], []>} : vector<16x4xf32>, vector<4x8xf32>, vector<16x8xf32> -> vector<16x8xf32>
    %c1_129 = arith.constant 1 : index
    %c0_130 = arith.constant 0 : index
    %347 = vector.load %arg9[%c1_129, %c0_130] : memref<7x8xf32, #tpu.memory_space<vmem>>, vector<1x8xf32>
    %348 = vector.shape_cast %347 : vector<1x8xf32> to vector<8xf32>
    %349 = vector.shape_cast %348 : vector<8xf32> to vector<1x8xf32>
    %350 = vector.broadcast %349 : vector<1x8xf32> to vector<16x8xf32>
    %351 = arith.addf %346, %350 : vector<16x8xf32>
    %352 = vector.shape_cast %351 : vector<16x8xf32> to vector<4x4x8xf32>
    %353 = arith.addf %352, %271 : vector<4x4x8xf32>
    %c3 = arith.constant 3 : index
    %c0_131 = arith.constant 0 : index
    %354 = vector.load %arg2[%c3, %c0_131] : memref<7x8xf32, #tpu.memory_space<vmem>>, vector<1x8xf32>
    %355 = vector.shape_cast %354 : vector<1x8xf32> to vector<8xf32>
    %356 = vector.shape_cast %355 : vector<8xf32> to vector<1x1x8xf32>
    %357 = vector.broadcast %356 : vector<1x1x8xf32> to vector<4x4x8xf32>
    %358 = arith.mulf %353, %357 : vector<4x4x8xf32>
    %c3_132 = arith.constant 3 : index
    %c0_133 = arith.constant 0 : index
    %359 = vector.load %arg3[%c3_132, %c0_133] : memref<7x8xf32, #tpu.memory_space<vmem>>, vector<1x8xf32>
    %360 = vector.shape_cast %359 : vector<1x8xf32> to vector<8xf32>
    %361 = vector.shape_cast %360 : vector<8xf32> to vector<1x1x8xf32>
    %362 = vector.broadcast %361 : vector<1x1x8xf32> to vector<4x4x8xf32>
    %363 = arith.addf %358, %362 : vector<4x4x8xf32>
    %cst_134 = arith.constant 0.000000e+00 : f32
    %364 = vector.broadcast %cst_134 : f32 to vector<4x4x8xf32>
    %365 = arith.maximumf %363, %364 : vector<4x4x8xf32>
    %366 = vector.shape_cast %365 : vector<4x4x8xf32> to vector<16x8xf32>
    %c3_135 = arith.constant 3 : index
    %c0_136 = arith.constant 0 : index
    %c0_137 = arith.constant 0 : index
    %367 = vector.load %arg4[%c3_135, %c0_136, %c0_137] : memref<7x8x4xf32, #tpu.memory_space<vmem>>, vector<1x8x4xf32>
    %368 = vector.shape_cast %367 : vector<1x8x4xf32> to vector<8x4xf32>
    %cst_138 = arith.constant dense<0.000000e+00> : vector<16x4xf32>
    %369 = tpu.matmul %366, %368, %cst_138 {dimension_numbers = #tpu.dot_dimension_numbers<[1], [0], [0], [1], [0, 0, 1, 1], [], []>} : vector<16x8xf32>, vector<8x4xf32>, vector<16x4xf32> -> vector<16x4xf32>
    %c3_139 = arith.constant 3 : index
    %c0_140 = arith.constant 0 : index
    %370 = vector.load %arg5[%c3_139, %c0_140] : memref<7x4xf32, #tpu.memory_space<vmem>>, vector<1x4xf32>
    %371 = vector.shape_cast %370 : vector<1x4xf32> to vector<4xf32>
    %372 = vector.shape_cast %371 : vector<4xf32> to vector<1x4xf32>
    %373 = vector.broadcast %372 : vector<1x4xf32> to vector<16x4xf32>
    %374 = arith.addf %369, %373 : vector<16x4xf32>
    %cst_141 = arith.constant 0.000000e+00 : f32
    %375 = vector.broadcast %cst_141 : f32 to vector<16x4xf32>
    %376 = arith.maximumf %374, %375 : vector<16x4xf32>
    %377 = vector.shape_cast %376 : vector<16x4xf32> to vector<4x4x4xf32>
    %c3_142 = arith.constant 3 : index
    %c0_143 = arith.constant 0 : index
    %c0_144 = arith.constant 0 : index
    %c0_145 = arith.constant 0 : index
    %378 = vector.load %arg6[%c3_142, %c0_143, %c0_144, %c0_145] : memref<7x3x12x4xf32, #tpu.memory_space<vmem>>, vector<1x3x12x4xf32>
    %379 = vector.shape_cast %378 : vector<1x3x12x4xf32> to vector<3x12x4xf32>
    %c3_146 = arith.constant 3 : index
    %c0_147 = arith.constant 0 : index
    %380 = vector.load %arg7[%c3_146, %c0_147] : memref<7x4xf32, #tpu.memory_space<vmem>>, vector<1x4xf32>
    %381 = vector.shape_cast %380 : vector<1x4xf32> to vector<4xf32>
    %cst_148 = arith.constant 0.000000e+00 : f32
    %382 = vector.broadcast %cst_148 : f32 to vector<1x4x4xf32>
    %383 = vector.extract_strided_slice %377 {offsets = [0, 0, 0], sizes = [3, 4, 4], strides = [1, 1, 1]} : vector<4x4x4xf32> to vector<3x4x4xf32>
    %384 = tpu.concatenate %382, %383 in 0 : vector<1x4x4xf32>, vector<3x4x4xf32> -> vector<4x4x4xf32>
    %385 = vector.extract_strided_slice %377 {offsets = [1, 0, 0], sizes = [3, 4, 4], strides = [1, 1, 1]} : vector<4x4x4xf32> to vector<3x4x4xf32>
    %386 = tpu.concatenate %385, %382 in 0 : vector<3x4x4xf32>, vector<1x4x4xf32> -> vector<4x4x4xf32>
    %387 = tpu.concatenate %384, %377, %386 in 2 : vector<4x4x4xf32>, vector<4x4x4xf32>, vector<4x4x4xf32> -> vector<4x4x12xf32>
    %388 = vector.shape_cast %387 : vector<4x4x12xf32> to vector<16x12xf32>
    %389 = vector.extract_strided_slice %379 {offsets = [0, 0, 0], sizes = [1, 12, 4], strides = [1, 1, 1]} : vector<3x12x4xf32> to vector<1x12x4xf32>
    %390 = vector.shape_cast %389 : vector<1x12x4xf32> to vector<12x4xf32>
    %cst_149 = arith.constant dense<0.000000e+00> : vector<16x4xf32>
    %391 = tpu.matmul %388, %390, %cst_149 {dimension_numbers = #tpu.dot_dimension_numbers<[1], [0], [0], [1], [0, 0, 1, 1], [], []>} : vector<16x12xf32>, vector<12x4xf32>, vector<16x4xf32> -> vector<16x4xf32>
    %392 = vector.extract_strided_slice %379 {offsets = [1, 0, 0], sizes = [1, 12, 4], strides = [1, 1, 1]} : vector<3x12x4xf32> to vector<1x12x4xf32>
    %393 = vector.shape_cast %392 : vector<1x12x4xf32> to vector<12x4xf32>
    %cst_150 = arith.constant dense<0.000000e+00> : vector<16x4xf32>
    %394 = tpu.matmul %388, %393, %cst_150 {dimension_numbers = #tpu.dot_dimension_numbers<[1], [0], [0], [1], [0, 0, 1, 1], [], []>} : vector<16x12xf32>, vector<12x4xf32>, vector<16x4xf32> -> vector<16x4xf32>
    %395 = vector.extract_strided_slice %379 {offsets = [2, 0, 0], sizes = [1, 12, 4], strides = [1, 1, 1]} : vector<3x12x4xf32> to vector<1x12x4xf32>
    %396 = vector.shape_cast %395 : vector<1x12x4xf32> to vector<12x4xf32>
    %cst_151 = arith.constant dense<0.000000e+00> : vector<16x4xf32>
    %397 = tpu.matmul %388, %396, %cst_151 {dimension_numbers = #tpu.dot_dimension_numbers<[1], [0], [0], [1], [0, 0, 1, 1], [], []>} : vector<16x12xf32>, vector<12x4xf32>, vector<16x4xf32> -> vector<16x4xf32>
    %cst_152 = arith.constant 0.000000e+00 : f32
    %398 = vector.broadcast %cst_152 : f32 to vector<1x4xf32>
    %399 = vector.extract_strided_slice %391 {offsets = [0, 0], sizes = [15, 4], strides = [1, 1]} : vector<16x4xf32> to vector<15x4xf32>
    %400 = tpu.concatenate %398, %399 in 0 : vector<1x4xf32>, vector<15x4xf32> -> vector<16x4xf32>
    %401 = vector.extract_strided_slice %397 {offsets = [1, 0], sizes = [15, 4], strides = [1, 1]} : vector<16x4xf32> to vector<15x4xf32>
    %402 = tpu.concatenate %401, %398 in 0 : vector<15x4xf32>, vector<1x4xf32> -> vector<16x4xf32>
    %403 = tpu.iota {dimensions = array<i32: 1>} : vector<4x4x1xi32>
    %404 = vector.shape_cast %403 : vector<4x4x1xi32> to vector<16x1xi32>
    %c0_i32_153 = arith.constant 0 : i32
    %405 = vector.broadcast %c0_i32_153 : i32 to vector<16x1xi32>
    %406 = arith.cmpi eq, %404, %405 : vector<16x1xi32>
    %cst_154 = arith.constant 0.000000e+00 : f32
    %407 = vector.shape_cast %406 : vector<16x1xi1> to vector<16x1xi1>
    %408 = vector.broadcast %407 : vector<16x1xi1> to vector<16x4xi1>
    %409 = vector.broadcast %cst_154 : f32 to vector<16x4xf32>
    %410 = arith.select %408, %409, %400 : vector<16x4xi1>, vector<16x4xf32>
    %411 = arith.addf %394, %410 : vector<16x4xf32>
    %c3_i32_155 = arith.constant 3 : i32
    %412 = vector.broadcast %c3_i32_155 : i32 to vector<16x1xi32>
    %413 = arith.cmpi eq, %404, %412 : vector<16x1xi32>
    %cst_156 = arith.constant 0.000000e+00 : f32
    %414 = vector.shape_cast %413 : vector<16x1xi1> to vector<16x1xi1>
    %415 = vector.broadcast %414 : vector<16x1xi1> to vector<16x4xi1>
    %416 = vector.broadcast %cst_156 : f32 to vector<16x4xf32>
    %417 = arith.select %415, %416, %402 : vector<16x4xi1>, vector<16x4xf32>
    %418 = arith.addf %411, %417 : vector<16x4xf32>
    %419 = vector.shape_cast %381 : vector<4xf32> to vector<1x4xf32>
    %420 = vector.broadcast %419 : vector<1x4xf32> to vector<16x4xf32>
    %421 = arith.addf %418, %420 : vector<16x4xf32>
    %422 = vector.shape_cast %421 : vector<16x4xf32> to vector<4x4x4xf32>
    %cst_157 = arith.constant 0.000000e+00 : f32
    %423 = vector.broadcast %cst_157 : f32 to vector<4x4x4xf32>
    %424 = arith.maximumf %422, %423 : vector<4x4x4xf32>
    %425 = vector.shape_cast %424 : vector<4x4x4xf32> to vector<16x4xf32>
    %c3_158 = arith.constant 3 : index
    %c0_159 = arith.constant 0 : index
    %c0_160 = arith.constant 0 : index
    %426 = vector.load %arg8[%c3_158, %c0_159, %c0_160] : memref<7x4x8xf32, #tpu.memory_space<vmem>>, vector<1x4x8xf32>
    %427 = vector.shape_cast %426 : vector<1x4x8xf32> to vector<4x8xf32>
    %cst_161 = arith.constant dense<0.000000e+00> : vector<16x8xf32>
    %428 = tpu.matmul %425, %427, %cst_161 {dimension_numbers = #tpu.dot_dimension_numbers<[1], [0], [0], [1], [0, 0, 1, 1], [], []>} : vector<16x4xf32>, vector<4x8xf32>, vector<16x8xf32> -> vector<16x8xf32>
    %c3_162 = arith.constant 3 : index
    %c0_163 = arith.constant 0 : index
    %429 = vector.load %arg9[%c3_162, %c0_163] : memref<7x8xf32, #tpu.memory_space<vmem>>, vector<1x8xf32>
    %430 = vector.shape_cast %429 : vector<1x8xf32> to vector<8xf32>
    %431 = vector.shape_cast %430 : vector<8xf32> to vector<1x8xf32>
    %432 = vector.broadcast %431 : vector<1x8xf32> to vector<16x8xf32>
    %433 = arith.addf %428, %432 : vector<16x8xf32>
    %434 = vector.shape_cast %433 : vector<16x8xf32> to vector<4x4x8xf32>
    %435 = arith.addf %434, %353 : vector<4x4x8xf32>
    %c2 = arith.constant 2 : index
    %c0_164 = arith.constant 0 : index
    %436 = vector.load %arg2[%c2, %c0_164] : memref<7x8xf32, #tpu.memory_space<vmem>>, vector<1x8xf32>
    %437 = vector.shape_cast %436 : vector<1x8xf32> to vector<8xf32>
    %438 = vector.shape_cast %437 : vector<8xf32> to vector<1x1x8xf32>
    %439 = vector.broadcast %438 : vector<1x1x8xf32> to vector<4x4x8xf32>
    %440 = arith.mulf %435, %439 : vector<4x4x8xf32>
    %c2_165 = arith.constant 2 : index
    %c0_166 = arith.constant 0 : index
    %441 = vector.load %arg3[%c2_165, %c0_166] : memref<7x8xf32, #tpu.memory_space<vmem>>, vector<1x8xf32>
    %442 = vector.shape_cast %441 : vector<1x8xf32> to vector<8xf32>
    %443 = vector.shape_cast %442 : vector<8xf32> to vector<1x1x8xf32>
    %444 = vector.broadcast %443 : vector<1x1x8xf32> to vector<4x4x8xf32>
    %445 = arith.addf %440, %444 : vector<4x4x8xf32>
    %cst_167 = arith.constant 0.000000e+00 : f32
    %446 = vector.broadcast %cst_167 : f32 to vector<4x4x8xf32>
    %447 = arith.maximumf %445, %446 : vector<4x4x8xf32>
    %448 = vector.shape_cast %447 : vector<4x4x8xf32> to vector<16x8xf32>
    %c2_168 = arith.constant 2 : index
    %c0_169 = arith.constant 0 : index
    %c0_170 = arith.constant 0 : index
    %449 = vector.load %arg4[%c2_168, %c0_169, %c0_170] : memref<7x8x4xf32, #tpu.memory_space<vmem>>, vector<1x8x4xf32>
    %450 = vector.shape_cast %449 : vector<1x8x4xf32> to vector<8x4xf32>
    %cst_171 = arith.constant dense<0.000000e+00> : vector<16x4xf32>
    %451 = tpu.matmul %448, %450, %cst_171 {dimension_numbers = #tpu.dot_dimension_numbers<[1], [0], [0], [1], [0, 0, 1, 1], [], []>} : vector<16x8xf32>, vector<8x4xf32>, vector<16x4xf32> -> vector<16x4xf32>
    %c2_172 = arith.constant 2 : index
    %c0_173 = arith.constant 0 : index
    %452 = vector.load %arg5[%c2_172, %c0_173] : memref<7x4xf32, #tpu.memory_space<vmem>>, vector<1x4xf32>
    %453 = vector.shape_cast %452 : vector<1x4xf32> to vector<4xf32>
    %454 = vector.shape_cast %453 : vector<4xf32> to vector<1x4xf32>
    %455 = vector.broadcast %454 : vector<1x4xf32> to vector<16x4xf32>
    %456 = arith.addf %451, %455 : vector<16x4xf32>
    %cst_174 = arith.constant 0.000000e+00 : f32
    %457 = vector.broadcast %cst_174 : f32 to vector<16x4xf32>
    %458 = arith.maximumf %456, %457 : vector<16x4xf32>
    %459 = vector.shape_cast %458 : vector<16x4xf32> to vector<4x4x4xf32>
    %c2_175 = arith.constant 2 : index
    %c0_176 = arith.constant 0 : index
    %c0_177 = arith.constant 0 : index
    %c0_178 = arith.constant 0 : index
    %460 = vector.load %arg6[%c2_175, %c0_176, %c0_177, %c0_178] : memref<7x3x12x4xf32, #tpu.memory_space<vmem>>, vector<1x3x12x4xf32>
    %461 = vector.shape_cast %460 : vector<1x3x12x4xf32> to vector<3x12x4xf32>
    %c2_179 = arith.constant 2 : index
    %c0_180 = arith.constant 0 : index
    %462 = vector.load %arg7[%c2_179, %c0_180] : memref<7x4xf32, #tpu.memory_space<vmem>>, vector<1x4xf32>
    %463 = vector.shape_cast %462 : vector<1x4xf32> to vector<4xf32>
    %cst_181 = arith.constant 0.000000e+00 : f32
    %464 = vector.broadcast %cst_181 : f32 to vector<1x4x4xf32>
    %465 = vector.extract_strided_slice %459 {offsets = [0, 0, 0], sizes = [3, 4, 4], strides = [1, 1, 1]} : vector<4x4x4xf32> to vector<3x4x4xf32>
    %466 = tpu.concatenate %464, %465 in 0 : vector<1x4x4xf32>, vector<3x4x4xf32> -> vector<4x4x4xf32>
    %467 = vector.extract_strided_slice %459 {offsets = [1, 0, 0], sizes = [3, 4, 4], strides = [1, 1, 1]} : vector<4x4x4xf32> to vector<3x4x4xf32>
    %468 = tpu.concatenate %467, %464 in 0 : vector<3x4x4xf32>, vector<1x4x4xf32> -> vector<4x4x4xf32>
    %469 = tpu.concatenate %466, %459, %468 in 2 : vector<4x4x4xf32>, vector<4x4x4xf32>, vector<4x4x4xf32> -> vector<4x4x12xf32>
    %470 = vector.shape_cast %469 : vector<4x4x12xf32> to vector<16x12xf32>
    %471 = vector.extract_strided_slice %461 {offsets = [0, 0, 0], sizes = [1, 12, 4], strides = [1, 1, 1]} : vector<3x12x4xf32> to vector<1x12x4xf32>
    %472 = vector.shape_cast %471 : vector<1x12x4xf32> to vector<12x4xf32>
    %cst_182 = arith.constant dense<0.000000e+00> : vector<16x4xf32>
    %473 = tpu.matmul %470, %472, %cst_182 {dimension_numbers = #tpu.dot_dimension_numbers<[1], [0], [0], [1], [0, 0, 1, 1], [], []>} : vector<16x12xf32>, vector<12x4xf32>, vector<16x4xf32> -> vector<16x4xf32>
    %474 = vector.extract_strided_slice %461 {offsets = [1, 0, 0], sizes = [1, 12, 4], strides = [1, 1, 1]} : vector<3x12x4xf32> to vector<1x12x4xf32>
    %475 = vector.shape_cast %474 : vector<1x12x4xf32> to vector<12x4xf32>
    %cst_183 = arith.constant dense<0.000000e+00> : vector<16x4xf32>
    %476 = tpu.matmul %470, %475, %cst_183 {dimension_numbers = #tpu.dot_dimension_numbers<[1], [0], [0], [1], [0, 0, 1, 1], [], []>} : vector<16x12xf32>, vector<12x4xf32>, vector<16x4xf32> -> vector<16x4xf32>
    %477 = vector.extract_strided_slice %461 {offsets = [2, 0, 0], sizes = [1, 12, 4], strides = [1, 1, 1]} : vector<3x12x4xf32> to vector<1x12x4xf32>
    %478 = vector.shape_cast %477 : vector<1x12x4xf32> to vector<12x4xf32>
    %cst_184 = arith.constant dense<0.000000e+00> : vector<16x4xf32>
    %479 = tpu.matmul %470, %478, %cst_184 {dimension_numbers = #tpu.dot_dimension_numbers<[1], [0], [0], [1], [0, 0, 1, 1], [], []>} : vector<16x12xf32>, vector<12x4xf32>, vector<16x4xf32> -> vector<16x4xf32>
    %cst_185 = arith.constant 0.000000e+00 : f32
    %480 = vector.broadcast %cst_185 : f32 to vector<1x4xf32>
    %481 = vector.extract_strided_slice %473 {offsets = [0, 0], sizes = [15, 4], strides = [1, 1]} : vector<16x4xf32> to vector<15x4xf32>
    %482 = tpu.concatenate %480, %481 in 0 : vector<1x4xf32>, vector<15x4xf32> -> vector<16x4xf32>
    %483 = vector.extract_strided_slice %479 {offsets = [1, 0], sizes = [15, 4], strides = [1, 1]} : vector<16x4xf32> to vector<15x4xf32>
    %484 = tpu.concatenate %483, %480 in 0 : vector<15x4xf32>, vector<1x4xf32> -> vector<16x4xf32>
    %485 = tpu.iota {dimensions = array<i32: 1>} : vector<4x4x1xi32>
    %486 = vector.shape_cast %485 : vector<4x4x1xi32> to vector<16x1xi32>
    %c0_i32_186 = arith.constant 0 : i32
    %487 = vector.broadcast %c0_i32_186 : i32 to vector<16x1xi32>
    %488 = arith.cmpi eq, %486, %487 : vector<16x1xi32>
    %cst_187 = arith.constant 0.000000e+00 : f32
    %489 = vector.shape_cast %488 : vector<16x1xi1> to vector<16x1xi1>
    %490 = vector.broadcast %489 : vector<16x1xi1> to vector<16x4xi1>
    %491 = vector.broadcast %cst_187 : f32 to vector<16x4xf32>
    %492 = arith.select %490, %491, %482 : vector<16x4xi1>, vector<16x4xf32>
    %493 = arith.addf %476, %492 : vector<16x4xf32>
    %c3_i32_188 = arith.constant 3 : i32
    %494 = vector.broadcast %c3_i32_188 : i32 to vector<16x1xi32>
    %495 = arith.cmpi eq, %486, %494 : vector<16x1xi32>
    %cst_189 = arith.constant 0.000000e+00 : f32
    %496 = vector.shape_cast %495 : vector<16x1xi1> to vector<16x1xi1>
    %497 = vector.broadcast %496 : vector<16x1xi1> to vector<16x4xi1>
    %498 = vector.broadcast %cst_189 : f32 to vector<16x4xf32>
    %499 = arith.select %497, %498, %484 : vector<16x4xi1>, vector<16x4xf32>
    %500 = arith.addf %493, %499 : vector<16x4xf32>
    %501 = vector.shape_cast %463 : vector<4xf32> to vector<1x4xf32>
    %502 = vector.broadcast %501 : vector<1x4xf32> to vector<16x4xf32>
    %503 = arith.addf %500, %502 : vector<16x4xf32>
    %504 = vector.shape_cast %503 : vector<16x4xf32> to vector<4x4x4xf32>
    %cst_190 = arith.constant 0.000000e+00 : f32
    %505 = vector.broadcast %cst_190 : f32 to vector<4x4x4xf32>
    %506 = arith.maximumf %504, %505 : vector<4x4x4xf32>
    %507 = vector.shape_cast %506 : vector<4x4x4xf32> to vector<16x4xf32>
    %c2_191 = arith.constant 2 : index
    %c0_192 = arith.constant 0 : index
    %c0_193 = arith.constant 0 : index
    %508 = vector.load %arg8[%c2_191, %c0_192, %c0_193] : memref<7x4x8xf32, #tpu.memory_space<vmem>>, vector<1x4x8xf32>
    %509 = vector.shape_cast %508 : vector<1x4x8xf32> to vector<4x8xf32>
    %cst_194 = arith.constant dense<0.000000e+00> : vector<16x8xf32>
    %510 = tpu.matmul %507, %509, %cst_194 {dimension_numbers = #tpu.dot_dimension_numbers<[1], [0], [0], [1], [0, 0, 1, 1], [], []>} : vector<16x4xf32>, vector<4x8xf32>, vector<16x8xf32> -> vector<16x8xf32>
    %c2_195 = arith.constant 2 : index
    %c0_196 = arith.constant 0 : index
    %511 = vector.load %arg9[%c2_195, %c0_196] : memref<7x8xf32, #tpu.memory_space<vmem>>, vector<1x8xf32>
    %512 = vector.shape_cast %511 : vector<1x8xf32> to vector<8xf32>
    %513 = vector.shape_cast %512 : vector<8xf32> to vector<1x8xf32>
    %514 = vector.broadcast %513 : vector<1x8xf32> to vector<16x8xf32>
    %515 = arith.addf %510, %514 : vector<16x8xf32>
    %516 = vector.shape_cast %515 : vector<16x8xf32> to vector<4x4x8xf32>
    %517 = arith.addf %516, %435 : vector<4x4x8xf32>
    %518 = vector.shape_cast %517 : vector<4x4x8xf32> to vector<4x4x1x8xf32>
    %519 = vector.shape_cast %518 : vector<4x4x1x8xf32> to vector<4x4x1x8xf32>
    %520 = vector.broadcast %519 : vector<4x4x1x8xf32> to vector<4x4x2x8xf32>
    %521 = vector.shape_cast %520 : vector<4x4x2x8xf32> to vector<4x8x8xf32>
    %522 = vector.shape_cast %521 : vector<4x8x8xf32> to vector<4x1x8x8xf32>
    %523 = vector.shape_cast %522 : vector<4x1x8x8xf32> to vector<4x1x8x8xf32>
    %524 = vector.broadcast %523 : vector<4x1x8x8xf32> to vector<4x2x8x8xf32>
    %525 = vector.shape_cast %524 : vector<4x2x8x8xf32> to vector<8x8x8xf32>
    %526 = arith.addf %259, %525 : vector<8x8x8xf32>
    %c6 = arith.constant 6 : index
    %c0_197 = arith.constant 0 : index
    %527 = vector.load %arg2[%c6, %c0_197] : memref<7x8xf32, #tpu.memory_space<vmem>>, vector<1x8xf32>
    %528 = vector.shape_cast %527 : vector<1x8xf32> to vector<8xf32>
    %529 = vector.shape_cast %528 : vector<8xf32> to vector<1x1x8xf32>
    %530 = vector.broadcast %529 : vector<1x1x8xf32> to vector<8x8x8xf32>
    %531 = arith.mulf %526, %530 : vector<8x8x8xf32>
    %c6_198 = arith.constant 6 : index
    %c0_199 = arith.constant 0 : index
    %532 = vector.load %arg3[%c6_198, %c0_199] : memref<7x8xf32, #tpu.memory_space<vmem>>, vector<1x8xf32>
    %533 = vector.shape_cast %532 : vector<1x8xf32> to vector<8xf32>
    %534 = vector.shape_cast %533 : vector<8xf32> to vector<1x1x8xf32>
    %535 = vector.broadcast %534 : vector<1x1x8xf32> to vector<8x8x8xf32>
    %536 = arith.addf %531, %535 : vector<8x8x8xf32>
    %cst_200 = arith.constant 0.000000e+00 : f32
    %537 = vector.broadcast %cst_200 : f32 to vector<8x8x8xf32>
    %538 = arith.maximumf %536, %537 : vector<8x8x8xf32>
    %539 = vector.shape_cast %538 : vector<8x8x8xf32> to vector<64x8xf32>
    %c6_201 = arith.constant 6 : index
    %c0_202 = arith.constant 0 : index
    %c0_203 = arith.constant 0 : index
    %540 = vector.load %arg4[%c6_201, %c0_202, %c0_203] : memref<7x8x4xf32, #tpu.memory_space<vmem>>, vector<1x8x4xf32>
    %541 = vector.shape_cast %540 : vector<1x8x4xf32> to vector<8x4xf32>
    %cst_204 = arith.constant dense<0.000000e+00> : vector<64x4xf32>
    %542 = tpu.matmul %539, %541, %cst_204 {dimension_numbers = #tpu.dot_dimension_numbers<[1], [0], [0], [1], [0, 0, 1, 1], [], []>} : vector<64x8xf32>, vector<8x4xf32>, vector<64x4xf32> -> vector<64x4xf32>
    %c6_205 = arith.constant 6 : index
    %c0_206 = arith.constant 0 : index
    %543 = vector.load %arg5[%c6_205, %c0_206] : memref<7x4xf32, #tpu.memory_space<vmem>>, vector<1x4xf32>
    %544 = vector.shape_cast %543 : vector<1x4xf32> to vector<4xf32>
    %545 = vector.shape_cast %544 : vector<4xf32> to vector<1x4xf32>
    %546 = vector.broadcast %545 : vector<1x4xf32> to vector<64x4xf32>
    %547 = arith.addf %542, %546 : vector<64x4xf32>
    %cst_207 = arith.constant 0.000000e+00 : f32
    %548 = vector.broadcast %cst_207 : f32 to vector<64x4xf32>
    %549 = arith.maximumf %547, %548 : vector<64x4xf32>
    %550 = vector.shape_cast %549 : vector<64x4xf32> to vector<8x8x4xf32>
    %c6_208 = arith.constant 6 : index
    %c0_209 = arith.constant 0 : index
    %c0_210 = arith.constant 0 : index
    %c0_211 = arith.constant 0 : index
    %551 = vector.load %arg6[%c6_208, %c0_209, %c0_210, %c0_211] : memref<7x3x12x4xf32, #tpu.memory_space<vmem>>, vector<1x3x12x4xf32>
    %552 = vector.shape_cast %551 : vector<1x3x12x4xf32> to vector<3x12x4xf32>
    %c6_212 = arith.constant 6 : index
    %c0_213 = arith.constant 0 : index
    %553 = vector.load %arg7[%c6_212, %c0_213] : memref<7x4xf32, #tpu.memory_space<vmem>>, vector<1x4xf32>
    %554 = vector.shape_cast %553 : vector<1x4xf32> to vector<4xf32>
    %cst_214 = arith.constant 0.000000e+00 : f32
    %555 = vector.broadcast %cst_214 : f32 to vector<1x8x4xf32>
    %556 = vector.extract_strided_slice %550 {offsets = [0, 0, 0], sizes = [7, 8, 4], strides = [1, 1, 1]} : vector<8x8x4xf32> to vector<7x8x4xf32>
    %557 = tpu.concatenate %555, %556 in 0 : vector<1x8x4xf32>, vector<7x8x4xf32> -> vector<8x8x4xf32>
    %558 = vector.extract_strided_slice %550 {offsets = [1, 0, 0], sizes = [7, 8, 4], strides = [1, 1, 1]} : vector<8x8x4xf32> to vector<7x8x4xf32>
    %559 = tpu.concatenate %558, %555 in 0 : vector<7x8x4xf32>, vector<1x8x4xf32> -> vector<8x8x4xf32>
    %560 = tpu.concatenate %557, %550, %559 in 2 : vector<8x8x4xf32>, vector<8x8x4xf32>, vector<8x8x4xf32> -> vector<8x8x12xf32>
    %561 = vector.shape_cast %560 : vector<8x8x12xf32> to vector<64x12xf32>
    %562 = vector.extract_strided_slice %552 {offsets = [0, 0, 0], sizes = [1, 12, 4], strides = [1, 1, 1]} : vector<3x12x4xf32> to vector<1x12x4xf32>
    %563 = vector.shape_cast %562 : vector<1x12x4xf32> to vector<12x4xf32>
    %cst_215 = arith.constant dense<0.000000e+00> : vector<64x4xf32>
    %564 = tpu.matmul %561, %563, %cst_215 {dimension_numbers = #tpu.dot_dimension_numbers<[1], [0], [0], [1], [0, 0, 1, 1], [], []>} : vector<64x12xf32>, vector<12x4xf32>, vector<64x4xf32> -> vector<64x4xf32>
    %565 = vector.extract_strided_slice %552 {offsets = [1, 0, 0], sizes = [1, 12, 4], strides = [1, 1, 1]} : vector<3x12x4xf32> to vector<1x12x4xf32>
    %566 = vector.shape_cast %565 : vector<1x12x4xf32> to vector<12x4xf32>
    %cst_216 = arith.constant dense<0.000000e+00> : vector<64x4xf32>
    %567 = tpu.matmul %561, %566, %cst_216 {dimension_numbers = #tpu.dot_dimension_numbers<[1], [0], [0], [1], [0, 0, 1, 1], [], []>} : vector<64x12xf32>, vector<12x4xf32>, vector<64x4xf32> -> vector<64x4xf32>
    %568 = vector.extract_strided_slice %552 {offsets = [2, 0, 0], sizes = [1, 12, 4], strides = [1, 1, 1]} : vector<3x12x4xf32> to vector<1x12x4xf32>
    %569 = vector.shape_cast %568 : vector<1x12x4xf32> to vector<12x4xf32>
    %cst_217 = arith.constant dense<0.000000e+00> : vector<64x4xf32>
    %570 = tpu.matmul %561, %569, %cst_217 {dimension_numbers = #tpu.dot_dimension_numbers<[1], [0], [0], [1], [0, 0, 1, 1], [], []>} : vector<64x12xf32>, vector<12x4xf32>, vector<64x4xf32> -> vector<64x4xf32>
    %cst_218 = arith.constant 0.000000e+00 : f32
    %571 = vector.broadcast %cst_218 : f32 to vector<1x4xf32>
    %572 = vector.extract_strided_slice %564 {offsets = [0, 0], sizes = [63, 4], strides = [1, 1]} : vector<64x4xf32> to vector<63x4xf32>
    %573 = tpu.concatenate %571, %572 in 0 : vector<1x4xf32>, vector<63x4xf32> -> vector<64x4xf32>
    %574 = vector.extract_strided_slice %570 {offsets = [1, 0], sizes = [63, 4], strides = [1, 1]} : vector<64x4xf32> to vector<63x4xf32>
    %575 = tpu.concatenate %574, %571 in 0 : vector<63x4xf32>, vector<1x4xf32> -> vector<64x4xf32>
    %576 = tpu.iota {dimensions = array<i32: 1>} : vector<8x8x1xi32>
    %577 = vector.shape_cast %576 : vector<8x8x1xi32> to vector<64x1xi32>
    %c0_i32_219 = arith.constant 0 : i32
    %578 = vector.broadcast %c0_i32_219 : i32 to vector<64x1xi32>
    %579 = arith.cmpi eq, %577, %578 : vector<64x1xi32>
    %cst_220 = arith.constant 0.000000e+00 : f32
    %580 = vector.shape_cast %579 : vector<64x1xi1> to vector<64x1xi1>
    %581 = vector.broadcast %580 : vector<64x1xi1> to vector<64x4xi1>
    %582 = vector.broadcast %cst_220 : f32 to vector<64x4xf32>
    %583 = arith.select %581, %582, %573 : vector<64x4xi1>, vector<64x4xf32>
    %584 = arith.addf %567, %583 : vector<64x4xf32>
    %c7_i32_221 = arith.constant 7 : i32
    %585 = vector.broadcast %c7_i32_221 : i32 to vector<64x1xi32>
    %586 = arith.cmpi eq, %577, %585 : vector<64x1xi32>
    %cst_222 = arith.constant 0.000000e+00 : f32
    %587 = vector.shape_cast %586 : vector<64x1xi1> to vector<64x1xi1>
    %588 = vector.broadcast %587 : vector<64x1xi1> to vector<64x4xi1>
    %589 = vector.broadcast %cst_222 : f32 to vector<64x4xf32>
    %590 = arith.select %588, %589, %575 : vector<64x4xi1>, vector<64x4xf32>
    %591 = arith.addf %584, %590 : vector<64x4xf32>
    %592 = vector.shape_cast %554 : vector<4xf32> to vector<1x4xf32>
    %593 = vector.broadcast %592 : vector<1x4xf32> to vector<64x4xf32>
    %594 = arith.addf %591, %593 : vector<64x4xf32>
    %595 = vector.shape_cast %594 : vector<64x4xf32> to vector<8x8x4xf32>
    %cst_223 = arith.constant 0.000000e+00 : f32
    %596 = vector.broadcast %cst_223 : f32 to vector<8x8x4xf32>
    %597 = arith.maximumf %595, %596 : vector<8x8x4xf32>
    %598 = vector.shape_cast %597 : vector<8x8x4xf32> to vector<64x4xf32>
    %c6_224 = arith.constant 6 : index
    %c0_225 = arith.constant 0 : index
    %c0_226 = arith.constant 0 : index
    %599 = vector.load %arg8[%c6_224, %c0_225, %c0_226] : memref<7x4x8xf32, #tpu.memory_space<vmem>>, vector<1x4x8xf32>
    %600 = vector.shape_cast %599 : vector<1x4x8xf32> to vector<4x8xf32>
    %cst_227 = arith.constant dense<0.000000e+00> : vector<64x8xf32>
    %601 = tpu.matmul %598, %600, %cst_227 {dimension_numbers = #tpu.dot_dimension_numbers<[1], [0], [0], [1], [0, 0, 1, 1], [], []>} : vector<64x4xf32>, vector<4x8xf32>, vector<64x8xf32> -> vector<64x8xf32>
    %c6_228 = arith.constant 6 : index
    %c0_229 = arith.constant 0 : index
    %602 = vector.load %arg9[%c6_228, %c0_229] : memref<7x8xf32, #tpu.memory_space<vmem>>, vector<1x8xf32>
    %603 = vector.shape_cast %602 : vector<1x8xf32> to vector<8xf32>
    %604 = vector.shape_cast %603 : vector<8xf32> to vector<1x8xf32>
    %605 = vector.broadcast %604 : vector<1x8xf32> to vector<64x8xf32>
    %606 = arith.addf %601, %605 : vector<64x8xf32>
    %607 = vector.shape_cast %606 : vector<64x8xf32> to vector<8x8x8xf32>
    %608 = arith.addf %607, %526 : vector<8x8x8xf32>
    %609 = vector.shape_cast %608 : vector<8x8x8xf32> to vector<8x8x1x8xf32>
    %610 = vector.shape_cast %609 : vector<8x8x1x8xf32> to vector<8x8x1x8xf32>
    %611 = vector.broadcast %610 : vector<8x8x1x8xf32> to vector<8x8x2x8xf32>
    %612 = vector.shape_cast %611 : vector<8x8x2x8xf32> to vector<8x16x8xf32>
    %613 = vector.shape_cast %612 : vector<8x16x8xf32> to vector<8x1x16x8xf32>
    %614 = vector.shape_cast %613 : vector<8x1x16x8xf32> to vector<8x1x16x8xf32>
    %615 = vector.broadcast %614 : vector<8x1x16x8xf32> to vector<8x2x16x8xf32>
    %616 = vector.shape_cast %615 : vector<8x2x16x8xf32> to vector<16x16x8xf32>
    %617 = arith.addf %83, %616 : vector<16x16x8xf32>
    %c0_230 = arith.constant 0 : index
    %c0_231 = arith.constant 0 : index
    %c0_232 = arith.constant 0 : index
    %c0_233 = arith.constant 0 : index
    %618 = vector.load %arg10[%c0_230, %c0_231, %c0_232, %c0_233] : memref<1x16x16x8xf32, #tpu.memory_space<vmem>>, vector<1x16x16x8xf32>
    %619 = vector.shape_cast %618 : vector<1x16x16x8xf32> to vector<16x16x8xf32>
    %620 = vector.shape_cast %617 : vector<16x16x8xf32> to vector<1x16x16x8xf32>
    tpu.vector_store %arg10[%c0_230, %c0_231, %c0_232, %c0_233], %620 {strides = array<i32>} : memref<1x16x16x8xf32, #tpu.memory_space<vmem>>, vector<1x16x16x8xf32>,
    return
  }
  func.func @transform_0(%arg0: i32) -> (i32, i32, i32, i32) {
    %c0_i32 = arith.constant 0 : i32
    %c0_i32_0 = arith.constant 0 : i32
    %c0_i32_1 = arith.constant 0 : i32
    %c0_i32_2 = arith.constant 0 : i32
    return %arg0, %c0_i32, %c0_i32_0, %c0_i32_1 : i32, i32, i32, i32
  }
  func.func @transform_1(%arg0: i32) -> (i32, i32) {
    %c0_i32 = arith.constant 0 : i32
    %c0_i32_0 = arith.constant 0 : i32
    %c0_i32_1 = arith.constant 0 : i32
    return %c0_i32, %c0_i32_0 : i32, i32
  }
  func.func @transform_2(%arg0: i32) -> (i32, i32) {
    %c0_i32 = arith.constant 0 : i32
    %c0_i32_0 = arith.constant 0 : i32
    %c0_i32_1 = arith.constant 0 : i32
    return %c0_i32, %c0_i32_0 : i32, i32
  }
  func.func @transform_3(%arg0: i32) -> (i32, i32, i32) {
    %c0_i32 = arith.constant 0 : i32
    %c0_i32_0 = arith.constant 0 : i32
    %c0_i32_1 = arith.constant 0 : i32
    %c0_i32_2 = arith.constant 0 : i32
    return %c0_i32, %c0_i32_0, %c0_i32_1 : i32, i32, i32
  }
  func.func @transform_4(%arg0: i32) -> (i32, i32) {
    %c0_i32 = arith.constant 0 : i32
    %c0_i32_0 = arith.constant 0 : i32
    %c0_i32_1 = arith.constant 0 : i32
    return %c0_i32, %c0_i32_0 : i32, i32
  }
  func.func @transform_5(%arg0: i32) -> (i32, i32, i32, i32) {
    %c0_i32 = arith.constant 0 : i32
    %c0_i32_0 = arith.constant 0 : i32
    %c0_i32_1 = arith.constant 0 : i32
    %c0_i32_2 = arith.constant 0 : i32
    %c0_i32_3 = arith.constant 0 : i32
    return %c0_i32, %c0_i32_0, %c0_i32_1, %c0_i32_2 : i32, i32, i32, i32
  }
  func.func @transform_6(%arg0: i32) -> (i32, i32) {
    %c0_i32 = arith.constant 0 : i32
    %c0_i32_0 = arith.constant 0 : i32
    %c0_i32_1 = arith.constant 0 : i32
    return %c0_i32, %c0_i32_0 : i32, i32
  }
  func.func @transform_7(%arg0: i32) -> (i32, i32, i32) {
    %c0_i32 = arith.constant 0 : i32
    %c0_i32_0 = arith.constant 0 : i32
    %c0_i32_1 = arith.constant 0 : i32
    %c0_i32_2 = arith.constant 0 : i32
    return %c0_i32, %c0_i32_0, %c0_i32_1 : i32, i32, i32
  }
  func.func @transform_8(%arg0: i32) -> (i32, i32) {
    %c0_i32 = arith.constant 0 : i32
    %c0_i32_0 = arith.constant 0 : i32
    %c0_i32_1 = arith.constant 0 : i32
    return %c0_i32, %c0_i32_0 : i32, i32
  }
  func.func @transform_9(%arg0: i32) -> (i32, i32, i32, i32) {
    %c0_i32 = arith.constant 0 : i32
    %c0_i32_0 = arith.constant 0 : i32
    %c0_i32_1 = arith.constant 0 : i32
    %c0_i32_2 = arith.constant 0 : i32
    return %arg0, %c0_i32, %c0_i32_0, %c0_i32_1 : i32, i32, i32, i32
  }
}

</mosaic_0001>

<llo_original>
// kernel: _lambda_.1
$region0: #{_lambda_.1}
  #allocation0 [shape = 'u32[]', space=smem, size = 0x4, offset = 0x4, fixed_abs, tag = 'smem constant byte address 0x4 - core index']
  #allocation1 [shape = 'u32[72,128]{1,0:T(1,128)}', space=vmem, size = 0x9000, scoped, tag = 'internal scratch']
  %s0 = inlined_call_operand.vmem [shape: f32[2,16,16,8], index: 0, kind: input, shape index: {}]
  %s1 = inlined_call_operand.vmem [shape: f32[7,8], index: 1, kind: input, shape index: {}]
  %s2 = inlined_call_operand.vmem [shape: f32[7,8], index: 2, kind: input, shape index: {}]
  %s3 = inlined_call_operand.vmem [shape: f32[7,8,4], index: 3, kind: input, shape index: {}]
  %s4 = inlined_call_operand.vmem [shape: f32[7,4], index: 4, kind: input, shape index: {}]
  %s5 = inlined_call_operand.vmem [shape: f32[7,3,12,4], index: 5, kind: input, shape index: {}]
  %s6 = inlined_call_operand.vmem [shape: f32[7,4], index: 6, kind: input, shape index: {}]
  %s7 = inlined_call_operand.vmem [shape: f32[7,4,8], index: 7, kind: input, shape index: {}]
  %s8 = inlined_call_operand.vmem [shape: f32[7,8], index: 8, kind: input, shape index: {}]
  %s9 = inlined_call_operand.vmem [shape: f32[2,16,16,8], index: 9, kind: output, shape index: {}]
  %s10 = sld [smem:[#allocation0]]
  $region69: #{_lambda_.1} parent=0
    _
  %s12 = ssub.s32 1, %s10
  %s13 = scalar_select 0, %s12, %s10
  loop: start=0, step=1, limit=4
  $region2: #{_lambda_.1} parent=0 // loop_pre_header
    _
  $region3: #{_lambda_.1} parent=0 // loop_header
    %s15 = sphi 0, %s19
    %p16 = scmp.ge.s32.totalorder %s15, 4
    %s25 = sphi 0, %s27
    %s28 = sphi 0, %s25
    %s29 = sphi 0, %s28
    %s45 = sphi 0, %s29
    %s49 = sphi 0, %s49
    %s51 = sphi 0, %s49
    %s52 = sphi 0, %s51
    %s66 = sphi 0, %s52
    %s70 = sphi 0, %s70
    %s72 = sphi 0, %s70
    %s73 = sphi 0, %s72
    %s87 = sphi 0, %s73
    %s91 = sphi 0, %s91
    %s93 = sphi 0, %s91
    %s94 = sphi 0, %s93
    %s108 = sphi 0, %s94
    %s112 = sphi 0, %s112
    %s114 = sphi 0, %s112
    %s115 = sphi 0, %s114
    %s129 = sphi 0, %s115
    %s133 = sphi 0, %s133
    %s135 = sphi 0, %s133
    %s136 = sphi 0, %s135
    %s150 = sphi 0, %s136
    %s154 = sphi 0, %s154
    %s156 = sphi 0, %s154
    %s157 = sphi 0, %s156
    %s171 = sphi 0, %s157
    %s175 = sphi 0, %s175
    %s177 = sphi 0, %s175
    %s178 = sphi 0, %s177
    %s192 = sphi 0, %s178
    %s196 = sphi 0, %s196
    %s198 = sphi 0, %s196
    %s199 = sphi 0, %s198
    %s213 = sphi 0, %s199
    %s219 = sphi 0, %s221
    %s222 = sphi 0, %s219
    %s223 = sphi 0, %s222
    %s239 = sphi 0, %s223
  $region4: #{_lambda_.1} parent=0 // loop_header_branch
    %18 = sbr.rel (%p16) target = $region8
  $region5: #{_lambda_.1} parent=0 // loop_body
    %s20 = ssub.s32 %s15, 1
    %s21 = ssub.s32 %s15, 2
    %s22 = sadd.s32 %s15, 1
    %s23 = ssub.s32 %s15, %s22
    %p24 = scmp.eq.s32.totalorder %s23, 0
    %s26 = sadd.s32 %s25, 1
    %s27 = scalar_select %p24, %s25, %s26
    %p30 = pneg %p24
    %p31 = scmp.eq.s32.totalorder %s15, 1
    %p32 = por %p30, %p31
    %p33 = scmp.ne.s32.totalorder %s25, %s28
    %p34 = scmp.eq.s32.totalorder %s15, 0
    %p35 = por %p33, %p34
    %p36 = scmp.ne.s32.totalorder %s25, %s28
    %p37 = scmp.eq.s32.totalorder %s20, 1
    %p38 = por %p36, %p37
    %p39 = scmp.ne.s32.totalorder %s28, %s29
    %p40 = scmp.eq.s32.totalorder %s20, 0
    %p41 = por %p39, %p40
    %p42 = scmp.ne.s32.totalorder %s28, %s29
    %p43 = scmp.eq.s32.totalorder %s21, 1
    %p44 = por %p42, %p43
    %p46 = scmp.ne.s32.totalorder %s29, %s45
    %p47 = scmp.eq.s32.totalorder %s21, 0
    %p48 = por %p46, %p47
    %s50 = sadd.s32 %s49, 1
    %p53 = scmp.eq.s32.totalorder %s15, 1
    %p54 = scmp.ne.s32.totalorder %s49, %s51
    %p55 = scmp.eq.s32.totalorder %s15, 0
    %p56 = por %p54, %p55
    %p57 = scmp.ne.s32.totalorder %s49, %s51
    %p58 = scmp.eq.s32.totalorder %s20, 1
    %p59 = por %p57, %p58
    %p60 = scmp.ne.s32.totalorder %s51, %s52
    %p61 = scmp.eq.s32.totalorder %s20, 0
    %p62 = por %p60, %p61
    %p63 = scmp.ne.s32.totalorder %s51, %s52
    %p64 = scmp.eq.s32.totalorder %s21, 1
    %p65 = por %p63, %p64
    %p67 = scmp.ne.s32.totalorder %s52, %s66
    %p68 = scmp.eq.s32.totalorder %s21, 0
    %p69 = por %p67, %p68
    %s71 = sadd.s32 %s70, 1
    %p74 = scmp.eq.s32.totalorder %s15, 1
    %p75 = scmp.ne.s32.totalorder %s70, %s72
    %p76 = scmp.eq.s32.totalorder %s15, 0
    %p77 = por %p75, %p76
    %p78 = scmp.ne.s32.totalorder %s70, %s72
    %p79 = scmp.eq.s32.totalorder %s20, 1
    %p80 = por %p78, %p79
    %p81 = scmp.ne.s32.totalorder %s72, %s73
    %p82 = scmp.eq.s32.totalorder %s20, 0
    %p83 = por %p81, %p82
    %p84 = scmp.ne.s32.totalorder %s72, %s73
    %p85 = scmp.eq.s32.totalorder %s21, 1
    %p86 = por %p84, %p85
    %p88 = scmp.ne.s32.totalorder %s73, %s87
    %p89 = scmp.eq.s32.totalorder %s21, 0
    %p90 = por %p88, %p89
    %s92 = sadd.s32 %s91, 1
    %p95 = scmp.eq.s32.totalorder %s15, 1
    %p96 = scmp.ne.s32.totalorder %s91, %s93
    %p97 = scmp.eq.s32.totalorder %s15, 0
    %p98 = por %p96, %p97
    %p99 = scmp.ne.s32.totalorder %s91, %s93
    %p100 = scmp.eq.s32.totalorder %s20, 1
    %p101 = por %p99, %p100
    %p102 = scmp.ne.s32.totalorder %s93, %s94
    %p103 = scmp.eq.s32.totalorder %s20, 0
    %p104 = por %p102, %p103
    %p105 = scmp.ne.s32.totalorder %s93, %s94
    %p106 = scmp.eq.s32.totalorder %s21, 1
    %p107 = por %p105, %p106
    %p109 = scmp.ne.s32.totalorder %s94, %s108
    %p110 = scmp.eq.s32.totalorder %s21, 0
    %p111 = por %p109, %p110
    %s113 = sadd.s32 %s112, 1
    %p116 = scmp.eq.s32.totalorder %s15, 1
    %p117 = scmp.ne.s32.totalorder %s112, %s114
    %p118 = scmp.eq.s32.totalorder %s15, 0
    %p119 = por %p117, %p118
    %p120 = scmp.ne.s32.totalorder %s112, %s114
    %p121 = scmp.eq.s32.totalorder %s20, 1
    %p122 = por %p120, %p121
    %p123 = scmp.ne.s32.totalorder %s114, %s115
    %p124 = scmp.eq.s32.totalorder %s20, 0
    %p125 = por %p123, %p124
    %p126 = scmp.ne.s32.totalorder %s114, %s115
    %p127 = scmp.eq.s32.totalorder %s21, 1
    %p128 = por %p126, %p127
    %p130 = scmp.ne.s32.totalorder %s115, %s129
    %p131 = scmp.eq.s32.totalorder %s21, 0
    %p132 = por %p130, %p131
    %s134 = sadd.s32 %s133, 1
    %p137 = scmp.eq.s32.totalorder %s15, 1
    %p138 = scmp.ne.s32.totalorder %s133, %s135
    %p139 = scmp.eq.s32.totalorder %s15, 0
    %p140 = por %p138, %p139
    %p141 = scmp.ne.s32.totalorder %s133, %s135
    %p142 = scmp.eq.s32.totalorder %s20, 1
    %p143 = por %p141, %p142
    %p144 = scmp.ne.s32.totalorder %s135, %s136
    %p145 = scmp.eq.s32.totalorder %s20, 0
    %p146 = por %p144, %p145
    %p147 = scmp.ne.s32.totalorder %s135, %s136
    %p148 = scmp.eq.s32.totalorder %s21, 1
    %p149 = por %p147, %p148
    %p151 = scmp.ne.s32.totalorder %s136, %s150
    %p152 = scmp.eq.s32.totalorder %s21, 0
    %p153 = por %p151, %p152
    %s155 = sadd.s32 %s154, 1
    %p158 = scmp.eq.s32.totalorder %s15, 1
    %p159 = scmp.ne.s32.totalorder %s154, %s156
    %p160 = scmp.eq.s32.totalorder %s15, 0
    %p161 = por %p159, %p160
    %p162 = scmp.ne.s32.totalorder %s154, %s156
    %p163 = scmp.eq.s32.totalorder %s20, 1
    %p164 = por %p162, %p163
    %p165 = scmp.ne.s32.totalorder %s156, %s157
    %p166 = scmp.eq.s32.totalorder %s20, 0
    %p167 = por %p165, %p166
    %p168 = scmp.ne.s32.totalorder %s156, %s157
    %p169 = scmp.eq.s32.totalorder %s21, 1
    %p170 = por %p168, %p169
    %p172 = scmp.ne.s32.totalorder %s157, %s171
    %p173 = scmp.eq.s32.totalorder %s21, 0
    %p174 = por %p172, %p173
    %s176 = sadd.s32 %s175, 1
    %p179 = scmp.eq.s32.totalorder %s15, 1
    %p180 = scmp.ne.s32.totalorder %s175, %s177
    %p181 = scmp.eq.s32.totalorder %s15, 0
    %p182 = por %p180, %p181
    %p183 = scmp.ne.s32.totalorder %s175, %s177
    %p184 = scmp.eq.s32.totalorder %s20, 1
    %p185 = por %p183, %p184
    %p186 = scmp.ne.s32.totalorder %s177, %s178
    %p187 = scmp.eq.s32.totalorder %s20, 0
    %p188 = por %p186, %p187
    %p189 = scmp.ne.s32.totalorder %s177, %s178
    %p190 = scmp.eq.s32.totalorder %s21, 1
    %p191 = por %p189, %p190
    %p193 = scmp.ne.s32.totalorder %s178, %s192
    %p194 = scmp.eq.s32.totalorder %s21, 0
    %p195 = por %p193, %p194
    %s197 = sadd.s32 %s196, 1
    %p200 = scmp.eq.s32.totalorder %s15, 1
    %p201 = scmp.ne.s32.totalorder %s196, %s198
    %p202 = scmp.eq.s32.totalorder %s15, 0
    %p203 = por %p201, %p202
    %p204 = scmp.ne.s32.totalorder %s196, %s198
    %p205 = scmp.eq.s32.totalorder %s20, 1
    %p206 = por %p204, %p205
    %p207 = scmp.ne.s32.totalorder %s198, %s199
    %p208 = scmp.eq.s32.totalorder %s20, 0
    %p209 = por %p207, %p208
    %p210 = scmp.ne.s32.totalorder %s198, %s199
    %p211 = scmp.eq.s32.totalorder %s21, 1
    %p212 = por %p210, %p211
    %p214 = scmp.ne.s32.totalorder %s199, %s213
    %p215 = scmp.eq.s32.totalorder %s21, 0
    %p216 = por %p214, %p215
    %s217 = ssub.s32 %s15, %s22
    %p218 = scmp.eq.s32.totalorder %s217, 0
    %s220 = sadd.s32 %s219, 1
    %s221 = scalar_select %p218, %s219, %s220
    %p224 = pneg %p218
    %p225 = scmp.eq.s32.totalorder %s15, 1
    %p226 = por %p224, %p225
    %p227 = scmp.ne.s32.totalorder %s219, %s222
    %p228 = scmp.eq.s32.totalorder %s15, 0
    %p229 = por %p227, %p228
    %p230 = scmp.ne.s32.totalorder %s219, %s222
    %p231 = scmp.eq.s32.totalorder %s20, 1
    %p232 = por %p230, %p231
    %p233 = scmp.ne.s32.totalorder %s222, %s223
    %p234 = scmp.eq.s32.totalorder %s20, 0
    %p235 = por %p233, %p234
    %p236 = scmp.ne.s32.totalorder %s222, %s223
    %p237 = scmp.eq.s32.totalorder %s21, 1
    %p238 = por %p236, %p237
    %p240 = scmp.ne.s32.totalorder %s223, %s239
    %p241 = scmp.eq.s32.totalorder %s21, 0
    %p242 = por %p240, %p241
    %p243 = scmp.le.s32.totalorder 1, %s15
    %p244 = scmp.lt.s32.totalorder %s15, 3
    %p245 = pnand %p243, %p244
    %p246 = pneg %p245
    // Predicated region
    $region9: #{_lambda_.1} parent=5 // pred_check
      _
    $region10: #{_lambda_.1} parent=5 // pred_check_branch
      %248 = sbr.rel (%p245) target = $region12
    $region11: #{_lambda_.1} parent=5 // pred_region
      %s249 = ssub.s32 %s15, 1
      // Predicated region
      $region13: #{_lambda_.1} parent=11 // pred_check
        %p250 = pneg %p62
      $region14: #{_lambda_.1} parent=11 // pred_check_branch
        %252 = sbr.rel (%p250) target = $region16
      $region15: #{_lambda_.1} parent=11 // pred_region
        _
      $region16: #{_lambda_.1} parent=11 // pred_fallthru
        _
      // Predicated region
      $region17: #{_lambda_.1} parent=11 // pred_check
        %p253 = pneg %p83
      $region18: #{_lambda_.1} parent=11 // pred_check_branch
        %255 = sbr.rel (%p253) target = $region20
      $region19: #{_lambda_.1} parent=11 // pred_region
        _
      $region20: #{_lambda_.1} parent=11 // pred_fallthru
        _
      // Predicated region
      $region21: #{_lambda_.1} parent=11 // pred_check
        %p256 = pneg %p104
      $region22: #{_lambda_.1} parent=11 // pred_check_branch
        %258 = sbr.rel (%p256) target = $region24
      $region23: #{_lambda_.1} parent=11 // pred_region
        _
      $region24: #{_lambda_.1} parent=11 // pred_fallthru
        _
      // Predicated region
      $region25: #{_lambda_.1} parent=11 // pred_check
        %p259 = pneg %p125
      $region26: #{_lambda_.1} parent=11 // pred_check_branch
        %261 = sbr.rel (%p259) target = $region28
      $region27: #{_lambda_.1} parent=11 // pred_region
        _
      $region28: #{_lambda_.1} parent=11 // pred_fallthru
        _
      // Predicated region
      $region29: #{_lambda_.1} parent=11 // pred_check
        %p262 = pneg %p146
      $region30: #{_lambda_.1} parent=11 // pred_check_branch
        %264 = sbr.rel (%p262) target = $region32
      $region31: #{_lambda_.1} parent=11 // pred_region
        _
      $region32: #{_lambda_.1} parent=11 // pred_fallthru
        _
      // Predicated region
      $region33: #{_lambda_.1} parent=11 // pred_check
        %p265 = pneg %p167
      $region34: #{_lambda_.1} parent=11 // pred_check_branch
        %267 = sbr.rel (%p265) target = $region36
      $region35: #{_lambda_.1} parent=11 // pred_region
        _
      $region36: #{_lambda_.1} parent=11 // pred_fallthru
        _
      // Predicated region
      $region37: #{_lambda_.1} parent=11 // pred_check
        %p268 = pneg %p188
      $region38: #{_lambda_.1} parent=11 // pred_check_branch
        %270 = sbr.rel (%p268) target = $region40
      $region39: #{_lambda_.1} parent=11 // pred_region
        _
      $region40: #{_lambda_.1} parent=11 // pred_fallthru
        _
      // Predicated region
      $region41: #{_lambda_.1} parent=11 // pred_check
        %p271 = pneg %p209
      $region42: #{_lambda_.1} parent=11 // pred_check_branch
        %273 = sbr.rel (%p271) target = $region44
      $region43: #{_lambda_.1} parent=11 // pred_region
        _
      $region44: #{_lambda_.1} parent=11 // pred_fallthru
        _
    $region12: #{_lambda_.1} parent=5 // pred_fallthru
      _
    %p274 = scmp.lt.s32.totalorder %s15, 2
    // Predicated region
    $region45: #{_lambda_.1} parent=5 // pred_check
      %p275 = pneg %p274
    $region46: #{_lambda_.1} parent=5 // pred_check_branch
      %277 = sbr.rel (%p275) target = $region48
    $region47: #{_lambda_.1} parent=5 // pred_region
      // Predicated region
      $region49: #{_lambda_.1} parent=47 // pred_check
        %p278 = pneg %p35
      $region50: #{_lambda_.1} parent=47 // pred_check_branch
        %280 = sbr.rel (%p278) target = $region52
      $region51: #{_lambda_.1} parent=47 // pred_region
        %p281 = scmp.lt.s32.totalorder %s15, 1
        %s282 = scalar_select %p281, %s15, 1
        %s283 = smul.addr %s282, 32
        %s284 = smul.addr %s283, 8
        %s285 = scalar_lea.vmem %s0, %s284
      $region52: #{_lambda_.1} parent=47 // pred_fallthru
        _
    $region48: #{_lambda_.1} parent=5 // pred_fallthru
      _
    %p286 = scmp.le.s32.totalorder 1, %s15
    %p287 = scmp.lt.s32.totalorder %s15, 3
    %p288 = pnand %p286, %p287
    %p289 = pneg %p288
    // Predicated region
    $region53: #{_lambda_.1} parent=5 // pred_check
      _
    $region54: #{_lambda_.1} parent=5 // pred_check_branch
      %291 = sbr.rel (%p288) target = $region56
    $region55: #{_lambda_.1} parent=5 // pred_region
      %s292 = ssub.s32 %s15, 1
      %p293 = scmp.lt.s32.totalorder %s20, 1
      %s294 = scalar_select %p293, %s20, 1
      %s295 = smul.addr %s294, 32
      %s296 = smul.addr %s295, 8
      %s297 = scalar_lea.vmem %s0, %s296
      %p298 = pneg %p41
      %p299 = pneg %p38
      %p300 = pneg %p62
      %p301 = pneg %p59
      %p302 = pneg %p83
      %p303 = pneg %p80
      %p304 = pneg %p104
      %p305 = pneg %p101
      %p306 = pneg %p125
      %p307 = pneg %p122
      %p308 = pneg %p146
      %p309 = pneg %p143
      %p310 = pneg %p167
      %p311 = pneg %p164
      %p312 = pneg %p188
      %p313 = pneg %p185
      %p314 = pneg %p209
      %p315 = pneg %p206
      %p316 = pneg %p235
      %p317 = pneg %p232
      %p318 = scmp.lt.s32.totalorder %s20, 1
      %s319 = scalar_select %p318, %s20, 1
      %s320 = smul.addr %s319, 32
      %s321 = smul.addr %s320, 8
      %s322 = scalar_lea.vmem %s9, %s321
      %p323 = scmp.lt.s32.totalorder %s20, 1
      %s324 = scalar_select %p323, %s20, 1
      %s325 = smul.addr %s324, 32
      %s326 = smul.addr %s325, 8
      %s327 = scalar_lea.vmem %s0, %s326
      %p328 = scmp.lt.s32.totalorder %s20, 1
      %s329 = scalar_select %p328, %s20, 1
      %s330 = smul.addr %s329, 32
      %s331 = smul.addr %s330, 8
      %s332 = scalar_lea.vmem %s9, %s331
      %v333 = vld [vmem:[%s327] sm:$0xff]
      %v334 = vld [vmem:[%s327 + $0x8] sm:$0xff]
      %v335 = vld [vmem:[%s327 + $0x10] sm:$0xff]
      %v336 = vld [vmem:[%s327 + $0x18] sm:$0xff]
      %v337 = vld [vmem:[%s327 + $0x20] sm:$0xff]
      %v338 = vld [vmem:[%s327 + $0x28] sm:$0xff]
      %v339 = vld [vmem:[%s327 + $0x30] sm:$0xff]
      %v340 = vld [vmem:[%s327 + $0x38] sm:$0xff]
      %v341 = vld [vmem:[%s327 + $0x40] sm:$0xff]
      %v342 = vld [vmem:[%s327 + $0x48] sm:$0xff]
      %v343 = vld [vmem:[%s327 + $0x50] sm:$0xff]
      %v344 = vld [vmem:[%s327 + $0x58] sm:$0xff]
      %v345 = vld [vmem:[%s327 + $0x60] sm:$0xff]
      %v346 = vld [vmem:[%s327 + $0x68] sm:$0xff]
      %v347 = vld [vmem:[%s327 + $0x70] sm:$0xff]
      %v348 = vld [vmem:[%s327 + $0x78] sm:$0xff]
      %v349 = vld [vmem:[%s327 + $0x80] sm:$0xff]
      %v350 = vld [vmem:[%s327 + $0x88] sm:$0xff]
      %v351 = vld [vmem:[%s327 + $0x90] sm:$0xff]
      %v352 = vld [vmem:[%s327 + $0x98] sm:$0xff]
      %v353 = vld [vmem:[%s327 + $0xa0] sm:$0xff]
      %v354 = vld [vmem:[%s327 + $0xa8] sm:$0xff]
      %v355 = vld [vmem:[%s327 + $0xb0] sm:$0xff]
      %v356 = vld [vmem:[%s327 + $0xb8] sm:$0xff]
      %v357 = vld [vmem:[%s327 + $0xc0] sm:$0xff]
      %v358 = vld [vmem:[%s327 + $0xc8] sm:$0xff]
      %v359 = vld [vmem:[%s327 + $0xd0] sm:$0xff]
      %v360 = vld [vmem:[%s327 + $0xd8] sm:$0xff]
      %v361 = vld [vmem:[%s327 + $0xe0] sm:$0xff]
      %v362 = vld [vmem:[%s327 + $0xe8] sm:$0xff]
      %v363 = vld [vmem:[%s327 + $0xf0] sm:$0xff]
      %v364 = vld [vmem:[%s327 + $0xf8] sm:$0xff]
      %v365 = vld [vmem:[%s1 + $0x4] sm:$0x1]
      %v366 = vperm.slane %v365, 0
      %v367 = vmul.f32 %v333, %v366
      %v368 = vmul.f32 %v334, %v366
      %v369 = vmul.f32 %v335, %v366
      %v370 = vmul.f32 %v336, %v366
      %v371 = vmul.f32 %v337, %v366
      %v372 = vmul.f32 %v338, %v366
      %v373 = vmul.f32 %v339, %v366
      %v374 = vmul.f32 %v340, %v366
      %v375 = vmul.f32 %v341, %v366
      %v376 = vmul.f32 %v342, %v366
      %v377 = vmul.f32 %v343, %v366
      %v378 = vmul.f32 %v344, %v366
      %v379 = vmul.f32 %v345, %v366
      %v380 = vmul.f32 %v346, %v366
      %v381 = vmul.f32 %v347, %v366
      %v382 = vmul.f32 %v348, %v366
      %v383 = vmul.f32 %v349, %v366
      %v384 = vmul.f32 %v350, %v366
      %v385 = vmul.f32 %v351, %v366
      %v386 = vmul.f32 %v352, %v366
      %v387 = vmul.f32 %v353, %v366
      %v388 = vmul.f32 %v354, %v366
      %v389 = vmul.f32 %v355, %v366
      %v390 = vmul.f32 %v356, %v366
      %v391 = vmul.f32 %v357, %v366
      %v392 = vmul.f32 %v358, %v366
      %v393 = vmul.f32 %v359, %v366
      %v394 = vmul.f32 %v360, %v366
      %v395 = vmul.f32 %v361, %v366
      %v396 = vmul.f32 %v362, %v366
      %v397 = vmul.f32 %v363, %v366
      %v398 = vmul.f32 %v364, %v366
      %v399 = vld [vmem:[%s2 + $0x4] sm:$0x1]
      %v400 = vperm.slane %v399, 0
      %v401 = vadd.f32 %v367, %v400
      %v402 = vadd.f32 %v368, %v400
      %v403 = vadd.f32 %v369, %v400
      %v404 = vadd.f32 %v370, %v400
      %v405 = vadd.f32 %v371, %v400
      %v406 = vadd.f32 %v372, %v400
      %v407 = vadd.f32 %v373, %v400
      %v408 = vadd.f32 %v374, %v400
      %v409 = vadd.f32 %v375, %v400
      %v410 = vadd.f32 %v376, %v400
      %v411 = vadd.f32 %v377, %v400
      %v412 = vadd.f32 %v378, %v400
      %v413 = vadd.f32 %v379, %v400
      %v414 = vadd.f32 %v380, %v400
      %v415 = vadd.f32 %v381, %v400
      %v416 = vadd.f32 %v382, %v400
      %v417 = vadd.f32 %v383, %v400
      %v418 = vadd.f32 %v384, %v400
      %v419 = vadd.f32 %v385, %v400
      %v420 = vadd.f32 %v386, %v400
      %v421 = vadd.f32 %v387, %v400
      %v422 = vadd.f32 %v388, %v400
      %v423 = vadd.f32 %v389, %v400
      %v424 = vadd.f32 %v390, %v400
      %v425 = vadd.f32 %v391, %v400
      %v426 = vadd.f32 %v392, %v400
      %v427 = vadd.f32 %v393, %v400
      %v428 = vadd.f32 %v394, %v400
      %v429 = vadd.f32 %v395, %v400
      %v430 = vadd.f32 %v396, %v400
      %v431 = vadd.f32 %v397, %v400
      %v432 = vadd.f32 %v398, %v400
      %v433 = vmax.f32 %v401, 0.0
      %v434 = vmax.f32 %v402, 0.0
      %v435 = vmax.f32 %v403, 0.0
      %v436 = vmax.f32 %v404, 0.0
      %v437 = vmax.f32 %v405, 0.0
      %v438 = vmax.f32 %v406, 0.0
      %v439 = vmax.f32 %v407, 0.0
      %v440 = vmax.f32 %v408, 0.0
      %v441 = vmax.f32 %v409, 0.0
      %v442 = vmax.f32 %v410, 0.0
      %v443 = vmax.f32 %v411, 0.0
      %v444 = vmax.f32 %v412, 0.0
      %v445 = vmax.f32 %v413, 0.0
      %v446 = vmax.f32 %v414, 0.0
      %v447 = vmax.f32 %v415, 0.0
      %v448 = vmax.f32 %v416, 0.0
      %v449 = vmax.f32 %v417, 0.0
      %v450 = vmax.f32 %v418, 0.0
      %v451 = vmax.f32 %v419, 0.0
      %v452 = vmax.f32 %v420, 0.0
      %v453 = vmax.f32 %v421, 0.0
      %v454 = vmax.f32 %v422, 0.0
      %v455 = vmax.f32 %v423, 0.0
      %v456 = vmax.f32 %v424, 0.0
      %v457 = vmax.f32 %v425, 0.0
      %v458 = vmax.f32 %v426, 0.0
      %v459 = vmax.f32 %v427, 0.0
      %v460 = vmax.f32 %v428, 0.0
      %v461 = vmax.f32 %v429, 0.0
      %v462 = vmax.f32 %v430, 0.0
      %v463 = vmax.f32 %v431, 0.0
      %v464 = vmax.f32 %v432, 0.0
      %s465 = scalar_lea.vmem %s3, 32
      %v466 = vld [vmem:[%s465] sm:$0xff]
      %v467 = vld [vmem:[%s4 + $0x4] sm:$0x1]
      %v468 = vperm.slane %v467, 0
      %vm469 = vcmask 64512
      %v471 = vsel %vm469, %v433, 0
      %v474 = vsel %vm469, %v434, 0
      %v477 = vsel %vm469, %v435, 0
      %v480 = vsel %vm469, %v436, 0
      %v483 = vsel %vm469, %v437, 0
      %v486 = vsel %vm469, %v438, 0
      %v489 = vsel %vm469, %v439, 0
      %v492 = vsel %vm469, %v440, 0
      %v495 = vsel %vm469, %v441, 0
      %v498 = vsel %vm469, %v442, 0
      %v501 = vsel %vm469, %v443, 0
      %v504 = vsel %vm469, %v444, 0
      %v507 = vsel %vm469, %v445, 0
      %v510 = vsel %vm469, %v446, 0
      %v513 = vsel %vm469, %v447, 0
      %v516 = vsel %vm469, %v448, 0
      %v519 = vsel %vm469, %v449, 0
      %v522 = vsel %vm469, %v450, 0
      %v525 = vsel %vm469, %v451, 0
      %v528 = vsel %vm469, %v452, 0
      %v531 = vsel %vm469, %v453, 0
      %v534 = vsel %vm469, %v454, 0
      %v537 = vsel %vm469, %v455, 0
      %v540 = vsel %vm469, %v456, 0
      %v543 = vsel %vm469, %v457, 0
      %v546 = vsel %vm469, %v458, 0
      %v549 = vsel %vm469, %v459, 0
      %v552 = vsel %vm469, %v460, 0
      %v555 = vsel %vm469, %v461, 0
      %v558 = vsel %vm469, %v462, 0
      %v561 = vsel %vm469, %v463, 0
      %v564 = vsel %vm469, %v464, 0
      %566 = vmatpush.msra.mxu0 0.0
      %567 = vmatpush.msra.mxu0 0.0
      %568 = vmatpush.msra.mxu0 0.0
      %569 = vmatpush.msra.mxu0 0.0
      %570 = vmatpush.msra.mxu0 0.0
      %571 = vmatpush.msra.mxu0 0.0
      %572 = vmatpush.msra.mxu0 0.0
      %573 = vmatpush.msra.mxu0 0.0
      %574 = vmatpush.msra.mxu0 0.0
      %575 = vmatpush.msra.mxu0 0.0
      %576 = vmatpush.msra.mxu0 0.0
      %577 = vmatpush.msra.mxu0 0.0
      %578 = vmatpush.msra.mxu0 0.0
      %579 = vmatpush.msra.mxu0 0.0
      %580 = vmatpush.msra.mxu0 0.0
      %581 = vmatpush.msra.mxu0 %v466
      %582 = vmatmul.f32.gmra.mxu0 %v471
      %v583 = vpop.f32.mrf.mxu0
      %v584 = vadd.f32 %v468, %v583
      %585 = vmatmul.f32.gmra.mxu0 %v474
      %v586 = vpop.f32.mrf.mxu0
      %v587 = vadd.f32 %v468, %v586
      %588 = vmatmul.f32.gmra.mxu0 %v477
      %v589 = vpop.f32.mrf.mxu0
      %v590 = vadd.f32 %v468, %v589
      %591 = vmatmul.f32.gmra.mxu0 %v480
      %v592 = vpop.f32.mrf.mxu0
      %v593 = vadd.f32 %v468, %v592
      %594 = vmatmul.f32.gmra.mxu0 %v483
      %v595 = vpop.f32.mrf.mxu0
      %v596 = vadd.f32 %v468, %v595
      %597 = vmatmul.f32.gmra.mxu0 %v486
      %v598 = vpop.f32.mrf.mxu0
      %v599 = vadd.f32 %v468, %v598
      %600 = vmatmul.f32.gmra.mxu0 %v489
      %v601 = vpop.f32.mrf.mxu0
      %v602 = vadd.f32 %v468, %v601
      %603 = vmatmul.f32.gmra.mxu0 %v492
      %v604 = vpop.f32.mrf.mxu0
      %v605 = vadd.f32 %v468, %v604
      %606 = vmatmul.f32.gmra.mxu0 %v495
      %v607 = vpop.f32.mrf.mxu0
      %v608 = vadd.f32 %v468, %v607
      %609 = vmatmul.f32.gmra.mxu0 %v498
      %v610 = vpop.f32.mrf.mxu0
      %v611 = vadd.f32 %v468, %v610
      %612 = vmatmul.f32.gmra.mxu0 %v501
      %v613 = vpop.f32.mrf.mxu0
      %v614 = vadd.f32 %v468, %v613
      %615 = vmatmul.f32.gmra.mxu0 %v504
      %v616 = vpop.f32.mrf.mxu0
      %v617 = vadd.f32 %v468, %v616
      %618 = vmatmul.f32.gmra.mxu0 %v507
      %v619 = vpop.f32.mrf.mxu0
      %v620 = vadd.f32 %v468, %v619
      %621 = vmatmul.f32.gmra.mxu0 %v510
      %v622 = vpop.f32.mrf.mxu0
      %v623 = vadd.f32 %v468, %v622
      %624 = vmatmul.f32.gmra.mxu0 %v513
      %v625 = vpop.f32.mrf.mxu0
      %v626 = vadd.f32 %v468, %v625
      %627 = vmatmul.f32.gmra.mxu0 %v516
      %v628 = vpop.f32.mrf.mxu0
      %v629 = vadd.f32 %v468, %v628
      %630 = vmatmul.f32.gmra.mxu0 %v519
      %v631 = vpop.f32.mrf.mxu0
      %v632 = vadd.f32 %v468, %v631
      %633 = vmatmul.f32.gmra.mxu0 %v522
      %v634 = vpop.f32.mrf.mxu0
      %v635 = vadd.f32 %v468, %v634
      %636 = vmatmul.f32.gmra.mxu0 %v525
      %v637 = vpop.f32.mrf.mxu0
      %v638 = vadd.f32 %v468, %v637
      %639 = vmatmul.f32.gmra.mxu0 %v528
      %v640 = vpop.f32.mrf.mxu0
      %v641 = vadd.f32 %v468, %v640
      %642 = vmatmul.f32.gmra.mxu0 %v531
      %v643 = vpop.f32.mrf.mxu0
      %v644 = vadd.f32 %v468, %v643
      %645 = vmatmul.f32.gmra.mxu0 %v534
      %v646 = vpop.f32.mrf.mxu0
      %v647 = vadd.f32 %v468, %v646
      %648 = vmatmul.f32.gmra.mxu0 %v537
      %v649 = vpop.f32.mrf.mxu0
      %v650 = vadd.f32 %v468, %v649
      %651 = vmatmul.f32.gmra.mxu0 %v540
      %v652 = vpop.f32.mrf.mxu0
      %v653 = vadd.f32 %v468, %v652
      %654 = vmatmul.f32.gmra.mxu0 %v543
      %v655 = vpop.f32.mrf.mxu0
      %v656 = vadd.f32 %v468, %v655
      %657 = vmatmul.f32.gmra.mxu0 %v546
      %v658 = vpop.f32.mrf.mxu0
      %v659 = vadd.f32 %v468, %v658
      %660 = vmatmul.f32.gmra.mxu0 %v549
      %v661 = vpop.f32.mrf.mxu0
      %v662 = vadd.f32 %v468, %v661
      %663 = vmatmul.f32.gmra.mxu0 %v552
      %v664 = vpop.f32.mrf.mxu0
      %v665 = vadd.f32 %v468, %v664
      %666 = vmatmul.f32.gmra.mxu0 %v555
      %v667 = vpop.f32.mrf.mxu0
      %v668 = vadd.f32 %v468, %v667
      %669 = vmatmul.f32.gmra.mxu0 %v558
      %v670 = vpop.f32.mrf.mxu0
      %v671 = vadd.f32 %v468, %v670
      %672 = vmatmul.f32.gmra.mxu0 %v561
      %v673 = vpop.f32.mrf.mxu0
      %v674 = vadd.f32 %v468, %v673
      %675 = vmatmul.f32.gmra.mxu0 %v564
      %v676 = vpop.f32.mrf.mxu0
      %v677 = vadd.f32 %v468, %v676
      %678 = vdwg.mxu0
      %v679 = vmax.f32 %v584, 0.0
      %v680 = vmax.f32 %v587, 0.0
      %v681 = vmax.f32 %v590, 0.0
      %v682 = vmax.f32 %v593, 0.0
      %v683 = vmax.f32 %v596, 0.0
      %v684 = vmax.f32 %v599, 0.0
      %v685 = vmax.f32 %v602, 0.0
      %v686 = vmax.f32 %v605, 0.0
      %v687 = vmax.f32 %v608, 0.0
      %v688 = vmax.f32 %v611, 0.0
      %v689 = vmax.f32 %v614, 0.0
      %v690 = vmax.f32 %v617, 0.0
      %v691 = vmax.f32 %v620, 0.0
      %v692 = vmax.f32 %v623, 0.0
      %v693 = vmax.f32 %v626, 0.0
      %v694 = vmax.f32 %v629, 0.0
      %v695 = vmax.f32 %v632, 0.0
      %v696 = vmax.f32 %v635, 0.0
      %v697 = vmax.f32 %v638, 0.0
      %v698 = vmax.f32 %v641, 0.0
      %v699 = vmax.f32 %v644, 0.0
      %v700 = vmax.f32 %v647, 0.0
      %v701 = vmax.f32 %v650, 0.0
      %v702 = vmax.f32 %v653, 0.0
      %v703 = vmax.f32 %v656, 0.0
      %v704 = vmax.f32 %v659, 0.0
      %v705 = vmax.f32 %v662, 0.0
      %v706 = vmax.f32 %v665, 0.0
      %v707 = vmax.f32 %v668, 0.0
      %v708 = vmax.f32 %v671, 0.0
      %v709 = vmax.f32 %v674, 0.0
      %v710 = vmax.f32 %v677, 0.0
      %s711 = scalar_lea.vmem %s5, 192
      %v712 = vld [vmem:[%s711] sm:$0xff]
      %v713 = vld [vmem:[%s711 + $0x8] sm:$0xf]
      %v714 = vld [vmem:[%s711 + $0x10] sm:$0xff]
      %v715 = vld [vmem:[%s711 + $0x18] sm:$0xf]
      %v716 = vld [vmem:[%s711 + $0x20] sm:$0xff]
      %v717 = vld [vmem:[%s711 + $0x28] sm:$0xf]
      %v718 = vld [vmem:[%s6 + $0x4] sm:$0x1]
      %751 = vrot.lane.b32.xlu0 %v679, 4
      %v752 = vpop.permute.xlu0 %751
      %753 = vrot.lane.b32.xlu0 %v680, 4
      %v754 = vpop.permute.xlu0 %753
      %755 = vrot.lane.b32.xlu0 %v681, 4
      %v756 = vpop.permute.xlu0 %755
      %757 = vrot.lane.b32.xlu0 %v682, 4
      %v758 = vpop.permute.xlu0 %757
      %759 = vrot.lane.b32.xlu0 %v683, 4
      %v760 = vpop.permute.xlu0 %759
      %761 = vrot.lane.b32.xlu0 %v684, 4
      %v762 = vpop.permute.xlu0 %761
      %763 = vrot.lane.b32.xlu0 %v685, 4
      %v764 = vpop.permute.xlu0 %763
      %765 = vrot.lane.b32.xlu0 %v686, 4
      %v766 = vpop.permute.xlu0 %765
      %767 = vrot.lane.b32.xlu0 %v687, 4
      %v768 = vpop.permute.xlu0 %767
      %769 = vrot.lane.b32.xlu0 %v688, 4
      %v770 = vpop.permute.xlu0 %769
      %771 = vrot.lane.b32.xlu0 %v689, 4
      %v772 = vpop.permute.xlu0 %771
      %773 = vrot.lane.b32.xlu0 %v690, 4
      %v774 = vpop.permute.xlu0 %773
      %775 = vrot.lane.b32.xlu0 %v691, 4
      %v776 = vpop.permute.xlu0 %775
      %777 = vrot.lane.b32.xlu0 %v692, 4
      %v778 = vpop.permute.xlu0 %777
      %779 = vrot.lane.b32.xlu0 %v693, 4
      %v780 = vpop.permute.xlu0 %779
      %781 = vrot.lane.b32.xlu0 %v694, 4
      %v782 = vpop.permute.xlu0 %781
      %783 = vrot.lane.b32.xlu0 %v695, 4
      %v784 = vpop.permute.xlu0 %783
      %785 = vrot.lane.b32.xlu0 %v696, 4
      %v786 = vpop.permute.xlu0 %785
      %787 = vrot.lane.b32.xlu0 %v697, 4
      %v788 = vpop.permute.xlu0 %787
      %789 = vrot.lane.b32.xlu0 %v698, 4
      %v790 = vpop.permute.xlu0 %789
      %791 = vrot.lane.b32.xlu0 %v699, 4
      %v792 = vpop.permute.xlu0 %791
      %793 = vrot.lane.b32.xlu0 %v700, 4
      %v794 = vpop.permute.xlu0 %793
      %795 = vrot.lane.b32.xlu0 %v701, 4
      %v796 = vpop.permute.xlu0 %795
      %797 = vrot.lane.b32.xlu0 %v702, 4
      %v798 = vpop.permute.xlu0 %797
      %799 = vrot.lane.b32.xlu0 %v703, 4
      %v800 = vpop.permute.xlu0 %799
      %801 = vrot.lane.b32.xlu0 %v704, 4
      %v802 = vpop.permute.xlu0 %801
      %803 = vrot.lane.b32.xlu0 %v705, 4
      %v804 = vpop.permute.xlu0 %803
      %805 = vrot.lane.b32.xlu0 %v706, 4
      %v806 = vpop.permute.xlu0 %805
      %807 = vrot.lane.b32.xlu0 %v707, 4
      %v808 = vpop.permute.xlu0 %807
      %809 = vrot.lane.b32.xlu0 %v708, 4
      %v810 = vpop.permute.xlu0 %809
      %811 = vrot.lane.b32.xlu0 %v709, 4
      %v812 = vpop.permute.xlu0 %811
      %813 = vrot.lane.b32.xlu0 %v710, 4
      %v814 = vpop.permute.xlu0 %813
      %848 = vrot.lane.b32.xlu0 %v681, 8
      %v849 = vpop.permute.xlu0 %848
      %850 = vrot.lane.b32.xlu0 %v682, 8
      %v851 = vpop.permute.xlu0 %850
      %852 = vrot.lane.b32.xlu0 %v683, 8
      %v853 = vpop.permute.xlu0 %852
      %854 = vrot.lane.b32.xlu0 %v684, 8
      %v855 = vpop.permute.xlu0 %854
      %856 = vrot.lane.b32.xlu0 %v685, 8
      %v857 = vpop.permute.xlu0 %856
      %858 = vrot.lane.b32.xlu0 %v686, 8
      %v859 = vpop.permute.xlu0 %858
      %860 = vrot.lane.b32.xlu0 %v687, 8
      %v861 = vpop.permute.xlu0 %860
      %862 = vrot.lane.b32.xlu0 %v688, 8
      %v863 = vpop.permute.xlu0 %862
      %864 = vrot.lane.b32.xlu0 %v689, 8
      %v865 = vpop.permute.xlu0 %864
      %866 = vrot.lane.b32.xlu0 %v690, 8
      %v867 = vpop.permute.xlu0 %866
      %868 = vrot.lane.b32.xlu0 %v691, 8
      %v869 = vpop.permute.xlu0 %868
      %870 = vrot.lane.b32.xlu0 %v692, 8
      %v871 = vpop.permute.xlu0 %870
      %872 = vrot.lane.b32.xlu0 %v693, 8
      %v873 = vpop.permute.xlu0 %872
      %874 = vrot.lane.b32.xlu0 %v694, 8
      %v875 = vpop.permute.xlu0 %874
      %876 = vrot.lane.b32.xlu0 %v695, 8
      %v877 = vpop.permute.xlu0 %876
      %878 = vrot.lane.b32.xlu0 %v696, 8
      %v879 = vpop.permute.xlu0 %878
      %880 = vrot.lane.b32.xlu0 %v697, 8
      %v881 = vpop.permute.xlu0 %880
      %882 = vrot.lane.b32.xlu0 %v698, 8
      %v883 = vpop.permute.xlu0 %882
      %884 = vrot.lane.b32.xlu0 %v699, 8
      %v885 = vpop.permute.xlu0 %884
      %886 = vrot.lane.b32.xlu0 %v700, 8
      %v887 = vpop.permute.xlu0 %886
      %888 = vrot.lane.b32.xlu0 %v701, 8
      %v889 = vpop.permute.xlu0 %888
      %890 = vrot.lane.b32.xlu0 %v702, 8
      %v891 = vpop.permute.xlu0 %890
      %892 = vrot.lane.b32.xlu0 %v703, 8
      %v893 = vpop.permute.xlu0 %892
      %894 = vrot.lane.b32.xlu0 %v704, 8
      %v895 = vpop.permute.xlu0 %894
      %896 = vrot.lane.b32.xlu0 %v705, 8
      %v897 = vpop.permute.xlu0 %896
      %898 = vrot.lane.b32.xlu0 %v706, 8
      %v899 = vpop.permute.xlu0 %898
      %900 = vrot.lane.b32.xlu0 %v707, 8
      %v901 = vpop.permute.xlu0 %900
      %902 = vrot.lane.b32.xlu0 %v708, 8
      %v903 = vpop.permute.xlu0 %902
      %904 = vrot.lane.b32.xlu0 %v709, 8
      %v905 = vpop.permute.xlu0 %904
      %906 = vrot.lane.b32.xlu0 %v710, 8
      %v907 = vpop.permute.xlu0 %906
      %908 = vrot.lane.b32.xlu0 0.0, 8
      %v909 = vpop.permute.xlu0 %908
      %vm941 = vcmask 31744
      %v942 = vsel %vm941, 0.0, %v752
      %v943 = vsel %vm941, 0.0, %v754
      %v944 = vsel %vm941, %v679, %v756
      %v945 = vsel %vm941, %v680, %v758
      %v946 = vsel %vm941, %v681, %v760
      %v947 = vsel %vm941, %v682, %v762
      %v948 = vsel %vm941, %v683, %v764
      %v949 = vsel %vm941, %v684, %v766
      %v950 = vsel %vm941, %v685, %v768
      %v951 = vsel %vm941, %v686, %v770
      %v952 = vsel %vm941, %v687, %v772
      %v953 = vsel %vm941, %v688, %v774
      %v954 = vsel %vm941, %v689, %v776
      %v955 = vsel %vm941, %v690, %v778
      %v956 = vsel %vm941, %v691, %v780
      %v957 = vsel %vm941, %v692, %v782
      %v958 = vsel %vm941, %v693, %v784
      %v959 = vsel %vm941, %v694, %v786
      %v960 = vsel %vm941, %v695, %v788
      %v961 = vsel %vm941, %v696, %v790
      %v962 = vsel %vm941, %v697, %v792
      %v963 = vsel %vm941, %v698, %v794
      %v964 = vsel %vm941, %v699, %v796
      %v965 = vsel %vm941, %v700, %v798
      %v966 = vsel %vm941, %v701, %v800
      %v967 = vsel %vm941, %v702, %v802
      %v968 = vsel %vm941, %v703, %v804
      %v969 = vsel %vm941, %v704, %v806
      %v970 = vsel %vm941, %v705, %v808
      %v971 = vsel %vm941, %v706, %v810
      %v972 = vsel %vm941, %v707, %v812
      %v973 = vsel %vm941, %v708, %v814
      %v974 = vsel %vm469, %v942, %v849
      %v975 = vsel %vm469, %v943, %v851
      %v976 = vsel %vm469, %v944, %v853
      %v977 = vsel %vm469, %v945, %v855
      %v978 = vsel %vm469, %v946, %v857
      %v979 = vsel %vm469, %v947, %v859
      %v980 = vsel %vm469, %v948, %v861
      %v981 = vsel %vm469, %v949, %v863
      %v982 = vsel %vm469, %v950, %v865
      %v983 = vsel %vm469, %v951, %v867
      %v984 = vsel %vm469, %v952, %v869
      %v985 = vsel %vm469, %v953, %v871
      %v986 = vsel %vm469, %v954, %v873
      %v987 = vsel %vm469, %v955, %v875
      %v988 = vsel %vm469, %v956, %v877
      %v989 = vsel %vm469, %v957, %v879
      %v990 = vsel %vm469, %v958, %v881
      %v991 = vsel %vm469, %v959, %v883
      %v992 = vsel %vm469, %v960, %v885
      %v993 = vsel %vm469, %v961, %v887
      %v994 = vsel %vm469, %v962, %v889
      %v995 = vsel %vm469, %v963, %v891
      %v996 = vsel %vm469, %v964, %v893
      %v997 = vsel %vm469, %v965, %v895
      %v998 = vsel %vm469, %v966, %v897
      %v999 = vsel %vm469, %v967, %v899
      %v1000 = vsel %vm469, %v968, %v901
      %v1001 = vsel %vm469, %v969, %v903
      %v1002 = vsel %vm469, %v970, %v905
      %v1003 = vsel %vm469, %v971, %v907
      %v1004 = vsel %vm469, %v972, %v909
      %v1005 = vsel %vm469, %v973, %v909
      %vm1006 = vcmask 97280
      %v1008 = vsel %vm1006, %v974, 0
      %v1011 = vsel %vm1006, %v975, 0
      %v1014 = vsel %vm1006, %v976, 0
      %v1017 = vsel %vm1006, %v977, 0
      %v1020 = vsel %vm1006, %v978, 0
      %v1023 = vsel %vm1006, %v979, 0
      %v1026 = vsel %vm1006, %v980, 0
      %v1029 = vsel %vm1006, %v981, 0
      %v1032 = vsel %vm1006, %v982, 0
      %v1035 = vsel %vm1006, %v983, 0
      %v1038 = vsel %vm1006, %v984, 0
      %v1041 = vsel %vm1006, %v985, 0
      %v1044 = vsel %vm1006, %v986, 0
      %v1047 = vsel %vm1006, %v987, 0
      %v1050 = vsel %vm1006, %v988, 0
      %v1053 = vsel %vm1006, %v989, 0
      %v1056 = vsel %vm1006, %v990, 0
      %v1059 = vsel %vm1006, %v991, 0
      %v1062 = vsel %vm1006, %v992, 0
      %v1065 = vsel %vm1006, %v993, 0
      %v1068 = vsel %vm1006, %v994, 0
      %v1071 = vsel %vm1006, %v995, 0
      %v1074 = vsel %vm1006, %v996, 0
      %v1077 = vsel %vm1006, %v997, 0
      %v1080 = vsel %vm1006, %v998, 0
      %v1083 = vsel %vm1006, %v999, 0
      %v1086 = vsel %vm1006, %v1000, 0
      %v1089 = vsel %vm1006, %v1001, 0
      %v1092 = vsel %vm1006, %v1002, 0
      %v1095 = vsel %vm1006, %v1003, 0
      %v1098 = vsel %vm1006, %v1004, 0
      %v1101 = vsel %vm1006, %v1005, 0
      %vm1103 = vcmask 1043456
      %v1105 = vsel %vm1103, %v713, 0
      %1107 = vmatpush.msra.mxu0 0.0
      %1108 = vmatpush.msra.mxu0 0.0
      %1109 = vmatpush.msra.mxu0 0.0
      %1110 = vmatpush.msra.mxu0 0.0
      %1111 = vmatpush.msra.mxu0 0.0
      %1112 = vmatpush.msra.mxu0 0.0
      %1113 = vmatpush.msra.mxu0 0.0
      %1114 = vmatpush.msra.mxu0 0.0
      %1115 = vmatpush.msra.mxu0 0.0
      %1116 = vmatpush.msra.mxu0 0.0
      %1117 = vmatpush.msra.mxu0 0.0
      %1118 = vmatpush.msra.mxu0 0.0
      %1119 = vmatpush.msra.mxu0 0.0
      %1120 = vmatpush.msra.mxu0 0.0
      %1121 = vmatpush.msra.mxu0 %v1105
      %1122 = vmatpush.msra.mxu0 %v712
      %1123 = vmatmul.f32.gmra.mxu0 %v1008
      %v1124 = vpop.f32.mrf.mxu0
      %v1125 = vadd.f32 0.0, %v1124
      %1126 = vmatmul.f32.gmra.mxu0 %v1011
      %v1127 = vpop.f32.mrf.mxu0
      %v1128 = vadd.f32 0.0, %v1127
      %1129 = vmatmul.f32.gmra.mxu0 %v1014
      %v1130 = vpop.f32.mrf.mxu0
      %v1131 = vadd.f32 0.0, %v1130
      %1132 = vmatmul.f32.gmra.mxu0 %v1017
      %v1133 = vpop.f32.mrf.mxu0
      %v1134 = vadd.f32 0.0, %v1133
      %1135 = vmatmul.f32.gmra.mxu0 %v1020
      %v1136 = vpop.f32.mrf.mxu0
      %v1137 = vadd.f32 0.0, %v1136
      %1138 = vmatmul.f32.gmra.mxu0 %v1023
      %v1139 = vpop.f32.mrf.mxu0
      %v1140 = vadd.f32 0.0, %v1139
      %1141 = vmatmul.f32.gmra.mxu0 %v1026
      %v1142 = vpop.f32.mrf.mxu0
      %v1143 = vadd.f32 0.0, %v1142
      %1144 = vmatmul.f32.gmra.mxu0 %v1029
      %v1145 = vpop.f32.mrf.mxu0
      %v1146 = vadd.f32 0.0, %v1145
      %1147 = vmatmul.f32.gmra.mxu0 %v1032
      %v1148 = vpop.f32.mrf.mxu0
      %v1149 = vadd.f32 0.0, %v1148
      %1150 = vmatmul.f32.gmra.mxu0 %v1035
      %v1151 = vpop.f32.mrf.mxu0
      %v1152 = vadd.f32 0.0, %v1151
      %1153 = vmatmul.f32.gmra.mxu0 %v1038
      %v1154 = vpop.f32.mrf.mxu0
      %v1155 = vadd.f32 0.0, %v1154
      %1156 = vmatmul.f32.gmra.mxu0 %v1041
      %v1157 = vpop.f32.mrf.mxu0
      %v1158 = vadd.f32 0.0, %v1157
      %1159 = vmatmul.f32.gmra.mxu0 %v1044
      %v1160 = vpop.f32.mrf.mxu0
      %v1161 = vadd.f32 0.0, %v1160
      %1162 = vmatmul.f32.gmra.mxu0 %v1047
      %v1163 = vpop.f32.mrf.mxu0
      %v1164 = vadd.f32 0.0, %v1163
      %1165 = vmatmul.f32.gmra.mxu0 %v1050
      %v1166 = vpop.f32.mrf.mxu0
      %v1167 = vadd.f32 0.0, %v1166
      %1168 = vmatmul.f32.gmra.mxu0 %v1053
      %v1169 = vpop.f32.mrf.mxu0
      %v1170 = vadd.f32 0.0, %v1169
      %1171 = vmatmul.f32.gmra.mxu0 %v1056
      %v1172 = vpop.f32.mrf.mxu0
      %v1173 = vadd.f32 0.0, %v1172
      %1174 = vmatmul.f32.gmra.mxu0 %v1059
      %v1175 = vpop.f32.mrf.mxu0
      %v1176 = vadd.f32 0.0, %v1175
      %1177 = vmatmul.f32.gmra.mxu0 %v1062
      %v1178 = vpop.f32.mrf.mxu0
      %v1179 = vadd.f32 0.0, %v1178
      %1180 = vmatmul.f32.gmra.mxu0 %v1065
      %v1181 = vpop.f32.mrf.mxu0
      %v1182 = vadd.f32 0.0, %v1181
      %1183 = vmatmul.f32.gmra.mxu0 %v1068
      %v1184 = vpop.f32.mrf.mxu0
      %v1185 = vadd.f32 0.0, %v1184
      %1186 = vmatmul.f32.gmra.mxu0 %v1071
      %v1187 = vpop.f32.mrf.mxu0
      %v1188 = vadd.f32 0.0, %v1187
      %1189 = vmatmul.f32.gmra.mxu0 %v1074
      %v1190 = vpop.f32.mrf.mxu0
      %v1191 = vadd.f32 0.0, %v1190
      %1192 = vmatmul.f32.gmra.mxu0 %v1077
      %v1193 = vpop.f32.mrf.mxu0
      %v1194 = vadd.f32 0.0, %v1193
      %1195 = vmatmul.f32.gmra.mxu0 %v1080
      %v1196 = vpop.f32.mrf.mxu0
      %v1197 = vadd.f32 0.0, %v1196
      %1198 = vmatmul.f32.gmra.mxu0 %v1083
      %v1199 = vpop.f32.mrf.mxu0
      %v1200 = vadd.f32 0.0, %v1199
      %1201 = vmatmul.f32.gmra.mxu0 %v1086
      %v1202 = vpop.f32.mrf.mxu0
      %v1203 = vadd.f32 0.0, %v1202
      %1204 = vmatmul.f32.gmra.mxu0 %v1089
      %v1205 = vpop.f32.mrf.mxu0
      %v1206 = vadd.f32 0.0, %v1205
      %1207 = vmatmul.f32.gmra.mxu0 %v1092
      %v1208 = vpop.f32.mrf.mxu0
      %v1209 = vadd.f32 0.0, %v1208
      %1210 = vmatmul.f32.gmra.mxu0 %v1095
      %v1211 = vpop.f32.mrf.mxu0
      %v1212 = vadd.f32 0.0, %v1211
      %1213 = vmatmul.f32.gmra.mxu0 %v1098
      %v1214 = vpop.f32.mrf.mxu0
      %v1215 = vadd.f32 0.0, %v1214
      %1216 = vmatmul.f32.gmra.mxu0 %v1101
      %v1217 = vpop.f32.mrf.mxu0
      %v1218 = vadd.f32 0.0, %v1217
      %1219 = vdwg.mxu0
      %v1221 = vsel %vm1103, %v717, 0
      %1223 = vmatpush.msra.mxu0 0.0
      %1224 = vmatpush.msra.mxu0 0.0
      %1225 = vmatpush.msra.mxu0 0.0
      %1226 = vmatpush.msra.mxu0 0.0
      %1227 = vmatpush.msra.mxu0 0.0
      %1228 = vmatpush.msra.mxu0 0.0
      %1229 = vmatpush.msra.mxu0 0.0
      %1230 = vmatpush.msra.mxu0 0.0
      %1231 = vmatpush.msra.mxu0 0.0
      %1232 = vmatpush.msra.mxu0 0.0
      %1233 = vmatpush.msra.mxu0 0.0
      %1234 = vmatpush.msra.mxu0 0.0
      %1235 = vmatpush.msra.mxu0 0.0
      %1236 = vmatpush.msra.mxu0 0.0
      %1237 = vmatpush.msra.mxu0 %v1221
      %1238 = vmatpush.msra.mxu0 %v716
      %1239 = vmatmul.f32.gmra.mxu0 %v1008
      %v1240 = vpop.f32.mrf.mxu0
      %v1241 = vadd.f32 0.0, %v1240
      %1242 = vmatmul.f32.gmra.mxu0 %v1011
      %v1243 = vpop.f32.mrf.mxu0
      %v1244 = vadd.f32 0.0, %v1243
      %1245 = vmatmul.f32.gmra.mxu0 %v1014
      %v1246 = vpop.f32.mrf.mxu0
      %v1247 = vadd.f32 0.0, %v1246
      %1248 = vmatmul.f32.gmra.mxu0 %v1017
      %v1249 = vpop.f32.mrf.mxu0
      %v1250 = vadd.f32 0.0, %v1249
      %1251 = vmatmul.f32.gmra.mxu0 %v1020
      %v1252 = vpop.f32.mrf.mxu0
      %v1253 = vadd.f32 0.0, %v1252
      %1254 = vmatmul.f32.gmra.mxu0 %v1023
      %v1255 = vpop.f32.mrf.mxu0
      %v1256 = vadd.f32 0.0, %v1255
      %1257 = vmatmul.f32.gmra.mxu0 %v1026
      %v1258 = vpop.f32.mrf.mxu0
      %v1259 = vadd.f32 0.0, %v1258
      %1260 = vmatmul.f32.gmra.mxu0 %v1029
      %v1261 = vpop.f32.mrf.mxu0
      %v1262 = vadd.f32 0.0, %v1261
      %1263 = vmatmul.f32.gmra.mxu0 %v1032
      %v1264 = vpop.f32.mrf.mxu0
      %v1265 = vadd.f32 0.0, %v1264
      %1266 = vmatmul.f32.gmra.mxu0 %v1035
      %v1267 = vpop.f32.mrf.mxu0
      %v1268 = vadd.f32 0.0, %v1267
      %1269 = vmatmul.f32.gmra.mxu0 %v1038
      %v1270 = vpop.f32.mrf.mxu0
      %v1271 = vadd.f32 0.0, %v1270
      %1272 = vmatmul.f32.gmra.mxu0 %v1041
      %v1273 = vpop.f32.mrf.mxu0
      %v1274 = vadd.f32 0.0, %v1273
      %1275 = vmatmul.f32.gmra.mxu0 %v1044
      %v1276 = vpop.f32.mrf.mxu0
      %v1277 = vadd.f32 0.0, %v1276
      %1278 = vmatmul.f32.gmra.mxu0 %v1047
      %v1279 = vpop.f32.mrf.mxu0
      %v1280 = vadd.f32 0.0, %v1279
      %1281 = vmatmul.f32.gmra.mxu0 %v1050
      %v1282 = vpop.f32.mrf.mxu0
      %v1283 = vadd.f32 0.0, %v1282
      %1284 = vmatmul.f32.gmra.mxu0 %v1053
      %v1285 = vpop.f32.mrf.mxu0
      %v1286 = vadd.f32 0.0, %v1285
      %1287 = vmatmul.f32.gmra.mxu0 %v1056
      %v1288 = vpop.f32.mrf.mxu0
      %v1289 = vadd.f32 0.0, %v1288
      %1290 = vmatmul.f32.gmra.mxu0 %v1059
      %v1291 = vpop.f32.mrf.mxu0
      %v1292 = vadd.f32 0.0, %v1291
      %1293 = vmatmul.f32.gmra.mxu0 %v1062
      %v1294 = vpop.f32.mrf.mxu0
      %v1295 = vadd.f32 0.0, %v1294
      %1296 = vmatmul.f32.gmra.mxu0 %v1065
      %v1297 = vpop.f32.mrf.mxu0
      %v1298 = vadd.f32 0.0, %v1297
      %1299 = vmatmul.f32.gmra.mxu0 %v1068
      %v1300 = vpop.f32.mrf.mxu0
      %v1301 = vadd.f32 0.0, %v1300
      %1302 = vmatmul.f32.gmra.mxu0 %v1071
      %v1303 = vpop.f32.mrf.mxu0
      %v1304 = vadd.f32 0.0, %v1303
      %1305 = vmatmul.f32.gmra.mxu0 %v1074
      %v1306 = vpop.f32.mrf.mxu0
      %v1307 = vadd.f32 0.0, %v1306
      %1308 = vmatmul.f32.gmra.mxu0 %v1077
      %v1309 = vpop.f32.mrf.mxu0
      %v1310 = vadd.f32 0.0, %v1309
      %1311 = vmatmul.f32.gmra.mxu0 %v1080
      %v1312 = vpop.f32.mrf.mxu0
      %v1313 = vadd.f32 0.0, %v1312
      %1314 = vmatmul.f32.gmra.mxu0 %v1083
      %v1315 = vpop.f32.mrf.mxu0
      %v1316 = vadd.f32 0.0, %v1315
      %1317 = vmatmul.f32.gmra.mxu0 %v1086
      %v1318 = vpop.f32.mrf.mxu0
      %v1319 = vadd.f32 0.0, %v1318
      %1320 = vmatmul.f32.gmra.mxu0 %v1089
      %v1321 = vpop.f32.mrf.mxu0
      %v1322 = vadd.f32 0.0, %v1321
      %1323 = vmatmul.f32.gmra.mxu0 %v1092
      %v1324 = vpop.f32.mrf.mxu0
      %v1325 = vadd.f32 0.0, %v1324
      %1326 = vmatmul.f32.gmra.mxu0 %v1095
      %v1327 = vpop.f32.mrf.mxu0
      %v1328 = vadd.f32 0.0, %v1327
      %1329 = vmatmul.f32.gmra.mxu0 %v1098
      %v1330 = vpop.f32.mrf.mxu0
      %v1331 = vadd.f32 0.0, %v1330
      %1332 = vmatmul.f32.gmra.mxu0 %v1101
      %v1333 = vpop.f32.mrf.mxu0
      %v1334 = vadd.f32 0.0, %v1333
      %1335 = vdwg.mxu0
      %vm1368 = vcmask 1040384
      %v1369 = vrot.slane %v1125, 7
      %v1370 = vrot.slane %v1128, 7
      %v1371 = vsel %vm1368, %v1369, %v1370
      %v1372 = vrot.slane %v1131, 7
      %v1373 = vsel %vm1368, %v1370, %v1372
      %v1374 = vrot.slane %v1134, 7
      %v1375 = vsel %vm1368, %v1372, %v1374
      %v1376 = vrot.slane %v1137, 7
      %v1377 = vsel %vm1368, %v1374, %v1376
      %v1378 = vrot.slane %v1140, 7
      %v1379 = vsel %vm1368, %v1376, %v1378
      %v1380 = vrot.slane %v1143, 7
      %v1381 = vsel %vm1368, %v1378, %v1380
      %v1382 = vrot.slane %v1146, 7
      %v1383 = vsel %vm1368, %v1380, %v1382
      %v1384 = vrot.slane %v1149, 7
      %v1385 = vsel %vm1368, %v1382, %v1384
      %v1386 = vrot.slane %v1152, 7
      %v1387 = vsel %vm1368, %v1384, %v1386
      %v1388 = vrot.slane %v1155, 7
      %v1389 = vsel %vm1368, %v1386, %v1388
      %v1390 = vrot.slane %v1158, 7
      %v1391 = vsel %vm1368, %v1388, %v1390
      %v1392 = vrot.slane %v1161, 7
      %v1393 = vsel %vm1368, %v1390, %v1392
      %v1394 = vrot.slane %v1164, 7
      %v1395 = vsel %vm1368, %v1392, %v1394
      %v1396 = vrot.slane %v1167, 7
      %v1397 = vsel %vm1368, %v1394, %v1396
      %v1398 = vrot.slane %v1170, 7
      %v1399 = vsel %vm1368, %v1396, %v1398
      %v1400 = vrot.slane %v1173, 7
      %v1401 = vsel %vm1368, %v1398, %v1400
      %v1402 = vrot.slane %v1176, 7
      %v1403 = vsel %vm1368, %v1400, %v1402
      %v1404 = vrot.slane %v1179, 7
      %v1405 = vsel %vm1368, %v1402, %v1404
      %v1406 = vrot.slane %v1182, 7
      %v1407 = vsel %vm1368, %v1404, %v1406
      %v1408 = vrot.slane %v1185, 7
      %v1409 = vsel %vm1368, %v1406, %v1408
      %v1410 = vrot.slane %v1188, 7
      %v1411 = vsel %vm1368, %v1408, %v1410
      %v1412 = vrot.slane %v1191, 7
      %v1413 = vsel %vm1368, %v1410, %v1412
      %v1414 = vrot.slane %v1194, 7
      %v1415 = vsel %vm1368, %v1412, %v1414
      %v1416 = vrot.slane %v1197, 7
      %v1417 = vsel %vm1368, %v1414, %v1416
      %v1418 = vrot.slane %v1200, 7
      %v1419 = vsel %vm1368, %v1416, %v1418
      %v1420 = vrot.slane %v1203, 7
      %v1421 = vsel %vm1368, %v1418, %v1420
      %v1422 = vrot.slane %v1206, 7
      %v1423 = vsel %vm1368, %v1420, %v1422
      %v1424 = vrot.slane %v1209, 7
      %v1425 = vsel %vm1368, %v1422, %v1424
      %v1426 = vrot.slane %v1212, 7
      %v1427 = vsel %vm1368, %v1424, %v1426
      %v1428 = vrot.slane %v1215, 7
      %v1429 = vsel %vm1368, %v1426, %v1428
      %v1430 = vrot.slane %v1218, 7
      %v1431 = vsel %vm1368, %v1428, %v1430
      %v1464 = vsel %vm1368, 0.0, %v1369
      %vm1497 = vcmask 1046528
      %v1498 = vrot.slane %v1241, 1
      %v1499 = vrot.slane %v1244, 1
      %v1500 = vsel %vm1497, %v1498, %v1499
      %v1501 = vrot.slane %v1247, 1
      %v1502 = vsel %vm1497, %v1499, %v1501
      %v1503 = vrot.slane %v1250, 1
      %v1504 = vsel %vm1497, %v1501, %v1503
      %v1505 = vrot.slane %v1253, 1
      %v1506 = vsel %vm1497, %v1503, %v1505
      %v1507 = vrot.slane %v1256, 1
      %v1508 = vsel %vm1497, %v1505, %v1507
      %v1509 = vrot.slane %v1259, 1
      %v1510 = vsel %vm1497, %v1507, %v1509
      %v1511 = vrot.slane %v1262, 1
      %v1512 = vsel %vm1497, %v1509, %v1511
      %v1513 = vrot.slane %v1265, 1
      %v1514 = vsel %vm1497, %v1511, %v1513
      %v1515 = vrot.slane %v1268, 1
      %v1516 = vsel %vm1497, %v1513, %v1515
      %v1517 = vrot.slane %v1271, 1
      %v1518 = vsel %vm1497, %v1515, %v1517
      %v1519 = vrot.slane %v1274, 1
      %v1520 = vsel %vm1497, %v1517, %v1519
      %v1521 = vrot.slane %v1277, 1
      %v1522 = vsel %vm1497, %v1519, %v1521
      %v1523 = vrot.slane %v1280, 1
      %v1524 = vsel %vm1497, %v1521, %v1523
      %v1525 = vrot.slane %v1283, 1
      %v1526 = vsel %vm1497, %v1523, %v1525
      %v1527 = vrot.slane %v1286, 1
      %v1528 = vsel %vm1497, %v1525, %v1527
      %v1529 = vrot.slane %v1289, 1
      %v1530 = vsel %vm1497, %v1527, %v1529
      %v1531 = vrot.slane %v1292, 1
      %v1532 = vsel %vm1497, %v1529, %v1531
      %v1533 = vrot.slane %v1295, 1
      %v1534 = vsel %vm1497, %v1531, %v1533
      %v1535 = vrot.slane %v1298, 1
      %v1536 = vsel %vm1497, %v1533, %v1535
      %v1537 = vrot.slane %v1301, 1
      %v1538 = vsel %vm1497, %v1535, %v1537
      %v1539 = vrot.slane %v1304, 1
      %v1540 = vsel %vm1497, %v1537, %v1539
      %v1541 = vrot.slane %v1307, 1
      %v1542 = vsel %vm1497, %v1539, %v1541
      %v1543 = vrot.slane %v1310, 1
      %v1544 = vsel %vm1497, %v1541, %v1543
      %v1545 = vrot.slane %v1313, 1
      %v1546 = vsel %vm1497, %v1543, %v1545
      %v1547 = vrot.slane %v1316, 1
      %v1548 = vsel %vm1497, %v1545, %v1547
      %v1549 = vrot.slane %v1319, 1
      %v1550 = vsel %vm1497, %v1547, %v1549
      %v1551 = vrot.slane %v1322, 1
      %v1552 = vsel %vm1497, %v1549, %v1551
      %v1553 = vrot.slane %v1325, 1
      %v1554 = vsel %vm1497, %v1551, %v1553
      %v1555 = vrot.slane %v1328, 1
      %v1556 = vsel %vm1497, %v1553, %v1555
      %v1557 = vrot.slane %v1331, 1
      %v1558 = vsel %vm1497, %v1555, %v1557
      %v1559 = vrot.slane %v1334, 1
      %v1560 = vsel %vm1497, %v1557, %v1559
      %v1593 = vsel %vm1497, %v1559, 0.0
      %v1594 = vlaneseq
      %v1595 = vshrl.u32 %v1594, 7
      %v1596 = vadd.s32 %v1595, 8
      %vm1597 = vcmp.eq.s32.totalorder %v1595, 0
      %vm1598 = vcmp.eq.s32.totalorder %v1596, 0
      %v1599 = vsel %vm1597, 1, 0
      %v1600 = vsel %vm1598, 1, 0
      %vm1601 = vcmp.eq.s32.totalorder %v1599, 1
      %vm1602 = vcmp.eq.s32.totalorder %v1600, 1
      %v1603 = vsel %vm1601, 0.0, %v1464
      %v1604 = vsel %vm1602, 0.0, %v1371
      %v1605 = vsel %vm1601, 0.0, %v1373
      %v1606 = vsel %vm1602, 0.0, %v1375
      %v1607 = vsel %vm1601, 0.0, %v1377
      %v1608 = vsel %vm1602, 0.0, %v1379
      %v1609 = vsel %vm1601, 0.0, %v1381
      %v1610 = vsel %vm1602, 0.0, %v1383
      %v1611 = vsel %vm1601, 0.0, %v1385
      %v1612 = vsel %vm1602, 0.0, %v1387
      %v1613 = vsel %vm1601, 0.0, %v1389
      %v1614 = vsel %vm1602, 0.0, %v1391
      %v1615 = vsel %vm1601, 0.0, %v1393
      %v1616 = vsel %vm1602, 0.0, %v1395
      %v1617 = vsel %vm1601, 0.0, %v1397
      %v1618 = vsel %vm1602, 0.0, %v1399
      %v1619 = vsel %vm1601, 0.0, %v1401
      %v1620 = vsel %vm1602, 0.0, %v1403
      %v1621 = vsel %vm1601, 0.0, %v1405
      %v1622 = vsel %vm1602, 0.0, %v1407
      %v1623 = vsel %vm1601, 0.0, %v1409
      %v1624 = vsel %vm1602, 0.0, %v1411
      %v1625 = vsel %vm1601, 0.0, %v1413
      %v1626 = vsel %vm1602, 0.0, %v1415
      %v1627 = vsel %vm1601, 0.0, %v1417
      %v1628 = vsel %vm1602, 0.0, %v1419
      %v1629 = vsel %vm1601, 0.0, %v1421
      %v1630 = vsel %vm1602, 0.0, %v1423
      %v1631 = vsel %vm1601, 0.0, %v1425
      %v1632 = vsel %vm1602, 0.0, %v1427
      %v1633 = vsel %vm1601, 0.0, %v1429
      %v1634 = vsel %vm1602, 0.0, %v1431
      %v1636 = vsel %vm1103, %v715, 0
      %1638 = vmatpush.msra.mxu0 0.0
      %1639 = vmatpush.msra.mxu0 0.0
      %1640 = vmatpush.msra.mxu0 0.0
      %1641 = vmatpush.msra.mxu0 0.0
      %1642 = vmatpush.msra.mxu0 0.0
      %1643 = vmatpush.msra.mxu0 0.0
      %1644 = vmatpush.msra.mxu0 0.0
      %1645 = vmatpush.msra.mxu0 0.0
      %1646 = vmatpush.msra.mxu0 0.0
      %1647 = vmatpush.msra.mxu0 0.0
      %1648 = vmatpush.msra.mxu0 0.0
      %1649 = vmatpush.msra.mxu0 0.0
      %1650 = vmatpush.msra.mxu0 0.0
      %1651 = vmatpush.msra.mxu0 0.0
      %1652 = vmatpush.msra.mxu0 %v1636
      %1653 = vmatpush.msra.mxu0 %v714
      %1654 = vmatmul.f32.gmra.mxu0 %v1008
      %v1655 = vpop.f32.mrf.mxu0
      %v1656 = vadd.f32 %v1603, %v1655
      %1657 = vmatmul.f32.gmra.mxu0 %v1011
      %v1658 = vpop.f32.mrf.mxu0
      %v1659 = vadd.f32 %v1604, %v1658
      %1660 = vmatmul.f32.gmra.mxu0 %v1014
      %v1661 = vpop.f32.mrf.mxu0
      %v1662 = vadd.f32 %v1605, %v1661
      %1663 = vmatmul.f32.gmra.mxu0 %v1017
      %v1664 = vpop.f32.mrf.mxu0
      %v1665 = vadd.f32 %v1606, %v1664
      %1666 = vmatmul.f32.gmra.mxu0 %v1020
      %v1667 = vpop.f32.mrf.mxu0
      %v1668 = vadd.f32 %v1607, %v1667
      %1669 = vmatmul.f32.gmra.mxu0 %v1023
      %v1670 = vpop.f32.mrf.mxu0
      %v1671 = vadd.f32 %v1608, %v1670
      %1672 = vmatmul.f32.gmra.mxu0 %v1026
      %v1673 = vpop.f32.mrf.mxu0
      %v1674 = vadd.f32 %v1609, %v1673
      %1675 = vmatmul.f32.gmra.mxu0 %v1029
      %v1676 = vpop.f32.mrf.mxu0
      %v1677 = vadd.f32 %v1610, %v1676
      %1678 = vmatmul.f32.gmra.mxu0 %v1032
      %v1679 = vpop.f32.mrf.mxu0
      %v1680 = vadd.f32 %v1611, %v1679
      %1681 = vmatmul.f32.gmra.mxu0 %v1035
      %v1682 = vpop.f32.mrf.mxu0
      %v1683 = vadd.f32 %v1612, %v1682
      %1684 = vmatmul.f32.gmra.mxu0 %v1038
      %v1685 = vpop.f32.mrf.mxu0
      %v1686 = vadd.f32 %v1613, %v1685
      %1687 = vmatmul.f32.gmra.mxu0 %v1041
      %v1688 = vpop.f32.mrf.mxu0
      %v1689 = vadd.f32 %v1614, %v1688
      %1690 = vmatmul.f32.gmra.mxu0 %v1044
      %v1691 = vpop.f32.mrf.mxu0
      %v1692 = vadd.f32 %v1615, %v1691
      %1693 = vmatmul.f32.gmra.mxu0 %v1047
      %v1694 = vpop.f32.mrf.mxu0
      %v1695 = vadd.f32 %v1616, %v1694
      %1696 = vmatmul.f32.gmra.mxu0 %v1050
      %v1697 = vpop.f32.mrf.mxu0
      %v1698 = vadd.f32 %v1617, %v1697
      %1699 = vmatmul.f32.gmra.mxu0 %v1053
      %v1700 = vpop.f32.mrf.mxu0
      %v1701 = vadd.f32 %v1618, %v1700
      %1702 = vmatmul.f32.gmra.mxu0 %v1056
      %v1703 = vpop.f32.mrf.mxu0
      %v1704 = vadd.f32 %v1619, %v1703
      %1705 = vmatmul.f32.gmra.mxu0 %v1059
      %v1706 = vpop.f32.mrf.mxu0
      %v1707 = vadd.f32 %v1620, %v1706
      %1708 = vmatmul.f32.gmra.mxu0 %v1062
      %v1709 = vpop.f32.mrf.mxu0
      %v1710 = vadd.f32 %v1621, %v1709
      %1711 = vmatmul.f32.gmra.mxu0 %v1065
      %v1712 = vpop.f32.mrf.mxu0
      %v1713 = vadd.f32 %v1622, %v1712
      %1714 = vmatmul.f32.gmra.mxu0 %v1068
      %v1715 = vpop.f32.mrf.mxu0
      %v1716 = vadd.f32 %v1623, %v1715
      %1717 = vmatmul.f32.gmra.mxu0 %v1071
      %v1718 = vpop.f32.mrf.mxu0
      %v1719 = vadd.f32 %v1624, %v1718
      %1720 = vmatmul.f32.gmra.mxu0 %v1074
      %v1721 = vpop.f32.mrf.mxu0
      %v1722 = vadd.f32 %v1625, %v1721
      %1723 = vmatmul.f32.gmra.mxu0 %v1077
      %v1724 = vpop.f32.mrf.mxu0
      %v1725 = vadd.f32 %v1626, %v1724
      %1726 = vmatmul.f32.gmra.mxu0 %v1080
      %v1727 = vpop.f32.mrf.mxu0
      %v1728 = vadd.f32 %v1627, %v1727
      %1729 = vmatmul.f32.gmra.mxu0 %v1083
      %v1730 = vpop.f32.mrf.mxu0
      %v1731 = vadd.f32 %v1628, %v1730
      %1732 = vmatmul.f32.gmra.mxu0 %v1086
      %v1733 = vpop.f32.mrf.mxu0
      %v1734 = vadd.f32 %v1629, %v1733
      %1735 = vmatmul.f32.gmra.mxu0 %v1089
      %v1736 = vpop.f32.mrf.mxu0
      %v1737 = vadd.f32 %v1630, %v1736
      %1738 = vmatmul.f32.gmra.mxu0 %v1092
      %v1739 = vpop.f32.mrf.mxu0
      %v1740 = vadd.f32 %v1631, %v1739
      %1741 = vmatmul.f32.gmra.mxu0 %v1095
      %v1742 = vpop.f32.mrf.mxu0
      %v1743 = vadd.f32 %v1632, %v1742
      %1744 = vmatmul.f32.gmra.mxu0 %v1098
      %v1745 = vpop.f32.mrf.mxu0
      %v1746 = vadd.f32 %v1633, %v1745
      %1747 = vmatmul.f32.gmra.mxu0 %v1101
      %v1748 = vpop.f32.mrf.mxu0
      %v1749 = vadd.f32 %v1634, %v1748
      %1750 = vdwg.mxu0
      %vm1751 = vcmp.eq.s32.totalorder %v1595, 15
      %vm1752 = vcmp.eq.s32.totalorder %v1596, 15
      %v1753 = vsel %vm1751, 1, 0
      %v1754 = vsel %vm1752, 1, 0
      %vm1755 = vcmp.eq.s32.totalorder %v1753, 1
      %vm1756 = vcmp.eq.s32.totalorder %v1754, 1
      %v1757 = vsel %vm1755, 0.0, %v1500
      %v1758 = vsel %vm1756, 0.0, %v1502
      %v1759 = vsel %vm1755, 0.0, %v1504
      %v1760 = vsel %vm1756, 0.0, %v1506
      %v1761 = vsel %vm1755, 0.0, %v1508
      %v1762 = vsel %vm1756, 0.0, %v1510
      %v1763 = vsel %vm1755, 0.0, %v1512
      %v1764 = vsel %vm1756, 0.0, %v1514
      %v1765 = vsel %vm1755, 0.0, %v1516
      %v1766 = vsel %vm1756, 0.0, %v1518
      %v1767 = vsel %vm1755, 0.0, %v1520
      %v1768 = vsel %vm1756, 0.0, %v1522
      %v1769 = vsel %vm1755, 0.0, %v1524
      %v1770 = vsel %vm1756, 0.0, %v1526
      %v1771 = vsel %vm1755, 0.0, %v1528
      %v1772 = vsel %vm1756, 0.0, %v1530
      %v1773 = vsel %vm1755, 0.0, %v1532
      %v1774 = vsel %vm1756, 0.0, %v1534
      %v1775 = vsel %vm1755, 0.0, %v1536
      %v1776 = vsel %vm1756, 0.0, %v1538
      %v1777 = vsel %vm1755, 0.0, %v1540
      %v1778 = vsel %vm1756, 0.0, %v1542
      %v1779 = vsel %vm1755, 0.0, %v1544
      %v1780 = vsel %vm1756, 0.0, %v1546
      %v1781 = vsel %vm1755, 0.0, %v1548
      %v1782 = vsel %vm1756, 0.0, %v1550
      %v1783 = vsel %vm1755, 0.0, %v1552
      %v1784 = vsel %vm1756, 0.0, %v1554
      %v1785 = vsel %vm1755, 0.0, %v1556
      %v1786 = vsel %vm1756, 0.0, %v1558
      %v1787 = vsel %vm1755, 0.0, %v1560
      %v1788 = vsel %vm1756, 0.0, %v1593
      %v1789 = vadd.f32 %v1656, %v1757
      %v1790 = vadd.f32 %v1659, %v1758
      %v1791 = vadd.f32 %v1662, %v1759
      %v1792 = vadd.f32 %v1665, %v1760
      %v1793 = vadd.f32 %v1668, %v1761
      %v1794 = vadd.f32 %v1671, %v1762
      %v1795 = vadd.f32 %v1674, %v1763
      %v1796 = vadd.f32 %v1677, %v1764
      %v1797 = vadd.f32 %v1680, %v1765
      %v1798 = vadd.f32 %v1683, %v1766
      %v1799 = vadd.f32 %v1686, %v1767
      %v1800 = vadd.f32 %v1689, %v1768
      %v1801 = vadd.f32 %v1692, %v1769
      %v1802 = vadd.f32 %v1695, %v1770
      %v1803 = vadd.f32 %v1698, %v1771
      %v1804 = vadd.f32 %v1701, %v1772
      %v1805 = vadd.f32 %v1704, %v1773
      %v1806 = vadd.f32 %v1707, %v1774
      %v1807 = vadd.f32 %v1710, %v1775
      %v1808 = vadd.f32 %v1713, %v1776
      %v1809 = vadd.f32 %v1716, %v1777
      %v1810 = vadd.f32 %v1719, %v1778
      %v1811 = vadd.f32 %v1722, %v1779
      %v1812 = vadd.f32 %v1725, %v1780
      %v1813 = vadd.f32 %v1728, %v1781
      %v1814 = vadd.f32 %v1731, %v1782
      %v1815 = vadd.f32 %v1734, %v1783
      %v1816 = vadd.f32 %v1737, %v1784
      %v1817 = vadd.f32 %v1740, %v1785
      %v1818 = vadd.f32 %v1743, %v1786
      %v1819 = vadd.f32 %v1746, %v1787
      %v1820 = vadd.f32 %v1749, %v1788
      %v1821 = vperm.slane %v718, 0
      %v1822 = vadd.f32 %v1789, %v1821
      %v1823 = vadd.f32 %v1790, %v1821
      %v1824 = vadd.f32 %v1791, %v1821
      %v1825 = vadd.f32 %v1792, %v1821
      %v1826 = vadd.f32 %v1793, %v1821
      %v1827 = vadd.f32 %v1794, %v1821
      %v1828 = vadd.f32 %v1795, %v1821
      %v1829 = vadd.f32 %v1796, %v1821
      %v1830 = vadd.f32 %v1797, %v1821
      %v1831 = vadd.f32 %v1798, %v1821
      %v1832 = vadd.f32 %v1799, %v1821
      %v1833 = vadd.f32 %v1800, %v1821
      %v1834 = vadd.f32 %v1801, %v1821
      %v1835 = vadd.f32 %v1802, %v1821
      %v1836 = vadd.f32 %v1803, %v1821
      %v1837 = vadd.f32 %v1804, %v1821
      %v1838 = vadd.f32 %v1805, %v1821
      %v1839 = vadd.f32 %v1806, %v1821
      %v1840 = vadd.f32 %v1807, %v1821
      %v1841 = vadd.f32 %v1808, %v1821
      %v1842 = vadd.f32 %v1809, %v1821
      %v1843 = vadd.f32 %v1810, %v1821
      %v1844 = vadd.f32 %v1811, %v1821
      %v1845 = vadd.f32 %v1812, %v1821
      %v1846 = vadd.f32 %v1813, %v1821
      %v1847 = vadd.f32 %v1814, %v1821
      %v1848 = vadd.f32 %v1815, %v1821
      %v1849 = vadd.f32 %v1816, %v1821
      %v1850 = vadd.f32 %v1817, %v1821
      %v1851 = vadd.f32 %v1818, %v1821
      %v1852 = vadd.f32 %v1819, %v1821
      %v1853 = vadd.f32 %v1820, %v1821
      %v1854 = vmax.f32 %v1822, 0.0
      %v1855 = vmax.f32 %v1823, 0.0
      %v1856 = vmax.f32 %v1824, 0.0
      %v1857 = vmax.f32 %v1825, 0.0
      %v1858 = vmax.f32 %v1826, 0.0
      %v1859 = vmax.f32 %v1827, 0.0
      %v1860 = vmax.f32 %v1828, 0.0
      %v1861 = vmax.f32 %v1829, 0.0
      %v1862 = vmax.f32 %v1830, 0.0
      %v1863 = vmax.f32 %v1831, 0.0
      %v1864 = vmax.f32 %v1832, 0.0
      %v1865 = vmax.f32 %v1833, 0.0
      %v1866 = vmax.f32 %v1834, 0.0
      %v1867 = vmax.f32 %v1835, 0.0
      %v1868 = vmax.f32 %v1836, 0.0
      %v1869 = vmax.f32 %v1837, 0.0
      %v1870 = vmax.f32 %v1838, 0.0
      %v1871 = vmax.f32 %v1839, 0.0
      %v1872 = vmax.f32 %v1840, 0.0
      %v1873 = vmax.f32 %v1841, 0.0
      %v1874 = vmax.f32 %v1842, 0.0
      %v1875 = vmax.f32 %v1843, 0.0
      %v1876 = vmax.f32 %v1844, 0.0
      %v1877 = vmax.f32 %v1845, 0.0
      %v1878 = vmax.f32 %v1846, 0.0
      %v1879 = vmax.f32 %v1847, 0.0
      %v1880 = vmax.f32 %v1848, 0.0
      %v1881 = vmax.f32 %v1849, 0.0
      %v1882 = vmax.f32 %v1850, 0.0
      %v1883 = vmax.f32 %v1851, 0.0
      %v1884 = vmax.f32 %v1852, 0.0
      %v1885 = vmax.f32 %v1853, 0.0
      %s1886 = scalar_lea.vmem %s7, 16
      %v1887 = vld [vmem:[%s1886] sm:$0xf]
      %v1888 = vld [vmem:[%s8 + $0x4] sm:$0x1]
      %v1889 = vperm.slane %v1888, 0
      %v1891 = vsel %vm941, %v1854, 0
      %v1894 = vsel %vm941, %v1855, 0
      %v1897 = vsel %vm941, %v1856, 0
      %v1900 = vsel %vm941, %v1857, 0
      %v1903 = vsel %vm941, %v1858, 0
      %v1906 = vsel %vm941, %v1859, 0
      %v1909 = vsel %vm941, %v1860, 0
      %v1912 = vsel %vm941, %v1861, 0
      %v1915 = vsel %vm941, %v1862, 0
      %v1918 = vsel %vm941, %v1863, 0
      %v1921 = vsel %vm941, %v1864, 0
      %v1924 = vsel %vm941, %v1865, 0
      %v1927 = vsel %vm941, %v1866, 0
      %v1930 = vsel %vm941, %v1867, 0
      %v1933 = vsel %vm941, %v1868, 0
      %v1936 = vsel %vm941, %v1869, 0
      %v1939 = vsel %vm941, %v1870, 0
      %v1942 = vsel %vm941, %v1871, 0
      %v1945 = vsel %vm941, %v1872, 0
      %v1948 = vsel %vm941, %v1873, 0
      %v1951 = vsel %vm941, %v1874, 0
      %v1954 = vsel %vm941, %v1875, 0
      %v1957 = vsel %vm941, %v1876, 0
      %v1960 = vsel %vm941, %v1877, 0
      %v1963 = vsel %vm941, %v1878, 0
      %v1966 = vsel %vm941, %v1879, 0
      %v1969 = vsel %vm941, %v1880, 0
      %v1972 = vsel %vm941, %v1881, 0
      %v1975 = vsel %vm941, %v1882, 0
      %v1978 = vsel %vm941, %v1883, 0
      %v1981 = vsel %vm941, %v1884, 0
      %v1984 = vsel %vm941, %v1885, 0
      %v1987 = vsel %vm1103, %v1887, 0
      %1989 = vmatpush.msra.mxu0 0.0
      %1990 = vmatpush.msra.mxu0 0.0
      %1991 = vmatpush.msra.mxu0 0.0
      %1992 = vmatpush.msra.mxu0 0.0
      %1993 = vmatpush.msra.mxu0 0.0
      %1994 = vmatpush.msra.mxu0 0.0
      %1995 = vmatpush.msra.mxu0 0.0
      %1996 = vmatpush.msra.mxu0 0.0
      %1997 = vmatpush.msra.mxu0 0.0
      %1998 = vmatpush.msra.mxu0 0.0
      %1999 = vmatpush.msra.mxu0 0.0
      %2000 = vmatpush.msra.mxu0 0.0
      %2001 = vmatpush.msra.mxu0 0.0
      %2002 = vmatpush.msra.mxu0 0.0
      %2003 = vmatpush.msra.mxu0 0.0
      %2004 = vmatpush.msra.mxu0 %v1987
      %2005 = vmatmul.f32.gmra.mxu0 %v1891
      %v2006 = vpop.f32.mrf.mxu0
      %v2007 = vadd.f32 %v1889, %v2006
      %2008 = vmatmul.f32.gmra.mxu0 %v1894
      %v2009 = vpop.f32.mrf.mxu0
      %v2010 = vadd.f32 %v1889, %v2009
      %2011 = vmatmul.f32.gmra.mxu0 %v1897
      %v2012 = vpop.f32.mrf.mxu0
      %v2013 = vadd.f32 %v1889, %v2012
      %2014 = vmatmul.f32.gmra.mxu0 %v1900
      %v2015 = vpop.f32.mrf.mxu0
      %v2016 = vadd.f32 %v1889, %v2015
      %2017 = vmatmul.f32.gmra.mxu0 %v1903
      %v2018 = vpop.f32.mrf.mxu0
      %v2019 = vadd.f32 %v1889, %v2018
      %2020 = vmatmul.f32.gmra.mxu0 %v1906
      %v2021 = vpop.f32.mrf.mxu0
      %v2022 = vadd.f32 %v1889, %v2021
      %2023 = vmatmul.f32.gmra.mxu0 %v1909
      %v2024 = vpop.f32.mrf.mxu0
      %v2025 = vadd.f32 %v1889, %v2024
      %2026 = vmatmul.f32.gmra.mxu0 %v1912
      %v2027 = vpop.f32.mrf.mxu0
      %v2028 = vadd.f32 %v1889, %v2027
      %2029 = vmatmul.f32.gmra.mxu0 %v1915
      %v2030 = vpop.f32.mrf.mxu0
      %v2031 = vadd.f32 %v1889, %v2030
      %2032 = vmatmul.f32.gmra.mxu0 %v1918
      %v2033 = vpop.f32.mrf.mxu0
      %v2034 = vadd.f32 %v1889, %v2033
      %2035 = vmatmul.f32.gmra.mxu0 %v1921
      %v2036 = vpop.f32.mrf.mxu0
      %v2037 = vadd.f32 %v1889, %v2036
      %2038 = vmatmul.f32.gmra.mxu0 %v1924
      %v2039 = vpop.f32.mrf.mxu0
      %v2040 = vadd.f32 %v1889, %v2039
      %2041 = vmatmul.f32.gmra.mxu0 %v1927
      %v2042 = vpop.f32.mrf.mxu0
      %v2043 = vadd.f32 %v1889, %v2042
      %2044 = vmatmul.f32.gmra.mxu0 %v1930
      %v2045 = vpop.f32.mrf.mxu0
      %v2046 = vadd.f32 %v1889, %v2045
      %2047 = vmatmul.f32.gmra.mxu0 %v1933
      %v2048 = vpop.f32.mrf.mxu0
      %v2049 = vadd.f32 %v1889, %v2048
      %2050 = vmatmul.f32.gmra.mxu0 %v1936
      %v2051 = vpop.f32.mrf.mxu0
      %v2052 = vadd.f32 %v1889, %v2051
      %2053 = vmatmul.f32.gmra.mxu0 %v1939
      %v2054 = vpop.f32.mrf.mxu0
      %v2055 = vadd.f32 %v1889, %v2054
      %2056 = vmatmul.f32.gmra.mxu0 %v1942
      %v2057 = vpop.f32.mrf.mxu0
      %v2058 = vadd.f32 %v1889, %v2057
      %2059 = vmatmul.f32.gmra.mxu0 %v1945
      %v2060 = vpop.f32.mrf.mxu0
      %v2061 = vadd.f32 %v1889, %v2060
      %2062 = vmatmul.f32.gmra.mxu0 %v1948
      %v2063 = vpop.f32.mrf.mxu0
      %v2064 = vadd.f32 %v1889, %v2063
      %2065 = vmatmul.f32.gmra.mxu0 %v1951
      %v2066 = vpop.f32.mrf.mxu0
      %v2067 = vadd.f32 %v1889, %v2066
      %2068 = vmatmul.f32.gmra.mxu0 %v1954
      %v2069 = vpop.f32.mrf.mxu0
      %v2070 = vadd.f32 %v1889, %v2069
      %2071 = vmatmul.f32.gmra.mxu0 %v1957
      %v2072 = vpop.f32.mrf.mxu0
      %v2073 = vadd.f32 %v1889, %v2072
      %2074 = vmatmul.f32.gmra.mxu0 %v1960
      %v2075 = vpop.f32.mrf.mxu0
      %v2076 = vadd.f32 %v1889, %v2075
      %2077 = vmatmul.f32.gmra.mxu0 %v1963
      %v2078 = vpop.f32.mrf.mxu0
      %v2079 = vadd.f32 %v1889, %v2078
      %2080 = vmatmul.f32.gmra.mxu0 %v1966
      %v2081 = vpop.f32.mrf.mxu0
      %v2082 = vadd.f32 %v1889, %v2081
      %2083 = vmatmul.f32.gmra.mxu0 %v1969
      %v2084 = vpop.f32.mrf.mxu0
      %v2085 = vadd.f32 %v1889, %v2084
      %2086 = vmatmul.f32.gmra.mxu0 %v1972
      %v2087 = vpop.f32.mrf.mxu0
      %v2088 = vadd.f32 %v1889, %v2087
      %2089 = vmatmul.f32.gmra.mxu0 %v1975
      %v2090 = vpop.f32.mrf.mxu0
      %v2091 = vadd.f32 %v1889, %v2090
      %2092 = vmatmul.f32.gmra.mxu0 %v1978
      %v2093 = vpop.f32.mrf.mxu0
      %v2094 = vadd.f32 %v1889, %v2093
      %2095 = vmatmul.f32.gmra.mxu0 %v1981
      %v2096 = vpop.f32.mrf.mxu0
      %v2097 = vadd.f32 %v1889, %v2096
      %2098 = vmatmul.f32.gmra.mxu0 %v1984
      %v2099 = vpop.f32.mrf.mxu0
      %v2100 = vadd.f32 %v1889, %v2099
      %2101 = vdwg.mxu0
      %v2102 = vadd.f32 %v2007, %v333
      %v2103 = vadd.f32 %v2010, %v334
      %v2104 = vadd.f32 %v2013, %v335
      %v2105 = vadd.f32 %v2016, %v336
      %v2106 = vadd.f32 %v2019, %v337
      %v2107 = vadd.f32 %v2022, %v338
      %v2108 = vadd.f32 %v2025, %v339
      %v2109 = vadd.f32 %v2028, %v340
      %v2110 = vadd.f32 %v2031, %v341
      %v2111 = vadd.f32 %v2034, %v342
      %v2112 = vadd.f32 %v2037, %v343
      %v2113 = vadd.f32 %v2040, %v344
      %v2114 = vadd.f32 %v2043, %v345
      %v2115 = vadd.f32 %v2046, %v346
      %v2116 = vadd.f32 %v2049, %v347
      %v2117 = vadd.f32 %v2052, %v348
      %v2118 = vadd.f32 %v2055, %v349
      %v2119 = vadd.f32 %v2058, %v350
      %v2120 = vadd.f32 %v2061, %v351
      %v2121 = vadd.f32 %v2064, %v352
      %v2122 = vadd.f32 %v2067, %v353
      %v2123 = vadd.f32 %v2070, %v354
      %v2124 = vadd.f32 %v2073, %v355
      %v2125 = vadd.f32 %v2076, %v356
      %v2126 = vadd.f32 %v2079, %v357
      %v2127 = vadd.f32 %v2082, %v358
      %v2128 = vadd.f32 %v2085, %v359
      %v2129 = vadd.f32 %v2088, %v360
      %v2130 = vadd.f32 %v2091, %v361
      %v2131 = vadd.f32 %v2094, %v362
      %v2132 = vadd.f32 %v2097, %v363
      %v2133 = vadd.f32 %v2100, %v364
      %v2134 = vmax.f32 %v333, %v335
      %v2135 = vmax.f32 %v334, %v336
      %v2136 = vmax.f32 %v337, %v339
      %v2137 = vmax.f32 %v338, %v340
      %v2138 = vmax.f32 %v341, %v343
      %v2139 = vmax.f32 %v342, %v344
      %v2140 = vmax.f32 %v345, %v347
      %v2141 = vmax.f32 %v346, %v348
      %v2142 = vmax.f32 %v349, %v351
      %v2143 = vmax.f32 %v350, %v352
      %v2144 = vmax.f32 %v353, %v355
      %v2145 = vmax.f32 %v354, %v356
      %v2146 = vmax.f32 %v357, %v359
      %v2147 = vmax.f32 %v358, %v360
      %v2148 = vmax.f32 %v361, %v363
      %v2149 = vmax.f32 %v362, %v364
      %v2166 = vrot.slane %v2134, 2
      %v2167 = vrot.slane %v2134, 4
      %v2168 = vrot.slane %v2134, 6
      %v2169 = vrot.slane %v2135, 2
      %v2170 = vrot.slane %v2135, 4
      %v2171 = vrot.slane %v2135, 6
      %v2172 = vrot.slane %v2136, 2
      %v2173 = vrot.slane %v2136, 4
      %v2174 = vrot.slane %v2136, 6
      %v2175 = vrot.slane %v2137, 2
      %v2176 = vrot.slane %v2137, 4
      %v2177 = vrot.slane %v2137, 6
      %v2178 = vrot.slane %v2138, 2
      %v2179 = vrot.slane %v2138, 4
      %v2180 = vrot.slane %v2138, 6
      %v2181 = vrot.slane %v2139, 2
      %v2182 = vrot.slane %v2139, 4
      %v2183 = vrot.slane %v2139, 6
      %v2184 = vrot.slane %v2140, 2
      %v2185 = vrot.slane %v2140, 4
      %v2186 = vrot.slane %v2140, 6
      %v2187 = vrot.slane %v2141, 2
      %v2188 = vrot.slane %v2141, 4
      %v2189 = vrot.slane %v2141, 6
      %v2190 = vrot.slane %v2142, 2
      %v2191 = vrot.slane %v2142, 4
      %v2192 = vrot.slane %v2142, 6
      %v2193 = vrot.slane %v2143, 2
      %v2194 = vrot.slane %v2143, 4
      %v2195 = vrot.slane %v2143, 6
      %v2196 = vrot.slane %v2144, 2
      %v2197 = vrot.slane %v2144, 4
      %v2198 = vrot.slane %v2144, 6
      %v2199 = vrot.slane %v2145, 2
      %v2200 = vrot.slane %v2145, 4
      %v2201 = vrot.slane %v2145, 6
      %v2202 = vrot.slane %v2146, 2
      %v2203 = vrot.slane %v2146, 4
      %v2204 = vrot.slane %v2146, 6
      %v2205 = vrot.slane %v2147, 2
      %v2206 = vrot.slane %v2147, 4
      %v2207 = vrot.slane %v2147, 6
      %v2208 = vrot.slane %v2148, 2
      %v2209 = vrot.slane %v2148, 4
      %v2210 = vrot.slane %v2148, 6
      %v2211 = vrot.slane %v2149, 2
      %v2212 = vrot.slane %v2149, 4
      %v2213 = vrot.slane %v2149, 6
      %v2262 = vrot.slane %v2134, 7
      %v2263 = vrot.slane %v2262, 2
      %v2264 = vrot.slane %v2166, 7
      %v2265 = vrot.slane %v2264, 2
      %v2266 = vrot.slane %v2167, 7
      %v2267 = vrot.slane %v2266, 2
      %v2268 = vrot.slane %v2168, 7
      %v2269 = vrot.slane %v2268, 2
      %v2270 = vrot.slane %v2135, 7
      %v2271 = vrot.slane %v2270, 2
      %v2272 = vrot.slane %v2169, 7
      %v2273 = vrot.slane %v2272, 2
      %v2274 = vrot.slane %v2170, 7
      %v2275 = vrot.slane %v2274, 2
      %v2276 = vrot.slane %v2171, 7
      %v2277 = vrot.slane %v2276, 2
      %v2278 = vrot.slane %v2136, 7
      %v2279 = vrot.slane %v2278, 2
      %v2280 = vrot.slane %v2172, 7
      %v2281 = vrot.slane %v2280, 2
      %v2282 = vrot.slane %v2173, 7
      %v2283 = vrot.slane %v2282, 2
      %v2284 = vrot.slane %v2174, 7
      %v2285 = vrot.slane %v2284, 2
      %v2286 = vrot.slane %v2137, 7
      %v2287 = vrot.slane %v2286, 2
      %v2288 = vrot.slane %v2175, 7
      %v2289 = vrot.slane %v2288, 2
      %v2290 = vrot.slane %v2176, 7
      %v2291 = vrot.slane %v2290, 2
      %v2292 = vrot.slane %v2177, 7
      %v2293 = vrot.slane %v2292, 2
      %v2294 = vrot.slane %v2138, 7
      %v2295 = vrot.slane %v2294, 2
      %v2296 = vrot.slane %v2178, 7
      %v2297 = vrot.slane %v2296, 2
      %v2298 = vrot.slane %v2179, 7
      %v2299 = vrot.slane %v2298, 2
      %v2300 = vrot.slane %v2180, 7
      %v2301 = vrot.slane %v2300, 2
      %v2302 = vrot.slane %v2139, 7
      %v2303 = vrot.slane %v2302, 2
      %v2304 = vrot.slane %v2181, 7
      %v2305 = vrot.slane %v2304, 2
      %v2306 = vrot.slane %v2182, 7
      %v2307 = vrot.slane %v2306, 2
      %v2308 = vrot.slane %v2183, 7
      %v2309 = vrot.slane %v2308, 2
      %v2310 = vrot.slane %v2140, 7
      %v2311 = vrot.slane %v2310, 2
      %v2312 = vrot.slane %v2184, 7
      %v2313 = vrot.slane %v2312, 2
      %v2314 = vrot.slane %v2185, 7
      %v2315 = vrot.slane %v2314, 2
      %v2316 = vrot.slane %v2186, 7
      %v2317 = vrot.slane %v2316, 2
      %v2318 = vrot.slane %v2141, 7
      %v2319 = vrot.slane %v2318, 2
      %v2320 = vrot.slane %v2187, 7
      %v2321 = vrot.slane %v2320, 2
      %v2322 = vrot.slane %v2188, 7
      %v2323 = vrot.slane %v2322, 2
      %v2324 = vrot.slane %v2189, 7
      %v2325 = vrot.slane %v2324, 2
      %v2326 = vrot.slane %v2142, 7
      %v2327 = vrot.slane %v2326, 2
      %v2328 = vrot.slane %v2190, 7
      %v2329 = vrot.slane %v2328, 2
      %v2330 = vrot.slane %v2191, 7
      %v2331 = vrot.slane %v2330, 2
      %v2332 = vrot.slane %v2192, 7
      %v2333 = vrot.slane %v2332, 2
      %v2334 = vrot.slane %v2143, 7
      %v2335 = vrot.slane %v2334, 2
      %v2336 = vrot.slane %v2193, 7
      %v2337 = vrot.slane %v2336, 2
      %v2338 = vrot.slane %v2194, 7
      %v2339 = vrot.slane %v2338, 2
      %v2340 = vrot.slane %v2195, 7
      %v2341 = vrot.slane %v2340, 2
      %v2342 = vrot.slane %v2144, 7
      %v2343 = vrot.slane %v2342, 2
      %v2344 = vrot.slane %v2196, 7
      %v2345 = vrot.slane %v2344, 2
      %v2346 = vrot.slane %v2197, 7
      %v2347 = vrot.slane %v2346, 2
      %v2348 = vrot.slane %v2198, 7
      %v2349 = vrot.slane %v2348, 2
      %v2350 = vrot.slane %v2145, 7
      %v2351 = vrot.slane %v2350, 2
      %v2352 = vrot.slane %v2199, 7
      %v2353 = vrot.slane %v2352, 2
      %v2354 = vrot.slane %v2200, 7
      %v2355 = vrot.slane %v2354, 2
      %v2356 = vrot.slane %v2201, 7
      %v2357 = vrot.slane %v2356, 2
      %v2358 = vrot.slane %v2146, 7
      %v2359 = vrot.slane %v2358, 2
      %v2360 = vrot.slane %v2202, 7
      %v2361 = vrot.slane %v2360, 2
      %v2362 = vrot.slane %v2203, 7
      %v2363 = vrot.slane %v2362, 2
      %v2364 = vrot.slane %v2204, 7
      %v2365 = vrot.slane %v2364, 2
      %v2366 = vrot.slane %v2147, 7
      %v2367 = vrot.slane %v2366, 2
      %v2368 = vrot.slane %v2205, 7
      %v2369 = vrot.slane %v2368, 2
      %v2370 = vrot.slane %v2206, 7
      %v2371 = vrot.slane %v2370, 2
      %v2372 = vrot.slane %v2207, 7
      %v2373 = vrot.slane %v2372, 2
      %v2374 = vrot.slane %v2148, 7
      %v2375 = vrot.slane %v2374, 2
      %v2376 = vrot.slane %v2208, 7
      %v2377 = vrot.slane %v2376, 2
      %v2378 = vrot.slane %v2209, 7
      %v2379 = vrot.slane %v2378, 2
      %v2380 = vrot.slane %v2210, 7
      %v2381 = vrot.slane %v2380, 2
      %v2382 = vrot.slane %v2149, 7
      %v2383 = vrot.slane %v2382, 2
      %v2384 = vrot.slane %v2211, 7
      %v2385 = vrot.slane %v2384, 2
      %v2386 = vrot.slane %v2212, 7
      %v2387 = vrot.slane %v2386, 2
      %v2388 = vrot.slane %v2213, 7
      %v2389 = vrot.slane %v2388, 2
      %v2454 = vmax.f32 %v2134, %v2263
      %v2455 = vmax.f32 %v2166, %v2265
      %v2456 = vmax.f32 %v2167, %v2267
      %v2457 = vmax.f32 %v2168, %v2269
      %v2458 = vmax.f32 %v2135, %v2271
      %v2459 = vmax.f32 %v2169, %v2273
      %v2460 = vmax.f32 %v2170, %v2275
      %v2461 = vmax.f32 %v2171, %v2277
      %v2462 = vmax.f32 %v2136, %v2279
      %v2463 = vmax.f32 %v2172, %v2281
      %v2464 = vmax.f32 %v2173, %v2283
      %v2465 = vmax.f32 %v2174, %v2285
      %v2466 = vmax.f32 %v2137, %v2287
      %v2467 = vmax.f32 %v2175, %v2289
      %v2468 = vmax.f32 %v2176, %v2291
      %v2469 = vmax.f32 %v2177, %v2293
      %v2470 = vmax.f32 %v2138, %v2295
      %v2471 = vmax.f32 %v2178, %v2297
      %v2472 = vmax.f32 %v2179, %v2299
      %v2473 = vmax.f32 %v2180, %v2301
      %v2474 = vmax.f32 %v2139, %v2303
      %v2475 = vmax.f32 %v2181, %v2305
      %v2476 = vmax.f32 %v2182, %v2307
      %v2477 = vmax.f32 %v2183, %v2309
      %v2478 = vmax.f32 %v2140, %v2311
      %v2479 = vmax.f32 %v2184, %v2313
      %v2480 = vmax.f32 %v2185, %v2315
      %v2481 = vmax.f32 %v2186, %v2317
      %v2482 = vmax.f32 %v2141, %v2319
      %v2483 = vmax.f32 %v2187, %v2321
      %v2484 = vmax.f32 %v2188, %v2323
      %v2485 = vmax.f32 %v2189, %v2325
      %v2486 = vmax.f32 %v2142, %v2327
      %v2487 = vmax.f32 %v2190, %v2329
      %v2488 = vmax.f32 %v2191, %v2331
      %v2489 = vmax.f32 %v2192, %v2333
      %v2490 = vmax.f32 %v2143, %v2335
      %v2491 = vmax.f32 %v2193, %v2337
      %v2492 = vmax.f32 %v2194, %v2339
      %v2493 = vmax.f32 %v2195, %v2341
      %v2494 = vmax.f32 %v2144, %v2343
      %v2495 = vmax.f32 %v2196, %v2345
      %v2496 = vmax.f32 %v2197, %v2347
      %v2497 = vmax.f32 %v2198, %v2349
      %v2498 = vmax.f32 %v2145, %v2351
      %v2499 = vmax.f32 %v2199, %v2353
      %v2500 = vmax.f32 %v2200, %v2355
      %v2501 = vmax.f32 %v2201, %v2357
      %v2502 = vmax.f32 %v2146, %v2359
      %v2503 = vmax.f32 %v2202, %v2361
      %v2504 = vmax.f32 %v2203, %v2363
      %v2505 = vmax.f32 %v2204, %v2365
      %v2506 = vmax.f32 %v2147, %v2367
      %v2507 = vmax.f32 %v2205, %v2369
      %v2508 = vmax.f32 %v2206, %v2371
      %v2509 = vmax.f32 %v2207, %v2373
      %v2510 = vmax.f32 %v2148, %v2375
      %v2511 = vmax.f32 %v2208, %v2377
      %v2512 = vmax.f32 %v2209, %v2379
      %v2513 = vmax.f32 %v2210, %v2381
      %v2514 = vmax.f32 %v2149, %v2383
      %v2515 = vmax.f32 %v2211, %v2385
      %v2516 = vmax.f32 %v2212, %v2387
      %v2517 = vmax.f32 %v2213, %v2389
      %v2518 = vld [vmem:[%s1 + $0x5] sm:$0x1]
      %v2519 = vperm.slane %v2518, 0
      %v2521 = vrot.slane %v2519, 2
      %v2522 = vrot.slane %v2519, 4
      %v2523 = vrot.slane %v2519, 6
      %v2524 = vrot.slane %v2519, 1
      %v2525 = vrot.slane %v2521, 1
      %v2526 = vrot.slane %v2522, 1
      %v2527 = vrot.slane %v2523, 1
      %v2536 = vmul.f32 %v2454, %v2519
      %v2537 = vmul.f32 %v2455, %v2524
      %v2538 = vmul.f32 %v2456, %v2521
      %v2539 = vmul.f32 %v2457, %v2525
      %v2540 = vmul.f32 %v2458, %v2522
      %v2541 = vmul.f32 %v2459, %v2526
      %v2542 = vmul.f32 %v2460, %v2523
      %v2543 = vmul.f32 %v2461, %v2527
      %v2544 = vmul.f32 %v2462, %v2519
      %v2545 = vmul.f32 %v2463, %v2524
      %v2546 = vmul.f32 %v2464, %v2521
      %v2547 = vmul.f32 %v2465, %v2525
      %v2548 = vmul.f32 %v2466, %v2522
      %v2549 = vmul.f32 %v2467, %v2526
      %v2550 = vmul.f32 %v2468, %v2523
      %v2551 = vmul.f32 %v2469, %v2527
      %v2552 = vmul.f32 %v2470, %v2519
      %v2553 = vmul.f32 %v2471, %v2524
      %v2554 = vmul.f32 %v2472, %v2521
      %v2555 = vmul.f32 %v2473, %v2525
      %v2556 = vmul.f32 %v2474, %v2522
      %v2557 = vmul.f32 %v2475, %v2526
      %v2558 = vmul.f32 %v2476, %v2523
      %v2559 = vmul.f32 %v2477, %v2527
      %v2560 = vmul.f32 %v2478, %v2519
      %v2561 = vmul.f32 %v2479, %v2524
      %v2562 = vmul.f32 %v2480, %v2521
      %v2563 = vmul.f32 %v2481, %v2525
      %v2564 = vmul.f32 %v2482, %v2522
      %v2565 = vmul.f32 %v2483, %v2526
      %v2566 = vmul.f32 %v2484, %v2523
      %v2567 = vmul.f32 %v2485, %v2527
      %v2568 = vmul.f32 %v2486, %v2519
      %v2569 = vmul.f32 %v2487, %v2524
      %v2570 = vmul.f32 %v2488, %v2521
      %v2571 = vmul.f32 %v2489, %v2525
      %v2572 = vmul.f32 %v2490, %v2522
      %v2573 = vmul.f32 %v2491, %v2526
      %v2574 = vmul.f32 %v2492, %v2523
      %v2575 = vmul.f32 %v2493, %v2527
      %v2576 = vmul.f32 %v2494, %v2519
      %v2577 = vmul.f32 %v2495, %v2524
      %v2578 = vmul.f32 %v2496, %v2521
      %v2579 = vmul.f32 %v2497, %v2525
      %v2580 = vmul.f32 %v2498, %v2522
      %v2581 = vmul.f32 %v2499, %v2526
      %v2582 = vmul.f32 %v2500, %v2523
      %v2583 = vmul.f32 %v2501, %v2527
      %v2584 = vmul.f32 %v2502, %v2519
      %v2585 = vmul.f32 %v2503, %v2524
      %v2586 = vmul.f32 %v2504, %v2521
      %v2587 = vmul.f32 %v2505, %v2525
      %v2588 = vmul.f32 %v2506, %v2522
      %v2589 = vmul.f32 %v2507, %v2526
      %v2590 = vmul.f32 %v2508, %v2523
      %v2591 = vmul.f32 %v2509, %v2527
      %v2592 = vmul.f32 %v2510, %v2519
      %v2593 = vmul.f32 %v2511, %v2524
      %v2594 = vmul.f32 %v2512, %v2521
      %v2595 = vmul.f32 %v2513, %v2525
      %v2596 = vmul.f32 %v2514, %v2522
      %v2597 = vmul.f32 %v2515, %v2526
      %v2598 = vmul.f32 %v2516, %v2523
      %v2599 = vmul.f32 %v2517, %v2527
      %v2600 = vld [vmem:[%s2 + $0x5] sm:$0x1]
      %v2601 = vperm.slane %v2600, 0
      %v2603 = vrot.slane %v2601, 2
      %v2604 = vrot.slane %v2601, 4
      %v2605 = vrot.slane %v2601, 6
      %v2606 = vrot.slane %v2601, 1
      %v2607 = vrot.slane %v2603, 1
      %v2608 = vrot.slane %v2604, 1
      %v2609 = vrot.slane %v2605, 1
      %v2618 = vadd.f32 %v2536, %v2601
      %v2619 = vadd.f32 %v2537, %v2606
      %v2620 = vadd.f32 %v2538, %v2603
      %v2621 = vadd.f32 %v2539, %v2607
      %v2622 = vadd.f32 %v2540, %v2604
      %v2623 = vadd.f32 %v2541, %v2608
      %v2624 = vadd.f32 %v2542, %v2605
      %v2625 = vadd.f32 %v2543, %v2609
      %v2626 = vadd.f32 %v2544, %v2601
      %v2627 = vadd.f32 %v2545, %v2606
      %v2628 = vadd.f32 %v2546, %v2603
      %v2629 = vadd.f32 %v2547, %v2607
      %v2630 = vadd.f32 %v2548, %v2604
      %v2631 = vadd.f32 %v2549, %v2608
      %v2632 = vadd.f32 %v2550, %v2605
      %v2633 = vadd.f32 %v2551, %v2609
      %v2634 = vadd.f32 %v2552, %v2601
      %v2635 = vadd.f32 %v2553, %v2606
      %v2636 = vadd.f32 %v2554, %v2603
      %v2637 = vadd.f32 %v2555, %v2607
      %v2638 = vadd.f32 %v2556, %v2604
      %v2639 = vadd.f32 %v2557, %v2608
      %v2640 = vadd.f32 %v2558, %v2605
      %v2641 = vadd.f32 %v2559, %v2609
      %v2642 = vadd.f32 %v2560, %v2601
      %v2643 = vadd.f32 %v2561, %v2606
      %v2644 = vadd.f32 %v2562, %v2603
      %v2645 = vadd.f32 %v2563, %v2607
      %v2646 = vadd.f32 %v2564, %v2604
      %v2647 = vadd.f32 %v2565, %v2608
      %v2648 = vadd.f32 %v2566, %v2605
      %v2649 = vadd.f32 %v2567, %v2609
      %v2650 = vadd.f32 %v2568, %v2601
      %v2651 = vadd.f32 %v2569, %v2606
      %v2652 = vadd.f32 %v2570, %v2603
      %v2653 = vadd.f32 %v2571, %v2607
      %v2654 = vadd.f32 %v2572, %v2604
      %v2655 = vadd.f32 %v2573, %v2608
      %v2656 = vadd.f32 %v2574, %v2605
      %v2657 = vadd.f32 %v2575, %v2609
      %v2658 = vadd.f32 %v2576, %v2601
      %v2659 = vadd.f32 %v2577, %v2606
      %v2660 = vadd.f32 %v2578, %v2603
      %v2661 = vadd.f32 %v2579, %v2607
      %v2662 = vadd.f32 %v2580, %v2604
      %v2663 = vadd.f32 %v2581, %v2608
      %v2664 = vadd.f32 %v2582, %v2605
      %v2665 = vadd.f32 %v2583, %v2609
      %v2666 = vadd.f32 %v2584, %v2601
      %v2667 = vadd.f32 %v2585, %v2606
      %v2668 = vadd.f32 %v2586, %v2603
      %v2669 = vadd.f32 %v2587, %v2607
      %v2670 = vadd.f32 %v2588, %v2604
      %v2671 = vadd.f32 %v2589, %v2608
      %v2672 = vadd.f32 %v2590, %v2605
      %v2673 = vadd.f32 %v2591, %v2609
      %v2674 = vadd.f32 %v2592, %v2601
      %v2675 = vadd.f32 %v2593, %v2606
      %v2676 = vadd.f32 %v2594, %v2603
      %v2677 = vadd.f32 %v2595, %v2607
      %v2678 = vadd.f32 %v2596, %v2604
      %v2679 = vadd.f32 %v2597, %v2608
      %v2680 = vadd.f32 %v2598, %v2605
      %v2681 = vadd.f32 %v2599, %v2609
      %v2682 = vmax.f32 %v2618, 0.0
      %v2683 = vmax.f32 %v2619, 0.0
      %v2684 = vmax.f32 %v2620, 0.0
      %v2685 = vmax.f32 %v2621, 0.0
      %v2686 = vmax.f32 %v2622, 0.0
      %v2687 = vmax.f32 %v2623, 0.0
      %v2688 = vmax.f32 %v2624, 0.0
      %v2689 = vmax.f32 %v2625, 0.0
      %v2690 = vmax.f32 %v2626, 0.0
      %v2691 = vmax.f32 %v2627, 0.0
      %v2692 = vmax.f32 %v2628, 0.0
      %v2693 = vmax.f32 %v2629, 0.0
      %v2694 = vmax.f32 %v2630, 0.0
      %v2695 = vmax.f32 %v2631, 0.0
      %v2696 = vmax.f32 %v2632, 0.0
      %v2697 = vmax.f32 %v2633, 0.0
      %v2698 = vmax.f32 %v2634, 0.0
      %v2699 = vmax.f32 %v2635, 0.0
      %v2700 = vmax.f32 %v2636, 0.0
      %v2701 = vmax.f32 %v2637, 0.0
      %v2702 = vmax.f32 %v2638, 0.0
      %v2703 = vmax.f32 %v2639, 0.0
      %v2704 = vmax.f32 %v2640, 0.0
      %v2705 = vmax.f32 %v2641, 0.0
      %v2706 = vmax.f32 %v2642, 0.0
      %v2707 = vmax.f32 %v2643, 0.0
      %v2708 = vmax.f32 %v2644, 0.0
      %v2709 = vmax.f32 %v2645, 0.0
      %v2710 = vmax.f32 %v2646, 0.0
      %v2711 = vmax.f32 %v2647, 0.0
      %v2712 = vmax.f32 %v2648, 0.0
      %v2713 = vmax.f32 %v2649, 0.0
      %v2714 = vmax.f32 %v2650, 0.0
      %v2715 = vmax.f32 %v2651, 0.0
      %v2716 = vmax.f32 %v2652, 0.0
      %v2717 = vmax.f32 %v2653, 0.0
      %v2718 = vmax.f32 %v2654, 0.0
      %v2719 = vmax.f32 %v2655, 0.0
      %v2720 = vmax.f32 %v2656, 0.0
      %v2721 = vmax.f32 %v2657, 0.0
      %v2722 = vmax.f32 %v2658, 0.0
      %v2723 = vmax.f32 %v2659, 0.0
      %v2724 = vmax.f32 %v2660, 0.0
      %v2725 = vmax.f32 %v2661, 0.0
      %v2726 = vmax.f32 %v2662, 0.0
      %v2727 = vmax.f32 %v2663, 0.0
      %v2728 = vmax.f32 %v2664, 0.0
      %v2729 = vmax.f32 %v2665, 0.0
      %v2730 = vmax.f32 %v2666, 0.0
      %v2731 = vmax.f32 %v2667, 0.0
      %v2732 = vmax.f32 %v2668, 0.0
      %v2733 = vmax.f32 %v2669, 0.0
      %v2734 = vmax.f32 %v2670, 0.0
      %v2735 = vmax.f32 %v2671, 0.0
      %v2736 = vmax.f32 %v2672, 0.0
      %v2737 = vmax.f32 %v2673, 0.0
      %v2738 = vmax.f32 %v2674, 0.0
      %v2739 = vmax.f32 %v2675, 0.0
      %v2740 = vmax.f32 %v2676, 0.0
      %v2741 = vmax.f32 %v2677, 0.0
      %v2742 = vmax.f32 %v2678, 0.0
      %v2743 = vmax.f32 %v2679, 0.0
      %v2744 = vmax.f32 %v2680, 0.0
      %v2745 = vmax.f32 %v2681, 0.0
      %s2746 = scalar_lea.vmem %s3, 40
      %v2747 = vld [vmem:[%s2746] sm:$0xff]
      %v2748 = vld [vmem:[%s4 + $0x5] sm:$0x1]
      %v2749 = vperm.slane %v2748, 0
      %v2814 = vperm.slane %v2682, 0
      %v2815 = vperm.slane %v2683, 0
      %v2816 = vperm.slane %v2684, 0
      %v2817 = vperm.slane %v2685, 0
      %v2818 = vperm.slane %v2686, 0
      %v2819 = vperm.slane %v2687, 0
      %v2820 = vperm.slane %v2688, 0
      %v2821 = vperm.slane %v2689, 0
      %v2822 = vperm.slane %v2690, 0
      %v2823 = vperm.slane %v2691, 0
      %v2824 = vperm.slane %v2692, 0
      %v2825 = vperm.slane %v2693, 0
      %v2826 = vperm.slane %v2694, 0
      %v2827 = vperm.slane %v2695, 0
      %v2828 = vperm.slane %v2696, 0
      %v2829 = vperm.slane %v2697, 0
      %v2830 = vperm.slane %v2698, 0
      %v2831 = vperm.slane %v2699, 0
      %v2832 = vperm.slane %v2700, 0
      %v2833 = vperm.slane %v2701, 0
      %v2834 = vperm.slane %v2702, 0
      %v2835 = vperm.slane %v2703, 0
      %v2836 = vperm.slane %v2704, 0
      %v2837 = vperm.slane %v2705, 0
      %v2838 = vperm.slane %v2706, 0
      %v2839 = vperm.slane %v2707, 0
      %v2840 = vperm.slane %v2708, 0
      %v2841 = vperm.slane %v2709, 0
      %v2842 = vperm.slane %v2710, 0
      %v2843 = vperm.slane %v2711, 0
      %v2844 = vperm.slane %v2712, 0
      %v2845 = vperm.slane %v2713, 0
      %v2846 = vperm.slane %v2714, 0
      %v2847 = vperm.slane %v2715, 0
      %v2848 = vperm.slane %v2716, 0
      %v2849 = vperm.slane %v2717, 0
      %v2850 = vperm.slane %v2718, 0
      %v2851 = vperm.slane %v2719, 0
      %v2852 = vperm.slane %v2720, 0
      %v2853 = vperm.slane %v2721, 0
      %v2854 = vperm.slane %v2722, 0
      %v2855 = vperm.slane %v2723, 0
      %v2856 = vperm.slane %v2724, 0
      %v2857 = vperm.slane %v2725, 0
      %v2858 = vperm.slane %v2726, 0
      %v2859 = vperm.slane %v2727, 0
      %v2860 = vperm.slane %v2728, 0
      %v2861 = vperm.slane %v2729, 0
      %v2862 = vperm.slane %v2730, 0
      %v2863 = vperm.slane %v2731, 0
      %v2864 = vperm.slane %v2732, 0
      %v2865 = vperm.slane %v2733, 0
      %v2866 = vperm.slane %v2734, 0
      %v2867 = vperm.slane %v2735, 0
      %v2868 = vperm.slane %v2736, 0
      %v2869 = vperm.slane %v2737, 0
      %v2870 = vperm.slane %v2738, 0
      %v2871 = vperm.slane %v2739, 0
      %v2872 = vperm.slane %v2740, 0
      %v2873 = vperm.slane %v2741, 0
      %v2874 = vperm.slane %v2742, 0
      %v2875 = vperm.slane %v2743, 0
      %v2876 = vperm.slane %v2744, 0
      %v2877 = vperm.slane %v2745, 0
      %vm2878 = vcmask 1041409
      %v2879 = vsel %vm2878, %v2815, %v2814
      %vm2880 = vcmask 1042434
      %v2881 = vsel %vm2880, %v2816, %v2879
      %vm2882 = vcmask 1043459
      %v2883 = vsel %vm2882, %v2817, %v2881
      %vm2884 = vcmask 1044484
      %v2885 = vsel %vm2884, %v2818, %v2883
      %vm2886 = vcmask 1045509
      %v2887 = vsel %vm2886, %v2819, %v2885
      %vm2888 = vcmask 1046534
      %v2889 = vsel %vm2888, %v2820, %v2887
      %vm2890 = vcmask 1047559
      %v2891 = vsel %vm2890, %v2821, %v2889
      %v2892 = vsel %vm2878, %v2823, %v2822
      %v2893 = vsel %vm2880, %v2824, %v2892
      %v2894 = vsel %vm2882, %v2825, %v2893
      %v2895 = vsel %vm2884, %v2826, %v2894
      %v2896 = vsel %vm2886, %v2827, %v2895
      %v2897 = vsel %vm2888, %v2828, %v2896
      %v2898 = vsel %vm2890, %v2829, %v2897
      %v2899 = vsel %vm2878, %v2831, %v2830
      %v2900 = vsel %vm2880, %v2832, %v2899
      %v2901 = vsel %vm2882, %v2833, %v2900
      %v2902 = vsel %vm2884, %v2834, %v2901
      %v2903 = vsel %vm2886, %v2835, %v2902
      %v2904 = vsel %vm2888, %v2836, %v2903
      %v2905 = vsel %vm2890, %v2837, %v2904
      %v2906 = vsel %vm2878, %v2839, %v2838
      %v2907 = vsel %vm2880, %v2840, %v2906
      %v2908 = vsel %vm2882, %v2841, %v2907
      %v2909 = vsel %vm2884, %v2842, %v2908
      %v2910 = vsel %vm2886, %v2843, %v2909
      %v2911 = vsel %vm2888, %v2844, %v2910
      %v2912 = vsel %vm2890, %v2845, %v2911
      %v2913 = vsel %vm2878, %v2847, %v2846
      %v2914 = vsel %vm2880, %v2848, %v2913
      %v2915 = vsel %vm2882, %v2849, %v2914
      %v2916 = vsel %vm2884, %v2850, %v2915
      %v2917 = vsel %vm2886, %v2851, %v2916
      %v2918 = vsel %vm2888, %v2852, %v2917
      %v2919 = vsel %vm2890, %v2853, %v2918
      %v2920 = vsel %vm2878, %v2855, %v2854
      %v2921 = vsel %vm2880, %v2856, %v2920
      %v2922 = vsel %vm2882, %v2857, %v2921
      %v2923 = vsel %vm2884, %v2858, %v2922
      %v2924 = vsel %vm2886, %v2859, %v2923
      %v2925 = vsel %vm2888, %v2860, %v2924
      %v2926 = vsel %vm2890, %v2861, %v2925
      %v2927 = vsel %vm2878, %v2863, %v2862
      %v2928 = vsel %vm2880, %v2864, %v2927
      %v2929 = vsel %vm2882, %v2865, %v2928
      %v2930 = vsel %vm2884, %v2866, %v2929
      %v2931 = vsel %vm2886, %v2867, %v2930
      %v2932 = vsel %vm2888, %v2868, %v2931
      %v2933 = vsel %vm2890, %v2869, %v2932
      %v2934 = vsel %vm2878, %v2871, %v2870
      %v2935 = vsel %vm2880, %v2872, %v2934
      %v2936 = vsel %vm2882, %v2873, %v2935
      %v2937 = vsel %vm2884, %v2874, %v2936
      %v2938 = vsel %vm2886, %v2875, %v2937
      %v2939 = vsel %vm2888, %v2876, %v2938
      %v2940 = vsel %vm2890, %v2877, %v2939
      %v2941 = vsel %vm469, %v2891, 0
      %v2943 = vsel %vm469, %v2898, 0
      %v2945 = vsel %vm469, %v2905, 0
      %v2947 = vsel %vm469, %v2912, 0
      %v2949 = vsel %vm469, %v2919, 0
      %v2951 = vsel %vm469, %v2926, 0
      %v2953 = vsel %vm469, %v2933, 0
      %v2955 = vsel %vm469, %v2940, 0
      %2957 = vmatpush.msra.mxu0 0.0
      %2958 = vmatpush.msra.mxu0 0.0
      %2959 = vmatpush.msra.mxu0 0.0
      %2960 = vmatpush.msra.mxu0 0.0
      %2961 = vmatpush.msra.mxu0 0.0
      %2962 = vmatpush.msra.mxu0 0.0
      %2963 = vmatpush.msra.mxu0 0.0
      %2964 = vmatpush.msra.mxu0 0.0
      %2965 = vmatpush.msra.mxu0 0.0
      %2966 = vmatpush.msra.mxu0 0.0
      %2967 = vmatpush.msra.mxu0 0.0
      %2968 = vmatpush.msra.mxu0 0.0
      %2969 = vmatpush.msra.mxu0 0.0
      %2970 = vmatpush.msra.mxu0 0.0
      %2971 = vmatpush.msra.mxu0 0.0
      %2972 = vmatpush.msra.mxu0 %v2747
      %2973 = vmatmul.f32.gmra.mxu0 %v2941
      %v2974 = vpop.f32.mrf.mxu0
      %v2975 = vadd.f32 %v2749, %v2974
      %2976 = vmatmul.f32.gmra.mxu0 %v2943
      %v2977 = vpop.f32.mrf.mxu0
      %v2978 = vadd.f32 %v2749, %v2977
      %2979 = vmatmul.f32.gmra.mxu0 %v2945
      %v2980 = vpop.f32.mrf.mxu0
      %v2981 = vadd.f32 %v2749, %v2980
      %2982 = vmatmul.f32.gmra.mxu0 %v2947
      %v2983 = vpop.f32.mrf.mxu0
      %v2984 = vadd.f32 %v2749, %v2983
      %2985 = vmatmul.f32.gmra.mxu0 %v2949
      %v2986 = vpop.f32.mrf.mxu0
      %v2987 = vadd.f32 %v2749, %v2986
      %2988 = vmatmul.f32.gmra.mxu0 %v2951
      %v2989 = vpop.f32.mrf.mxu0
      %v2990 = vadd.f32 %v2749, %v2989
      %2991 = vmatmul.f32.gmra.mxu0 %v2953
      %v2992 = vpop.f32.mrf.mxu0
      %v2993 = vadd.f32 %v2749, %v2992
      %2994 = vmatmul.f32.gmra.mxu0 %v2955
      %v2995 = vpop.f32.mrf.mxu0
      %v2996 = vadd.f32 %v2749, %v2995
      %2997 = vdwg.mxu0
      %v2998 = vmax.f32 %v2975, 0.0
      %v2999 = vmax.f32 %v2978, 0.0
      %v3000 = vmax.f32 %v2981, 0.0
      %v3001 = vmax.f32 %v2984, 0.0
      %v3002 = vmax.f32 %v2987, 0.0
      %v3003 = vmax.f32 %v2990, 0.0
      %v3004 = vmax.f32 %v2993, 0.0
      %v3005 = vmax.f32 %v2996, 0.0
      %s3006 = scalar_lea.vmem %s5, 240
      %v3007 = vld [vmem:[%s3006] sm:$0xff]
      %v3008 = vld [vmem:[%s3006 + $0x8] sm:$0xf]
      %v3009 = vld [vmem:[%s3006 + $0x10] sm:$0xff]
      %v3010 = vld [vmem:[%s3006 + $0x18] sm:$0xf]
      %v3011 = vld [vmem:[%s3006 + $0x20] sm:$0xff]
      %v3012 = vld [vmem:[%s3006 + $0x28] sm:$0xf]
      %v3013 = vld [vmem:[%s6 + $0x5] sm:$0x1]
      %3022 = vrot.lane.b32.xlu0 %v2998, 4
      %v3023 = vpop.permute.xlu0 %3022
      %3024 = vrot.lane.b32.xlu0 %v2999, 4
      %v3025 = vpop.permute.xlu0 %3024
      %3026 = vrot.lane.b32.xlu0 %v3000, 4
      %v3027 = vpop.permute.xlu0 %3026
      %3028 = vrot.lane.b32.xlu0 %v3001, 4
      %v3029 = vpop.permute.xlu0 %3028
      %3030 = vrot.lane.b32.xlu0 %v3002, 4
      %v3031 = vpop.permute.xlu0 %3030
      %3032 = vrot.lane.b32.xlu0 %v3003, 4
      %v3033 = vpop.permute.xlu0 %3032
      %3034 = vrot.lane.b32.xlu0 %v3004, 4
      %v3035 = vpop.permute.xlu0 %3034
      %3036 = vrot.lane.b32.xlu0 %v3005, 4
      %v3037 = vpop.permute.xlu0 %3036
      %3046 = vrot.lane.b32.xlu0 %v2999, 8
      %v3047 = vpop.permute.xlu0 %3046
      %3048 = vrot.lane.b32.xlu0 %v3000, 8
      %v3049 = vpop.permute.xlu0 %3048
      %3050 = vrot.lane.b32.xlu0 %v3001, 8
      %v3051 = vpop.permute.xlu0 %3050
      %3052 = vrot.lane.b32.xlu0 %v3002, 8
      %v3053 = vpop.permute.xlu0 %3052
      %3054 = vrot.lane.b32.xlu0 %v3003, 8
      %v3055 = vpop.permute.xlu0 %3054
      %3056 = vrot.lane.b32.xlu0 %v3004, 8
      %v3057 = vpop.permute.xlu0 %3056
      %3058 = vrot.lane.b32.xlu0 %v3005, 8
      %v3059 = vpop.permute.xlu0 %3058
      %v3067 = vsel %vm941, 0.0, %v3023
      %v3068 = vsel %vm941, %v2998, %v3025
      %v3069 = vsel %vm941, %v2999, %v3027
      %v3070 = vsel %vm941, %v3000, %v3029
      %v3071 = vsel %vm941, %v3001, %v3031
      %v3072 = vsel %vm941, %v3002, %v3033
      %v3073 = vsel %vm941, %v3003, %v3035
      %v3074 = vsel %vm941, %v3004, %v3037
      %v3075 = vsel %vm469, %v3067, %v3047
      %v3076 = vsel %vm469, %v3068, %v3049
      %v3077 = vsel %vm469, %v3069, %v3051
      %v3078 = vsel %vm469, %v3070, %v3053
      %v3079 = vsel %vm469, %v3071, %v3055
      %v3080 = vsel %vm469, %v3072, %v3057
      %v3081 = vsel %vm469, %v3073, %v3059
      %v3082 = vsel %vm469, %v3074, %v909
      %v3084 = vsel %vm1006, %v3075, 0
      %v3087 = vsel %vm1006, %v3076, 0
      %v3090 = vsel %vm1006, %v3077, 0
      %v3093 = vsel %vm1006, %v3078, 0
      %v3096 = vsel %vm1006, %v3079, 0
      %v3099 = vsel %vm1006, %v3080, 0
      %v3102 = vsel %vm1006, %v3081, 0
      %v3105 = vsel %vm1006, %v3082, 0
      %v3108 = vsel %vm1103, %v3008, 0
      %3110 = vmatpush.msra.mxu0 0.0
      %3111 = vmatpush.msra.mxu0 0.0
      %3112 = vmatpush.msra.mxu0 0.0
      %3113 = vmatpush.msra.mxu0 0.0
      %3114 = vmatpush.msra.mxu0 0.0
      %3115 = vmatpush.msra.mxu0 0.0
      %3116 = vmatpush.msra.mxu0 0.0
      %3117 = vmatpush.msra.mxu0 0.0
      %3118 = vmatpush.msra.mxu0 0.0
      %3119 = vmatpush.msra.mxu0 0.0
      %3120 = vmatpush.msra.mxu0 0.0
      %3121 = vmatpush.msra.mxu0 0.0
      %3122 = vmatpush.msra.mxu0 0.0
      %3123 = vmatpush.msra.mxu0 0.0
      %3124 = vmatpush.msra.mxu0 %v3108
      %3125 = vmatpush.msra.mxu0 %v3007
      %3126 = vmatmul.f32.gmra.mxu0 %v3084
      %v3127 = vpop.f32.mrf.mxu0
      %v3128 = vadd.f32 0.0, %v3127
      %3129 = vmatmul.f32.gmra.mxu0 %v3087
      %v3130 = vpop.f32.mrf.mxu0
      %v3131 = vadd.f32 0.0, %v3130
      %3132 = vmatmul.f32.gmra.mxu0 %v3090
      %v3133 = vpop.f32.mrf.mxu0
      %v3134 = vadd.f32 0.0, %v3133
      %3135 = vmatmul.f32.gmra.mxu0 %v3093
      %v3136 = vpop.f32.mrf.mxu0
      %v3137 = vadd.f32 0.0, %v3136
      %3138 = vmatmul.f32.gmra.mxu0 %v3096
      %v3139 = vpop.f32.mrf.mxu0
      %v3140 = vadd.f32 0.0, %v3139
      %3141 = vmatmul.f32.gmra.mxu0 %v3099
      %v3142 = vpop.f32.mrf.mxu0
      %v3143 = vadd.f32 0.0, %v3142
      %3144 = vmatmul.f32.gmra.mxu0 %v3102
      %v3145 = vpop.f32.mrf.mxu0
      %v3146 = vadd.f32 0.0, %v3145
      %3147 = vmatmul.f32.gmra.mxu0 %v3105
      %v3148 = vpop.f32.mrf.mxu0
      %v3149 = vadd.f32 0.0, %v3148
      %3150 = vdwg.mxu0
      %v3152 = vsel %vm1103, %v3012, 0
      %3154 = vmatpush.msra.mxu0 0.0
      %3155 = vmatpush.msra.mxu0 0.0
      %3156 = vmatpush.msra.mxu0 0.0
      %3157 = vmatpush.msra.mxu0 0.0
      %3158 = vmatpush.msra.mxu0 0.0
      %3159 = vmatpush.msra.mxu0 0.0
      %3160 = vmatpush.msra.mxu0 0.0
      %3161 = vmatpush.msra.mxu0 0.0
      %3162 = vmatpush.msra.mxu0 0.0
      %3163 = vmatpush.msra.mxu0 0.0
      %3164 = vmatpush.msra.mxu0 0.0
      %3165 = vmatpush.msra.mxu0 0.0
      %3166 = vmatpush.msra.mxu0 0.0
      %3167 = vmatpush.msra.mxu0 0.0
      %3168 = vmatpush.msra.mxu0 %v3152
      %3169 = vmatpush.msra.mxu0 %v3011
      %3170 = vmatmul.f32.gmra.mxu0 %v3084
      %v3171 = vpop.f32.mrf.mxu0
      %v3172 = vadd.f32 0.0, %v3171
      %3173 = vmatmul.f32.gmra.mxu0 %v3087
      %v3174 = vpop.f32.mrf.mxu0
      %v3175 = vadd.f32 0.0, %v3174
      %3176 = vmatmul.f32.gmra.mxu0 %v3090
      %v3177 = vpop.f32.mrf.mxu0
      %v3178 = vadd.f32 0.0, %v3177
      %3179 = vmatmul.f32.gmra.mxu0 %v3093
      %v3180 = vpop.f32.mrf.mxu0
      %v3181 = vadd.f32 0.0, %v3180
      %3182 = vmatmul.f32.gmra.mxu0 %v3096
      %v3183 = vpop.f32.mrf.mxu0
      %v3184 = vadd.f32 0.0, %v3183
      %3185 = vmatmul.f32.gmra.mxu0 %v3099
      %v3186 = vpop.f32.mrf.mxu0
      %v3187 = vadd.f32 0.0, %v3186
      %3188 = vmatmul.f32.gmra.mxu0 %v3102
      %v3189 = vpop.f32.mrf.mxu0
      %v3190 = vadd.f32 0.0, %v3189
      %3191 = vmatmul.f32.gmra.mxu0 %v3105
      %v3192 = vpop.f32.mrf.mxu0
      %v3193 = vadd.f32 0.0, %v3192
      %3194 = vdwg.mxu0
      %v3203 = vrot.slane %v3128, 7
      %v3204 = vrot.slane %v3131, 7
      %v3205 = vsel %vm1368, %v3203, %v3204
      %v3206 = vrot.slane %v3134, 7
      %v3207 = vsel %vm1368, %v3204, %v3206
      %v3208 = vrot.slane %v3137, 7
      %v3209 = vsel %vm1368, %v3206, %v3208
      %v3210 = vrot.slane %v3140, 7
      %v3211 = vsel %vm1368, %v3208, %v3210
      %v3212 = vrot.slane %v3143, 7
      %v3213 = vsel %vm1368, %v3210, %v3212
      %v3214 = vrot.slane %v3146, 7
      %v3215 = vsel %vm1368, %v3212, %v3214
      %v3216 = vrot.slane %v3149, 7
      %v3217 = vsel %vm1368, %v3214, %v3216
      %v3226 = vsel %vm1368, 0.0, %v3203
      %v3235 = vrot.slane %v3172, 1
      %v3236 = vrot.slane %v3175, 1
      %v3237 = vsel %vm1497, %v3235, %v3236
      %v3238 = vrot.slane %v3178, 1
      %v3239 = vsel %vm1497, %v3236, %v3238
      %v3240 = vrot.slane %v3181, 1
      %v3241 = vsel %vm1497, %v3238, %v3240
      %v3242 = vrot.slane %v3184, 1
      %v3243 = vsel %vm1497, %v3240, %v3242
      %v3244 = vrot.slane %v3187, 1
      %v3245 = vsel %vm1497, %v3242, %v3244
      %v3246 = vrot.slane %v3190, 1
      %v3247 = vsel %vm1497, %v3244, %v3246
      %v3248 = vrot.slane %v3193, 1
      %v3249 = vsel %vm1497, %v3246, %v3248
      %v3258 = vsel %vm1497, %v3248, 0.0
      %v3259 = vsel %vm1601, 0.0, %v3226
      %v3260 = vsel %vm1601, 0.0, %v3205
      %v3261 = vsel %vm1601, 0.0, %v3207
      %v3262 = vsel %vm1601, 0.0, %v3209
      %v3263 = vsel %vm1601, 0.0, %v3211
      %v3264 = vsel %vm1601, 0.0, %v3213
      %v3265 = vsel %vm1601, 0.0, %v3215
      %v3266 = vsel %vm1601, 0.0, %v3217
      %v3268 = vsel %vm1103, %v3010, 0
      %3270 = vmatpush.msra.mxu0 0.0
      %3271 = vmatpush.msra.mxu0 0.0
      %3272 = vmatpush.msra.mxu0 0.0
      %3273 = vmatpush.msra.mxu0 0.0
      %3274 = vmatpush.msra.mxu0 0.0
      %3275 = vmatpush.msra.mxu0 0.0
      %3276 = vmatpush.msra.mxu0 0.0
      %3277 = vmatpush.msra.mxu0 0.0
      %3278 = vmatpush.msra.mxu0 0.0
      %3279 = vmatpush.msra.mxu0 0.0
      %3280 = vmatpush.msra.mxu0 0.0
      %3281 = vmatpush.msra.mxu0 0.0
      %3282 = vmatpush.msra.mxu0 0.0
      %3283 = vmatpush.msra.mxu0 0.0
      %3284 = vmatpush.msra.mxu0 %v3268
      %3285 = vmatpush.msra.mxu0 %v3009
      %3286 = vmatmul.f32.gmra.mxu0 %v3084
      %v3287 = vpop.f32.mrf.mxu0
      %v3288 = vadd.f32 %v3259, %v3287
      %3289 = vmatmul.f32.gmra.mxu0 %v3087
      %v3290 = vpop.f32.mrf.mxu0
      %v3291 = vadd.f32 %v3260, %v3290
      %3292 = vmatmul.f32.gmra.mxu0 %v3090
      %v3293 = vpop.f32.mrf.mxu0
      %v3294 = vadd.f32 %v3261, %v3293
      %3295 = vmatmul.f32.gmra.mxu0 %v3093
      %v3296 = vpop.f32.mrf.mxu0
      %v3297 = vadd.f32 %v3262, %v3296
      %3298 = vmatmul.f32.gmra.mxu0 %v3096
      %v3299 = vpop.f32.mrf.mxu0
      %v3300 = vadd.f32 %v3263, %v3299
      %3301 = vmatmul.f32.gmra.mxu0 %v3099
      %v3302 = vpop.f32.mrf.mxu0
      %v3303 = vadd.f32 %v3264, %v3302
      %3304 = vmatmul.f32.gmra.mxu0 %v3102
      %v3305 = vpop.f32.mrf.mxu0
      %v3306 = vadd.f32 %v3265, %v3305
      %3307 = vmatmul.f32.gmra.mxu0 %v3105
      %v3308 = vpop.f32.mrf.mxu0
      %v3309 = vadd.f32 %v3266, %v3308
      %3310 = vdwg.mxu0
      %vm3311 = vcmp.eq.s32.totalorder %v1595, 7
      %v3312 = vsel %vm3311, 1, 0
      %vm3313 = vcmp.eq.s32.totalorder %v3312, 1
      %v3314 = vsel %vm3313, 0.0, %v3237
      %v3315 = vsel %vm3313, 0.0, %v3239
      %v3316 = vsel %vm3313, 0.0, %v3241
      %v3317 = vsel %vm3313, 0.0, %v3243
      %v3318 = vsel %vm3313, 0.0, %v3245
      %v3319 = vsel %vm3313, 0.0, %v3247
      %v3320 = vsel %vm3313, 0.0, %v3249
      %v3321 = vsel %vm3313, 0.0, %v3258
      %v3322 = vadd.f32 %v3288, %v3314
      %v3323 = vadd.f32 %v3291, %v3315
      %v3324 = vadd.f32 %v3294, %v3316
      %v3325 = vadd.f32 %v3297, %v3317
      %v3326 = vadd.f32 %v3300, %v3318
      %v3327 = vadd.f32 %v3303, %v3319
      %v3328 = vadd.f32 %v3306, %v3320
      %v3329 = vadd.f32 %v3309, %v3321
      %v3330 = vperm.slane %v3013, 0
      %v3331 = vadd.f32 %v3322, %v3330
      %v3332 = vadd.f32 %v3323, %v3330
      %v3333 = vadd.f32 %v3324, %v3330
      %v3334 = vadd.f32 %v3325, %v3330
      %v3335 = vadd.f32 %v3326, %v3330
      %v3336 = vadd.f32 %v3327, %v3330
      %v3337 = vadd.f32 %v3328, %v3330
      %v3338 = vadd.f32 %v3329, %v3330
      %v3339 = vmax.f32 %v3331, 0.0
      %v3340 = vmax.f32 %v3332, 0.0
      %v3341 = vmax.f32 %v3333, 0.0
      %v3342 = vmax.f32 %v3334, 0.0
      %v3343 = vmax.f32 %v3335, 0.0
      %v3344 = vmax.f32 %v3336, 0.0
      %v3345 = vmax.f32 %v3337, 0.0
      %v3346 = vmax.f32 %v3338, 0.0
      %s3347 = scalar_lea.vmem %s7, 20
      %v3348 = vld [vmem:[%s3347] sm:$0xf]
      %v3349 = vld [vmem:[%s8 + $0x5] sm:$0x1]
      %v3350 = vperm.slane %v3349, 0
      %v3352 = vsel %vm941, %v3339, 0
      %v3355 = vsel %vm941, %v3340, 0
      %v3358 = vsel %vm941, %v3341, 0
      %v3361 = vsel %vm941, %v3342, 0
      %v3364 = vsel %vm941, %v3343, 0
      %v3367 = vsel %vm941, %v3344, 0
      %v3370 = vsel %vm941, %v3345, 0
      %v3373 = vsel %vm941, %v3346, 0
      %v3376 = vsel %vm1103, %v3348, 0
      %3378 = vmatpush.msra.mxu0 0.0
      %3379 = vmatpush.msra.mxu0 0.0
      %3380 = vmatpush.msra.mxu0 0.0
      %3381 = vmatpush.msra.mxu0 0.0
      %3382 = vmatpush.msra.mxu0 0.0
      %3383 = vmatpush.msra.mxu0 0.0
      %3384 = vmatpush.msra.mxu0 0.0
      %3385 = vmatpush.msra.mxu0 0.0
      %3386 = vmatpush.msra.mxu0 0.0
      %3387 = vmatpush.msra.mxu0 0.0
      %3388 = vmatpush.msra.mxu0 0.0
      %3389 = vmatpush.msra.mxu0 0.0
      %3390 = vmatpush.msra.mxu0 0.0
      %3391 = vmatpush.msra.mxu0 0.0
      %3392 = vmatpush.msra.mxu0 0.0
      %3393 = vmatpush.msra.mxu0 %v3376
      %3394 = vmatmul.f32.gmra.mxu0 %v3352
      %v3395 = vpop.f32.mrf.mxu0
      %v3396 = vadd.f32 %v3350, %v3395
      %3397 = vmatmul.f32.gmra.mxu0 %v3355
      %v3398 = vpop.f32.mrf.mxu0
      %v3399 = vadd.f32 %v3350, %v3398
      %3400 = vmatmul.f32.gmra.mxu0 %v3358
      %v3401 = vpop.f32.mrf.mxu0
      %v3402 = vadd.f32 %v3350, %v3401
      %3403 = vmatmul.f32.gmra.mxu0 %v3361
      %v3404 = vpop.f32.mrf.mxu0
      %v3405 = vadd.f32 %v3350, %v3404
      %3406 = vmatmul.f32.gmra.mxu0 %v3364
      %v3407 = vpop.f32.mrf.mxu0
      %v3408 = vadd.f32 %v3350, %v3407
      %3409 = vmatmul.f32.gmra.mxu0 %v3367
      %v3410 = vpop.f32.mrf.mxu0
      %v3411 = vadd.f32 %v3350, %v3410
      %3412 = vmatmul.f32.gmra.mxu0 %v3370
      %v3413 = vpop.f32.mrf.mxu0
      %v3414 = vadd.f32 %v3350, %v3413
      %3415 = vmatmul.f32.gmra.mxu0 %v3373
      %v3416 = vpop.f32.mrf.mxu0
      %v3417 = vadd.f32 %v3350, %v3416
      %3418 = vdwg.mxu0
      %v3483 = vperm.slane %v2454, 0
      %v3484 = vperm.slane %v2455, 0
      %v3485 = vperm.slane %v2456, 0
      %v3486 = vperm.slane %v2457, 0
      %v3487 = vperm.slane %v2458, 0
      %v3488 = vperm.slane %v2459, 0
      %v3489 = vperm.slane %v2460, 0
      %v3490 = vperm.slane %v2461, 0
      %v3491 = vperm.slane %v2462, 0
      %v3492 = vperm.slane %v2463, 0
      %v3493 = vperm.slane %v2464, 0
      %v3494 = vperm.slane %v2465, 0
      %v3495 = vperm.slane %v2466, 0
      %v3496 = vperm.slane %v2467, 0
      %v3497 = vperm.slane %v2468, 0
      %v3498 = vperm.slane %v2469, 0
      %v3499 = vperm.slane %v2470, 0
      %v3500 = vperm.slane %v2471, 0
      %v3501 = vperm.slane %v2472, 0
      %v3502 = vperm.slane %v2473, 0
      %v3503 = vperm.slane %v2474, 0
      %v3504 = vperm.slane %v2475, 0
      %v3505 = vperm.slane %v2476, 0
      %v3506 = vperm.slane %v2477, 0
      %v3507 = vperm.slane %v2478, 0
      %v3508 = vperm.slane %v2479, 0
      %v3509 = vperm.slane %v2480, 0
      %v3510 = vperm.slane %v2481, 0
      %v3511 = vperm.slane %v2482, 0
      %v3512 = vperm.slane %v2483, 0
      %v3513 = vperm.slane %v2484, 0
      %v3514 = vperm.slane %v2485, 0
      %v3515 = vperm.slane %v2486, 0
      %v3516 = vperm.slane %v2487, 0
      %v3517 = vperm.slane %v2488, 0
      %v3518 = vperm.slane %v2489, 0
      %v3519 = vperm.slane %v2490, 0
      %v3520 = vperm.slane %v2491, 0
      %v3521 = vperm.slane %v2492, 0
      %v3522 = vperm.slane %v2493, 0
      %v3523 = vperm.slane %v2494, 0
      %v3524 = vperm.slane %v2495, 0
      %v3525 = vperm.slane %v2496, 0
      %v3526 = vperm.slane %v2497, 0
      %v3527 = vperm.slane %v2498, 0
      %v3528 = vperm.slane %v2499, 0
      %v3529 = vperm.slane %v2500, 0
      %v3530 = vperm.slane %v2501, 0
      %v3531 = vperm.slane %v2502, 0
      %v3532 = vperm.slane %v2503, 0
      %v3533 = vperm.slane %v2504, 0
      %v3534 = vperm.slane %v2505, 0
      %v3535 = vperm.slane %v2506, 0
      %v3536 = vperm.slane %v2507, 0
      %v3537 = vperm.slane %v2508, 0
      %v3538 = vperm.slane %v2509, 0
      %v3539 = vperm.slane %v2510, 0
      %v3540 = vperm.slane %v2511, 0
      %v3541 = vperm.slane %v2512, 0
      %v3542 = vperm.slane %v2513, 0
      %v3543 = vperm.slane %v2514, 0
      %v3544 = vperm.slane %v2515, 0
      %v3545 = vperm.slane %v2516, 0
      %v3546 = vperm.slane %v2517, 0
      %v3547 = vsel %vm2878, %v3484, %v3483
      %v3548 = vsel %vm2880, %v3485, %v3547
      %v3549 = vsel %vm2882, %v3486, %v3548
      %v3550 = vsel %vm2884, %v3487, %v3549
      %v3551 = vsel %vm2886, %v3488, %v3550
      %v3552 = vsel %vm2888, %v3489, %v3551
      %v3553 = vsel %vm2890, %v3490, %v3552
      %v3554 = vsel %vm2878, %v3492, %v3491
      %v3555 = vsel %vm2880, %v3493, %v3554
      %v3556 = vsel %vm2882, %v3494, %v3555
      %v3557 = vsel %vm2884, %v3495, %v3556
      %v3558 = vsel %vm2886, %v3496, %v3557
      %v3559 = vsel %vm2888, %v3497, %v3558
      %v3560 = vsel %vm2890, %v3498, %v3559
      %v3561 = vsel %vm2878, %v3500, %v3499
      %v3562 = vsel %vm2880, %v3501, %v3561
      %v3563 = vsel %vm2882, %v3502, %v3562
      %v3564 = vsel %vm2884, %v3503, %v3563
      %v3565 = vsel %vm2886, %v3504, %v3564
      %v3566 = vsel %vm2888, %v3505, %v3565
      %v3567 = vsel %vm2890, %v3506, %v3566
      %v3568 = vsel %vm2878, %v3508, %v3507
      %v3569 = vsel %vm2880, %v3509, %v3568
      %v3570 = vsel %vm2882, %v3510, %v3569
      %v3571 = vsel %vm2884, %v3511, %v3570
      %v3572 = vsel %vm2886, %v3512, %v3571
      %v3573 = vsel %vm2888, %v3513, %v3572
      %v3574 = vsel %vm2890, %v3514, %v3573
      %v3575 = vsel %vm2878, %v3516, %v3515
      %v3576 = vsel %vm2880, %v3517, %v3575
      %v3577 = vsel %vm2882, %v3518, %v3576
      %v3578 = vsel %vm2884, %v3519, %v3577
      %v3579 = vsel %vm2886, %v3520, %v3578
      %v3580 = vsel %vm2888, %v3521, %v3579
      %v3581 = vsel %vm2890, %v3522, %v3580
      %v3582 = vsel %vm2878, %v3524, %v3523
      %v3583 = vsel %vm2880, %v3525, %v3582
      %v3584 = vsel %vm2882, %v3526, %v3583
      %v3585 = vsel %vm2884, %v3527, %v3584
      %v3586 = vsel %vm2886, %v3528, %v3585
      %v3587 = vsel %vm2888, %v3529, %v3586
      %v3588 = vsel %vm2890, %v3530, %v3587
      %v3589 = vsel %vm2878, %v3532, %v3531
      %v3590 = vsel %vm2880, %v3533, %v3589
      %v3591 = vsel %vm2882, %v3534, %v3590
      %v3592 = vsel %vm2884, %v3535, %v3591
      %v3593 = vsel %vm2886, %v3536, %v3592
      %v3594 = vsel %vm2888, %v3537, %v3593
      %v3595 = vsel %vm2890, %v3538, %v3594
      %v3596 = vsel %vm2878, %v3540, %v3539
      %v3597 = vsel %vm2880, %v3541, %v3596
      %v3598 = vsel %vm2882, %v3542, %v3597
      %v3599 = vsel %vm2884, %v3543, %v3598
      %v3600 = vsel %vm2886, %v3544, %v3599
      %v3601 = vsel %vm2888, %v3545, %v3600
      %v3602 = vsel %vm2890, %v3546, %v3601
      %v3611 = vadd.f32 %v3396, %v3553
      %v3612 = vadd.f32 %v3399, %v3560
      %v3613 = vadd.f32 %v3402, %v3567
      %v3614 = vadd.f32 %v3405, %v3574
      %v3615 = vadd.f32 %v3408, %v3581
      %v3616 = vadd.f32 %v3411, %v3588
      %v3617 = vadd.f32 %v3414, %v3595
      %v3618 = vadd.f32 %v3417, %v3602
      %v3619 = vld [vmem:[%s1] sm:$0x1]
      %v3620 = vperm.slane %v3619, 0
      %v3621 = vmul.f32 %v3611, %v3620
      %v3622 = vmul.f32 %v3612, %v3620
      %v3623 = vmul.f32 %v3613, %v3620
      %v3624 = vmul.f32 %v3614, %v3620
      %v3625 = vmul.f32 %v3615, %v3620
      %v3626 = vmul.f32 %v3616, %v3620
      %v3627 = vmul.f32 %v3617, %v3620
      %v3628 = vmul.f32 %v3618, %v3620
      %v3629 = vld [vmem:[%s2] sm:$0x1]
      %v3630 = vperm.slane %v3629, 0
      %v3631 = vadd.f32 %v3621, %v3630
      %v3632 = vadd.f32 %v3622, %v3630
      %v3633 = vadd.f32 %v3623, %v3630
      %v3634 = vadd.f32 %v3624, %v3630
      %v3635 = vadd.f32 %v3625, %v3630
      %v3636 = vadd.f32 %v3626, %v3630
      %v3637 = vadd.f32 %v3627, %v3630
      %v3638 = vadd.f32 %v3628, %v3630
      %v3639 = vmax.f32 %v3631, 0.0
      %v3640 = vmax.f32 %v3632, 0.0
      %v3641 = vmax.f32 %v3633, 0.0
      %v3642 = vmax.f32 %v3634, 0.0
      %v3643 = vmax.f32 %v3635, 0.0
      %v3644 = vmax.f32 %v3636, 0.0
      %v3645 = vmax.f32 %v3637, 0.0
      %v3646 = vmax.f32 %v3638, 0.0
      %v3647 = vld [vmem:[%s3] sm:$0xff]
      %v3648 = vld [vmem:[%s4] sm:$0x1]
      %v3649 = vperm.slane %v3648, 0
      %v3651 = vsel %vm469, %v3639, 0
      %v3654 = vsel %vm469, %v3640, 0
      %v3657 = vsel %vm469, %v3641, 0
      %v3660 = vsel %vm469, %v3642, 0
      %v3663 = vsel %vm469, %v3643, 0
      %v3666 = vsel %vm469, %v3644, 0
      %v3669 = vsel %vm469, %v3645, 0
      %v3672 = vsel %vm469, %v3646, 0
      %3674 = vmatpush.msra.mxu0 0.0
      %3675 = vmatpush.msra.mxu0 0.0
      %3676 = vmatpush.msra.mxu0 0.0
      %3677 = vmatpush.msra.mxu0 0.0
      %3678 = vmatpush.msra.mxu0 0.0
      %3679 = vmatpush.msra.mxu0 0.0
      %3680 = vmatpush.msra.mxu0 0.0
      %3681 = vmatpush.msra.mxu0 0.0
      %3682 = vmatpush.msra.mxu0 0.0
      %3683 = vmatpush.msra.mxu0 0.0
      %3684 = vmatpush.msra.mxu0 0.0
      %3685 = vmatpush.msra.mxu0 0.0
      %3686 = vmatpush.msra.mxu0 0.0
      %3687 = vmatpush.msra.mxu0 0.0
      %3688 = vmatpush.msra.mxu0 0.0
      %3689 = vmatpush.msra.mxu0 %v3647
      %3690 = vmatmul.f32.gmra.mxu0 %v3651
      %v3691 = vpop.f32.mrf.mxu0
      %v3692 = vadd.f32 %v3649, %v3691
      %3693 = vmatmul.f32.gmra.mxu0 %v3654
      %v3694 = vpop.f32.mrf.mxu0
      %v3695 = vadd.f32 %v3649, %v3694
      %3696 = vmatmul.f32.gmra.mxu0 %v3657
      %v3697 = vpop.f32.mrf.mxu0
      %v3698 = vadd.f32 %v3649, %v3697
      %3699 = vmatmul.f32.gmra.mxu0 %v3660
      %v3700 = vpop.f32.mrf.mxu0
      %v3701 = vadd.f32 %v3649, %v3700
      %3702 = vmatmul.f32.gmra.mxu0 %v3663
      %v3703 = vpop.f32.mrf.mxu0
      %v3704 = vadd.f32 %v3649, %v3703
      %3705 = vmatmul.f32.gmra.mxu0 %v3666
      %v3706 = vpop.f32.mrf.mxu0
      %v3707 = vadd.f32 %v3649, %v3706
      %3708 = vmatmul.f32.gmra.mxu0 %v3669
      %v3709 = vpop.f32.mrf.mxu0
      %v3710 = vadd.f32 %v3649, %v3709
      %3711 = vmatmul.f32.gmra.mxu0 %v3672
      %v3712 = vpop.f32.mrf.mxu0
      %v3713 = vadd.f32 %v3649, %v3712
      %3714 = vdwg.mxu0
      %v3715 = vmax.f32 %v3692, 0.0
      %v3716 = vmax.f32 %v3695, 0.0
      %v3717 = vmax.f32 %v3698, 0.0
      %v3718 = vmax.f32 %v3701, 0.0
      %v3719 = vmax.f32 %v3704, 0.0
      %v3720 = vmax.f32 %v3707, 0.0
      %v3721 = vmax.f32 %v3710, 0.0
      %v3722 = vmax.f32 %v3713, 0.0
      %v3723 = vld [vmem:[%s5] sm:$0xff]
      %v3724 = vld [vmem:[%s5 + $0x8] sm:$0xf]
      %v3725 = vld [vmem:[%s5 + $0x10] sm:$0xff]
      %v3726 = vld [vmem:[%s5 + $0x18] sm:$0xf]
      %v3727 = vld [vmem:[%s5 + $0x20] sm:$0xff]
      %v3728 = vld [vmem:[%s5 + $0x28] sm:$0xf]
      %v3729 = vld [vmem:[%s6] sm:$0x1]
      %3738 = vrot.lane.b32.xlu0 %v3715, 4
      %v3739 = vpop.permute.xlu0 %3738
      %3740 = vrot.lane.b32.xlu0 %v3716, 4
      %v3741 = vpop.permute.xlu0 %3740
      %3742 = vrot.lane.b32.xlu0 %v3717, 4
      %v3743 = vpop.permute.xlu0 %3742
      %3744 = vrot.lane.b32.xlu0 %v3718, 4
      %v3745 = vpop.permute.xlu0 %3744
      %3746 = vrot.lane.b32.xlu0 %v3719, 4
      %v3747 = vpop.permute.xlu0 %3746
      %3748 = vrot.lane.b32.xlu0 %v3720, 4
      %v3749 = vpop.permute.xlu0 %3748
      %3750 = vrot.lane.b32.xlu0 %v3721, 4
      %v3751 = vpop.permute.xlu0 %3750
      %3752 = vrot.lane.b32.xlu0 %v3722, 4
      %v3753 = vpop.permute.xlu0 %3752
      %3762 = vrot.lane.b32.xlu0 %v3716, 8
      %v3763 = vpop.permute.xlu0 %3762
      %3764 = vrot.lane.b32.xlu0 %v3717, 8
      %v3765 = vpop.permute.xlu0 %3764
      %3766 = vrot.lane.b32.xlu0 %v3718, 8
      %v3767 = vpop.permute.xlu0 %3766
      %3768 = vrot.lane.b32.xlu0 %v3719, 8
      %v3769 = vpop.permute.xlu0 %3768
      %3770 = vrot.lane.b32.xlu0 %v3720, 8
      %v3771 = vpop.permute.xlu0 %3770
      %3772 = vrot.lane.b32.xlu0 %v3721, 8
      %v3773 = vpop.permute.xlu0 %3772
      %3774 = vrot.lane.b32.xlu0 %v3722, 8
      %v3775 = vpop.permute.xlu0 %3774
      %v3783 = vsel %vm941, 0.0, %v3739
      %v3784 = vsel %vm941, %v3715, %v3741
      %v3785 = vsel %vm941, %v3716, %v3743
      %v3786 = vsel %vm941, %v3717, %v3745
      %v3787 = vsel %vm941, %v3718, %v3747
      %v3788 = vsel %vm941, %v3719, %v3749
      %v3789 = vsel %vm941, %v3720, %v3751
      %v3790 = vsel %vm941, %v3721, %v3753
      %v3791 = vsel %vm469, %v3783, %v3763
      %v3792 = vsel %vm469, %v3784, %v3765
      %v3793 = vsel %vm469, %v3785, %v3767
      %v3794 = vsel %vm469, %v3786, %v3769
      %v3795 = vsel %vm469, %v3787, %v3771
      %v3796 = vsel %vm469, %v3788, %v3773
      %v3797 = vsel %vm469, %v3789, %v3775
      %v3798 = vsel %vm469, %v3790, %v909
      %v3800 = vsel %vm1006, %v3791, 0
      %v3803 = vsel %vm1006, %v3792, 0
      %v3806 = vsel %vm1006, %v3793, 0
      %v3809 = vsel %vm1006, %v3794, 0
      %v3812 = vsel %vm1006, %v3795, 0
      %v3815 = vsel %vm1006, %v3796, 0
      %v3818 = vsel %vm1006, %v3797, 0
      %v3821 = vsel %vm1006, %v3798, 0
      %v3824 = vsel %vm1103, %v3724, 0
      %3826 = vmatpush.msra.mxu0 0.0
      %3827 = vmatpush.msra.mxu0 0.0
      %3828 = vmatpush.msra.mxu0 0.0
      %3829 = vmatpush.msra.mxu0 0.0
      %3830 = vmatpush.msra.mxu0 0.0
      %3831 = vmatpush.msra.mxu0 0.0
      %3832 = vmatpush.msra.mxu0 0.0
      %3833 = vmatpush.msra.mxu0 0.0
      %3834 = vmatpush.msra.mxu0 0.0
      %3835 = vmatpush.msra.mxu0 0.0
      %3836 = vmatpush.msra.mxu0 0.0
      %3837 = vmatpush.msra.mxu0 0.0
      %3838 = vmatpush.msra.mxu0 0.0
      %3839 = vmatpush.msra.mxu0 0.0
      %3840 = vmatpush.msra.mxu0 %v3824
      %3841 = vmatpush.msra.mxu0 %v3723
      %3842 = vmatmul.f32.gmra.mxu0 %v3800
      %v3843 = vpop.f32.mrf.mxu0
      %v3844 = vadd.f32 0.0, %v3843
      %3845 = vmatmul.f32.gmra.mxu0 %v3803
      %v3846 = vpop.f32.mrf.mxu0
      %v3847 = vadd.f32 0.0, %v3846
      %3848 = vmatmul.f32.gmra.mxu0 %v3806
      %v3849 = vpop.f32.mrf.mxu0
      %v3850 = vadd.f32 0.0, %v3849
      %3851 = vmatmul.f32.gmra.mxu0 %v3809
      %v3852 = vpop.f32.mrf.mxu0
      %v3853 = vadd.f32 0.0, %v3852
      %3854 = vmatmul.f32.gmra.mxu0 %v3812
      %v3855 = vpop.f32.mrf.mxu0
      %v3856 = vadd.f32 0.0, %v3855
      %3857 = vmatmul.f32.gmra.mxu0 %v3815
      %v3858 = vpop.f32.mrf.mxu0
      %v3859 = vadd.f32 0.0, %v3858
      %3860 = vmatmul.f32.gmra.mxu0 %v3818
      %v3861 = vpop.f32.mrf.mxu0
      %v3862 = vadd.f32 0.0, %v3861
      %3863 = vmatmul.f32.gmra.mxu0 %v3821
      %v3864 = vpop.f32.mrf.mxu0
      %v3865 = vadd.f32 0.0, %v3864
      %3866 = vdwg.mxu0
      %v3868 = vsel %vm1103, %v3728, 0
      %3870 = vmatpush.msra.mxu0 0.0
      %3871 = vmatpush.msra.mxu0 0.0
      %3872 = vmatpush.msra.mxu0 0.0
      %3873 = vmatpush.msra.mxu0 0.0
      %3874 = vmatpush.msra.mxu0 0.0
      %3875 = vmatpush.msra.mxu0 0.0
      %3876 = vmatpush.msra.mxu0 0.0
      %3877 = vmatpush.msra.mxu0 0.0
      %3878 = vmatpush.msra.mxu0 0.0
      %3879 = vmatpush.msra.mxu0 0.0
      %3880 = vmatpush.msra.mxu0 0.0
      %3881 = vmatpush.msra.mxu0 0.0
      %3882 = vmatpush.msra.mxu0 0.0
      %3883 = vmatpush.msra.mxu0 0.0
      %3884 = vmatpush.msra.mxu0 %v3868
      %3885 = vmatpush.msra.mxu0 %v3727
      %3886 = vmatmul.f32.gmra.mxu0 %v3800
      %v3887 = vpop.f32.mrf.mxu0
      %v3888 = vadd.f32 0.0, %v3887
      %3889 = vmatmul.f32.gmra.mxu0 %v3803
      %v3890 = vpop.f32.mrf.mxu0
      %v3891 = vadd.f32 0.0, %v3890
      %3892 = vmatmul.f32.gmra.mxu0 %v3806
      %v3893 = vpop.f32.mrf.mxu0
      %v3894 = vadd.f32 0.0, %v3893
      %3895 = vmatmul.f32.gmra.mxu0 %v3809
      %v3896 = vpop.f32.mrf.mxu0
      %v3897 = vadd.f32 0.0, %v3896
      %3898 = vmatmul.f32.gmra.mxu0 %v3812
      %v3899 = vpop.f32.mrf.mxu0
      %v3900 = vadd.f32 0.0, %v3899
      %3901 = vmatmul.f32.gmra.mxu0 %v3815
      %v3902 = vpop.f32.mrf.mxu0
      %v3903 = vadd.f32 0.0, %v3902
      %3904 = vmatmul.f32.gmra.mxu0 %v3818
      %v3905 = vpop.f32.mrf.mxu0
      %v3906 = vadd.f32 0.0, %v3905
      %3907 = vmatmul.f32.gmra.mxu0 %v3821
      %v3908 = vpop.f32.mrf.mxu0
      %v3909 = vadd.f32 0.0, %v3908
      %3910 = vdwg.mxu0
      %v3919 = vrot.slane %v3844, 7
      %v3920 = vrot.slane %v3847, 7
      %v3921 = vsel %vm1368, %v3919, %v3920
      %v3922 = vrot.slane %v3850, 7
      %v3923 = vsel %vm1368, %v3920, %v3922
      %v3924 = vrot.slane %v3853, 7
      %v3925 = vsel %vm1368, %v3922, %v3924
      %v3926 = vrot.slane %v3856, 7
      %v3927 = vsel %vm1368, %v3924, %v3926
      %v3928 = vrot.slane %v3859, 7
      %v3929 = vsel %vm1368, %v3926, %v3928
      %v3930 = vrot.slane %v3862, 7
      %v3931 = vsel %vm1368, %v3928, %v3930
      %v3932 = vrot.slane %v3865, 7
      %v3933 = vsel %vm1368, %v3930, %v3932
      %v3942 = vsel %vm1368, 0.0, %v3919
      %v3951 = vrot.slane %v3888, 1
      %v3952 = vrot.slane %v3891, 1
      %v3953 = vsel %vm1497, %v3951, %v3952
      %v3954 = vrot.slane %v3894, 1
      %v3955 = vsel %vm1497, %v3952, %v3954
      %v3956 = vrot.slane %v3897, 1
      %v3957 = vsel %vm1497, %v3954, %v3956
      %v3958 = vrot.slane %v3900, 1
      %v3959 = vsel %vm1497, %v3956, %v3958
      %v3960 = vrot.slane %v3903, 1
      %v3961 = vsel %vm1497, %v3958, %v3960
      %v3962 = vrot.slane %v3906, 1
      %v3963 = vsel %vm1497, %v3960, %v3962
      %v3964 = vrot.slane %v3909, 1
      %v3965 = vsel %vm1497, %v3962, %v3964
      %v3974 = vsel %vm1497, %v3964, 0.0
      %v3975 = vsel %vm1601, 0.0, %v3942
      %v3976 = vsel %vm1601, 0.0, %v3921
      %v3977 = vsel %vm1601, 0.0, %v3923
      %v3978 = vsel %vm1601, 0.0, %v3925
      %v3979 = vsel %vm1601, 0.0, %v3927
      %v3980 = vsel %vm1601, 0.0, %v3929
      %v3981 = vsel %vm1601, 0.0, %v3931
      %v3982 = vsel %vm1601, 0.0, %v3933
      %v3984 = vsel %vm1103, %v3726, 0
      %3986 = vmatpush.msra.mxu0 0.0
      %3987 = vmatpush.msra.mxu0 0.0
      %3988 = vmatpush.msra.mxu0 0.0
      %3989 = vmatpush.msra.mxu0 0.0
      %3990 = vmatpush.msra.mxu0 0.0
      %3991 = vmatpush.msra.mxu0 0.0
      %3992 = vmatpush.msra.mxu0 0.0
      %3993 = vmatpush.msra.mxu0 0.0
      %3994 = vmatpush.msra.mxu0 0.0
      %3995 = vmatpush.msra.mxu0 0.0
      %3996 = vmatpush.msra.mxu0 0.0
      %3997 = vmatpush.msra.mxu0 0.0
      %3998 = vmatpush.msra.mxu0 0.0
      %3999 = vmatpush.msra.mxu0 0.0
      %4000 = vmatpush.msra.mxu0 %v3984
      %4001 = vmatpush.msra.mxu0 %v3725
      %4002 = vmatmul.f32.gmra.mxu0 %v3800
      %v4003 = vpop.f32.mrf.mxu0
      %v4004 = vadd.f32 %v3975, %v4003
      %4005 = vmatmul.f32.gmra.mxu0 %v3803
      %v4006 = vpop.f32.mrf.mxu0
      %v4007 = vadd.f32 %v3976, %v4006
      %4008 = vmatmul.f32.gmra.mxu0 %v3806
      %v4009 = vpop.f32.mrf.mxu0
      %v4010 = vadd.f32 %v3977, %v4009
      %4011 = vmatmul.f32.gmra.mxu0 %v3809
      %v4012 = vpop.f32.mrf.mxu0
      %v4013 = vadd.f32 %v3978, %v4012
      %4014 = vmatmul.f32.gmra.mxu0 %v3812
      %v4015 = vpop.f32.mrf.mxu0
      %v4016 = vadd.f32 %v3979, %v4015
      %4017 = vmatmul.f32.gmra.mxu0 %v3815
      %v4018 = vpop.f32.mrf.mxu0
      %v4019 = vadd.f32 %v3980, %v4018
      %4020 = vmatmul.f32.gmra.mxu0 %v3818
      %v4021 = vpop.f32.mrf.mxu0
      %v4022 = vadd.f32 %v3981, %v4021
      %4023 = vmatmul.f32.gmra.mxu0 %v3821
      %v4024 = vpop.f32.mrf.mxu0
      %v4025 = vadd.f32 %v3982, %v4024
      %4026 = vdwg.mxu0
      %v4027 = vsel %vm3313, 0.0, %v3953
      %v4028 = vsel %vm3313, 0.0, %v3955
      %v4029 = vsel %vm3313, 0.0, %v3957
      %v4030 = vsel %vm3313, 0.0, %v3959
      %v4031 = vsel %vm3313, 0.0, %v3961
      %v4032 = vsel %vm3313, 0.0, %v3963
      %v4033 = vsel %vm3313, 0.0, %v3965
      %v4034 = vsel %vm3313, 0.0, %v3974
      %v4035 = vadd.f32 %v4004, %v4027
      %v4036 = vadd.f32 %v4007, %v4028
      %v4037 = vadd.f32 %v4010, %v4029
      %v4038 = vadd.f32 %v4013, %v4030
      %v4039 = vadd.f32 %v4016, %v4031
      %v4040 = vadd.f32 %v4019, %v4032
      %v4041 = vadd.f32 %v4022, %v4033
      %v4042 = vadd.f32 %v4025, %v4034
      %v4043 = vperm.slane %v3729, 0
      %v4044 = vadd.f32 %v4035, %v4043
      %v4045 = vadd.f32 %v4036, %v4043
      %v4046 = vadd.f32 %v4037, %v4043
      %v4047 = vadd.f32 %v4038, %v4043
      %v4048 = vadd.f32 %v4039, %v4043
      %v4049 = vadd.f32 %v4040, %v4043
      %v4050 = vadd.f32 %v4041, %v4043
      %v4051 = vadd.f32 %v4042, %v4043
      %v4052 = vmax.f32 %v4044, 0.0
      %v4053 = vmax.f32 %v4045, 0.0
      %v4054 = vmax.f32 %v4046, 0.0
      %v4055 = vmax.f32 %v4047, 0.0
      %v4056 = vmax.f32 %v4048, 0.0
      %v4057 = vmax.f32 %v4049, 0.0
      %v4058 = vmax.f32 %v4050, 0.0
      %v4059 = vmax.f32 %v4051, 0.0
      %v4060 = vld [vmem:[%s7] sm:$0xf]
      %v4061 = vld [vmem:[%s8] sm:$0x1]
      %v4062 = vperm.slane %v4061, 0
      %v4064 = vsel %vm941, %v4052, 0
      %v4067 = vsel %vm941, %v4053, 0
      %v4070 = vsel %vm941, %v4054, 0
      %v4073 = vsel %vm941, %v4055, 0
      %v4076 = vsel %vm941, %v4056, 0
      %v4079 = vsel %vm941, %v4057, 0
      %v4082 = vsel %vm941, %v4058, 0
      %v4085 = vsel %vm941, %v4059, 0
      %v4088 = vsel %vm1103, %v4060, 0
      %4090 = vmatpush.msra.mxu0 0.0
      %4091 = vmatpush.msra.mxu0 0.0
      %4092 = vmatpush.msra.mxu0 0.0
      %4093 = vmatpush.msra.mxu0 0.0
      %4094 = vmatpush.msra.mxu0 0.0
      %4095 = vmatpush.msra.mxu0 0.0
      %4096 = vmatpush.msra.mxu0 0.0
      %4097 = vmatpush.msra.mxu0 0.0
      %4098 = vmatpush.msra.mxu0 0.0
      %4099 = vmatpush.msra.mxu0 0.0
      %4100 = vmatpush.msra.mxu0 0.0
      %4101 = vmatpush.msra.mxu0 0.0
      %4102 = vmatpush.msra.mxu0 0.0
      %4103 = vmatpush.msra.mxu0 0.0
      %4104 = vmatpush.msra.mxu0 0.0
      %4105 = vmatpush.msra.mxu0 %v4088
      %4106 = vmatmul.f32.gmra.mxu0 %v4064
      %v4107 = vpop.f32.mrf.mxu0
      %v4108 = vadd.f32 %v4062, %v4107
      %4109 = vmatmul.f32.gmra.mxu0 %v4067
      %v4110 = vpop.f32.mrf.mxu0
      %v4111 = vadd.f32 %v4062, %v4110
      %4112 = vmatmul.f32.gmra.mxu0 %v4070
      %v4113 = vpop.f32.mrf.mxu0
      %v4114 = vadd.f32 %v4062, %v4113
      %4115 = vmatmul.f32.gmra.mxu0 %v4073
      %v4116 = vpop.f32.mrf.mxu0
      %v4117 = vadd.f32 %v4062, %v4116
      %4118 = vmatmul.f32.gmra.mxu0 %v4076
      %v4119 = vpop.f32.mrf.mxu0
      %v4120 = vadd.f32 %v4062, %v4119
      %4121 = vmatmul.f32.gmra.mxu0 %v4079
      %v4122 = vpop.f32.mrf.mxu0
      %v4123 = vadd.f32 %v4062, %v4122
      %4124 = vmatmul.f32.gmra.mxu0 %v4082
      %v4125 = vpop.f32.mrf.mxu0
      %v4126 = vadd.f32 %v4062, %v4125
      %4127 = vmatmul.f32.gmra.mxu0 %v4085
      %v4128 = vpop.f32.mrf.mxu0
      %v4129 = vadd.f32 %v4062, %v4128
      %4130 = vdwg.mxu0
      %v4131 = vadd.f32 %v4108, %v3611
      %v4132 = vadd.f32 %v4111, %v3612
      %v4133 = vadd.f32 %v4114, %v3613
      %v4134 = vadd.f32 %v4117, %v3614
      %v4135 = vadd.f32 %v4120, %v3615
      %v4136 = vadd.f32 %v4123, %v3616
      %v4137 = vadd.f32 %v4126, %v3617
      %v4138 = vadd.f32 %v4129, %v3618
      %v4139 = vmax.f32 %v3611, %v3612
      %v4140 = vmax.f32 %v3613, %v3614
      %v4141 = vmax.f32 %v3615, %v3616
      %v4142 = vmax.f32 %v3617, %v3618
      %v4147 = vrot.slane %v4139, 2
      %v4148 = vrot.slane %v4139, 4
      %v4149 = vrot.slane %v4139, 6
      %v4150 = vrot.slane %v4140, 2
      %v4151 = vrot.slane %v4140, 4
      %v4152 = vrot.slane %v4140, 6
      %v4153 = vrot.slane %v4141, 2
      %v4154 = vrot.slane %v4141, 4
      %v4155 = vrot.slane %v4141, 6
      %v4156 = vrot.slane %v4142, 2
      %v4157 = vrot.slane %v4142, 4
      %v4158 = vrot.slane %v4142, 6
      %v4171 = vrot.slane %v4139, 7
      %v4172 = vrot.slane %v4171, 2
      %v4173 = vrot.slane %v4147, 7
      %v4174 = vrot.slane %v4173, 2
      %v4175 = vrot.slane %v4148, 7
      %v4176 = vrot.slane %v4175, 2
      %v4177 = vrot.slane %v4149, 7
      %v4178 = vrot.slane %v4177, 2
      %v4179 = vrot.slane %v4140, 7
      %v4180 = vrot.slane %v4179, 2
      %v4181 = vrot.slane %v4150, 7
      %v4182 = vrot.slane %v4181, 2
      %v4183 = vrot.slane %v4151, 7
      %v4184 = vrot.slane %v4183, 2
      %v4185 = vrot.slane %v4152, 7
      %v4186 = vrot.slane %v4185, 2
      %v4187 = vrot.slane %v4141, 7
      %v4188 = vrot.slane %v4187, 2
      %v4189 = vrot.slane %v4153, 7
      %v4190 = vrot.slane %v4189, 2
      %v4191 = vrot.slane %v4154, 7
      %v4192 = vrot.slane %v4191, 2
      %v4193 = vrot.slane %v4155, 7
      %v4194 = vrot.slane %v4193, 2
      %v4195 = vrot.slane %v4142, 7
      %v4196 = vrot.slane %v4195, 2
      %v4197 = vrot.slane %v4156, 7
      %v4198 = vrot.slane %v4197, 2
      %v4199 = vrot.slane %v4157, 7
      %v4200 = vrot.slane %v4199, 2
      %v4201 = vrot.slane %v4158, 7
      %v4202 = vrot.slane %v4201, 2
      %v4219 = vmax.f32 %v4139, %v4172
      %v4220 = vmax.f32 %v4147, %v4174
      %v4221 = vmax.f32 %v4148, %v4176
      %v4222 = vmax.f32 %v4149, %v4178
      %v4223 = vmax.f32 %v4140, %v4180
      %v4224 = vmax.f32 %v4150, %v4182
      %v4225 = vmax.f32 %v4151, %v4184
      %v4226 = vmax.f32 %v4152, %v4186
      %v4227 = vmax.f32 %v4141, %v4188
      %v4228 = vmax.f32 %v4153, %v4190
      %v4229 = vmax.f32 %v4154, %v4192
      %v4230 = vmax.f32 %v4155, %v4194
      %v4231 = vmax.f32 %v4142, %v4196
      %v4232 = vmax.f32 %v4156, %v4198
      %v4233 = vmax.f32 %v4157, %v4200
      %v4234 = vmax.f32 %v4158, %v4202
      %v4235 = vld [vmem:[%s1 + $0x1] sm:$0x1]
      %v4236 = vperm.slane %v4235, 0
      %v4238 = vrot.slane %v4236, 2
      %v4239 = vrot.slane %v4236, 1
      %v4240 = vrot.slane %v4238, 1
      %v4245 = vmul.f32 %v4219, %v4236
      %v4246 = vmul.f32 %v4220, %v4239
      %v4247 = vmul.f32 %v4221, %v4238
      %v4248 = vmul.f32 %v4222, %v4240
      %v4249 = vmul.f32 %v4223, %v4236
      %v4250 = vmul.f32 %v4224, %v4239
      %v4251 = vmul.f32 %v4225, %v4238
      %v4252 = vmul.f32 %v4226, %v4240
      %v4253 = vmul.f32 %v4227, %v4236
      %v4254 = vmul.f32 %v4228, %v4239
      %v4255 = vmul.f32 %v4229, %v4238
      %v4256 = vmul.f32 %v4230, %v4240
      %v4257 = vmul.f32 %v4231, %v4236
      %v4258 = vmul.f32 %v4232, %v4239
      %v4259 = vmul.f32 %v4233, %v4238
      %v4260 = vmul.f32 %v4234, %v4240
      %v4261 = vld [vmem:[%s2 + $0x1] sm:$0x1]
      %v4262 = vperm.slane %v4261, 0
      %v4264 = vrot.slane %v4262, 2
      %v4265 = vrot.slane %v4262, 1
      %v4266 = vrot.slane %v4264, 1
      %v4271 = vadd.f32 %v4245, %v4262
      %v4272 = vadd.f32 %v4246, %v4265
      %v4273 = vadd.f32 %v4247, %v4264
      %v4274 = vadd.f32 %v4248, %v4266
      %v4275 = vadd.f32 %v4249, %v4262
      %v4276 = vadd.f32 %v4250, %v4265
      %v4277 = vadd.f32 %v4251, %v4264
      %v4278 = vadd.f32 %v4252, %v4266
      %v4279 = vadd.f32 %v4253, %v4262
      %v4280 = vadd.f32 %v4254, %v4265
      %v4281 = vadd.f32 %v4255, %v4264
      %v4282 = vadd.f32 %v4256, %v4266
      %v4283 = vadd.f32 %v4257, %v4262
      %v4284 = vadd.f32 %v4258, %v4265
      %v4285 = vadd.f32 %v4259, %v4264
      %v4286 = vadd.f32 %v4260, %v4266
      %v4287 = vmax.f32 %v4271, 0.0
      %v4288 = vmax.f32 %v4272, 0.0
      %v4289 = vmax.f32 %v4273, 0.0
      %v4290 = vmax.f32 %v4274, 0.0
      %v4291 = vmax.f32 %v4275, 0.0
      %v4292 = vmax.f32 %v4276, 0.0
      %v4293 = vmax.f32 %v4277, 0.0
      %v4294 = vmax.f32 %v4278, 0.0
      %v4295 = vmax.f32 %v4279, 0.0
      %v4296 = vmax.f32 %v4280, 0.0
      %v4297 = vmax.f32 %v4281, 0.0
      %v4298 = vmax.f32 %v4282, 0.0
      %v4299 = vmax.f32 %v4283, 0.0
      %v4300 = vmax.f32 %v4284, 0.0
      %v4301 = vmax.f32 %v4285, 0.0
      %v4302 = vmax.f32 %v4286, 0.0
      %s4303 = scalar_lea.vmem %s3, 8
      %v4304 = vld [vmem:[%s4303] sm:$0xff]
      %v4305 = vld [vmem:[%s4 + $0x1] sm:$0x1]
      %v4306 = vperm.slane %v4305, 0
      %v4323 = vperm.slane %v4287, 0
      %v4324 = vperm.slane %v4288, 0
      %v4325 = vperm.slane %v4289, 0
      %v4326 = vperm.slane %v4290, 0
      %v4327 = vperm.slane %v4291, 0
      %v4328 = vperm.slane %v4292, 0
      %v4329 = vperm.slane %v4293, 0
      %v4330 = vperm.slane %v4294, 0
      %v4331 = vperm.slane %v4295, 0
      %v4332 = vperm.slane %v4296, 0
      %v4333 = vperm.slane %v4297, 0
      %v4334 = vperm.slane %v4298, 0
      %v4335 = vperm.slane %v4299, 0
      %v4336 = vperm.slane %v4300, 0
      %v4337 = vperm.slane %v4301, 0
      %v4338 = vperm.slane %v4302, 0
      %v4339 = vsel %vm2878, %v4324, %v4323
      %v4340 = vsel %vm2880, %v4325, %v4339
      %v4341 = vsel %vm2882, %v4326, %v4340
      %v4342 = vsel %vm2884, %v4327, %v4341
      %v4343 = vsel %vm2886, %v4328, %v4342
      %v4344 = vsel %vm2888, %v4329, %v4343
      %v4345 = vsel %vm2890, %v4330, %v4344
      %v4346 = vsel %vm2878, %v4332, %v4331
      %v4347 = vsel %vm2880, %v4333, %v4346
      %v4348 = vsel %vm2882, %v4334, %v4347
      %v4349 = vsel %vm2884, %v4335, %v4348
      %v4350 = vsel %vm2886, %v4336, %v4349
      %v4351 = vsel %vm2888, %v4337, %v4350
      %v4352 = vsel %vm2890, %v4338, %v4351
      %v4353 = vsel %vm469, %v4345, 0
      %v4355 = vsel %vm469, %v4352, 0
      %4357 = vmatpush.msra.mxu0 0.0
      %4358 = vmatpush.msra.mxu0 0.0
      %4359 = vmatpush.msra.mxu0 0.0
      %4360 = vmatpush.msra.mxu0 0.0
      %4361 = vmatpush.msra.mxu0 0.0
      %4362 = vmatpush.msra.mxu0 0.0
      %4363 = vmatpush.msra.mxu0 0.0
      %4364 = vmatpush.msra.mxu0 0.0
      %4365 = vmatpush.msra.mxu0 0.0
      %4366 = vmatpush.msra.mxu0 0.0
      %4367 = vmatpush.msra.mxu0 0.0
      %4368 = vmatpush.msra.mxu0 0.0
      %4369 = vmatpush.msra.mxu0 0.0
      %4370 = vmatpush.msra.mxu0 0.0
      %4371 = vmatpush.msra.mxu0 0.0
      %4372 = vmatpush.msra.mxu0 %v4304
      %4373 = vmatmul.f32.gmra.mxu0 %v4353
      %v4374 = vpop.f32.mrf.mxu0
      %v4375 = vadd.f32 %v4306, %v4374
      %4376 = vmatmul.f32.gmra.mxu0 %v4355
      %v4377 = vpop.f32.mrf.mxu0
      %v4378 = vadd.f32 %v4306, %v4377
      %4379 = vdwg.mxu0
      %v4380 = vmax.f32 %v4375, 0.0
      %v4381 = vmax.f32 %v4378, 0.0
      %v4384 = vrot.slane %v4380, 4
      %v4385 = vrot.slane %v4381, 4
      %s4387 = scalar_lea.vmem %s5, 48
      %v4388 = vld [vmem:[%s4387] sm:$0xff]
      %v4389 = vld [vmem:[%s4387 + $0x8] sm:$0xf]
      %v4390 = vld [vmem:[%s4387 + $0x10] sm:$0xff]
      %v4391 = vld [vmem:[%s4387 + $0x18] sm:$0xf]
      %v4392 = vld [vmem:[%s4387 + $0x20] sm:$0xff]
      %v4393 = vld [vmem:[%s4387 + $0x28] sm:$0xf]
      %v4394 = vld [vmem:[%s6 + $0x1] sm:$0x1]
      %4395 = vst [vmem:[#allocation1] ss:$2 sm:$0xff] %v4380
      %v4396 = vld.sshfl [vmem:[#allocation1] sm:$0xff pattern:$0x75316420]
      %s4397 = scalar_lea.vmem [#allocation1], 16
      %4398 = vst [vmem:[%s4397] ss:$2 sm:$0xff] %v4384
      %v4399 = vld.sshfl [vmem:[#allocation1 + $0x10] sm:$0xff pattern:$0x75316420]
      %s4400 = scalar_lea.vmem [#allocation1], 32
      %4401 = vst [vmem:[%s4400] ss:$2 sm:$0xff] %v4381
      %v4402 = vld.sshfl [vmem:[#allocation1 + $0x20] sm:$0xff pattern:$0x75316420]
      %s4403 = scalar_lea.vmem [#allocation1], 48
      %4404 = vst [vmem:[%s4403] ss:$2 sm:$0xff] %v4385
      %v4405 = vld.sshfl [vmem:[#allocation1 + $0x30] sm:$0xff pattern:$0x75316420]
      %4406 = vrot.lane.b32.xlu0 %v4396, 4
      %v4407 = vpop.permute.xlu0 %4406
      %4408 = vrot.lane.b32.xlu0 %v4399, 4
      %v4409 = vpop.permute.xlu0 %4408
      %4410 = vrot.lane.b32.xlu0 %v4402, 4
      %v4411 = vpop.permute.xlu0 %4410
      %4412 = vrot.lane.b32.xlu0 %v4405, 4
      %v4413 = vpop.permute.xlu0 %4412
      %4418 = vst [vmem:[#allocation1] ss:$2 sm:$0xff] %v4384
      %v4419 = vld.sshfl [vmem:[#allocation1] sm:$0xff pattern:$0x75316420]
      %s4420 = scalar_lea.vmem [#allocation1], 16
      %4421 = vst [vmem:[%s4420] ss:$2 sm:$0xff] %v4381
      %v4422 = vld.sshfl [vmem:[#allocation1 + $0x10] sm:$0xff pattern:$0x75316420]
      %s4423 = scalar_lea.vmem [#allocation1], 32
      %4424 = vst [vmem:[%s4423] ss:$2 sm:$0xff] %v4385
      %v4425 = vld.sshfl [vmem:[#allocation1 + $0x20] sm:$0xff pattern:$0x75316420]
      %s4426 = scalar_lea.vmem [#allocation1], 48
      %4427 = vst [vmem:[%s4426] ss:$2 sm:$0xff] 0.0
      %v4428 = vld.sshfl [vmem:[#allocation1 + $0x30] sm:$0xff pattern:$0x75316420]
      %4429 = vrot.lane.b32.xlu0 %v4419, 8
      %v4430 = vpop.permute.xlu0 %4429
      %4431 = vrot.lane.b32.xlu0 %v4422, 8
      %v4432 = vpop.permute.xlu0 %4431
      %4433 = vrot.lane.b32.xlu0 %v4425, 8
      %v4434 = vpop.permute.xlu0 %4433
      %4435 = vrot.lane.b32.xlu0 %v4428, 8
      %v4436 = vpop.permute.xlu0 %4435
      %v4441 = vsel %vm941, 0.0, %v4407
      %v4442 = vsel %vm941, %v4380, %v4409
      %v4443 = vsel %vm941, %v4384, %v4411
      %v4444 = vsel %vm941, %v4381, %v4413
      %v4445 = vsel %vm469, %v4441, %v4430
      %v4446 = vsel %vm469, %v4442, %v4432
      %v4447 = vsel %vm469, %v4443, %v4434
      %v4448 = vsel %vm469, %v4444, %v4436
      %4453 = vst [vmem:[#allocation1] ss:$2 sm:$0xff] %v4445
      %s4454 = scalar_lea.vmem [#allocation1], 1
      %4455 = vst [vmem:[%s4454] ss:$2 sm:$0xff] %v4446
      %s4456 = scalar_lea.vmem [#allocation1], 16
      %4457 = vst [vmem:[%s4456] ss:$2 sm:$0xff] %v4447
      %s4458 = scalar_lea.vmem [#allocation1], 17
      %4459 = vst [vmem:[%s4458] ss:$2 sm:$0xff] %v4448
      %v4460 = vld.sshfl [vmem:[#allocation1] sm:$0xff pattern:$0x75316420]
      %v4461 = vld.sshfl [vmem:[#allocation1 + $0x10] sm:$0xff pattern:$0x75316420]
      %v4462 = vsel %vm1006, %v4460, 0
      %v4464 = vsel %vm1006, %v4461, 0
      %v4467 = vsel %vm1103, %v4389, 0
      %4469 = vmatpush.msra.mxu0 0.0
      %4470 = vmatpush.msra.mxu0 0.0
      %4471 = vmatpush.msra.mxu0 0.0
      %4472 = vmatpush.msra.mxu0 0.0
      %4473 = vmatpush.msra.mxu0 0.0
      %4474 = vmatpush.msra.mxu0 0.0
      %4475 = vmatpush.msra.mxu0 0.0
      %4476 = vmatpush.msra.mxu0 0.0
      %4477 = vmatpush.msra.mxu0 0.0
      %4478 = vmatpush.msra.mxu0 0.0
      %4479 = vmatpush.msra.mxu0 0.0
      %4480 = vmatpush.msra.mxu0 0.0
      %4481 = vmatpush.msra.mxu0 0.0
      %4482 = vmatpush.msra.mxu0 0.0
      %4483 = vmatpush.msra.mxu0 %v4467
      %4484 = vmatpush.msra.mxu0 %v4388
      %4485 = vmatmul.f32.gmra.mxu0 %v4462
      %v4486 = vpop.f32.mrf.mxu0
      %v4487 = vadd.f32 0.0, %v4486
      %4488 = vmatmul.f32.gmra.mxu0 %v4464
      %v4489 = vpop.f32.mrf.mxu0
      %v4490 = vadd.f32 0.0, %v4489
      %4491 = vdwg.mxu0
      %4492 = vst [vmem:[#allocation1] ss:$2 sm:$0xff] %v4445
      %s4493 = scalar_lea.vmem [#allocation1], 1
      %4494 = vst [vmem:[%s4493] ss:$2 sm:$0xff] %v4446
      %s4495 = scalar_lea.vmem [#allocation1], 16
      %4496 = vst [vmem:[%s4495] ss:$2 sm:$0xff] %v4447
      %s4497 = scalar_lea.vmem [#allocation1], 17
      %4498 = vst [vmem:[%s4497] ss:$2 sm:$0xff] %v4448
      %v4499 = vld.sshfl [vmem:[#allocation1] sm:$0xff pattern:$0x75316420]
      %v4500 = vld.sshfl [vmem:[#allocation1 + $0x10] sm:$0xff pattern:$0x75316420]
      %v4501 = vsel %vm1006, %v4499, 0
      %v4503 = vsel %vm1006, %v4500, 0
      %v4506 = vsel %vm1103, %v4393, 0
      %4508 = vmatpush.msra.mxu0 0.0
      %4509 = vmatpush.msra.mxu0 0.0
      %4510 = vmatpush.msra.mxu0 0.0
      %4511 = vmatpush.msra.mxu0 0.0
      %4512 = vmatpush.msra.mxu0 0.0
      %4513 = vmatpush.msra.mxu0 0.0
      %4514 = vmatpush.msra.mxu0 0.0
      %4515 = vmatpush.msra.mxu0 0.0
      %4516 = vmatpush.msra.mxu0 0.0
      %4517 = vmatpush.msra.mxu0 0.0
      %4518 = vmatpush.msra.mxu0 0.0
      %4519 = vmatpush.msra.mxu0 0.0
      %4520 = vmatpush.msra.mxu0 0.0
      %4521 = vmatpush.msra.mxu0 0.0
      %4522 = vmatpush.msra.mxu0 %v4506
      %4523 = vmatpush.msra.mxu0 %v4392
      %4524 = vmatmul.f32.gmra.mxu0 %v4501
      %v4525 = vpop.f32.mrf.mxu0
      %v4526 = vadd.f32 0.0, %v4525
      %4527 = vmatmul.f32.gmra.mxu0 %v4503
      %v4528 = vpop.f32.mrf.mxu0
      %v4529 = vadd.f32 0.0, %v4528
      %4530 = vdwg.mxu0
      %v4533 = vrot.slane %v4487, 7
      %v4534 = vrot.slane %v4490, 7
      %v4535 = vsel %vm1368, %v4533, %v4534
      %v4538 = vsel %vm1368, 0.0, %v4533
      %v4541 = vrot.slane %v4526, 1
      %v4542 = vrot.slane %v4529, 1
      %v4543 = vsel %vm1497, %v4541, %v4542
      %v4546 = vsel %vm1497, %v4542, 0.0
      %v4548 = vrot.slane %v4538, 4
      %v4549 = vrot.slane %v4535, 4
      %v4552 = vsel %vm1601, 0.0, %v4538
      %v4553 = vsel %vm1601, 0.0, %v4548
      %v4554 = vsel %vm1601, 0.0, %v4535
      %v4555 = vsel %vm1601, 0.0, %v4549
      %4556 = vst [vmem:[#allocation1] ss:$2 sm:$0xff] %v4445
      %s4557 = scalar_lea.vmem [#allocation1], 1
      %4558 = vst [vmem:[%s4557] ss:$2 sm:$0xff] %v4446
      %s4559 = scalar_lea.vmem [#allocation1], 16
      %4560 = vst [vmem:[%s4559] ss:$2 sm:$0xff] %v4447
      %s4561 = scalar_lea.vmem [#allocation1], 17
      %4562 = vst [vmem:[%s4561] ss:$2 sm:$0xff] %v4448
      %v4563 = vld.sshfl [vmem:[#allocation1] sm:$0xff pattern:$0x75316420]
      %v4564 = vld.sshfl [vmem:[#allocation1 + $0x10] sm:$0xff pattern:$0x75316420]
      %4569 = vst [vmem:[#allocation1] ss:$2 sm:$0xff] %v4552
      %s4570 = scalar_lea.vmem [#allocation1], 1
      %4571 = vst [vmem:[%s4570] ss:$2 sm:$0xff] %v4553
      %s4572 = scalar_lea.vmem [#allocation1], 16
      %4573 = vst [vmem:[%s4572] ss:$2 sm:$0xff] %v4554
      %s4574 = scalar_lea.vmem [#allocation1], 17
      %4575 = vst [vmem:[%s4574] ss:$2 sm:$0xff] %v4555
      %v4576 = vld.sshfl [vmem:[#allocation1] sm:$0xff pattern:$0x75316420]
      %v4577 = vld.sshfl [vmem:[#allocation1 + $0x10] sm:$0xff pattern:$0x75316420]
      %v4580 = vsel %vm1006, %v4563, 0
      %v4582 = vsel %vm1006, %v4564, 0
      %v4585 = vsel %vm1103, %v4391, 0
      %4587 = vmatpush.msra.mxu0 0.0
      %4588 = vmatpush.msra.mxu0 0.0
      %4589 = vmatpush.msra.mxu0 0.0
      %4590 = vmatpush.msra.mxu0 0.0
      %4591 = vmatpush.msra.mxu0 0.0
      %4592 = vmatpush.msra.mxu0 0.0
      %4593 = vmatpush.msra.mxu0 0.0
      %4594 = vmatpush.msra.mxu0 0.0
      %4595 = vmatpush.msra.mxu0 0.0
      %4596 = vmatpush.msra.mxu0 0.0
      %4597 = vmatpush.msra.mxu0 0.0
      %4598 = vmatpush.msra.mxu0 0.0
      %4599 = vmatpush.msra.mxu0 0.0
      %4600 = vmatpush.msra.mxu0 0.0
      %4601 = vmatpush.msra.mxu0 %v4585
      %4602 = vmatpush.msra.mxu0 %v4390
      %4603 = vmatmul.f32.gmra.mxu0 %v4580
      %v4604 = vpop.f32.mrf.mxu0
      %v4605 = vadd.f32 %v4576, %v4604
      %4606 = vmatmul.f32.gmra.mxu0 %v4582
      %v4607 = vpop.f32.mrf.mxu0
      %v4608 = vadd.f32 %v4577, %v4607
      %4609 = vdwg.mxu0
      %vm4610 = vcmp.eq.s32.totalorder %v1595, 3
      %v4611 = vsel %vm4610, 1, 0
      %vm4612 = vcmp.eq.s32.totalorder %v4611, 1
      %v4614 = vrot.slane %v4543, 4
      %v4615 = vrot.slane %v4546, 4
      %v4618 = vsel %vm4612, 0.0, %v4543
      %v4619 = vsel %vm4612, 0.0, %v4614
      %v4620 = vsel %vm4612, 0.0, %v4546
      %v4621 = vsel %vm4612, 0.0, %v4615
      %4626 = vst [vmem:[#allocation1] ss:$2 sm:$0xff] %v4618
      %s4627 = scalar_lea.vmem [#allocation1], 1
      %4628 = vst [vmem:[%s4627] ss:$2 sm:$0xff] %v4619
      %s4629 = scalar_lea.vmem [#allocation1], 16
      %4630 = vst [vmem:[%s4629] ss:$2 sm:$0xff] %v4620
      %s4631 = scalar_lea.vmem [#allocation1], 17
      %4632 = vst [vmem:[%s4631] ss:$2 sm:$0xff] %v4621
      %v4633 = vld.sshfl [vmem:[#allocation1] sm:$0xff pattern:$0x75316420]
      %v4634 = vld.sshfl [vmem:[#allocation1 + $0x10] sm:$0xff pattern:$0x75316420]
      %v4637 = vadd.f32 %v4605, %v4633
      %v4638 = vadd.f32 %v4608, %v4634
      %v4639 = vperm.slane %v4394, 0
      %v4640 = vadd.f32 %v4637, %v4639
      %v4641 = vadd.f32 %v4638, %v4639
      %v4644 = vrot.slane %v4640, 4
      %v4645 = vrot.slane %v4641, 4
      %v4648 = vmax.f32 %v4640, 0.0
      %v4649 = vmax.f32 %v4644, 0.0
      %v4650 = vmax.f32 %v4641, 0.0
      %v4651 = vmax.f32 %v4645, 0.0
      %s4652 = scalar_lea.vmem %s7, 4
      %v4653 = vld [vmem:[%s4652] sm:$0xf]
      %v4654 = vld [vmem:[%s8 + $0x1] sm:$0x1]
      %v4655 = vperm.slane %v4654, 0
      %4660 = vst [vmem:[#allocation1] ss:$2 sm:$0xff] %v4648
      %s4661 = scalar_lea.vmem [#allocation1], 1
      %4662 = vst [vmem:[%s4661] ss:$2 sm:$0xff] %v4649
      %s4663 = scalar_lea.vmem [#allocation1], 16
      %4664 = vst [vmem:[%s4663] ss:$2 sm:$0xff] %v4650
      %s4665 = scalar_lea.vmem [#allocation1], 17
      %4666 = vst [vmem:[%s4665] ss:$2 sm:$0xff] %v4651
      %v4667 = vld.sshfl [vmem:[#allocation1] sm:$0xff pattern:$0x75316420]
      %v4668 = vld.sshfl [vmem:[#allocation1 + $0x10] sm:$0xff pattern:$0x75316420]
      %v4669 = vsel %vm941, %v4667, 0
      %v4671 = vsel %vm941, %v4668, 0
      %v4674 = vsel %vm1103, %v4653, 0
      %4676 = vmatpush.msra.mxu0 0.0
      %4677 = vmatpush.msra.mxu0 0.0
      %4678 = vmatpush.msra.mxu0 0.0
      %4679 = vmatpush.msra.mxu0 0.0
      %4680 = vmatpush.msra.mxu0 0.0
      %4681 = vmatpush.msra.mxu0 0.0
      %4682 = vmatpush.msra.mxu0 0.0
      %4683 = vmatpush.msra.mxu0 0.0
      %4684 = vmatpush.msra.mxu0 0.0
      %4685 = vmatpush.msra.mxu0 0.0
      %4686 = vmatpush.msra.mxu0 0.0
      %4687 = vmatpush.msra.mxu0 0.0
      %4688 = vmatpush.msra.mxu0 0.0
      %4689 = vmatpush.msra.mxu0 0.0
      %4690 = vmatpush.msra.mxu0 0.0
      %4691 = vmatpush.msra.mxu0 %v4674
      %4692 = vmatmul.f32.gmra.mxu0 %v4669
      %v4693 = vpop.f32.mrf.mxu0
      %v4694 = vadd.f32 %v4655, %v4693
      %4695 = vmatmul.f32.gmra.mxu0 %v4671
      %v4696 = vpop.f32.mrf.mxu0
      %v4697 = vadd.f32 %v4655, %v4696
      %4698 = vdwg.mxu0
      %v4701 = vrot.slane %v4694, 4
      %v4702 = vrot.slane %v4697, 4
      %v4722 = vunpack.c.l.s4 572653568
      %v4723 = vunpack.c.0.s8 %v4722
      %v4724 = vperm.slane %v4219, %v4723
      %v4726 = vunpack.c.l.s4 572653568
      %v4727 = vunpack.c.0.s8 %v4726
      %v4728 = vperm.slane %v4220, %v4727
      %v4730 = vunpack.c.l.s4 572653568
      %v4731 = vunpack.c.0.s8 %v4730
      %v4732 = vperm.slane %v4221, %v4731
      %v4734 = vunpack.c.l.s4 572653568
      %v4735 = vunpack.c.0.s8 %v4734
      %v4736 = vperm.slane %v4222, %v4735
      %v4738 = vunpack.c.l.s4 572653568
      %v4739 = vunpack.c.0.s8 %v4738
      %v4740 = vperm.slane %v4223, %v4739
      %v4742 = vunpack.c.l.s4 572653568
      %v4743 = vunpack.c.0.s8 %v4742
      %v4744 = vperm.slane %v4224, %v4743
      %v4746 = vunpack.c.l.s4 572653568
      %v4747 = vunpack.c.0.s8 %v4746
      %v4748 = vperm.slane %v4225, %v4747
      %v4750 = vunpack.c.l.s4 572653568
      %v4751 = vunpack.c.0.s8 %v4750
      %v4752 = vperm.slane %v4226, %v4751
      %v4754 = vunpack.c.l.s4 572653568
      %v4755 = vunpack.c.0.s8 %v4754
      %v4756 = vperm.slane %v4227, %v4755
      %v4758 = vunpack.c.l.s4 572653568
      %v4759 = vunpack.c.0.s8 %v4758
      %v4760 = vperm.slane %v4228, %v4759
      %v4762 = vunpack.c.l.s4 572653568
      %v4763 = vunpack.c.0.s8 %v4762
      %v4764 = vperm.slane %v4229, %v4763
      %v4766 = vunpack.c.l.s4 572653568
      %v4767 = vunpack.c.0.s8 %v4766
      %v4768 = vperm.slane %v4230, %v4767
      %v4770 = vunpack.c.l.s4 572653568
      %v4771 = vunpack.c.0.s8 %v4770
      %v4772 = vperm.slane %v4231, %v4771
      %v4774 = vunpack.c.l.s4 572653568
      %v4775 = vunpack.c.0.s8 %v4774
      %v4776 = vperm.slane %v4232, %v4775
      %v4778 = vunpack.c.l.s4 572653568
      %v4779 = vunpack.c.0.s8 %v4778
      %v4780 = vperm.slane %v4233, %v4779
      %v4782 = vunpack.c.l.s4 572653568
      %v4783 = vunpack.c.0.s8 %v4782
      %v4784 = vperm.slane %v4234, %v4783
      %v4785 = vsel %vm2878, %v4728, %v4724
      %v4786 = vsel %vm2886, %v4728, %v4785
      %v4787 = vsel %vm2880, %v4732, %v4786
      %v4788 = vsel %vm2888, %v4732, %v4787
      %v4789 = vsel %vm2882, %v4736, %v4788
      %v4790 = vsel %vm2890, %v4736, %v4789
      %v4791 = vsel %vm2878, %v4744, %v4740
      %v4792 = vsel %vm2886, %v4744, %v4791
      %v4793 = vsel %vm2880, %v4748, %v4792
      %v4794 = vsel %vm2888, %v4748, %v4793
      %v4795 = vsel %vm2882, %v4752, %v4794
      %v4796 = vsel %vm2890, %v4752, %v4795
      %v4797 = vsel %vm2878, %v4760, %v4756
      %v4798 = vsel %vm2886, %v4760, %v4797
      %v4799 = vsel %vm2880, %v4764, %v4798
      %v4800 = vsel %vm2888, %v4764, %v4799
      %v4801 = vsel %vm2882, %v4768, %v4800
      %v4802 = vsel %vm2890, %v4768, %v4801
      %v4803 = vsel %vm2878, %v4776, %v4772
      %v4804 = vsel %vm2886, %v4776, %v4803
      %v4805 = vsel %vm2880, %v4780, %v4804
      %v4806 = vsel %vm2888, %v4780, %v4805
      %v4807 = vsel %vm2882, %v4784, %v4806
      %v4808 = vsel %vm2890, %v4784, %v4807
      %v4813 = vadd.f32 %v4694, %v4790
      %v4814 = vadd.f32 %v4701, %v4796
      %v4815 = vadd.f32 %v4697, %v4802
      %v4816 = vadd.f32 %v4702, %v4808
      %v4817 = vld [vmem:[%s1 + $0x3] sm:$0x1]
      %v4818 = vperm.slane %v4817, 0
      %v4819 = vmul.f32 %v4813, %v4818
      %v4820 = vmul.f32 %v4814, %v4818
      %v4821 = vmul.f32 %v4815, %v4818
      %v4822 = vmul.f32 %v4816, %v4818
      %v4823 = vld [vmem:[%s2 + $0x3] sm:$0x1]
      %v4824 = vperm.slane %v4823, 0
      %v4825 = vadd.f32 %v4819, %v4824
      %v4826 = vadd.f32 %v4820, %v4824
      %v4827 = vadd.f32 %v4821, %v4824
      %v4828 = vadd.f32 %v4822, %v4824
      %v4829 = vmax.f32 %v4825, 0.0
      %v4830 = vmax.f32 %v4826, 0.0
      %v4831 = vmax.f32 %v4827, 0.0
      %v4832 = vmax.f32 %v4828, 0.0
      %s4833 = scalar_lea.vmem %s3, 24
      %v4834 = vld [vmem:[%s4833] sm:$0xff]
      %v4835 = vld [vmem:[%s4 + $0x3] sm:$0x1]
      %v4836 = vperm.slane %v4835, 0
      %4841 = vst [vmem:[#allocation1] ss:$2 sm:$0xff] %v4829
      %s4842 = scalar_lea.vmem [#allocation1], 1
      %4843 = vst [vmem:[%s4842] ss:$2 sm:$0xff] %v4830
      %s4844 = scalar_lea.vmem [#allocation1], 16
      %4845 = vst [vmem:[%s4844] ss:$2 sm:$0xff] %v4831
      %s4846 = scalar_lea.vmem [#allocation1], 17
      %4847 = vst [vmem:[%s4846] ss:$2 sm:$0xff] %v4832
      %v4848 = vld.sshfl [vmem:[#allocation1] sm:$0xff pattern:$0x75316420]
      %v4849 = vld.sshfl [vmem:[#allocation1 + $0x10] sm:$0xff pattern:$0x75316420]
      %v4850 = vsel %vm469, %v4848, 0
      %v4852 = vsel %vm469, %v4849, 0
      %4854 = vmatpush.msra.mxu0 0.0
      %4855 = vmatpush.msra.mxu0 0.0
      %4856 = vmatpush.msra.mxu0 0.0
      %4857 = vmatpush.msra.mxu0 0.0
      %4858 = vmatpush.msra.mxu0 0.0
      %4859 = vmatpush.msra.mxu0 0.0
      %4860 = vmatpush.msra.mxu0 0.0
      %4861 = vmatpush.msra.mxu0 0.0
      %4862 = vmatpush.msra.mxu0 0.0
      %4863 = vmatpush.msra.mxu0 0.0
      %4864 = vmatpush.msra.mxu0 0.0
      %4865 = vmatpush.msra.mxu0 0.0
      %4866 = vmatpush.msra.mxu0 0.0
      %4867 = vmatpush.msra.mxu0 0.0
      %4868 = vmatpush.msra.mxu0 0.0
      %4869 = vmatpush.msra.mxu0 %v4834
      %4870 = vmatmul.f32.gmra.mxu0 %v4850
      %v4871 = vpop.f32.mrf.mxu0
      %v4872 = vadd.f32 %v4836, %v4871
      %4873 = vmatmul.f32.gmra.mxu0 %v4852
      %v4874 = vpop.f32.mrf.mxu0
      %v4875 = vadd.f32 %v4836, %v4874
      %4876 = vdwg.mxu0
      %v4877 = vmax.f32 %v4872, 0.0
      %v4878 = vmax.f32 %v4875, 0.0
      %v4881 = vrot.slane %v4877, 4
      %v4882 = vrot.slane %v4878, 4
      %s4884 = scalar_lea.vmem %s5, 144
      %v4885 = vld [vmem:[%s4884] sm:$0xff]
      %v4886 = vld [vmem:[%s4884 + $0x8] sm:$0xf]
      %v4887 = vld [vmem:[%s4884 + $0x10] sm:$0xff]
      %v4888 = vld [vmem:[%s4884 + $0x18] sm:$0xf]
      %v4889 = vld [vmem:[%s4884 + $0x20] sm:$0xff]
      %v4890 = vld [vmem:[%s4884 + $0x28] sm:$0xf]
      %v4891 = vld [vmem:[%s6 + $0x3] sm:$0x1]
      %4892 = vst [vmem:[#allocation1] ss:$2 sm:$0xff] %v4877
      %v4893 = vld.sshfl [vmem:[#allocation1] sm:$0xff pattern:$0x75316420]
      %s4894 = scalar_lea.vmem [#allocation1], 16
      %4895 = vst [vmem:[%s4894] ss:$2 sm:$0xff] %v4881
      %v4896 = vld.sshfl [vmem:[#allocation1 + $0x10] sm:$0xff pattern:$0x75316420]
      %s4897 = scalar_lea.vmem [#allocation1], 32
      %4898 = vst [vmem:[%s4897] ss:$2 sm:$0xff] %v4878
      %v4899 = vld.sshfl [vmem:[#allocation1 + $0x20] sm:$0xff pattern:$0x75316420]
      %s4900 = scalar_lea.vmem [#allocation1], 48
      %4901 = vst [vmem:[%s4900] ss:$2 sm:$0xff] %v4882
      %v4902 = vld.sshfl [vmem:[#allocation1 + $0x30] sm:$0xff pattern:$0x75316420]
      %4903 = vrot.lane.b32.xlu0 %v4893, 4
      %v4904 = vpop.permute.xlu0 %4903
      %4905 = vrot.lane.b32.xlu0 %v4896, 4
      %v4906 = vpop.permute.xlu0 %4905
      %4907 = vrot.lane.b32.xlu0 %v4899, 4
      %v4908 = vpop.permute.xlu0 %4907
      %4909 = vrot.lane.b32.xlu0 %v4902, 4
      %v4910 = vpop.permute.xlu0 %4909
      %4915 = vst [vmem:[#allocation1] ss:$2 sm:$0xff] %v4881
      %v4916 = vld.sshfl [vmem:[#allocation1] sm:$0xff pattern:$0x75316420]
      %s4917 = scalar_lea.vmem [#allocation1], 16
      %4918 = vst [vmem:[%s4917] ss:$2 sm:$0xff] %v4878
      %v4919 = vld.sshfl [vmem:[#allocation1 + $0x10] sm:$0xff pattern:$0x75316420]
      %s4920 = scalar_lea.vmem [#allocation1], 32
      %4921 = vst [vmem:[%s4920] ss:$2 sm:$0xff] %v4882
      %v4922 = vld.sshfl [vmem:[#allocation1 + $0x20] sm:$0xff pattern:$0x75316420]
      %s4923 = scalar_lea.vmem [#allocation1], 48
      %4924 = vst [vmem:[%s4923] ss:$2 sm:$0xff] 0.0
      %v4925 = vld.sshfl [vmem:[#allocation1 + $0x30] sm:$0xff pattern:$0x75316420]
      %4926 = vrot.lane.b32.xlu0 %v4916, 8
      %v4927 = vpop.permute.xlu0 %4926
      %4928 = vrot.lane.b32.xlu0 %v4919, 8
      %v4929 = vpop.permute.xlu0 %4928
      %4930 = vrot.lane.b32.xlu0 %v4922, 8
      %v4931 = vpop.permute.xlu0 %4930
      %4932 = vrot.lane.b32.xlu0 %v4925, 8
      %v4933 = vpop.permute.xlu0 %4932
      %v4938 = vsel %vm941, 0.0, %v4904
      %v4939 = vsel %vm941, %v4877, %v4906
      %v4940 = vsel %vm941, %v4881, %v4908
      %v4941 = vsel %vm941, %v4878, %v4910
      %v4942 = vsel %vm469, %v4938, %v4927
      %v4943 = vsel %vm469, %v4939, %v4929
      %v4944 = vsel %vm469, %v4940, %v4931
      %v4945 = vsel %vm469, %v4941, %v4933
      %4950 = vst [vmem:[#allocation1] ss:$2 sm:$0xff] %v4942
      %s4951 = scalar_lea.vmem [#allocation1], 1
      %4952 = vst [vmem:[%s4951] ss:$2 sm:$0xff] %v4943
      %s4953 = scalar_lea.vmem [#allocation1], 16
      %4954 = vst [vmem:[%s4953] ss:$2 sm:$0xff] %v4944
      %s4955 = scalar_lea.vmem [#allocation1], 17
      %4956 = vst [vmem:[%s4955] ss:$2 sm:$0xff] %v4945
      %v4957 = vld.sshfl [vmem:[#allocation1] sm:$0xff pattern:$0x75316420]
      %v4958 = vld.sshfl [vmem:[#allocation1 + $0x10] sm:$0xff pattern:$0x75316420]
      %v4959 = vsel %vm1006, %v4957, 0
      %v4961 = vsel %vm1006, %v4958, 0
      %v4964 = vsel %vm1103, %v4886, 0
      %4966 = vmatpush.msra.mxu0 0.0
      %4967 = vmatpush.msra.mxu0 0.0
      %4968 = vmatpush.msra.mxu0 0.0
      %4969 = vmatpush.msra.mxu0 0.0
      %4970 = vmatpush.msra.mxu0 0.0
      %4971 = vmatpush.msra.mxu0 0.0
      %4972 = vmatpush.msra.mxu0 0.0
      %4973 = vmatpush.msra.mxu0 0.0
      %4974 = vmatpush.msra.mxu0 0.0
      %4975 = vmatpush.msra.mxu0 0.0
      %4976 = vmatpush.msra.mxu0 0.0
      %4977 = vmatpush.msra.mxu0 0.0
      %4978 = vmatpush.msra.mxu0 0.0
      %4979 = vmatpush.msra.mxu0 0.0
      %4980 = vmatpush.msra.mxu0 %v4964
      %4981 = vmatpush.msra.mxu0 %v4885
      %4982 = vmatmul.f32.gmra.mxu0 %v4959
      %v4983 = vpop.f32.mrf.mxu0
      %v4984 = vadd.f32 0.0, %v4983
      %4985 = vmatmul.f32.gmra.mxu0 %v4961
      %v4986 = vpop.f32.mrf.mxu0
      %v4987 = vadd.f32 0.0, %v4986
      %4988 = vdwg.mxu0
      %4989 = vst [vmem:[#allocation1] ss:$2 sm:$0xff] %v4942
      %s4990 = scalar_lea.vmem [#allocation1], 1
      %4991 = vst [vmem:[%s4990] ss:$2 sm:$0xff] %v4943
      %s4992 = scalar_lea.vmem [#allocation1], 16
      %4993 = vst [vmem:[%s4992] ss:$2 sm:$0xff] %v4944
      %s4994 = scalar_lea.vmem [#allocation1], 17
      %4995 = vst [vmem:[%s4994] ss:$2 sm:$0xff] %v4945
      %v4996 = vld.sshfl [vmem:[#allocation1] sm:$0xff pattern:$0x75316420]
      %v4997 = vld.sshfl [vmem:[#allocation1 + $0x10] sm:$0xff pattern:$0x75316420]
      %v4998 = vsel %vm1006, %v4996, 0
      %v5000 = vsel %vm1006, %v4997, 0
      %v5003 = vsel %vm1103, %v4890, 0
      %5005 = vmatpush.msra.mxu0 0.0
      %5006 = vmatpush.msra.mxu0 0.0
      %5007 = vmatpush.msra.mxu0 0.0
      %5008 = vmatpush.msra.mxu0 0.0
      %5009 = vmatpush.msra.mxu0 0.0
      %5010 = vmatpush.msra.mxu0 0.0
      %5011 = vmatpush.msra.mxu0 0.0
      %5012 = vmatpush.msra.mxu0 0.0
      %5013 = vmatpush.msra.mxu0 0.0
      %5014 = vmatpush.msra.mxu0 0.0
      %5015 = vmatpush.msra.mxu0 0.0
      %5016 = vmatpush.msra.mxu0 0.0
      %5017 = vmatpush.msra.mxu0 0.0
      %5018 = vmatpush.msra.mxu0 0.0
      %5019 = vmatpush.msra.mxu0 %v5003
      %5020 = vmatpush.msra.mxu0 %v4889
      %5021 = vmatmul.f32.gmra.mxu0 %v4998
      %v5022 = vpop.f32.mrf.mxu0
      %v5023 = vadd.f32 0.0, %v5022
      %5024 = vmatmul.f32.gmra.mxu0 %v5000
      %v5025 = vpop.f32.mrf.mxu0
      %v5026 = vadd.f32 0.0, %v5025
      %5027 = vdwg.mxu0
      %v5030 = vrot.slane %v4984, 7
      %v5031 = vrot.slane %v4987, 7
      %v5032 = vsel %vm1368, %v5030, %v5031
      %v5035 = vsel %vm1368, 0.0, %v5030
      %v5038 = vrot.slane %v5023, 1
      %v5039 = vrot.slane %v5026, 1
      %v5040 = vsel %vm1497, %v5038, %v5039
      %v5043 = vsel %vm1497, %v5039, 0.0
      %v5045 = vrot.slane %v5035, 4
      %v5046 = vrot.slane %v5032, 4
      %v5049 = vsel %vm1601, 0.0, %v5035
      %v5050 = vsel %vm1601, 0.0, %v5045
      %v5051 = vsel %vm1601, 0.0, %v5032
      %v5052 = vsel %vm1601, 0.0, %v5046
      %5053 = vst [vmem:[#allocation1] ss:$2 sm:$0xff] %v4942
      %s5054 = scalar_lea.vmem [#allocation1], 1
      %5055 = vst [vmem:[%s5054] ss:$2 sm:$0xff] %v4943
      %s5056 = scalar_lea.vmem [#allocation1], 16
      %5057 = vst [vmem:[%s5056] ss:$2 sm:$0xff] %v4944
      %s5058 = scalar_lea.vmem [#allocation1], 17
      %5059 = vst [vmem:[%s5058] ss:$2 sm:$0xff] %v4945
      %v5060 = vld.sshfl [vmem:[#allocation1] sm:$0xff pattern:$0x75316420]
      %v5061 = vld.sshfl [vmem:[#allocation1 + $0x10] sm:$0xff pattern:$0x75316420]
      %5066 = vst [vmem:[#allocation1] ss:$2 sm:$0xff] %v5049
      %s5067 = scalar_lea.vmem [#allocation1], 1
      %5068 = vst [vmem:[%s5067] ss:$2 sm:$0xff] %v5050
      %s5069 = scalar_lea.vmem [#allocation1], 16
      %5070 = vst [vmem:[%s5069] ss:$2 sm:$0xff] %v5051
      %s5071 = scalar_lea.vmem [#allocation1], 17
      %5072 = vst [vmem:[%s5071] ss:$2 sm:$0xff] %v5052
      %v5073 = vld.sshfl [vmem:[#allocation1] sm:$0xff pattern:$0x75316420]
      %v5074 = vld.sshfl [vmem:[#allocation1 + $0x10] sm:$0xff pattern:$0x75316420]
      %v5077 = vsel %vm1006, %v5060, 0
      %v5079 = vsel %vm1006, %v5061, 0
      %v5082 = vsel %vm1103, %v4888, 0
      %5084 = vmatpush.msra.mxu0 0.0
      %5085 = vmatpush.msra.mxu0 0.0
      %5086 = vmatpush.msra.mxu0 0.0
      %5087 = vmatpush.msra.mxu0 0.0
      %5088 = vmatpush.msra.mxu0 0.0
      %5089 = vmatpush.msra.mxu0 0.0
      %5090 = vmatpush.msra.mxu0 0.0
      %5091 = vmatpush.msra.mxu0 0.0
      %5092 = vmatpush.msra.mxu0 0.0
      %5093 = vmatpush.msra.mxu0 0.0
      %5094 = vmatpush.msra.mxu0 0.0
      %5095 = vmatpush.msra.mxu0 0.0
      %5096 = vmatpush.msra.mxu0 0.0
      %5097 = vmatpush.msra.mxu0 0.0
      %5098 = vmatpush.msra.mxu0 %v5082
      %5099 = vmatpush.msra.mxu0 %v4887
      %5100 = vmatmul.f32.gmra.mxu0 %v5077
      %v5101 = vpop.f32.mrf.mxu0
      %v5102 = vadd.f32 %v5073, %v5101
      %5103 = vmatmul.f32.gmra.mxu0 %v5079
      %v5104 = vpop.f32.mrf.mxu0
      %v5105 = vadd.f32 %v5074, %v5104
      %5106 = vdwg.mxu0
      %v5108 = vrot.slane %v5040, 4
      %v5109 = vrot.slane %v5043, 4
      %v5112 = vsel %vm4612, 0.0, %v5040
      %v5113 = vsel %vm4612, 0.0, %v5108
      %v5114 = vsel %vm4612, 0.0, %v5043
      %v5115 = vsel %vm4612, 0.0, %v5109
      %5120 = vst [vmem:[#allocation1] ss:$2 sm:$0xff] %v5112
      %s5121 = scalar_lea.vmem [#allocation1], 1
      %5122 = vst [vmem:[%s5121] ss:$2 sm:$0xff] %v5113
      %s5123 = scalar_lea.vmem [#allocation1], 16
      %5124 = vst [vmem:[%s5123] ss:$2 sm:$0xff] %v5114
      %s5125 = scalar_lea.vmem [#allocation1], 17
      %5126 = vst [vmem:[%s5125] ss:$2 sm:$0xff] %v5115
      %v5127 = vld.sshfl [vmem:[#allocation1] sm:$0xff pattern:$0x75316420]
      %v5128 = vld.sshfl [vmem:[#allocation1 + $0x10] sm:$0xff pattern:$0x75316420]
      %v5131 = vadd.f32 %v5102, %v5127
      %v5132 = vadd.f32 %v5105, %v5128
      %v5133 = vperm.slane %v4891, 0
      %v5134 = vadd.f32 %v5131, %v5133
      %v5135 = vadd.f32 %v5132, %v5133
      %v5138 = vrot.slane %v5134, 4
      %v5139 = vrot.slane %v5135, 4
      %v5142 = vmax.f32 %v5134, 0.0
      %v5143 = vmax.f32 %v5138, 0.0
      %v5144 = vmax.f32 %v5135, 0.0
      %v5145 = vmax.f32 %v5139, 0.0
      %s5146 = scalar_lea.vmem %s7, 12
      %v5147 = vld [vmem:[%s5146] sm:$0xf]
      %v5148 = vld [vmem:[%s8 + $0x3] sm:$0x1]
      %v5149 = vperm.slane %v5148, 0
      %5154 = vst [vmem:[#allocation1] ss:$2 sm:$0xff] %v5142
      %s5155 = scalar_lea.vmem [#allocation1], 1
      %5156 = vst [vmem:[%s5155] ss:$2 sm:$0xff] %v5143
      %s5157 = scalar_lea.vmem [#allocation1], 16
      %5158 = vst [vmem:[%s5157] ss:$2 sm:$0xff] %v5144
      %s5159 = scalar_lea.vmem [#allocation1], 17
      %5160 = vst [vmem:[%s5159] ss:$2 sm:$0xff] %v5145
      %v5161 = vld.sshfl [vmem:[#allocation1] sm:$0xff pattern:$0x75316420]
      %v5162 = vld.sshfl [vmem:[#allocation1 + $0x10] sm:$0xff pattern:$0x75316420]
      %v5163 = vsel %vm941, %v5161, 0
      %v5165 = vsel %vm941, %v5162, 0
      %v5168 = vsel %vm1103, %v5147, 0
      %5170 = vmatpush.msra.mxu0 0.0
      %5171 = vmatpush.msra.mxu0 0.0
      %5172 = vmatpush.msra.mxu0 0.0
      %5173 = vmatpush.msra.mxu0 0.0
      %5174 = vmatpush.msra.mxu0 0.0
      %5175 = vmatpush.msra.mxu0 0.0
      %5176 = vmatpush.msra.mxu0 0.0
      %5177 = vmatpush.msra.mxu0 0.0
      %5178 = vmatpush.msra.mxu0 0.0
      %5179 = vmatpush.msra.mxu0 0.0
      %5180 = vmatpush.msra.mxu0 0.0
      %5181 = vmatpush.msra.mxu0 0.0
      %5182 = vmatpush.msra.mxu0 0.0
      %5183 = vmatpush.msra.mxu0 0.0
      %5184 = vmatpush.msra.mxu0 0.0
      %5185 = vmatpush.msra.mxu0 %v5168
      %5186 = vmatmul.f32.gmra.mxu0 %v5163
      %v5187 = vpop.f32.mrf.mxu0
      %v5188 = vadd.f32 %v5149, %v5187
      %5189 = vmatmul.f32.gmra.mxu0 %v5165
      %v5190 = vpop.f32.mrf.mxu0
      %v5191 = vadd.f32 %v5149, %v5190
      %5192 = vdwg.mxu0
      %v5195 = vrot.slane %v5188, 4
      %v5196 = vrot.slane %v5191, 4
      %v5199 = vadd.f32 %v5188, %v4813
      %v5200 = vadd.f32 %v5195, %v4814
      %v5201 = vadd.f32 %v5191, %v4815
      %v5202 = vadd.f32 %v5196, %v4816
      %v5203 = vld [vmem:[%s1 + $0x2] sm:$0x1]
      %v5204 = vperm.slane %v5203, 0
      %v5205 = vmul.f32 %v5199, %v5204
      %v5206 = vmul.f32 %v5200, %v5204
      %v5207 = vmul.f32 %v5201, %v5204
      %v5208 = vmul.f32 %v5202, %v5204
      %v5209 = vld [vmem:[%s2 + $0x2] sm:$0x1]
      %v5210 = vperm.slane %v5209, 0
      %v5211 = vadd.f32 %v5205, %v5210
      %v5212 = vadd.f32 %v5206, %v5210
      %v5213 = vadd.f32 %v5207, %v5210
      %v5214 = vadd.f32 %v5208, %v5210
      %v5215 = vmax.f32 %v5211, 0.0
      %v5216 = vmax.f32 %v5212, 0.0
      %v5217 = vmax.f32 %v5213, 0.0
      %v5218 = vmax.f32 %v5214, 0.0
      %s5219 = scalar_lea.vmem %s3, 16
      %v5220 = vld [vmem:[%s5219] sm:$0xff]
      %v5221 = vld [vmem:[%s4 + $0x2] sm:$0x1]
      %v5222 = vperm.slane %v5221, 0
      %5227 = vst [vmem:[#allocation1] ss:$2 sm:$0xff] %v5215
      %s5228 = scalar_lea.vmem [#allocation1], 1
      %5229 = vst [vmem:[%s5228] ss:$2 sm:$0xff] %v5216
      %s5230 = scalar_lea.vmem [#allocation1], 16
      %5231 = vst [vmem:[%s5230] ss:$2 sm:$0xff] %v5217
      %s5232 = scalar_lea.vmem [#allocation1], 17
      %5233 = vst [vmem:[%s5232] ss:$2 sm:$0xff] %v5218
      %v5234 = vld.sshfl [vmem:[#allocation1] sm:$0xff pattern:$0x75316420]
      %v5235 = vld.sshfl [vmem:[#allocation1 + $0x10] sm:$0xff pattern:$0x75316420]
      %v5236 = vsel %vm469, %v5234, 0
      %v5238 = vsel %vm469, %v5235, 0
      %5240 = vmatpush.msra.mxu0 0.0
      %5241 = vmatpush.msra.mxu0 0.0
      %5242 = vmatpush.msra.mxu0 0.0
      %5243 = vmatpush.msra.mxu0 0.0
      %5244 = vmatpush.msra.mxu0 0.0
      %5245 = vmatpush.msra.mxu0 0.0
      %5246 = vmatpush.msra.mxu0 0.0
      %5247 = vmatpush.msra.mxu0 0.0
      %5248 = vmatpush.msra.mxu0 0.0
      %5249 = vmatpush.msra.mxu0 0.0
      %5250 = vmatpush.msra.mxu0 0.0
      %5251 = vmatpush.msra.mxu0 0.0
      %5252 = vmatpush.msra.mxu0 0.0
      %5253 = vmatpush.msra.mxu0 0.0
      %5254 = vmatpush.msra.mxu0 0.0
      %5255 = vmatpush.msra.mxu0 %v5220
      %5256 = vmatmul.f32.gmra.mxu0 %v5236
      %v5257 = vpop.f32.mrf.mxu0
      %v5258 = vadd.f32 %v5222, %v5257
      %5259 = vmatmul.f32.gmra.mxu0 %v5238
      %v5260 = vpop.f32.mrf.mxu0
      %v5261 = vadd.f32 %v5222, %v5260
      %5262 = vdwg.mxu0
      %v5263 = vmax.f32 %v5258, 0.0
      %v5264 = vmax.f32 %v5261, 0.0
      %v5267 = vrot.slane %v5263, 4
      %v5268 = vrot.slane %v5264, 4
      %s5270 = scalar_lea.vmem %s5, 96
      %v5271 = vld [vmem:[%s5270] sm:$0xff]
      %v5272 = vld [vmem:[%s5270 + $0x8] sm:$0xf]
      %v5273 = vld [vmem:[%s5270 + $0x10] sm:$0xff]
      %v5274 = vld [vmem:[%s5270 + $0x18] sm:$0xf]
      %v5275 = vld [vmem:[%s5270 + $0x20] sm:$0xff]
      %v5276 = vld [vmem:[%s5270 + $0x28] sm:$0xf]
      %v5277 = vld [vmem:[%s6 + $0x2] sm:$0x1]
      %5278 = vst [vmem:[#allocation1] ss:$2 sm:$0xff] %v5263
      %v5279 = vld.sshfl [vmem:[#allocation1] sm:$0xff pattern:$0x75316420]
      %s5280 = scalar_lea.vmem [#allocation1], 16
      %5281 = vst [vmem:[%s5280] ss:$2 sm:$0xff] %v5267
      %v5282 = vld.sshfl [vmem:[#allocation1 + $0x10] sm:$0xff pattern:$0x75316420]
      %s5283 = scalar_lea.vmem [#allocation1], 32
      %5284 = vst [vmem:[%s5283] ss:$2 sm:$0xff] %v5264
      %v5285 = vld.sshfl [vmem:[#allocation1 + $0x20] sm:$0xff pattern:$0x75316420]
      %s5286 = scalar_lea.vmem [#allocation1], 48
      %5287 = vst [vmem:[%s5286] ss:$2 sm:$0xff] %v5268
      %v5288 = vld.sshfl [vmem:[#allocation1 + $0x30] sm:$0xff pattern:$0x75316420]
      %5289 = vrot.lane.b32.xlu0 %v5279, 4
      %v5290 = vpop.permute.xlu0 %5289
      %5291 = vrot.lane.b32.xlu0 %v5282, 4
      %v5292 = vpop.permute.xlu0 %5291
      %5293 = vrot.lane.b32.xlu0 %v5285, 4
      %v5294 = vpop.permute.xlu0 %5293
      %5295 = vrot.lane.b32.xlu0 %v5288, 4
      %v5296 = vpop.permute.xlu0 %5295
      %5301 = vst [vmem:[#allocation1] ss:$2 sm:$0xff] %v5267
      %v5302 = vld.sshfl [vmem:[#allocation1] sm:$0xff pattern:$0x75316420]
      %s5303 = scalar_lea.vmem [#allocation1], 16
      %5304 = vst [vmem:[%s5303] ss:$2 sm:$0xff] %v5264
      %v5305 = vld.sshfl [vmem:[#allocation1 + $0x10] sm:$0xff pattern:$0x75316420]
      %s5306 = scalar_lea.vmem [#allocation1], 32
      %5307 = vst [vmem:[%s5306] ss:$2 sm:$0xff] %v5268
      %v5308 = vld.sshfl [vmem:[#allocation1 + $0x20] sm:$0xff pattern:$0x75316420]
      %s5309 = scalar_lea.vmem [#allocation1], 48
      %5310 = vst [vmem:[%s5309] ss:$2 sm:$0xff] 0.0
      %v5311 = vld.sshfl [vmem:[#allocation1 + $0x30] sm:$0xff pattern:$0x75316420]
      %5312 = vrot.lane.b32.xlu0 %v5302, 8
      %v5313 = vpop.permute.xlu0 %5312
      %5314 = vrot.lane.b32.xlu0 %v5305, 8
      %v5315 = vpop.permute.xlu0 %5314
      %5316 = vrot.lane.b32.xlu0 %v5308, 8
      %v5317 = vpop.permute.xlu0 %5316
      %5318 = vrot.lane.b32.xlu0 %v5311, 8
      %v5319 = vpop.permute.xlu0 %5318
      %v5324 = vsel %vm941, 0.0, %v5290
      %v5325 = vsel %vm941, %v5263, %v5292
      %v5326 = vsel %vm941, %v5267, %v5294
      %v5327 = vsel %vm941, %v5264, %v5296
      %v5328 = vsel %vm469, %v5324, %v5313
      %v5329 = vsel %vm469, %v5325, %v5315
      %v5330 = vsel %vm469, %v5326, %v5317
      %v5331 = vsel %vm469, %v5327, %v5319
      %5336 = vst [vmem:[#allocation1] ss:$2 sm:$0xff] %v5328
      %s5337 = scalar_lea.vmem [#allocation1], 1
      %5338 = vst [vmem:[%s5337] ss:$2 sm:$0xff] %v5329
      %s5339 = scalar_lea.vmem [#allocation1], 16
      %5340 = vst [vmem:[%s5339] ss:$2 sm:$0xff] %v5330
      %s5341 = scalar_lea.vmem [#allocation1], 17
      %5342 = vst [vmem:[%s5341] ss:$2 sm:$0xff] %v5331
      %v5343 = vld.sshfl [vmem:[#allocation1] sm:$0xff pattern:$0x75316420]
      %v5344 = vld.sshfl [vmem:[#allocation1 + $0x10] sm:$0xff pattern:$0x75316420]
      %v5345 = vsel %vm1006, %v5343, 0
      %v5347 = vsel %vm1006, %v5344, 0
      %v5350 = vsel %vm1103, %v5272, 0
      %5352 = vmatpush.msra.mxu0 0.0
      %5353 = vmatpush.msra.mxu0 0.0
      %5354 = vmatpush.msra.mxu0 0.0
      %5355 = vmatpush.msra.mxu0 0.0
      %5356 = vmatpush.msra.mxu0 0.0
      %5357 = vmatpush.msra.mxu0 0.0
      %5358 = vmatpush.msra.mxu0 0.0
      %5359 = vmatpush.msra.mxu0 0.0
      %5360 = vmatpush.msra.mxu0 0.0
      %5361 = vmatpush.msra.mxu0 0.0
      %5362 = vmatpush.msra.mxu0 0.0
      %5363 = vmatpush.msra.mxu0 0.0
      %5364 = vmatpush.msra.mxu0 0.0
      %5365 = vmatpush.msra.mxu0 0.0
      %5366 = vmatpush.msra.mxu0 %v5350
      %5367 = vmatpush.msra.mxu0 %v5271
      %5368 = vmatmul.f32.gmra.mxu0 %v5345
      %v5369 = vpop.f32.mrf.mxu0
      %v5370 = vadd.f32 0.0, %v5369
      %5371 = vmatmul.f32.gmra.mxu0 %v5347
      %v5372 = vpop.f32.mrf.mxu0
      %v5373 = vadd.f32 0.0, %v5372
      %5374 = vdwg.mxu0
      %5375 = vst [vmem:[#allocation1] ss:$2 sm:$0xff] %v5328
      %s5376 = scalar_lea.vmem [#allocation1], 1
      %5377 = vst [vmem:[%s5376] ss:$2 sm:$0xff] %v5329
      %s5378 = scalar_lea.vmem [#allocation1], 16
      %5379 = vst [vmem:[%s5378] ss:$2 sm:$0xff] %v5330
      %s5380 = scalar_lea.vmem [#allocation1], 17
      %5381 = vst [vmem:[%s5380] ss:$2 sm:$0xff] %v5331
      %v5382 = vld.sshfl [vmem:[#allocation1] sm:$0xff pattern:$0x75316420]
      %v5383 = vld.sshfl [vmem:[#allocation1 + $0x10] sm:$0xff pattern:$0x75316420]
      %v5384 = vsel %vm1006, %v5382, 0
      %v5386 = vsel %vm1006, %v5383, 0
      %v5389 = vsel %vm1103, %v5276, 0
      %5391 = vmatpush.msra.mxu0 0.0
      %5392 = vmatpush.msra.mxu0 0.0
      %5393 = vmatpush.msra.mxu0 0.0
      %5394 = vmatpush.msra.mxu0 0.0
      %5395 = vmatpush.msra.mxu0 0.0
      %5396 = vmatpush.msra.mxu0 0.0
      %5397 = vmatpush.msra.mxu0 0.0
      %5398 = vmatpush.msra.mxu0 0.0
      %5399 = vmatpush.msra.mxu0 0.0
      %5400 = vmatpush.msra.mxu0 0.0
      %5401 = vmatpush.msra.mxu0 0.0
      %5402 = vmatpush.msra.mxu0 0.0
      %5403 = vmatpush.msra.mxu0 0.0
      %5404 = vmatpush.msra.mxu0 0.0
      %5405 = vmatpush.msra.mxu0 %v5389
      %5406 = vmatpush.msra.mxu0 %v5275
      %5407 = vmatmul.f32.gmra.mxu0 %v5384
      %v5408 = vpop.f32.mrf.mxu0
      %v5409 = vadd.f32 0.0, %v5408
      %5410 = vmatmul.f32.gmra.mxu0 %v5386
      %v5411 = vpop.f32.mrf.mxu0
      %v5412 = vadd.f32 0.0, %v5411
      %5413 = vdwg.mxu0
      %v5416 = vrot.slane %v5370, 7
      %v5417 = vrot.slane %v5373, 7
      %v5418 = vsel %vm1368, %v5416, %v5417
      %v5421 = vsel %vm1368, 0.0, %v5416
      %v5424 = vrot.slane %v5409, 1
      %v5425 = vrot.slane %v5412, 1
      %v5426 = vsel %vm1497, %v5424, %v5425
      %v5429 = vsel %vm1497, %v5425, 0.0
      %v5431 = vrot.slane %v5421, 4
      %v5432 = vrot.slane %v5418, 4
      %v5435 = vsel %vm1601, 0.0, %v5421
      %v5436 = vsel %vm1601, 0.0, %v5431
      %v5437 = vsel %vm1601, 0.0, %v5418
      %v5438 = vsel %vm1601, 0.0, %v5432
      %5439 = vst [vmem:[#allocation1] ss:$2 sm:$0xff] %v5328
      %s5440 = scalar_lea.vmem [#allocation1], 1
      %5441 = vst [vmem:[%s5440] ss:$2 sm:$0xff] %v5329
      %s5442 = scalar_lea.vmem [#allocation1], 16
      %5443 = vst [vmem:[%s5442] ss:$2 sm:$0xff] %v5330
      %s5444 = scalar_lea.vmem [#allocation1], 17
      %5445 = vst [vmem:[%s5444] ss:$2 sm:$0xff] %v5331
      %v5446 = vld.sshfl [vmem:[#allocation1] sm:$0xff pattern:$0x75316420]
      %v5447 = vld.sshfl [vmem:[#allocation1 + $0x10] sm:$0xff pattern:$0x75316420]
      %5452 = vst [vmem:[#allocation1] ss:$2 sm:$0xff] %v5435
      %s5453 = scalar_lea.vmem [#allocation1], 1
      %5454 = vst [vmem:[%s5453] ss:$2 sm:$0xff] %v5436
      %s5455 = scalar_lea.vmem [#allocation1], 16
      %5456 = vst [vmem:[%s5455] ss:$2 sm:$0xff] %v5437
      %s5457 = scalar_lea.vmem [#allocation1], 17
      %5458 = vst [vmem:[%s5457] ss:$2 sm:$0xff] %v5438
      %v5459 = vld.sshfl [vmem:[#allocation1] sm:$0xff pattern:$0x75316420]
      %v5460 = vld.sshfl [vmem:[#allocation1 + $0x10] sm:$0xff pattern:$0x75316420]
      %v5463 = vsel %vm1006, %v5446, 0
      %v5465 = vsel %vm1006, %v5447, 0
      %v5468 = vsel %vm1103, %v5274, 0
      %5470 = vmatpush.msra.mxu0 0.0
      %5471 = vmatpush.msra.mxu0 0.0
      %5472 = vmatpush.msra.mxu0 0.0
      %5473 = vmatpush.msra.mxu0 0.0
      %5474 = vmatpush.msra.mxu0 0.0
      %5475 = vmatpush.msra.mxu0 0.0
      %5476 = vmatpush.msra.mxu0 0.0
      %5477 = vmatpush.msra.mxu0 0.0
      %5478 = vmatpush.msra.mxu0 0.0
      %5479 = vmatpush.msra.mxu0 0.0
      %5480 = vmatpush.msra.mxu0 0.0
      %5481 = vmatpush.msra.mxu0 0.0
      %5482 = vmatpush.msra.mxu0 0.0
      %5483 = vmatpush.msra.mxu0 0.0
      %5484 = vmatpush.msra.mxu0 %v5468
      %5485 = vmatpush.msra.mxu0 %v5273
      %5486 = vmatmul.f32.gmra.mxu0 %v5463
      %v5487 = vpop.f32.mrf.mxu0
      %v5488 = vadd.f32 %v5459, %v5487
      %5489 = vmatmul.f32.gmra.mxu0 %v5465
      %v5490 = vpop.f32.mrf.mxu0
      %v5491 = vadd.f32 %v5460, %v5490
      %5492 = vdwg.mxu0
      %v5494 = vrot.slane %v5426, 4
      %v5495 = vrot.slane %v5429, 4
      %v5498 = vsel %vm4612, 0.0, %v5426
      %v5499 = vsel %vm4612, 0.0, %v5494
      %v5500 = vsel %vm4612, 0.0, %v5429
      %v5501 = vsel %vm4612, 0.0, %v5495
      %5506 = vst [vmem:[#allocation1] ss:$2 sm:$0xff] %v5498
      %s5507 = scalar_lea.vmem [#allocation1], 1
      %5508 = vst [vmem:[%s5507] ss:$2 sm:$0xff] %v5499
      %s5509 = scalar_lea.vmem [#allocation1], 16
      %5510 = vst [vmem:[%s5509] ss:$2 sm:$0xff] %v5500
      %s5511 = scalar_lea.vmem [#allocation1], 17
      %5512 = vst [vmem:[%s5511] ss:$2 sm:$0xff] %v5501
      %v5513 = vld.sshfl [vmem:[#allocation1] sm:$0xff pattern:$0x75316420]
      %v5514 = vld.sshfl [vmem:[#allocation1 + $0x10] sm:$0xff pattern:$0x75316420]
      %v5517 = vadd.f32 %v5488, %v5513
      %v5518 = vadd.f32 %v5491, %v5514
      %v5519 = vperm.slane %v5277, 0
      %v5520 = vadd.f32 %v5517, %v5519
      %v5521 = vadd.f32 %v5518, %v5519
      %v5524 = vrot.slane %v5520, 4
      %v5525 = vrot.slane %v5521, 4
      %v5528 = vmax.f32 %v5520, 0.0
      %v5529 = vmax.f32 %v5524, 0.0
      %v5530 = vmax.f32 %v5521, 0.0
      %v5531 = vmax.f32 %v5525, 0.0
      %s5532 = scalar_lea.vmem %s7, 8
      %v5533 = vld [vmem:[%s5532] sm:$0xf]
      %v5534 = vld [vmem:[%s8 + $0x2] sm:$0x1]
      %v5535 = vperm.slane %v5534, 0
      %5540 = vst [vmem:[#allocation1] ss:$2 sm:$0xff] %v5528
      %s5541 = scalar_lea.vmem [#allocation1], 1
      %5542 = vst [vmem:[%s5541] ss:$2 sm:$0xff] %v5529
      %s5543 = scalar_lea.vmem [#allocation1], 16
      %5544 = vst [vmem:[%s5543] ss:$2 sm:$0xff] %v5530
      %s5545 = scalar_lea.vmem [#allocation1], 17
      %5546 = vst [vmem:[%s5545] ss:$2 sm:$0xff] %v5531
      %v5547 = vld.sshfl [vmem:[#allocation1] sm:$0xff pattern:$0x75316420]
      %v5548 = vld.sshfl [vmem:[#allocation1 + $0x10] sm:$0xff pattern:$0x75316420]
      %v5549 = vsel %vm941, %v5547, 0
      %v5551 = vsel %vm941, %v5548, 0
      %v5554 = vsel %vm1103, %v5533, 0
      %5556 = vmatpush.msra.mxu0 0.0
      %5557 = vmatpush.msra.mxu0 0.0
      %5558 = vmatpush.msra.mxu0 0.0
      %5559 = vmatpush.msra.mxu0 0.0
      %5560 = vmatpush.msra.mxu0 0.0
      %5561 = vmatpush.msra.mxu0 0.0
      %5562 = vmatpush.msra.mxu0 0.0
      %5563 = vmatpush.msra.mxu0 0.0
      %5564 = vmatpush.msra.mxu0 0.0
      %5565 = vmatpush.msra.mxu0 0.0
      %5566 = vmatpush.msra.mxu0 0.0
      %5567 = vmatpush.msra.mxu0 0.0
      %5568 = vmatpush.msra.mxu0 0.0
      %5569 = vmatpush.msra.mxu0 0.0
      %5570 = vmatpush.msra.mxu0 0.0
      %5571 = vmatpush.msra.mxu0 %v5554
      %5572 = vmatmul.f32.gmra.mxu0 %v5549
      %v5573 = vpop.f32.mrf.mxu0
      %v5574 = vadd.f32 %v5535, %v5573
      %5575 = vmatmul.f32.gmra.mxu0 %v5551
      %v5576 = vpop.f32.mrf.mxu0
      %v5577 = vadd.f32 %v5535, %v5576
      %5578 = vdwg.mxu0
      %v5581 = vrot.slane %v5574, 4
      %v5582 = vrot.slane %v5577, 4
      %v5585 = vadd.f32 %v5574, %v5199
      %v5586 = vadd.f32 %v5581, %v5200
      %v5587 = vadd.f32 %v5577, %v5201
      %v5588 = vadd.f32 %v5582, %v5202
      %v5593 = vrot.slane %v5585, 3
      %v5594 = vrot.slane %v5586, 3
      %v5595 = vrot.slane %v5587, 3
      %v5596 = vrot.slane %v5588, 3
      %v5597 = vsel %vm1368, %v5585, %v5593
      %v5598 = vsel %vm2878, %v5585, %v5593
      %v5599 = vrot.slane %v5598, 1
      %v5600 = vsel %vm2880, %v5585, %v5593
      %v5601 = vrot.slane %v5600, 2
      %v5602 = vsel %vm2882, %v5585, %v5593
      %v5603 = vrot.slane %v5602, 3
      %v5604 = vsel %vm1368, %v5586, %v5594
      %v5605 = vsel %vm2878, %v5586, %v5594
      %v5606 = vrot.slane %v5605, 1
      %v5607 = vsel %vm2880, %v5586, %v5594
      %v5608 = vrot.slane %v5607, 2
      %v5609 = vsel %vm2882, %v5586, %v5594
      %v5610 = vrot.slane %v5609, 3
      %v5611 = vsel %vm1368, %v5587, %v5595
      %v5612 = vsel %vm2878, %v5587, %v5595
      %v5613 = vrot.slane %v5612, 1
      %v5614 = vsel %vm2880, %v5587, %v5595
      %v5615 = vrot.slane %v5614, 2
      %v5616 = vsel %vm2882, %v5587, %v5595
      %v5617 = vrot.slane %v5616, 3
      %v5618 = vsel %vm1368, %v5588, %v5596
      %v5619 = vsel %vm2878, %v5588, %v5596
      %v5620 = vrot.slane %v5619, 1
      %v5621 = vsel %vm2880, %v5588, %v5596
      %v5622 = vrot.slane %v5621, 2
      %v5623 = vsel %vm2882, %v5588, %v5596
      %v5624 = vrot.slane %v5623, 3
      %v5625 = vperm.slane %v5597, 0
      %v5626 = vperm.slane %v5599, 0
      %v5627 = vperm.slane %v5601, 0
      %v5628 = vperm.slane %v5603, 0
      %v5629 = vperm.slane %v5604, 0
      %v5630 = vperm.slane %v5606, 0
      %v5631 = vperm.slane %v5608, 0
      %v5632 = vperm.slane %v5610, 0
      %v5633 = vperm.slane %v5611, 0
      %v5634 = vperm.slane %v5613, 0
      %v5635 = vperm.slane %v5615, 0
      %v5636 = vperm.slane %v5617, 0
      %v5637 = vperm.slane %v5618, 0
      %v5638 = vperm.slane %v5620, 0
      %v5639 = vperm.slane %v5622, 0
      %v5640 = vperm.slane %v5624, 0
      %5641 = vst [vmem:[#allocation1] ss:$4 sm:$0xff] %v5625
      %s5642 = scalar_lea.vmem [#allocation1], 1
      %5643 = vst [vmem:[%s5642] ss:$4 sm:$0xff] %v5626
      %s5644 = scalar_lea.vmem [#allocation1], 2
      %5645 = vst [vmem:[%s5644] ss:$4 sm:$0xff] %v5627
      %s5646 = scalar_lea.vmem [#allocation1], 3
      %5647 = vst [vmem:[%s5646] ss:$4 sm:$0xff] %v5628
      %v5648 = vld.sshfl [vmem:[#allocation1] sm:$0xff pattern:$0x73625140]
      %s5649 = scalar_lea.vmem [#allocation1], 32
      %5650 = vst [vmem:[%s5649] ss:$4 sm:$0xff] %v5625
      %s5651 = scalar_lea.vmem [#allocation1], 33
      %5652 = vst [vmem:[%s5651] ss:$4 sm:$0xff] %v5626
      %s5653 = scalar_lea.vmem [#allocation1], 34
      %5654 = vst [vmem:[%s5653] ss:$4 sm:$0xff] %v5627
      %s5655 = scalar_lea.vmem [#allocation1], 35
      %5656 = vst [vmem:[%s5655] ss:$4 sm:$0xff] %v5628
      %v5657 = vld.sshfl [vmem:[#allocation1 + $0x20] sm:$0xff pattern:$0x73625140]
      %5658 = vst [vmem:[#allocation1] ss:$4 sm:$0xff] %v5629
      %5659 = vst [vmem:[%s5642] ss:$4 sm:$0xff] %v5630
      %5660 = vst [vmem:[%s5644] ss:$4 sm:$0xff] %v5631
      %5661 = vst [vmem:[%s5646] ss:$4 sm:$0xff] %v5632
      %v5662 = vld.sshfl [vmem:[#allocation1] sm:$0xff pattern:$0x73625140]
      %5663 = vst [vmem:[%s5649] ss:$4 sm:$0xff] %v5629
      %5664 = vst [vmem:[%s5651] ss:$4 sm:$0xff] %v5630
      %5665 = vst [vmem:[%s5653] ss:$4 sm:$0xff] %v5631
      %5666 = vst [vmem:[%s5655] ss:$4 sm:$0xff] %v5632
      %v5667 = vld.sshfl [vmem:[#allocation1 + $0x20] sm:$0xff pattern:$0x73625140]
      %5668 = vst [vmem:[#allocation1] ss:$4 sm:$0xff] %v5633
      %5669 = vst [vmem:[%s5642] ss:$4 sm:$0xff] %v5634
      %5670 = vst [vmem:[%s5644] ss:$4 sm:$0xff] %v5635
      %5671 = vst [vmem:[%s5646] ss:$4 sm:$0xff] %v5636
      %v5672 = vld.sshfl [vmem:[#allocation1] sm:$0xff pattern:$0x73625140]
      %5673 = vst [vmem:[%s5649] ss:$4 sm:$0xff] %v5633
      %5674 = vst [vmem:[%s5651] ss:$4 sm:$0xff] %v5634
      %5675 = vst [vmem:[%s5653] ss:$4 sm:$0xff] %v5635
      %5676 = vst [vmem:[%s5655] ss:$4 sm:$0xff] %v5636
      %v5677 = vld.sshfl [vmem:[#allocation1 + $0x20] sm:$0xff pattern:$0x73625140]
      %5678 = vst [vmem:[#allocation1] ss:$4 sm:$0xff] %v5637
      %5679 = vst [vmem:[%s5642] ss:$4 sm:$0xff] %v5638
      %5680 = vst [vmem:[%s5644] ss:$4 sm:$0xff] %v5639
      %5681 = vst [vmem:[%s5646] ss:$4 sm:$0xff] %v5640
      %v5682 = vld.sshfl [vmem:[#allocation1] sm:$0xff pattern:$0x73625140]
      %5683 = vst [vmem:[%s5649] ss:$4 sm:$0xff] %v5637
      %5684 = vst [vmem:[%s5651] ss:$4 sm:$0xff] %v5638
      %5685 = vst [vmem:[%s5653] ss:$4 sm:$0xff] %v5639
      %5686 = vst [vmem:[%s5655] ss:$4 sm:$0xff] %v5640
      %v5687 = vld.sshfl [vmem:[#allocation1 + $0x20] sm:$0xff pattern:$0x73625140]
      %v5696 = vadd.f32 %v4131, %v5648
      %v5697 = vadd.f32 %v4132, %v5657
      %v5698 = vadd.f32 %v4133, %v5662
      %v5699 = vadd.f32 %v4134, %v5667
      %v5700 = vadd.f32 %v4135, %v5672
      %v5701 = vadd.f32 %v4136, %v5677
      %v5702 = vadd.f32 %v4137, %v5682
      %v5703 = vadd.f32 %v4138, %v5687
      %v5704 = vld [vmem:[%s1 + $0x6] sm:$0x1]
      %v5705 = vperm.slane %v5704, 0
      %v5706 = vmul.f32 %v5696, %v5705
      %v5707 = vmul.f32 %v5697, %v5705
      %v5708 = vmul.f32 %v5698, %v5705
      %v5709 = vmul.f32 %v5699, %v5705
      %v5710 = vmul.f32 %v5700, %v5705
      %v5711 = vmul.f32 %v5701, %v5705
      %v5712 = vmul.f32 %v5702, %v5705
      %v5713 = vmul.f32 %v5703, %v5705
      %v5714 = vld [vmem:[%s2 + $0x6] sm:$0x1]
      %v5715 = vperm.slane %v5714, 0
      %v5716 = vadd.f32 %v5706, %v5715
      %v5717 = vadd.f32 %v5707, %v5715
      %v5718 = vadd.f32 %v5708, %v5715
      %v5719 = vadd.f32 %v5709, %v5715
      %v5720 = vadd.f32 %v5710, %v5715
      %v5721 = vadd.f32 %v5711, %v5715
      %v5722 = vadd.f32 %v5712, %v5715
      %v5723 = vadd.f32 %v5713, %v5715
      %v5724 = vmax.f32 %v5716, 0.0
      %v5725 = vmax.f32 %v5717, 0.0
      %v5726 = vmax.f32 %v5718, 0.0
      %v5727 = vmax.f32 %v5719, 0.0
      %v5728 = vmax.f32 %v5720, 0.0
      %v5729 = vmax.f32 %v5721, 0.0
      %v5730 = vmax.f32 %v5722, 0.0
      %v5731 = vmax.f32 %v5723, 0.0
      %s5732 = scalar_lea.vmem %s3, 48
      %v5733 = vld [vmem:[%s5732] sm:$0xff]
      %v5734 = vld [vmem:[%s4 + $0x6] sm:$0x1]
      %v5735 = vperm.slane %v5734, 0
      %v5737 = vsel %vm469, %v5724, 0
      %v5740 = vsel %vm469, %v5725, 0
      %v5743 = vsel %vm469, %v5726, 0
      %v5746 = vsel %vm469, %v5727, 0
      %v5749 = vsel %vm469, %v5728, 0
      %v5752 = vsel %vm469, %v5729, 0
      %v5755 = vsel %vm469, %v5730, 0
      %v5758 = vsel %vm469, %v5731, 0
      %5760 = vmatpush.msra.mxu0 0.0
      %5761 = vmatpush.msra.mxu0 0.0
      %5762 = vmatpush.msra.mxu0 0.0
      %5763 = vmatpush.msra.mxu0 0.0
      %5764 = vmatpush.msra.mxu0 0.0
      %5765 = vmatpush.msra.mxu0 0.0
      %5766 = vmatpush.msra.mxu0 0.0
      %5767 = vmatpush.msra.mxu0 0.0
      %5768 = vmatpush.msra.mxu0 0.0
      %5769 = vmatpush.msra.mxu0 0.0
      %5770 = vmatpush.msra.mxu0 0.0
      %5771 = vmatpush.msra.mxu0 0.0
      %5772 = vmatpush.msra.mxu0 0.0
      %5773 = vmatpush.msra.mxu0 0.0
      %5774 = vmatpush.msra.mxu0 0.0
      %5775 = vmatpush.msra.mxu0 %v5733
      %5776 = vmatmul.f32.gmra.mxu0 %v5737
      %v5777 = vpop.f32.mrf.mxu0
      %v5778 = vadd.f32 %v5735, %v5777
      %5779 = vmatmul.f32.gmra.mxu0 %v5740
      %v5780 = vpop.f32.mrf.mxu0
      %v5781 = vadd.f32 %v5735, %v5780
      %5782 = vmatmul.f32.gmra.mxu0 %v5743
      %v5783 = vpop.f32.mrf.mxu0
      %v5784 = vadd.f32 %v5735, %v5783
      %5785 = vmatmul.f32.gmra.mxu0 %v5746
      %v5786 = vpop.f32.mrf.mxu0
      %v5787 = vadd.f32 %v5735, %v5786
      %5788 = vmatmul.f32.gmra.mxu0 %v5749
      %v5789 = vpop.f32.mrf.mxu0
      %v5790 = vadd.f32 %v5735, %v5789
      %5791 = vmatmul.f32.gmra.mxu0 %v5752
      %v5792 = vpop.f32.mrf.mxu0
      %v5793 = vadd.f32 %v5735, %v5792
      %5794 = vmatmul.f32.gmra.mxu0 %v5755
      %v5795 = vpop.f32.mrf.mxu0
      %v5796 = vadd.f32 %v5735, %v5795
      %5797 = vmatmul.f32.gmra.mxu0 %v5758
      %v5798 = vpop.f32.mrf.mxu0
      %v5799 = vadd.f32 %v5735, %v5798
      %5800 = vdwg.mxu0
      %v5801 = vmax.f32 %v5778, 0.0
      %v5802 = vmax.f32 %v5781, 0.0
      %v5803 = vmax.f32 %v5784, 0.0
      %v5804 = vmax.f32 %v5787, 0.0
      %v5805 = vmax.f32 %v5790, 0.0
      %v5806 = vmax.f32 %v5793, 0.0
      %v5807 = vmax.f32 %v5796, 0.0
      %v5808 = vmax.f32 %v5799, 0.0
      %s5809 = scalar_lea.vmem %s5, 288
      %v5810 = vld [vmem:[%s5809] sm:$0xff]
      %v5811 = vld [vmem:[%s5809 + $0x8] sm:$0xf]
      %v5812 = vld [vmem:[%s5809 + $0x10] sm:$0xff]
      %v5813 = vld [vmem:[%s5809 + $0x18] sm:$0xf]
      %v5814 = vld [vmem:[%s5809 + $0x20] sm:$0xff]
      %v5815 = vld [vmem:[%s5809 + $0x28] sm:$0xf]
      %v5816 = vld [vmem:[%s6 + $0x6] sm:$0x1]
      %5825 = vrot.lane.b32.xlu0 %v5801, 4
      %v5826 = vpop.permute.xlu0 %5825
      %5827 = vrot.lane.b32.xlu0 %v5802, 4
      %v5828 = vpop.permute.xlu0 %5827
      %5829 = vrot.lane.b32.xlu0 %v5803, 4
      %v5830 = vpop.permute.xlu0 %5829
      %5831 = vrot.lane.b32.xlu0 %v5804, 4
      %v5832 = vpop.permute.xlu0 %5831
      %5833 = vrot.lane.b32.xlu0 %v5805, 4
      %v5834 = vpop.permute.xlu0 %5833
      %5835 = vrot.lane.b32.xlu0 %v5806, 4
      %v5836 = vpop.permute.xlu0 %5835
      %5837 = vrot.lane.b32.xlu0 %v5807, 4
      %v5838 = vpop.permute.xlu0 %5837
      %5839 = vrot.lane.b32.xlu0 %v5808, 4
      %v5840 = vpop.permute.xlu0 %5839
      %5849 = vrot.lane.b32.xlu0 %v5802, 8
      %v5850 = vpop.permute.xlu0 %5849
      %5851 = vrot.lane.b32.xlu0 %v5803, 8
      %v5852 = vpop.permute.xlu0 %5851
      %5853 = vrot.lane.b32.xlu0 %v5804, 8
      %v5854 = vpop.permute.xlu0 %5853
      %5855 = vrot.lane.b32.xlu0 %v5805, 8
      %v5856 = vpop.permute.xlu0 %5855
      %5857 = vrot.lane.b32.xlu0 %v5806, 8
      %v5858 = vpop.permute.xlu0 %5857
      %5859 = vrot.lane.b32.xlu0 %v5807, 8
      %v5860 = vpop.permute.xlu0 %5859
      %5861 = vrot.lane.b32.xlu0 %v5808, 8
      %v5862 = vpop.permute.xlu0 %5861
      %v5870 = vsel %vm941, 0.0, %v5826
      %v5871 = vsel %vm941, %v5801, %v5828
      %v5872 = vsel %vm941, %v5802, %v5830
      %v5873 = vsel %vm941, %v5803, %v5832
      %v5874 = vsel %vm941, %v5804, %v5834
      %v5875 = vsel %vm941, %v5805, %v5836
      %v5876 = vsel %vm941, %v5806, %v5838
      %v5877 = vsel %vm941, %v5807, %v5840
      %v5878 = vsel %vm469, %v5870, %v5850
      %v5879 = vsel %vm469, %v5871, %v5852
      %v5880 = vsel %vm469, %v5872, %v5854
      %v5881 = vsel %vm469, %v5873, %v5856
      %v5882 = vsel %vm469, %v5874, %v5858
      %v5883 = vsel %vm469, %v5875, %v5860
      %v5884 = vsel %vm469, %v5876, %v5862
      %v5885 = vsel %vm469, %v5877, %v909
      %v5887 = vsel %vm1006, %v5878, 0
      %v5890 = vsel %vm1006, %v5879, 0
      %v5893 = vsel %vm1006, %v5880, 0
      %v5896 = vsel %vm1006, %v5881, 0
      %v5899 = vsel %vm1006, %v5882, 0
      %v5902 = vsel %vm1006, %v5883, 0
      %v5905 = vsel %vm1006, %v5884, 0
      %v5908 = vsel %vm1006, %v5885, 0
      %v5911 = vsel %vm1103, %v5811, 0
      %5913 = vmatpush.msra.mxu0 0.0
      %5914 = vmatpush.msra.mxu0 0.0
      %5915 = vmatpush.msra.mxu0 0.0
      %5916 = vmatpush.msra.mxu0 0.0
      %5917 = vmatpush.msra.mxu0 0.0
      %5918 = vmatpush.msra.mxu0 0.0
      %5919 = vmatpush.msra.mxu0 0.0
      %5920 = vmatpush.msra.mxu0 0.0
      %5921 = vmatpush.msra.mxu0 0.0
      %5922 = vmatpush.msra.mxu0 0.0
      %5923 = vmatpush.msra.mxu0 0.0
      %5924 = vmatpush.msra.mxu0 0.0
      %5925 = vmatpush.msra.mxu0 0.0
      %5926 = vmatpush.msra.mxu0 0.0
      %5927 = vmatpush.msra.mxu0 %v5911
      %5928 = vmatpush.msra.mxu0 %v5810
      %5929 = vmatmul.f32.gmra.mxu0 %v5887
      %v5930 = vpop.f32.mrf.mxu0
      %v5931 = vadd.f32 0.0, %v5930
      %5932 = vmatmul.f32.gmra.mxu0 %v5890
      %v5933 = vpop.f32.mrf.mxu0
      %v5934 = vadd.f32 0.0, %v5933
      %5935 = vmatmul.f32.gmra.mxu0 %v5893
      %v5936 = vpop.f32.mrf.mxu0
      %v5937 = vadd.f32 0.0, %v5936
      %5938 = vmatmul.f32.gmra.mxu0 %v5896
      %v5939 = vpop.f32.mrf.mxu0
      %v5940 = vadd.f32 0.0, %v5939
      %5941 = vmatmul.f32.gmra.mxu0 %v5899
      %v5942 = vpop.f32.mrf.mxu0
      %v5943 = vadd.f32 0.0, %v5942
      %5944 = vmatmul.f32.gmra.mxu0 %v5902
      %v5945 = vpop.f32.mrf.mxu0
      %v5946 = vadd.f32 0.0, %v5945
      %5947 = vmatmul.f32.gmra.mxu0 %v5905
      %v5948 = vpop.f32.mrf.mxu0
      %v5949 = vadd.f32 0.0, %v5948
      %5950 = vmatmul.f32.gmra.mxu0 %v5908
      %v5951 = vpop.f32.mrf.mxu0
      %v5952 = vadd.f32 0.0, %v5951
      %5953 = vdwg.mxu0
      %v5955 = vsel %vm1103, %v5815, 0
      %5957 = vmatpush.msra.mxu0 0.0
      %5958 = vmatpush.msra.mxu0 0.0
      %5959 = vmatpush.msra.mxu0 0.0
      %5960 = vmatpush.msra.mxu0 0.0
      %5961 = vmatpush.msra.mxu0 0.0
      %5962 = vmatpush.msra.mxu0 0.0
      %5963 = vmatpush.msra.mxu0 0.0
      %5964 = vmatpush.msra.mxu0 0.0
      %5965 = vmatpush.msra.mxu0 0.0
      %5966 = vmatpush.msra.mxu0 0.0
      %5967 = vmatpush.msra.mxu0 0.0
      %5968 = vmatpush.msra.mxu0 0.0
      %5969 = vmatpush.msra.mxu0 0.0
      %5970 = vmatpush.msra.mxu0 0.0
      %5971 = vmatpush.msra.mxu0 %v5955
      %5972 = vmatpush.msra.mxu0 %v5814
      %5973 = vmatmul.f32.gmra.mxu0 %v5887
      %v5974 = vpop.f32.mrf.mxu0
      %v5975 = vadd.f32 0.0, %v5974
      %5976 = vmatmul.f32.gmra.mxu0 %v5890
      %v5977 = vpop.f32.mrf.mxu0
      %v5978 = vadd.f32 0.0, %v5977
      %5979 = vmatmul.f32.gmra.mxu0 %v5893
      %v5980 = vpop.f32.mrf.mxu0
      %v5981 = vadd.f32 0.0, %v5980
      %5982 = vmatmul.f32.gmra.mxu0 %v5896
      %v5983 = vpop.f32.mrf.mxu0
      %v5984 = vadd.f32 0.0, %v5983
      %5985 = vmatmul.f32.gmra.mxu0 %v5899
      %v5986 = vpop.f32.mrf.mxu0
      %v5987 = vadd.f32 0.0, %v5986
      %5988 = vmatmul.f32.gmra.mxu0 %v5902
      %v5989 = vpop.f32.mrf.mxu0
      %v5990 = vadd.f32 0.0, %v5989
      %5991 = vmatmul.f32.gmra.mxu0 %v5905
      %v5992 = vpop.f32.mrf.mxu0
      %v5993 = vadd.f32 0.0, %v5992
      %5994 = vmatmul.f32.gmra.mxu0 %v5908
      %v5995 = vpop.f32.mrf.mxu0
      %v5996 = vadd.f32 0.0, %v5995
      %5997 = vdwg.mxu0
      %v6006 = vrot.slane %v5931, 7
      %v6007 = vrot.slane %v5934, 7
      %v6008 = vsel %vm1368, %v6006, %v6007
      %v6009 = vrot.slane %v5937, 7
      %v6010 = vsel %vm1368, %v6007, %v6009
      %v6011 = vrot.slane %v5940, 7
      %v6012 = vsel %vm1368, %v6009, %v6011
      %v6013 = vrot.slane %v5943, 7
      %v6014 = vsel %vm1368, %v6011, %v6013
      %v6015 = vrot.slane %v5946, 7
      %v6016 = vsel %vm1368, %v6013, %v6015
      %v6017 = vrot.slane %v5949, 7
      %v6018 = vsel %vm1368, %v6015, %v6017
      %v6019 = vrot.slane %v5952, 7
      %v6020 = vsel %vm1368, %v6017, %v6019
      %v6029 = vsel %vm1368, 0.0, %v6006
      %v6038 = vrot.slane %v5975, 1
      %v6039 = vrot.slane %v5978, 1
      %v6040 = vsel %vm1497, %v6038, %v6039
      %v6041 = vrot.slane %v5981, 1
      %v6042 = vsel %vm1497, %v6039, %v6041
      %v6043 = vrot.slane %v5984, 1
      %v6044 = vsel %vm1497, %v6041, %v6043
      %v6045 = vrot.slane %v5987, 1
      %v6046 = vsel %vm1497, %v6043, %v6045
      %v6047 = vrot.slane %v5990, 1
      %v6048 = vsel %vm1497, %v6045, %v6047
      %v6049 = vrot.slane %v5993, 1
      %v6050 = vsel %vm1497, %v6047, %v6049
      %v6051 = vrot.slane %v5996, 1
      %v6052 = vsel %vm1497, %v6049, %v6051
      %v6061 = vsel %vm1497, %v6051, 0.0
      %v6062 = vsel %vm1601, 0.0, %v6029
      %v6063 = vsel %vm1601, 0.0, %v6008
      %v6064 = vsel %vm1601, 0.0, %v6010
      %v6065 = vsel %vm1601, 0.0, %v6012
      %v6066 = vsel %vm1601, 0.0, %v6014
      %v6067 = vsel %vm1601, 0.0, %v6016
      %v6068 = vsel %vm1601, 0.0, %v6018
      %v6069 = vsel %vm1601, 0.0, %v6020
      %v6071 = vsel %vm1103, %v5813, 0
      %6073 = vmatpush.msra.mxu0 0.0
      %6074 = vmatpush.msra.mxu0 0.0
      %6075 = vmatpush.msra.mxu0 0.0
      %6076 = vmatpush.msra.mxu0 0.0
      %6077 = vmatpush.msra.mxu0 0.0
      %6078 = vmatpush.msra.mxu0 0.0
      %6079 = vmatpush.msra.mxu0 0.0
      %6080 = vmatpush.msra.mxu0 0.0
      %6081 = vmatpush.msra.mxu0 0.0
      %6082 = vmatpush.msra.mxu0 0.0
      %6083 = vmatpush.msra.mxu0 0.0
      %6084 = vmatpush.msra.mxu0 0.0
      %6085 = vmatpush.msra.mxu0 0.0
      %6086 = vmatpush.msra.mxu0 0.0
      %6087 = vmatpush.msra.mxu0 %v6071
      %6088 = vmatpush.msra.mxu0 %v5812
      %6089 = vmatmul.f32.gmra.mxu0 %v5887
      %v6090 = vpop.f32.mrf.mxu0
      %v6091 = vadd.f32 %v6062, %v6090
      %6092 = vmatmul.f32.gmra.mxu0 %v5890
      %v6093 = vpop.f32.mrf.mxu0
      %v6094 = vadd.f32 %v6063, %v6093
      %6095 = vmatmul.f32.gmra.mxu0 %v5893
      %v6096 = vpop.f32.mrf.mxu0
      %v6097 = vadd.f32 %v6064, %v6096
      %6098 = vmatmul.f32.gmra.mxu0 %v5896
      %v6099 = vpop.f32.mrf.mxu0
      %v6100 = vadd.f32 %v6065, %v6099
      %6101 = vmatmul.f32.gmra.mxu0 %v5899
      %v6102 = vpop.f32.mrf.mxu0
      %v6103 = vadd.f32 %v6066, %v6102
      %6104 = vmatmul.f32.gmra.mxu0 %v5902
      %v6105 = vpop.f32.mrf.mxu0
      %v6106 = vadd.f32 %v6067, %v6105
      %6107 = vmatmul.f32.gmra.mxu0 %v5905
      %v6108 = vpop.f32.mrf.mxu0
      %v6109 = vadd.f32 %v6068, %v6108
      %6110 = vmatmul.f32.gmra.mxu0 %v5908
      %v6111 = vpop.f32.mrf.mxu0
      %v6112 = vadd.f32 %v6069, %v6111
      %6113 = vdwg.mxu0
      %v6114 = vsel %vm3313, 0.0, %v6040
      %v6115 = vsel %vm3313, 0.0, %v6042
      %v6116 = vsel %vm3313, 0.0, %v6044
      %v6117 = vsel %vm3313, 0.0, %v6046
      %v6118 = vsel %vm3313, 0.0, %v6048
      %v6119 = vsel %vm3313, 0.0, %v6050
      %v6120 = vsel %vm3313, 0.0, %v6052
      %v6121 = vsel %vm3313, 0.0, %v6061
      %v6122 = vadd.f32 %v6091, %v6114
      %v6123 = vadd.f32 %v6094, %v6115
      %v6124 = vadd.f32 %v6097, %v6116
      %v6125 = vadd.f32 %v6100, %v6117
      %v6126 = vadd.f32 %v6103, %v6118
      %v6127 = vadd.f32 %v6106, %v6119
      %v6128 = vadd.f32 %v6109, %v6120
      %v6129 = vadd.f32 %v6112, %v6121
      %v6130 = vperm.slane %v5816, 0
      %v6131 = vadd.f32 %v6122, %v6130
      %v6132 = vadd.f32 %v6123, %v6130
      %v6133 = vadd.f32 %v6124, %v6130
      %v6134 = vadd.f32 %v6125, %v6130
      %v6135 = vadd.f32 %v6126, %v6130
      %v6136 = vadd.f32 %v6127, %v6130
      %v6137 = vadd.f32 %v6128, %v6130
      %v6138 = vadd.f32 %v6129, %v6130
      %v6139 = vmax.f32 %v6131, 0.0
      %v6140 = vmax.f32 %v6132, 0.0
      %v6141 = vmax.f32 %v6133, 0.0
      %v6142 = vmax.f32 %v6134, 0.0
      %v6143 = vmax.f32 %v6135, 0.0
      %v6144 = vmax.f32 %v6136, 0.0
      %v6145 = vmax.f32 %v6137, 0.0
      %v6146 = vmax.f32 %v6138, 0.0
      %s6147 = scalar_lea.vmem %s7, 24
      %v6148 = vld [vmem:[%s6147] sm:$0xf]
      %v6149 = vld [vmem:[%s8 + $0x6] sm:$0x1]
      %v6150 = vperm.slane %v6149, 0
      %v6152 = vsel %vm941, %v6139, 0
      %v6155 = vsel %vm941, %v6140, 0
      %v6158 = vsel %vm941, %v6141, 0
      %v6161 = vsel %vm941, %v6142, 0
      %v6164 = vsel %vm941, %v6143, 0
      %v6167 = vsel %vm941, %v6144, 0
      %v6170 = vsel %vm941, %v6145, 0
      %v6173 = vsel %vm941, %v6146, 0
      %v6176 = vsel %vm1103, %v6148, 0
      %6178 = vmatpush.msra.mxu0 0.0
      %6179 = vmatpush.msra.mxu0 0.0
      %6180 = vmatpush.msra.mxu0 0.0
      %6181 = vmatpush.msra.mxu0 0.0
      %6182 = vmatpush.msra.mxu0 0.0
      %6183 = vmatpush.msra.mxu0 0.0
      %6184 = vmatpush.msra.mxu0 0.0
      %6185 = vmatpush.msra.mxu0 0.0
      %6186 = vmatpush.msra.mxu0 0.0
      %6187 = vmatpush.msra.mxu0 0.0
      %6188 = vmatpush.msra.mxu0 0.0
      %6189 = vmatpush.msra.mxu0 0.0
      %6190 = vmatpush.msra.mxu0 0.0
      %6191 = vmatpush.msra.mxu0 0.0
      %6192 = vmatpush.msra.mxu0 0.0
      %6193 = vmatpush.msra.mxu0 %v6176
      %6194 = vmatmul.f32.gmra.mxu0 %v6152
      %v6195 = vpop.f32.mrf.mxu0
      %v6196 = vadd.f32 %v6150, %v6195
      %6197 = vmatmul.f32.gmra.mxu0 %v6155
      %v6198 = vpop.f32.mrf.mxu0
      %v6199 = vadd.f32 %v6150, %v6198
      %6200 = vmatmul.f32.gmra.mxu0 %v6158
      %v6201 = vpop.f32.mrf.mxu0
      %v6202 = vadd.f32 %v6150, %v6201
      %6203 = vmatmul.f32.gmra.mxu0 %v6161
      %v6204 = vpop.f32.mrf.mxu0
      %v6205 = vadd.f32 %v6150, %v6204
      %6206 = vmatmul.f32.gmra.mxu0 %v6164
      %v6207 = vpop.f32.mrf.mxu0
      %v6208 = vadd.f32 %v6150, %v6207
      %6209 = vmatmul.f32.gmra.mxu0 %v6167
      %v6210 = vpop.f32.mrf.mxu0
      %v6211 = vadd.f32 %v6150, %v6210
      %6212 = vmatmul.f32.gmra.mxu0 %v6170
      %v6213 = vpop.f32.mrf.mxu0
      %v6214 = vadd.f32 %v6150, %v6213
      %6215 = vmatmul.f32.gmra.mxu0 %v6173
      %v6216 = vpop.f32.mrf.mxu0
      %v6217 = vadd.f32 %v6150, %v6216
      %6218 = vdwg.mxu0
      %v6219 = vadd.f32 %v6196, %v5696
      %v6220 = vadd.f32 %v6199, %v5697
      %v6221 = vadd.f32 %v6202, %v5698
      %v6222 = vadd.f32 %v6205, %v5699
      %v6223 = vadd.f32 %v6208, %v5700
      %v6224 = vadd.f32 %v6211, %v5701
      %v6225 = vadd.f32 %v6214, %v5702
      %v6226 = vadd.f32 %v6217, %v5703
      %v6235 = vrot.slane %v6219, 1
      %v6236 = vrot.slane %v6219, 2
      %v6237 = vrot.slane %v6219, 3
      %v6238 = vrot.slane %v6219, 4
      %v6239 = vrot.slane %v6219, 5
      %v6240 = vrot.slane %v6219, 6
      %v6241 = vrot.slane %v6219, 7
      %v6242 = vrot.slane %v6220, 1
      %v6243 = vrot.slane %v6220, 2
      %v6244 = vrot.slane %v6220, 3
      %v6245 = vrot.slane %v6220, 4
      %v6246 = vrot.slane %v6220, 5
      %v6247 = vrot.slane %v6220, 6
      %v6248 = vrot.slane %v6220, 7
      %v6249 = vrot.slane %v6221, 1
      %v6250 = vrot.slane %v6221, 2
      %v6251 = vrot.slane %v6221, 3
      %v6252 = vrot.slane %v6221, 4
      %v6253 = vrot.slane %v6221, 5
      %v6254 = vrot.slane %v6221, 6
      %v6255 = vrot.slane %v6221, 7
      %v6256 = vrot.slane %v6222, 1
      %v6257 = vrot.slane %v6222, 2
      %v6258 = vrot.slane %v6222, 3
      %v6259 = vrot.slane %v6222, 4
      %v6260 = vrot.slane %v6222, 5
      %v6261 = vrot.slane %v6222, 6
      %v6262 = vrot.slane %v6222, 7
      %v6263 = vrot.slane %v6223, 1
      %v6264 = vrot.slane %v6223, 2
      %v6265 = vrot.slane %v6223, 3
      %v6266 = vrot.slane %v6223, 4
      %v6267 = vrot.slane %v6223, 5
      %v6268 = vrot.slane %v6223, 6
      %v6269 = vrot.slane %v6223, 7
      %v6270 = vrot.slane %v6224, 1
      %v6271 = vrot.slane %v6224, 2
      %v6272 = vrot.slane %v6224, 3
      %v6273 = vrot.slane %v6224, 4
      %v6274 = vrot.slane %v6224, 5
      %v6275 = vrot.slane %v6224, 6
      %v6276 = vrot.slane %v6224, 7
      %v6277 = vrot.slane %v6225, 1
      %v6278 = vrot.slane %v6225, 2
      %v6279 = vrot.slane %v6225, 3
      %v6280 = vrot.slane %v6225, 4
      %v6281 = vrot.slane %v6225, 5
      %v6282 = vrot.slane %v6225, 6
      %v6283 = vrot.slane %v6225, 7
      %v6284 = vrot.slane %v6226, 1
      %v6285 = vrot.slane %v6226, 2
      %v6286 = vrot.slane %v6226, 3
      %v6287 = vrot.slane %v6226, 4
      %v6288 = vrot.slane %v6226, 5
      %v6289 = vrot.slane %v6226, 6
      %v6290 = vrot.slane %v6226, 7
      %v6291 = vperm.slane %v6219, 0
      %v6292 = vperm.slane %v6235, 0
      %v6293 = vperm.slane %v6236, 0
      %v6294 = vperm.slane %v6237, 0
      %v6295 = vperm.slane %v6238, 0
      %v6296 = vperm.slane %v6239, 0
      %v6297 = vperm.slane %v6240, 0
      %v6298 = vperm.slane %v6241, 0
      %v6299 = vperm.slane %v6220, 0
      %v6300 = vperm.slane %v6242, 0
      %v6301 = vperm.slane %v6243, 0
      %v6302 = vperm.slane %v6244, 0
      %v6303 = vperm.slane %v6245, 0
      %v6304 = vperm.slane %v6246, 0
      %v6305 = vperm.slane %v6247, 0
      %v6306 = vperm.slane %v6248, 0
      %v6307 = vperm.slane %v6221, 0
      %v6308 = vperm.slane %v6249, 0
      %v6309 = vperm.slane %v6250, 0
      %v6310 = vperm.slane %v6251, 0
      %v6311 = vperm.slane %v6252, 0
      %v6312 = vperm.slane %v6253, 0
      %v6313 = vperm.slane %v6254, 0
      %v6314 = vperm.slane %v6255, 0
      %v6315 = vperm.slane %v6222, 0
      %v6316 = vperm.slane %v6256, 0
      %v6317 = vperm.slane %v6257, 0
      %v6318 = vperm.slane %v6258, 0
      %v6319 = vperm.slane %v6259, 0
      %v6320 = vperm.slane %v6260, 0
      %v6321 = vperm.slane %v6261, 0
      %v6322 = vperm.slane %v6262, 0
      %v6323 = vperm.slane %v6223, 0
      %v6324 = vperm.slane %v6263, 0
      %v6325 = vperm.slane %v6264, 0
      %v6326 = vperm.slane %v6265, 0
      %v6327 = vperm.slane %v6266, 0
      %v6328 = vperm.slane %v6267, 0
      %v6329 = vperm.slane %v6268, 0
      %v6330 = vperm.slane %v6269, 0
      %v6331 = vperm.slane %v6224, 0
      %v6332 = vperm.slane %v6270, 0
      %v6333 = vperm.slane %v6271, 0
      %v6334 = vperm.slane %v6272, 0
      %v6335 = vperm.slane %v6273, 0
      %v6336 = vperm.slane %v6274, 0
      %v6337 = vperm.slane %v6275, 0
      %v6338 = vperm.slane %v6276, 0
      %v6339 = vperm.slane %v6225, 0
      %v6340 = vperm.slane %v6277, 0
      %v6341 = vperm.slane %v6278, 0
      %v6342 = vperm.slane %v6279, 0
      %v6343 = vperm.slane %v6280, 0
      %v6344 = vperm.slane %v6281, 0
      %v6345 = vperm.slane %v6282, 0
      %v6346 = vperm.slane %v6283, 0
      %v6347 = vperm.slane %v6226, 0
      %v6348 = vperm.slane %v6284, 0
      %v6349 = vperm.slane %v6285, 0
      %v6350 = vperm.slane %v6286, 0
      %v6351 = vperm.slane %v6287, 0
      %v6352 = vperm.slane %v6288, 0
      %v6353 = vperm.slane %v6289, 0
      %v6354 = vperm.slane %v6290, 0
      %6355 = vst [vmem:[#allocation1] ss:$4 sm:$0xff] %v6291
      %s6356 = scalar_lea.vmem [#allocation1], 1
      %6357 = vst [vmem:[%s6356] ss:$4 sm:$0xff] %v6292
      %s6358 = scalar_lea.vmem [#allocation1], 2
      %6359 = vst [vmem:[%s6358] ss:$4 sm:$0xff] %v6293
      %s6360 = scalar_lea.vmem [#allocation1], 3
      %6361 = vst [vmem:[%s6360] ss:$4 sm:$0xff] %v6294
      %s6362 = scalar_lea.vmem [#allocation1], 32
      %6363 = vst [vmem:[%s6362] ss:$4 sm:$0xff] %v6295
      %s6364 = scalar_lea.vmem [#allocation1], 33
      %6365 = vst [vmem:[%s6364] ss:$4 sm:$0xff] %v6296
      %s6366 = scalar_lea.vmem [#allocation1], 34
      %6367 = vst [vmem:[%s6366] ss:$4 sm:$0xff] %v6297
      %s6368 = scalar_lea.vmem [#allocation1], 35
      %6369 = vst [vmem:[%s6368] ss:$4 sm:$0xff] %v6298
      %v6370 = vld.sshfl [vmem:[#allocation1] sm:$0xff pattern:$0x73625140]
      %v6371 = vld.sshfl [vmem:[#allocation1 + $0x20] sm:$0xff pattern:$0x73625140]
      %6372 = vst [vmem:[#allocation1] ss:$4 sm:$0xff] %v6291
      %6373 = vst [vmem:[%s6356] ss:$4 sm:$0xff] %v6292
      %6374 = vst [vmem:[%s6358] ss:$4 sm:$0xff] %v6293
      %6375 = vst [vmem:[%s6360] ss:$4 sm:$0xff] %v6294
      %6376 = vst [vmem:[%s6362] ss:$4 sm:$0xff] %v6295
      %6377 = vst [vmem:[%s6364] ss:$4 sm:$0xff] %v6296
      %6378 = vst [vmem:[%s6366] ss:$4 sm:$0xff] %v6297
      %6379 = vst [vmem:[%s6368] ss:$4 sm:$0xff] %v6298
      %v6380 = vld.sshfl [vmem:[#allocation1] sm:$0xff pattern:$0x73625140]
      %v6381 = vld.sshfl [vmem:[#allocation1 + $0x20] sm:$0xff pattern:$0x73625140]
      %6382 = vst [vmem:[#allocation1] ss:$4 sm:$0xff] %v6299
      %6383 = vst [vmem:[%s6356] ss:$4 sm:$0xff] %v6300
      %6384 = vst [vmem:[%s6358] ss:$4 sm:$0xff] %v6301
      %6385 = vst [vmem:[%s6360] ss:$4 sm:$0xff] %v6302
      %6386 = vst [vmem:[%s6362] ss:$4 sm:$0xff] %v6303
      %6387 = vst [vmem:[%s6364] ss:$4 sm:$0xff] %v6304
      %6388 = vst [vmem:[%s6366] ss:$4 sm:$0xff] %v6305
      %6389 = vst [vmem:[%s6368] ss:$4 sm:$0xff] %v6306
      %v6390 = vld.sshfl [vmem:[#allocation1] sm:$0xff pattern:$0x73625140]
      %v6391 = vld.sshfl [vmem:[#allocation1 + $0x20] sm:$0xff pattern:$0x73625140]
      %6392 = vst [vmem:[#allocation1] ss:$4 sm:$0xff] %v6299
      %6393 = vst [vmem:[%s6356] ss:$4 sm:$0xff] %v6300
      %6394 = vst [vmem:[%s6358] ss:$4 sm:$0xff] %v6301
      %6395 = vst [vmem:[%s6360] ss:$4 sm:$0xff] %v6302
      %6396 = vst [vmem:[%s6362] ss:$4 sm:$0xff] %v6303
      %6397 = vst [vmem:[%s6364] ss:$4 sm:$0xff] %v6304
      %6398 = vst [vmem:[%s6366] ss:$4 sm:$0xff] %v6305
      %6399 = vst [vmem:[%s6368] ss:$4 sm:$0xff] %v6306
      %v6400 = vld.sshfl [vmem:[#allocation1] sm:$0xff pattern:$0x73625140]
      %v6401 = vld.sshfl [vmem:[#allocation1 + $0x20] sm:$0xff pattern:$0x73625140]
      %6402 = vst [vmem:[#allocation1] ss:$4 sm:$0xff] %v6307
      %6403 = vst [vmem:[%s6356] ss:$4 sm:$0xff] %v6308
      %6404 = vst [vmem:[%s6358] ss:$4 sm:$0xff] %v6309
      %6405 = vst [vmem:[%s6360] ss:$4 sm:$0xff] %v6310
      %6406 = vst [vmem:[%s6362] ss:$4 sm:$0xff] %v6311
      %6407 = vst [vmem:[%s6364] ss:$4 sm:$0xff] %v6312
      %6408 = vst [vmem:[%s6366] ss:$4 sm:$0xff] %v6313
      %6409 = vst [vmem:[%s6368] ss:$4 sm:$0xff] %v6314
      %v6410 = vld.sshfl [vmem:[#allocation1] sm:$0xff pattern:$0x73625140]
      %v6411 = vld.sshfl [vmem:[#allocation1 + $0x20] sm:$0xff pattern:$0x73625140]
      %6412 = vst [vmem:[#allocation1] ss:$4 sm:$0xff] %v6307
      %6413 = vst [vmem:[%s6356] ss:$4 sm:$0xff] %v6308
      %6414 = vst [vmem:[%s6358] ss:$4 sm:$0xff] %v6309
      %6415 = vst [vmem:[%s6360] ss:$4 sm:$0xff] %v6310
      %6416 = vst [vmem:[%s6362] ss:$4 sm:$0xff] %v6311
      %6417 = vst [vmem:[%s6364] ss:$4 sm:$0xff] %v6312
      %6418 = vst [vmem:[%s6366] ss:$4 sm:$0xff] %v6313
      %6419 = vst [vmem:[%s6368] ss:$4 sm:$0xff] %v6314
      %v6420 = vld.sshfl [vmem:[#allocation1] sm:$0xff pattern:$0x73625140]
      %v6421 = vld.sshfl [vmem:[#allocation1 + $0x20] sm:$0xff pattern:$0x73625140]
      %6422 = vst [vmem:[#allocation1] ss:$4 sm:$0xff] %v6315
      %6423 = vst [vmem:[%s6356] ss:$4 sm:$0xff] %v6316
      %6424 = vst [vmem:[%s6358] ss:$4 sm:$0xff] %v6317
      %6425 = vst [vmem:[%s6360] ss:$4 sm:$0xff] %v6318
      %6426 = vst [vmem:[%s6362] ss:$4 sm:$0xff] %v6319
      %6427 = vst [vmem:[%s6364] ss:$4 sm:$0xff] %v6320
      %6428 = vst [vmem:[%s6366] ss:$4 sm:$0xff] %v6321
      %6429 = vst [vmem:[%s6368] ss:$4 sm:$0xff] %v6322
      %v6430 = vld.sshfl [vmem:[#allocation1] sm:$0xff pattern:$0x73625140]
      %v6431 = vld.sshfl [vmem:[#allocation1 + $0x20] sm:$0xff pattern:$0x73625140]
      %6432 = vst [vmem:[#allocation1] ss:$4 sm:$0xff] %v6315
      %6433 = vst [vmem:[%s6356] ss:$4 sm:$0xff] %v6316
      %6434 = vst [vmem:[%s6358] ss:$4 sm:$0xff] %v6317
      %6435 = vst [vmem:[%s6360] ss:$4 sm:$0xff] %v6318
      %6436 = vst [vmem:[%s6362] ss:$4 sm:$0xff] %v6319
      %6437 = vst [vmem:[%s6364] ss:$4 sm:$0xff] %v6320
      %6438 = vst [vmem:[%s6366] ss:$4 sm:$0xff] %v6321
      %6439 = vst [vmem:[%s6368] ss:$4 sm:$0xff] %v6322
      %v6440 = vld.sshfl [vmem:[#allocation1] sm:$0xff pattern:$0x73625140]
      %v6441 = vld.sshfl [vmem:[#allocation1 + $0x20] sm:$0xff pattern:$0x73625140]
      %6442 = vst [vmem:[#allocation1] ss:$4 sm:$0xff] %v6323
      %6443 = vst [vmem:[%s6356] ss:$4 sm:$0xff] %v6324
      %6444 = vst [vmem:[%s6358] ss:$4 sm:$0xff] %v6325
      %6445 = vst [vmem:[%s6360] ss:$4 sm:$0xff] %v6326
      %6446 = vst [vmem:[%s6362] ss:$4 sm:$0xff] %v6327
      %6447 = vst [vmem:[%s6364] ss:$4 sm:$0xff] %v6328
      %6448 = vst [vmem:[%s6366] ss:$4 sm:$0xff] %v6329
      %6449 = vst [vmem:[%s6368] ss:$4 sm:$0xff] %v6330
      %v6450 = vld.sshfl [vmem:[#allocation1] sm:$0xff pattern:$0x73625140]
      %v6451 = vld.sshfl [vmem:[#allocation1 + $0x20] sm:$0xff pattern:$0x73625140]
      %6452 = vst [vmem:[#allocation1] ss:$4 sm:$0xff] %v6323
      %6453 = vst [vmem:[%s6356] ss:$4 sm:$0xff] %v6324
      %6454 = vst [vmem:[%s6358] ss:$4 sm:$0xff] %v6325
      %6455 = vst [vmem:[%s6360] ss:$4 sm:$0xff] %v6326
      %6456 = vst [vmem:[%s6362] ss:$4 sm:$0xff] %v6327
      %6457 = vst [vmem:[%s6364] ss:$4 sm:$0xff] %v6328
      %6458 = vst [vmem:[%s6366] ss:$4 sm:$0xff] %v6329
      %6459 = vst [vmem:[%s6368] ss:$4 sm:$0xff] %v6330
      %v6460 = vld.sshfl [vmem:[#allocation1] sm:$0xff pattern:$0x73625140]
      %v6461 = vld.sshfl [vmem:[#allocation1 + $0x20] sm:$0xff pattern:$0x73625140]
      %6462 = vst [vmem:[#allocation1] ss:$4 sm:$0xff] %v6331
      %6463 = vst [vmem:[%s6356] ss:$4 sm:$0xff] %v6332
      %6464 = vst [vmem:[%s6358] ss:$4 sm:$0xff] %v6333
      %6465 = vst [vmem:[%s6360] ss:$4 sm:$0xff] %v6334
      %6466 = vst [vmem:[%s6362] ss:$4 sm:$0xff] %v6335
      %6467 = vst [vmem:[%s6364] ss:$4 sm:$0xff] %v6336
      %6468 = vst [vmem:[%s6366] ss:$4 sm:$0xff] %v6337
      %6469 = vst [vmem:[%s6368] ss:$4 sm:$0xff] %v6338
      %v6470 = vld.sshfl [vmem:[#allocation1] sm:$0xff pattern:$0x73625140]
      %v6471 = vld.sshfl [vmem:[#allocation1 + $0x20] sm:$0xff pattern:$0x73625140]
      %6472 = vst [vmem:[#allocation1] ss:$4 sm:$0xff] %v6331
      %6473 = vst [vmem:[%s6356] ss:$4 sm:$0xff] %v6332
      %6474 = vst [vmem:[%s6358] ss:$4 sm:$0xff] %v6333
      %6475 = vst [vmem:[%s6360] ss:$4 sm:$0xff] %v6334
      %6476 = vst [vmem:[%s6362] ss:$4 sm:$0xff] %v6335
      %6477 = vst [vmem:[%s6364] ss:$4 sm:$0xff] %v6336
      %6478 = vst [vmem:[%s6366] ss:$4 sm:$0xff] %v6337
      %6479 = vst [vmem:[%s6368] ss:$4 sm:$0xff] %v6338
      %v6480 = vld.sshfl [vmem:[#allocation1] sm:$0xff pattern:$0x73625140]
      %v6481 = vld.sshfl [vmem:[#allocation1 + $0x20] sm:$0xff pattern:$0x73625140]
      %6482 = vst [vmem:[#allocation1] ss:$4 sm:$0xff] %v6339
      %6483 = vst [vmem:[%s6356] ss:$4 sm:$0xff] %v6340
      %6484 = vst [vmem:[%s6358] ss:$4 sm:$0xff] %v6341
      %6485 = vst [vmem:[%s6360] ss:$4 sm:$0xff] %v6342
      %6486 = vst [vmem:[%s6362] ss:$4 sm:$0xff] %v6343
      %6487 = vst [vmem:[%s6364] ss:$4 sm:$0xff] %v6344
      %6488 = vst [vmem:[%s6366] ss:$4 sm:$0xff] %v6345
      %6489 = vst [vmem:[%s6368] ss:$4 sm:$0xff] %v6346
      %v6490 = vld.sshfl [vmem:[#allocation1] sm:$0xff pattern:$0x73625140]
      %v6491 = vld.sshfl [vmem:[#allocation1 + $0x20] sm:$0xff pattern:$0x73625140]
      %6492 = vst [vmem:[#allocation1] ss:$4 sm:$0xff] %v6339
      %6493 = vst [vmem:[%s6356] ss:$4 sm:$0xff] %v6340
      %6494 = vst [vmem:[%s6358] ss:$4 sm:$0xff] %v6341
      %6495 = vst [vmem:[%s6360] ss:$4 sm:$0xff] %v6342
      %6496 = vst [vmem:[%s6362] ss:$4 sm:$0xff] %v6343
      %6497 = vst [vmem:[%s6364] ss:$4 sm:$0xff] %v6344
      %6498 = vst [vmem:[%s6366] ss:$4 sm:$0xff] %v6345
      %6499 = vst [vmem:[%s6368] ss:$4 sm:$0xff] %v6346
      %v6500 = vld.sshfl [vmem:[#allocation1] sm:$0xff pattern:$0x73625140]
      %v6501 = vld.sshfl [vmem:[#allocation1 + $0x20] sm:$0xff pattern:$0x73625140]
      %6502 = vst [vmem:[#allocation1] ss:$4 sm:$0xff] %v6347
      %6503 = vst [vmem:[%s6356] ss:$4 sm:$0xff] %v6348
      %6504 = vst [vmem:[%s6358] ss:$4 sm:$0xff] %v6349
      %6505 = vst [vmem:[%s6360] ss:$4 sm:$0xff] %v6350
      %6506 = vst [vmem:[%s6362] ss:$4 sm:$0xff] %v6351
      %6507 = vst [vmem:[%s6364] ss:$4 sm:$0xff] %v6352
      %6508 = vst [vmem:[%s6366] ss:$4 sm:$0xff] %v6353
      %6509 = vst [vmem:[%s6368] ss:$4 sm:$0xff] %v6354
      %v6510 = vld.sshfl [vmem:[#allocation1] sm:$0xff pattern:$0x73625140]
      %v6511 = vld.sshfl [vmem:[#allocation1 + $0x20] sm:$0xff pattern:$0x73625140]
      %6512 = vst [vmem:[#allocation1] ss:$4 sm:$0xff] %v6347
      %6513 = vst [vmem:[%s6356] ss:$4 sm:$0xff] %v6348
      %6514 = vst [vmem:[%s6358] ss:$4 sm:$0xff] %v6349
      %6515 = vst [vmem:[%s6360] ss:$4 sm:$0xff] %v6350
      %6516 = vst [vmem:[%s6362] ss:$4 sm:$0xff] %v6351
      %6517 = vst [vmem:[%s6364] ss:$4 sm:$0xff] %v6352
      %6518 = vst [vmem:[%s6366] ss:$4 sm:$0xff] %v6353
      %6519 = vst [vmem:[%s6368] ss:$4 sm:$0xff] %v6354
      %v6520 = vld.sshfl [vmem:[#allocation1] sm:$0xff pattern:$0x73625140]
      %v6521 = vld.sshfl [vmem:[#allocation1 + $0x20] sm:$0xff pattern:$0x73625140]
      %v6554 = vadd.f32 %v2102, %v6370
      %v6555 = vadd.f32 %v2103, %v6371
      %v6556 = vadd.f32 %v2104, %v6380
      %v6557 = vadd.f32 %v2105, %v6381
      %v6558 = vadd.f32 %v2106, %v6390
      %v6559 = vadd.f32 %v2107, %v6391
      %v6560 = vadd.f32 %v2108, %v6400
      %v6561 = vadd.f32 %v2109, %v6401
      %v6562 = vadd.f32 %v2110, %v6410
      %v6563 = vadd.f32 %v2111, %v6411
      %v6564 = vadd.f32 %v2112, %v6420
      %v6565 = vadd.f32 %v2113, %v6421
      %v6566 = vadd.f32 %v2114, %v6430
      %v6567 = vadd.f32 %v2115, %v6431
      %v6568 = vadd.f32 %v2116, %v6440
      %v6569 = vadd.f32 %v2117, %v6441
      %v6570 = vadd.f32 %v2118, %v6450
      %v6571 = vadd.f32 %v2119, %v6451
      %v6572 = vadd.f32 %v2120, %v6460
      %v6573 = vadd.f32 %v2121, %v6461
      %v6574 = vadd.f32 %v2122, %v6470
      %v6575 = vadd.f32 %v2123, %v6471
      %v6576 = vadd.f32 %v2124, %v6480
      %v6577 = vadd.f32 %v2125, %v6481
      %v6578 = vadd.f32 %v2126, %v6490
      %v6579 = vadd.f32 %v2127, %v6491
      %v6580 = vadd.f32 %v2128, %v6500
      %v6581 = vadd.f32 %v2129, %v6501
      %v6582 = vadd.f32 %v2130, %v6510
      %v6583 = vadd.f32 %v2131, %v6511
      %v6584 = vadd.f32 %v2132, %v6520
      %v6585 = vadd.f32 %v2133, %v6521
      %6586 = vst.msk [vmem:[%s332] sm:$0xff] %vm469, %v6554
      %6587 = vst.msk [vmem:[%s332 + $0x8] sm:$0xff] %vm469, %v6555
      %6588 = vst.msk [vmem:[%s332 + $0x10] sm:$0xff] %vm469, %v6556
      %6589 = vst.msk [vmem:[%s332 + $0x18] sm:$0xff] %vm469, %v6557
      %6590 = vst.msk [vmem:[%s332 + $0x20] sm:$0xff] %vm469, %v6558
      %6591 = vst.msk [vmem:[%s332 + $0x28] sm:$0xff] %vm469, %v6559
      %6592 = vst.msk [vmem:[%s332 + $0x30] sm:$0xff] %vm469, %v6560
      %6593 = vst.msk [vmem:[%s332 + $0x38] sm:$0xff] %vm469, %v6561
      %6594 = vst.msk [vmem:[%s332 + $0x40] sm:$0xff] %vm469, %v6562
      %6595 = vst.msk [vmem:[%s332 + $0x48] sm:$0xff] %vm469, %v6563
      %6596 = vst.msk [vmem:[%s332 + $0x50] sm:$0xff] %vm469, %v6564
      %6597 = vst.msk [vmem:[%s332 + $0x58] sm:$0xff] %vm469, %v6565
      %6598 = vst.msk [vmem:[%s332 + $0x60] sm:$0xff] %vm469, %v6566
      %6599 = vst.msk [vmem:[%s332 + $0x68] sm:$0xff] %vm469, %v6567
      %6600 = vst.msk [vmem:[%s332 + $0x70] sm:$0xff] %vm469, %v6568
      %6601 = vst.msk [vmem:[%s332 + $0x78] sm:$0xff] %vm469, %v6569
      %6602 = vst.msk [vmem:[%s332 + $0x80] sm:$0xff] %vm469, %v6570
      %6603 = vst.msk [vmem:[%s332 + $0x88] sm:$0xff] %vm469, %v6571
      %6604 = vst.msk [vmem:[%s332 + $0x90] sm:$0xff] %vm469, %v6572
      %6605 = vst.msk [vmem:[%s332 + $0x98] sm:$0xff] %vm469, %v6573
      %6606 = vst.msk [vmem:[%s332 + $0xa0] sm:$0xff] %vm469, %v6574
      %6607 = vst.msk [vmem:[%s332 + $0xa8] sm:$0xff] %vm469, %v6575
      %6608 = vst.msk [vmem:[%s332 + $0xb0] sm:$0xff] %vm469, %v6576
      %6609 = vst.msk [vmem:[%s332 + $0xb8] sm:$0xff] %vm469, %v6577
      %6610 = vst.msk [vmem:[%s332 + $0xc0] sm:$0xff] %vm469, %v6578
      %6611 = vst.msk [vmem:[%s332 + $0xc8] sm:$0xff] %vm469, %v6579
      %6612 = vst.msk [vmem:[%s332 + $0xd0] sm:$0xff] %vm469, %v6580
      %6613 = vst.msk [vmem:[%s332 + $0xd8] sm:$0xff] %vm469, %v6581
      %6614 = vst.msk [vmem:[%s332 + $0xe0] sm:$0xff] %vm469, %v6582
      %6615 = vst.msk [vmem:[%s332 + $0xe8] sm:$0xff] %vm469, %v6583
      %6616 = vst.msk [vmem:[%s332 + $0xf0] sm:$0xff] %vm469, %v6584
      %6617 = vst.msk [vmem:[%s332 + $0xf8] sm:$0xff] %vm469, %v6585
      %p6618 = scmp.lt.s32.totalorder %s20, 1
      %s6619 = scalar_select %p6618, %s20, 1
      %s6620 = smul.addr %s6619, 32
      %s6621 = smul.addr %s6620, 8
      %s6622 = scalar_lea.vmem %s9, %s6621
      // Predicated region
      $region57: #{_lambda_.1} parent=55 // pred_check
        %p6623 = pneg %p232
      $region58: #{_lambda_.1} parent=55 // pred_check_branch
        %6625 = sbr.rel (%p6623) target = $region60
      $region59: #{_lambda_.1} parent=55 // pred_region
        _
      $region60: #{_lambda_.1} parent=55 // pred_fallthru
        _
    $region56: #{_lambda_.1} parent=5 // pred_fallthru
      _
    %p6626 = scmp.le.s32.totalorder 2, %s15
    // Predicated region
    $region61: #{_lambda_.1} parent=5 // pred_check
      %p6627 = pneg %p6626
    $region62: #{_lambda_.1} parent=5 // pred_check_branch
      %6629 = sbr.rel (%p6627) target = $region64
    $region63: #{_lambda_.1} parent=5 // pred_region
      %s6630 = ssub.s32 %s15, 2
      // Predicated region
      $region65: #{_lambda_.1} parent=63 // pred_check
        %p6631 = pneg %p238
      $region66: #{_lambda_.1} parent=63 // pred_check_branch
        %6633 = sbr.rel (%p6631) target = $region68
      $region67: #{_lambda_.1} parent=63 // pred_region
        %p6634 = scmp.lt.s32.totalorder %s21, 1
        %s6635 = scalar_select %p6634, %s21, 1
        %s6636 = smul.addr %s6635, 32
        %s6637 = smul.addr %s6636, 8
        %s6638 = scalar_lea.vmem %s9, %s6637
      $region68: #{_lambda_.1} parent=63 // pred_fallthru
        _
    $region64: #{_lambda_.1} parent=5 // pred_fallthru
      _
  $region6: #{_lambda_.1} parent=0 // loop_footer
    %s19 = sadd.s32 1, %s15
  $region7: #{_lambda_.1} parent=0 // loop_footer_branch
    %14 = sbr.rel target = $region3
  $region8: #{_lambda_.1} parent=0 // loop_exit
    _

</llo_original>
